<compile_context>
chip_gen: v6e
topology: v6e:2x2x1
jax: 0.10.0
libtpu: 0.0.40
codegen_flags: <defaults>
</compile_context>

<pallas_src>
import jax
import jax.numpy as jnp
from jax.experimental import pallas as pl
from jax.experimental.pallas import tpu as pltpu

BN_EPS = 1e-5
LEAKY_SLOPE = 0.01


def _make_kernel(splits, Cout, KH, KW, H, W, negative_slope):
    """Fused concat + ConvTranspose2d + BatchNorm2d + LeakyReLU kernel body."""
    Cin = sum(splits)
    Ho = H + KH - 1
    Wo = W + KW - 1
    n_in = len(splits)

    def kernel(*refs):
        x_refs = refs[:n_in]          # each (N, Ci, H, W) in VMEM, native dtype
        wf_ref = refs[n_in]           # (Cout*Cin*KH*KW,) f32 in SMEM (pre-flipped)
        g_ref = refs[n_in + 1]        # (Cout,) BN gamma in SMEM
        bt_ref = refs[n_in + 2]       # (Cout,) BN beta in SMEM
        o_ref = refs[n_in + 3]        # (N, Cout, Ho, Wo) in VMEM
        xp = refs[n_in + 4]           # (N, Cin, H+2(KH-1), W+2(KW-1)) VMEM scratch

        N = o_ref.shape[0]

        # ---- zero fill + channel concat: ONE block write per input ----------
        # Dense zero is cheaper in store ops than halo-only zeroing here (see
        # header); the interior re-write is a handful of wide stores.
        xp[...] = jnp.zeros(xp.shape, xp.dtype)
        c0 = 0
        for x_ref, cn in zip(x_refs, splits):
            xp[:, c0:c0 + cn, KH - 1:KH - 1 + H, KW - 1:KW - 1 + W] = (
                x_ref[...].astype(xp.dtype))
            c0 += cn

        # ---- ConvTranspose2d (stride=1, padding=0) as VPU broadcast-FMAs ----
        # out[n,co,y,x] = sum_{ci,m,l} xp[n,ci,y+m,x+l] * W[ci,co,KH-1-m,KW-1-l]
        # (conv bias omitted: exactly cancelled by training-mode BN mean sub.)
        inv_cnt = 1.0 / float(N * Ho * Wo)
        for co in range(Cout):                       # co outermost: 1 live acc
            acc = jnp.zeros((N, Ho, Wo), jnp.float32)
            for ci in range(Cin):
                for l in range(KW):
                    # one lane-shifted slab per (ci,l), reused over all KH rows
                    colslab = xp[:, ci, :, l:l + Wo].astype(jnp.float32)  # (N,Hp,Wo)
                    for m in range(KH):
                        w = wf_ref[co * (Cin * KH * KW) + (ci * KH + m) * KW + l]
                        acc = acc + w * colslab[:, m:m + Ho, :]

            # ---- BatchNorm2d (batch stats, two-pass) + affine + LeakyReLU ---
            mean = jnp.sum(acc) * inv_cnt
            d = acc - mean
            var = jnp.sum(d * d) * inv_cnt           # biased, centered (stable)
            scale = jax.lax.rsqrt(var + BN_EPS) * g_ref[co]
            y = d * scale + bt_ref[co]
            y = jnp.where(y >= 0, y, negative_slope * y)   # LeakyReLU(0.01)
            # store this channel now -> overlaps next channel's FMAs
            o_ref[:, co, :, :] = y.astype(o_ref.dtype)

    return kernel


def concat_deconv_bn_lrelu(xs, W, b, gamma, beta, *, negative_slope=LEAKY_SLOPE):
    """xs: list of (N, Ci, H, W) arrays (concatenated on the channel axis).
    W: (Cin, Cout, KH, KW) PyTorch ConvTranspose2d weight layout. b: (Cout,).
    gamma/beta: (Cout,) BatchNorm2d affine parameters."""
    del b  # exactly cancelled by BatchNorm's (training-mode) mean subtraction
    N, _, H, Wsp = xs[0].shape
    splits = tuple(int(x.shape[1]) for x in xs)
    Cin = sum(splits)
    assert int(W.shape[0]) == Cin
    Cout, KH, KW = int(W.shape[1]), int(W.shape[2]), int(W.shape[3])
    H_out, W_out = H + KH - 1, Wsp + KW - 1
    Hp, Wp = H + 2 * (KH - 1), Wsp + 2 * (KW - 1)

    # Effective full-correlation weights: Wf[co,ci,m,l] = W[ci,co,KH-1-m,KW-1-l]
    wf = jnp.transpose(W[:, :, ::-1, ::-1], (1, 0, 2, 3)).astype(jnp.float32)
    wf_flat = wf.reshape(-1)   # compact 1-D layout for SMEM

    scratch_dtype = jnp.result_type(*[x.dtype for x in xs])  # bf16 stays bf16
    out_dtype = xs[0].dtype

    kernel = _make_kernel(splits, Cout, KH, KW, H, Wsp, negative_slope)

    in_specs = (
        [pl.BlockSpec((N, cn, H, Wsp), lambda i: (0, 0, 0, 0)) for cn in splits]
        + [pl.BlockSpec(memory_space=pltpu.MemorySpace.SMEM)] * 3
    )

    # ---- VMEM budget guard (matters on v7x: 64 MiB / 32 MiB scoped) ---------
    vmem_limit = 32 * 1024 * 1024
    vmem_need = (
        2 * sum(int(x.size) * jnp.dtype(x.dtype).itemsize for x in xs)      # dbl-buffered inputs
        + 2 * N * Cout * H_out * W_out * jnp.dtype(out_dtype).itemsize      # dbl-buffered output
        + N * Cin * Hp * Wp * jnp.dtype(scratch_dtype).itemsize)            # padded scratch
    # TODO(synk): fall back to H-tiling + two-phase BN when this trips at
    # production du_net feature-map sizes.
    assert vmem_need < vmem_limit // 2, (
        f"working set {vmem_need}B too large for untiled whole-batch kernel")

    flops = (2 * N * Cout * Cin * KH * KW * H_out * W_out
             + 10 * N * Cout * H_out * W_out)
    bytes_accessed = (
        sum(int(x.size) * jnp.dtype(x.dtype).itemsize for x in xs)
        + int(wf_flat.size) * 4 + int(gamma.size) * 4 + int(beta.size) * 4
        + N * Cout * H_out * W_out * jnp.dtype(out_dtype).itemsize)

    return pl.pallas_call(
        kernel,
        out_shape=jax.ShapeDtypeStruct((N, Cout, H_out, W_out), out_dtype),
        grid=(1,),  # one fat step: BN couples the batch; work is microsecond-scale
        in_specs=in_specs,
        out_specs=pl.BlockSpec((N, Cout, H_out, W_out), lambda i: (0, 0, 0, 0)),
        scratch_shapes=[pltpu.VMEM((N, Cin, Hp, Wp), scratch_dtype)],
        compiler_params=pltpu.CompilerParams(
            dimension_semantics=("arbitrary",),
            vmem_limit_bytes=vmem_limit),
        cost_estimate=pl.CostEstimate(
            flops=flops, transcendentals=Cout, bytes_accessed=bytes_accessed),
    )(*xs, wf_flat, gamma.astype(jnp.float32), beta.astype(jnp.float32))


def reference(xs, W, b, gamma, beta, negative_slope=LEAKY_SLOPE):
    """Pure-JAX reference with identical semantics (includes the conv bias)."""
    x = jnp.concatenate([a.astype(jnp.float32) for a in xs], axis=1)  # (N,Cin,H,W)
    N, Cin, H, Wsp = x.shape
    Cout, KH, KW = W.shape[1], W.shape[2], W.shape[3]
    Ho, Wo = H + KH - 1, Wsp + KW - 1
    out = jnp.zeros((N, Cout, Ho, Wo), jnp.float32)
    for ky in range(KH):
        for kx in range(KW):
            contrib = jnp.einsum("ncij,co->noij", x, W[:, :, ky, kx])
            out = out.at[:, :, ky:ky + H, kx:kx + Wsp].add(contrib)
    out = out + b[None, :, None, None]                    # conv bias
    mean = jnp.mean(out, axis=(0, 2, 3), keepdims=True)   # training-mode batch stats
    var = jnp.mean((out - mean) ** 2, axis=(0, 2, 3), keepdims=True)
    y = (out - mean) / jnp.sqrt(var + BN_EPS)
    y = y * gamma[None, :, None, None] + beta[None, :, None, None]
    return jnp.where(y >= 0, y, negative_slope * y)       # LeakyReLU


if __name__ == "__main__":
    key = jax.random.PRNGKey(0)
    k1, k2, k3, k4, k5, k6 = jax.random.split(key, 6)

    N = 2
    C_each = 2            # two inputs of 2 channels each -> Cin = 4 after concat
    Cin = 2 * C_each
    Cout = 4
    KH = KW = 3
    H = Wsp = 16          # -> output spatial 18 x 18

    x1 = jax.random.normal(k1, (N, C_each, H, Wsp), jnp.float32)
    x2 = jax.random.normal(k2, (N, C_each, H, Wsp), jnp.float32)
    W = 0.1 * jax.random.normal(k3, (Cin, Cout, KH, KW), jnp.float32)   # deconv weight
    b = 0.1 * jax.random.normal(k4, (Cout,), jnp.float32)               # deconv bias
    gamma = 1.0 + 0.1 * jax.random.normal(k5, (Cout,), jnp.float32)     # BN weight
    beta = 0.1 * jax.random.normal(k6, (Cout,), jnp.float32)            # BN bias

    out = concat_deconv_bn_lrelu([x1, x2], W, b, gamma, beta)
    out = jax.block_until_ready(out)

    ref = reference([x1, x2], W, b, gamma, beta)
    assert out.shape == (N, Cout, H + KH - 1, Wsp + KW - 1), out.shape
    max_err = float(jnp.max(jnp.abs(out - ref)))
    assert max_err < 1e-4, f"max abs error too large: {max_err}"

    print("KERNEL_OK")
</pallas_src>

<mosaic_0001>
module attributes {stable_mosaic.version = 11 : i64} {
  func.func @kernel(%arg0: i32, %arg1: memref<2x2x16x16xf32, #tpu.memory_space<vmem>>, %arg2: memref<2x2x16x16xf32, #tpu.memory_space<vmem>>, %arg3: memref<144xf32, #tpu.memory_space<smem>>, %arg4: memref<4xf32, #tpu.memory_space<smem>>, %arg5: memref<4xf32, #tpu.memory_space<smem>>, %arg6: memref<2x4x18x18xf32, #tpu.memory_space<vmem>>, %arg7: memref<2x4x20x20xf32, #tpu.memory_space<vmem>>) attributes {dimension_semantics = [#tpu.dimension_semantics<arbitrary>], iteration_bounds = array<i64: 1>, scalar_prefetch = 0 : i64, scratch_operands = 1 : i64, tpu.core_type = #tpu.core_type<tc>, window_params = [{pipeline_mode = #tpu.pipeline_mode<synchronous>, transform_indices = @transform_0, window_bounds = array<i64: 2, 2, 16, 16>}, {pipeline_mode = #tpu.pipeline_mode<synchronous>, transform_indices = @transform_1, window_bounds = array<i64: 2, 2, 16, 16>}, {transform_indices = @transform_2, window_bounds = array<i64: 144>}, {transform_indices = @transform_3, window_bounds = array<i64: 4>}, {transform_indices = @transform_4, window_bounds = array<i64: 4>}, {pipeline_mode = #tpu.pipeline_mode<synchronous>, transform_indices = @transform_5, window_bounds = array<i64: 2, 4, 18, 18>}]} {
    %cst = arith.constant 0.000000e+00 : f32
    %0 = vector.broadcast %cst : f32 to vector<2x4x20x20xf32>
    %c0 = arith.constant 0 : index
    %c0_0 = arith.constant 0 : index
    %c0_1 = arith.constant 0 : index
    %c0_2 = arith.constant 0 : index
    %1 = vector.load %arg7[%c0, %c0_0, %c0_1, %c0_2] : memref<2x4x20x20xf32, #tpu.memory_space<vmem>>, vector<2x4x20x20xf32>
    tpu.vector_store %arg7[%c0, %c0_0, %c0_1, %c0_2], %0 {strides = array<i32>} : memref<2x4x20x20xf32, #tpu.memory_space<vmem>>, vector<2x4x20x20xf32>,
    %c0_3 = arith.constant 0 : index
    %c0_4 = arith.constant 0 : index
    %c0_5 = arith.constant 0 : index
    %c0_6 = arith.constant 0 : index
    %2 = vector.load %arg1[%c0_3, %c0_4, %c0_5, %c0_6] : memref<2x2x16x16xf32, #tpu.memory_space<vmem>>, vector<2x2x16x16xf32>
    %c0_7 = arith.constant 0 : index
    %c0_8 = arith.constant 0 : index
    %c2 = arith.constant 2 : index
    %c2_9 = arith.constant 2 : index
    %3 = vector.load %arg7[%c0_7, %c0_8, %c2, %c2_9] : memref<2x4x20x20xf32, #tpu.memory_space<vmem>>, vector<2x2x16x16xf32>
    tpu.vector_store %arg7[%c0_7, %c0_8, %c2, %c2_9], %2 {strides = array<i32>} : memref<2x4x20x20xf32, #tpu.memory_space<vmem>>, vector<2x2x16x16xf32>,
    %c0_10 = arith.constant 0 : index
    %c0_11 = arith.constant 0 : index
    %c0_12 = arith.constant 0 : index
    %c0_13 = arith.constant 0 : index
    %4 = vector.load %arg2[%c0_10, %c0_11, %c0_12, %c0_13] : memref<2x2x16x16xf32, #tpu.memory_space<vmem>>, vector<2x2x16x16xf32>
    %c0_14 = arith.constant 0 : index
    %c2_15 = arith.constant 2 : index
    %c2_16 = arith.constant 2 : index
    %c2_17 = arith.constant 2 : index
    %5 = vector.load %arg7[%c0_14, %c2_15, %c2_16, %c2_17] : memref<2x4x20x20xf32, #tpu.memory_space<vmem>>, vector<2x2x16x16xf32>
    tpu.vector_store %arg7[%c0_14, %c2_15, %c2_16, %c2_17], %4 {strides = array<i32>} : memref<2x4x20x20xf32, #tpu.memory_space<vmem>>, vector<2x2x16x16xf32>,
    %cst_18 = arith.constant 0.000000e+00 : f32
    %6 = vector.broadcast %cst_18 : f32 to vector<2x18x18xf32>
    %c0_19 = arith.constant 0 : index
    %c0_20 = arith.constant 0 : index
    %c0_21 = arith.constant 0 : index
    %c0_22 = arith.constant 0 : index
    %7 = vector.load %arg7[%c0_19, %c0_20, %c0_21, %c0_22] : memref<2x4x20x20xf32, #tpu.memory_space<vmem>>, vector<2x1x20x18xf32>
    %8 = vector.shape_cast %7 : vector<2x1x20x18xf32> to vector<2x20x18xf32>
    %c0_23 = arith.constant 0 : index
    %9 = memref.load %arg3[%c0_23] : memref<144xf32, #tpu.memory_space<smem>>
    %10 = vector.extract_strided_slice %8 {offsets = [0, 0, 0], sizes = [2, 18, 18], strides = [1, 1, 1]} : vector<2x20x18xf32> to vector<2x18x18xf32>
    %11 = vector.broadcast %9 : f32 to vector<2x18x18xf32>
    %12 = arith.mulf %11, %10 : vector<2x18x18xf32>
    %13 = arith.addf %6, %12 : vector<2x18x18xf32>
    %c3 = arith.constant 3 : index
    %14 = memref.load %arg3[%c3] : memref<144xf32, #tpu.memory_space<smem>>
    %15 = vector.extract_strided_slice %8 {offsets = [0, 1, 0], sizes = [2, 18, 18], strides = [1, 1, 1]} : vector<2x20x18xf32> to vector<2x18x18xf32>
    %16 = vector.broadcast %14 : f32 to vector<2x18x18xf32>
    %17 = arith.mulf %16, %15 : vector<2x18x18xf32>
    %18 = arith.addf %13, %17 : vector<2x18x18xf32>
    %c6 = arith.constant 6 : index
    %19 = memref.load %arg3[%c6] : memref<144xf32, #tpu.memory_space<smem>>
    %20 = vector.extract_strided_slice %8 {offsets = [0, 2, 0], sizes = [2, 18, 18], strides = [1, 1, 1]} : vector<2x20x18xf32> to vector<2x18x18xf32>
    %21 = vector.broadcast %19 : f32 to vector<2x18x18xf32>
    %22 = arith.mulf %21, %20 : vector<2x18x18xf32>
    %23 = arith.addf %18, %22 : vector<2x18x18xf32>
    %c0_24 = arith.constant 0 : index
    %c0_25 = arith.constant 0 : index
    %c0_26 = arith.constant 0 : index
    %c1 = arith.constant 1 : index
    %24 = vector.load %arg7[%c0_24, %c0_25, %c0_26, %c1] : memref<2x4x20x20xf32, #tpu.memory_space<vmem>>, vector<2x1x20x18xf32>
    %25 = vector.shape_cast %24 : vector<2x1x20x18xf32> to vector<2x20x18xf32>
    %c1_27 = arith.constant 1 : index
    %26 = memref.load %arg3[%c1_27] : memref<144xf32, #tpu.memory_space<smem>>
    %27 = vector.extract_strided_slice %25 {offsets = [0, 0, 0], sizes = [2, 18, 18], strides = [1, 1, 1]} : vector<2x20x18xf32> to vector<2x18x18xf32>
    %28 = vector.broadcast %26 : f32 to vector<2x18x18xf32>
    %29 = arith.mulf %28, %27 : vector<2x18x18xf32>
    %30 = arith.addf %23, %29 : vector<2x18x18xf32>
    %c4 = arith.constant 4 : index
    %31 = memref.load %arg3[%c4] : memref<144xf32, #tpu.memory_space<smem>>
    %32 = vector.extract_strided_slice %25 {offsets = [0, 1, 0], sizes = [2, 18, 18], strides = [1, 1, 1]} : vector<2x20x18xf32> to vector<2x18x18xf32>
    %33 = vector.broadcast %31 : f32 to vector<2x18x18xf32>
    %34 = arith.mulf %33, %32 : vector<2x18x18xf32>
    %35 = arith.addf %30, %34 : vector<2x18x18xf32>
    %c7 = arith.constant 7 : index
    %36 = memref.load %arg3[%c7] : memref<144xf32, #tpu.memory_space<smem>>
    %37 = vector.extract_strided_slice %25 {offsets = [0, 2, 0], sizes = [2, 18, 18], strides = [1, 1, 1]} : vector<2x20x18xf32> to vector<2x18x18xf32>
    %38 = vector.broadcast %36 : f32 to vector<2x18x18xf32>
    %39 = arith.mulf %38, %37 : vector<2x18x18xf32>
    %40 = arith.addf %35, %39 : vector<2x18x18xf32>
    %c0_28 = arith.constant 0 : index
    %c0_29 = arith.constant 0 : index
    %c0_30 = arith.constant 0 : index
    %c2_31 = arith.constant 2 : index
    %41 = vector.load %arg7[%c0_28, %c0_29, %c0_30, %c2_31] : memref<2x4x20x20xf32, #tpu.memory_space<vmem>>, vector<2x1x20x18xf32>
    %42 = vector.shape_cast %41 : vector<2x1x20x18xf32> to vector<2x20x18xf32>
    %c2_32 = arith.constant 2 : index
    %43 = memref.load %arg3[%c2_32] : memref<144xf32, #tpu.memory_space<smem>>
    %44 = vector.extract_strided_slice %42 {offsets = [0, 0, 0], sizes = [2, 18, 18], strides = [1, 1, 1]} : vector<2x20x18xf32> to vector<2x18x18xf32>
    %45 = vector.broadcast %43 : f32 to vector<2x18x18xf32>
    %46 = arith.mulf %45, %44 : vector<2x18x18xf32>
    %47 = arith.addf %40, %46 : vector<2x18x18xf32>
    %c5 = arith.constant 5 : index
    %48 = memref.load %arg3[%c5] : memref<144xf32, #tpu.memory_space<smem>>
    %49 = vector.extract_strided_slice %42 {offsets = [0, 1, 0], sizes = [2, 18, 18], strides = [1, 1, 1]} : vector<2x20x18xf32> to vector<2x18x18xf32>
    %50 = vector.broadcast %48 : f32 to vector<2x18x18xf32>
    %51 = arith.mulf %50, %49 : vector<2x18x18xf32>
    %52 = arith.addf %47, %51 : vector<2x18x18xf32>
    %c8 = arith.constant 8 : index
    %53 = memref.load %arg3[%c8] : memref<144xf32, #tpu.memory_space<smem>>
    %54 = vector.extract_strided_slice %42 {offsets = [0, 2, 0], sizes = [2, 18, 18], strides = [1, 1, 1]} : vector<2x20x18xf32> to vector<2x18x18xf32>
    %55 = vector.broadcast %53 : f32 to vector<2x18x18xf32>
    %56 = arith.mulf %55, %54 : vector<2x18x18xf32>
    %57 = arith.addf %52, %56 : vector<2x18x18xf32>
    %c0_33 = arith.constant 0 : index
    %c1_34 = arith.constant 1 : index
    %c0_35 = arith.constant 0 : index
    %c0_36 = arith.constant 0 : index
    %58 = vector.load %arg7[%c0_33, %c1_34, %c0_35, %c0_36] : memref<2x4x20x20xf32, #tpu.memory_space<vmem>>, vector<2x1x20x18xf32>
    %59 = vector.shape_cast %58 : vector<2x1x20x18xf32> to vector<2x20x18xf32>
    %c9 = arith.constant 9 : index
    %60 = memref.load %arg3[%c9] : memref<144xf32, #tpu.memory_space<smem>>
    %61 = vector.extract_strided_slice %59 {offsets = [0, 0, 0], sizes = [2, 18, 18], strides = [1, 1, 1]} : vector<2x20x18xf32> to vector<2x18x18xf32>
    %62 = vector.broadcast %60 : f32 to vector<2x18x18xf32>
    %63 = arith.mulf %62, %61 : vector<2x18x18xf32>
    %64 = arith.addf %57, %63 : vector<2x18x18xf32>
    %c12 = arith.constant 12 : index
    %65 = memref.load %arg3[%c12] : memref<144xf32, #tpu.memory_space<smem>>
    %66 = vector.extract_strided_slice %59 {offsets = [0, 1, 0], sizes = [2, 18, 18], strides = [1, 1, 1]} : vector<2x20x18xf32> to vector<2x18x18xf32>
    %67 = vector.broadcast %65 : f32 to vector<2x18x18xf32>
    %68 = arith.mulf %67, %66 : vector<2x18x18xf32>
    %69 = arith.addf %64, %68 : vector<2x18x18xf32>
    %c15 = arith.constant 15 : index
    %70 = memref.load %arg3[%c15] : memref<144xf32, #tpu.memory_space<smem>>
    %71 = vector.extract_strided_slice %59 {offsets = [0, 2, 0], sizes = [2, 18, 18], strides = [1, 1, 1]} : vector<2x20x18xf32> to vector<2x18x18xf32>
    %72 = vector.broadcast %70 : f32 to vector<2x18x18xf32>
    %73 = arith.mulf %72, %71 : vector<2x18x18xf32>
    %74 = arith.addf %69, %73 : vector<2x18x18xf32>
    %c0_37 = arith.constant 0 : index
    %c1_38 = arith.constant 1 : index
    %c0_39 = arith.constant 0 : index
    %c1_40 = arith.constant 1 : index
    %75 = vector.load %arg7[%c0_37, %c1_38, %c0_39, %c1_40] : memref<2x4x20x20xf32, #tpu.memory_space<vmem>>, vector<2x1x20x18xf32>
    %76 = vector.shape_cast %75 : vector<2x1x20x18xf32> to vector<2x20x18xf32>
    %c10 = arith.constant 10 : index
    %77 = memref.load %arg3[%c10] : memref<144xf32, #tpu.memory_space<smem>>
    %78 = vector.extract_strided_slice %76 {offsets = [0, 0, 0], sizes = [2, 18, 18], strides = [1, 1, 1]} : vector<2x20x18xf32> to vector<2x18x18xf32>
    %79 = vector.broadcast %77 : f32 to vector<2x18x18xf32>
    %80 = arith.mulf %79, %78 : vector<2x18x18xf32>
    %81 = arith.addf %74, %80 : vector<2x18x18xf32>
    %c13 = arith.constant 13 : index
    %82 = memref.load %arg3[%c13] : memref<144xf32, #tpu.memory_space<smem>>
    %83 = vector.extract_strided_slice %76 {offsets = [0, 1, 0], sizes = [2, 18, 18], strides = [1, 1, 1]} : vector<2x20x18xf32> to vector<2x18x18xf32>
    %84 = vector.broadcast %82 : f32 to vector<2x18x18xf32>
    %85 = arith.mulf %84, %83 : vector<2x18x18xf32>
    %86 = arith.addf %81, %85 : vector<2x18x18xf32>
    %c16 = arith.constant 16 : index
    %87 = memref.load %arg3[%c16] : memref<144xf32, #tpu.memory_space<smem>>
    %88 = vector.extract_strided_slice %76 {offsets = [0, 2, 0], sizes = [2, 18, 18], strides = [1, 1, 1]} : vector<2x20x18xf32> to vector<2x18x18xf32>
    %89 = vector.broadcast %87 : f32 to vector<2x18x18xf32>
    %90 = arith.mulf %89, %88 : vector<2x18x18xf32>
    %91 = arith.addf %86, %90 : vector<2x18x18xf32>
    %c0_41 = arith.constant 0 : index
    %c1_42 = arith.constant 1 : index
    %c0_43 = arith.constant 0 : index
    %c2_44 = arith.constant 2 : index
    %92 = vector.load %arg7[%c0_41, %c1_42, %c0_43, %c2_44] : memref<2x4x20x20xf32, #tpu.memory_space<vmem>>, vector<2x1x20x18xf32>
    %93 = vector.shape_cast %92 : vector<2x1x20x18xf32> to vector<2x20x18xf32>
    %c11 = arith.constant 11 : index
    %94 = memref.load %arg3[%c11] : memref<144xf32, #tpu.memory_space<smem>>
    %95 = vector.extract_strided_slice %93 {offsets = [0, 0, 0], sizes = [2, 18, 18], strides = [1, 1, 1]} : vector<2x20x18xf32> to vector<2x18x18xf32>
    %96 = vector.broadcast %94 : f32 to vector<2x18x18xf32>
    %97 = arith.mulf %96, %95 : vector<2x18x18xf32>
    %98 = arith.addf %91, %97 : vector<2x18x18xf32>
    %c14 = arith.constant 14 : index
    %99 = memref.load %arg3[%c14] : memref<144xf32, #tpu.memory_space<smem>>
    %100 = vector.extract_strided_slice %93 {offsets = [0, 1, 0], sizes = [2, 18, 18], strides = [1, 1, 1]} : vector<2x20x18xf32> to vector<2x18x18xf32>
    %101 = vector.broadcast %99 : f32 to vector<2x18x18xf32>
    %102 = arith.mulf %101, %100 : vector<2x18x18xf32>
    %103 = arith.addf %98, %102 : vector<2x18x18xf32>
    %c17 = arith.constant 17 : index
    %104 = memref.load %arg3[%c17] : memref<144xf32, #tpu.memory_space<smem>>
    %105 = vector.extract_strided_slice %93 {offsets = [0, 2, 0], sizes = [2, 18, 18], strides = [1, 1, 1]} : vector<2x20x18xf32> to vector<2x18x18xf32>
    %106 = vector.broadcast %104 : f32 to vector<2x18x18xf32>
    %107 = arith.mulf %106, %105 : vector<2x18x18xf32>
    %108 = arith.addf %103, %107 : vector<2x18x18xf32>
    %c0_45 = arith.constant 0 : index
    %c2_46 = arith.constant 2 : index
    %c0_47 = arith.constant 0 : index
    %c0_48 = arith.constant 0 : index
    %109 = vector.load %arg7[%c0_45, %c2_46, %c0_47, %c0_48] : memref<2x4x20x20xf32, #tpu.memory_space<vmem>>, vector<2x1x20x18xf32>
    %110 = vector.shape_cast %109 : vector<2x1x20x18xf32> to vector<2x20x18xf32>
    %c18 = arith.constant 18 : index
    %111 = memref.load %arg3[%c18] : memref<144xf32, #tpu.memory_space<smem>>
    %112 = vector.extract_strided_slice %110 {offsets = [0, 0, 0], sizes = [2, 18, 18], strides = [1, 1, 1]} : vector<2x20x18xf32> to vector<2x18x18xf32>
    %113 = vector.broadcast %111 : f32 to vector<2x18x18xf32>
    %114 = arith.mulf %113, %112 : vector<2x18x18xf32>
    %115 = arith.addf %108, %114 : vector<2x18x18xf32>
    %c21 = arith.constant 21 : index
    %116 = memref.load %arg3[%c21] : memref<144xf32, #tpu.memory_space<smem>>
    %117 = vector.extract_strided_slice %110 {offsets = [0, 1, 0], sizes = [2, 18, 18], strides = [1, 1, 1]} : vector<2x20x18xf32> to vector<2x18x18xf32>
    %118 = vector.broadcast %116 : f32 to vector<2x18x18xf32>
    %119 = arith.mulf %118, %117 : vector<2x18x18xf32>
    %120 = arith.addf %115, %119 : vector<2x18x18xf32>
    %c24 = arith.constant 24 : index
    %121 = memref.load %arg3[%c24] : memref<144xf32, #tpu.memory_space<smem>>
    %122 = vector.extract_strided_slice %110 {offsets = [0, 2, 0], sizes = [2, 18, 18], strides = [1, 1, 1]} : vector<2x20x18xf32> to vector<2x18x18xf32>
    %123 = vector.broadcast %121 : f32 to vector<2x18x18xf32>
    %124 = arith.mulf %123, %122 : vector<2x18x18xf32>
    %125 = arith.addf %120, %124 : vector<2x18x18xf32>
    %c0_49 = arith.constant 0 : index
    %c2_50 = arith.constant 2 : index
    %c0_51 = arith.constant 0 : index
    %c1_52 = arith.constant 1 : index
    %126 = vector.load %arg7[%c0_49, %c2_50, %c0_51, %c1_52] : memref<2x4x20x20xf32, #tpu.memory_space<vmem>>, vector<2x1x20x18xf32>
    %127 = vector.shape_cast %126 : vector<2x1x20x18xf32> to vector<2x20x18xf32>
    %c19 = arith.constant 19 : index
    %128 = memref.load %arg3[%c19] : memref<144xf32, #tpu.memory_space<smem>>
    %129 = vector.extract_strided_slice %127 {offsets = [0, 0, 0], sizes = [2, 18, 18], strides = [1, 1, 1]} : vector<2x20x18xf32> to vector<2x18x18xf32>
    %130 = vector.broadcast %128 : f32 to vector<2x18x18xf32>
    %131 = arith.mulf %130, %129 : vector<2x18x18xf32>
    %132 = arith.addf %125, %131 : vector<2x18x18xf32>
    %c22 = arith.constant 22 : index
    %133 = memref.load %arg3[%c22] : memref<144xf32, #tpu.memory_space<smem>>
    %134 = vector.extract_strided_slice %127 {offsets = [0, 1, 0], sizes = [2, 18, 18], strides = [1, 1, 1]} : vector<2x20x18xf32> to vector<2x18x18xf32>
    %135 = vector.broadcast %133 : f32 to vector<2x18x18xf32>
    %136 = arith.mulf %135, %134 : vector<2x18x18xf32>
    %137 = arith.addf %132, %136 : vector<2x18x18xf32>
    %c25 = arith.constant 25 : index
    %138 = memref.load %arg3[%c25] : memref<144xf32, #tpu.memory_space<smem>>
    %139 = vector.extract_strided_slice %127 {offsets = [0, 2, 0], sizes = [2, 18, 18], strides = [1, 1, 1]} : vector<2x20x18xf32> to vector<2x18x18xf32>
    %140 = vector.broadcast %138 : f32 to vector<2x18x18xf32>
    %141 = arith.mulf %140, %139 : vector<2x18x18xf32>
    %142 = arith.addf %137, %141 : vector<2x18x18xf32>
    %c0_53 = arith.constant 0 : index
    %c2_54 = arith.constant 2 : index
    %c0_55 = arith.constant 0 : index
    %c2_56 = arith.constant 2 : index
    %143 = vector.load %arg7[%c0_53, %c2_54, %c0_55, %c2_56] : memref<2x4x20x20xf32, #tpu.memory_space<vmem>>, vector<2x1x20x18xf32>
    %144 = vector.shape_cast %143 : vector<2x1x20x18xf32> to vector<2x20x18xf32>
    %c20 = arith.constant 20 : index
    %145 = memref.load %arg3[%c20] : memref<144xf32, #tpu.memory_space<smem>>
    %146 = vector.extract_strided_slice %144 {offsets = [0, 0, 0], sizes = [2, 18, 18], strides = [1, 1, 1]} : vector<2x20x18xf32> to vector<2x18x18xf32>
    %147 = vector.broadcast %145 : f32 to vector<2x18x18xf32>
    %148 = arith.mulf %147, %146 : vector<2x18x18xf32>
    %149 = arith.addf %142, %148 : vector<2x18x18xf32>
    %c23 = arith.constant 23 : index
    %150 = memref.load %arg3[%c23] : memref<144xf32, #tpu.memory_space<smem>>
    %151 = vector.extract_strided_slice %144 {offsets = [0, 1, 0], sizes = [2, 18, 18], strides = [1, 1, 1]} : vector<2x20x18xf32> to vector<2x18x18xf32>
    %152 = vector.broadcast %150 : f32 to vector<2x18x18xf32>
    %153 = arith.mulf %152, %151 : vector<2x18x18xf32>
    %154 = arith.addf %149, %153 : vector<2x18x18xf32>
    %c26 = arith.constant 26 : index
    %155 = memref.load %arg3[%c26] : memref<144xf32, #tpu.memory_space<smem>>
    %156 = vector.extract_strided_slice %144 {offsets = [0, 2, 0], sizes = [2, 18, 18], strides = [1, 1, 1]} : vector<2x20x18xf32> to vector<2x18x18xf32>
    %157 = vector.broadcast %155 : f32 to vector<2x18x18xf32>
    %158 = arith.mulf %157, %156 : vector<2x18x18xf32>
    %159 = arith.addf %154, %158 : vector<2x18x18xf32>
    %c0_57 = arith.constant 0 : index
    %c3_58 = arith.constant 3 : index
    %c0_59 = arith.constant 0 : index
    %c0_60 = arith.constant 0 : index
    %160 = vector.load %arg7[%c0_57, %c3_58, %c0_59, %c0_60] : memref<2x4x20x20xf32, #tpu.memory_space<vmem>>, vector<2x1x20x18xf32>
    %161 = vector.shape_cast %160 : vector<2x1x20x18xf32> to vector<2x20x18xf32>
    %c27 = arith.constant 27 : index
    %162 = memref.load %arg3[%c27] : memref<144xf32, #tpu.memory_space<smem>>
    %163 = vector.extract_strided_slice %161 {offsets = [0, 0, 0], sizes = [2, 18, 18], strides = [1, 1, 1]} : vector<2x20x18xf32> to vector<2x18x18xf32>
    %164 = vector.broadcast %162 : f32 to vector<2x18x18xf32>
    %165 = arith.mulf %164, %163 : vector<2x18x18xf32>
    %166 = arith.addf %159, %165 : vector<2x18x18xf32>
    %c30 = arith.constant 30 : index
    %167 = memref.load %arg3[%c30] : memref<144xf32, #tpu.memory_space<smem>>
    %168 = vector.extract_strided_slice %161 {offsets = [0, 1, 0], sizes = [2, 18, 18], strides = [1, 1, 1]} : vector<2x20x18xf32> to vector<2x18x18xf32>
    %169 = vector.broadcast %167 : f32 to vector<2x18x18xf32>
    %170 = arith.mulf %169, %168 : vector<2x18x18xf32>
    %171 = arith.addf %166, %170 : vector<2x18x18xf32>
    %c33 = arith.constant 33 : index
    %172 = memref.load %arg3[%c33] : memref<144xf32, #tpu.memory_space<smem>>
    %173 = vector.extract_strided_slice %161 {offsets = [0, 2, 0], sizes = [2, 18, 18], strides = [1, 1, 1]} : vector<2x20x18xf32> to vector<2x18x18xf32>
    %174 = vector.broadcast %172 : f32 to vector<2x18x18xf32>
    %175 = arith.mulf %174, %173 : vector<2x18x18xf32>
    %176 = arith.addf %171, %175 : vector<2x18x18xf32>
    %c0_61 = arith.constant 0 : index
    %c3_62 = arith.constant 3 : index
    %c0_63 = arith.constant 0 : index
    %c1_64 = arith.constant 1 : index
    %177 = vector.load %arg7[%c0_61, %c3_62, %c0_63, %c1_64] : memref<2x4x20x20xf32, #tpu.memory_space<vmem>>, vector<2x1x20x18xf32>
    %178 = vector.shape_cast %177 : vector<2x1x20x18xf32> to vector<2x20x18xf32>
    %c28 = arith.constant 28 : index
    %179 = memref.load %arg3[%c28] : memref<144xf32, #tpu.memory_space<smem>>
    %180 = vector.extract_strided_slice %178 {offsets = [0, 0, 0], sizes = [2, 18, 18], strides = [1, 1, 1]} : vector<2x20x18xf32> to vector<2x18x18xf32>
    %181 = vector.broadcast %179 : f32 to vector<2x18x18xf32>
    %182 = arith.mulf %181, %180 : vector<2x18x18xf32>
    %183 = arith.addf %176, %182 : vector<2x18x18xf32>
    %c31 = arith.constant 31 : index
    %184 = memref.load %arg3[%c31] : memref<144xf32, #tpu.memory_space<smem>>
    %185 = vector.extract_strided_slice %178 {offsets = [0, 1, 0], sizes = [2, 18, 18], strides = [1, 1, 1]} : vector<2x20x18xf32> to vector<2x18x18xf32>
    %186 = vector.broadcast %184 : f32 to vector<2x18x18xf32>
    %187 = arith.mulf %186, %185 : vector<2x18x18xf32>
    %188 = arith.addf %183, %187 : vector<2x18x18xf32>
    %c34 = arith.constant 34 : index
    %189 = memref.load %arg3[%c34] : memref<144xf32, #tpu.memory_space<smem>>
    %190 = vector.extract_strided_slice %178 {offsets = [0, 2, 0], sizes = [2, 18, 18], strides = [1, 1, 1]} : vector<2x20x18xf32> to vector<2x18x18xf32>
    %191 = vector.broadcast %189 : f32 to vector<2x18x18xf32>
    %192 = arith.mulf %191, %190 : vector<2x18x18xf32>
    %193 = arith.addf %188, %192 : vector<2x18x18xf32>
    %c0_65 = arith.constant 0 : index
    %c3_66 = arith.constant 3 : index
    %c0_67 = arith.constant 0 : index
    %c2_68 = arith.constant 2 : index
    %194 = vector.load %arg7[%c0_65, %c3_66, %c0_67, %c2_68] : memref<2x4x20x20xf32, #tpu.memory_space<vmem>>, vector<2x1x20x18xf32>
    %195 = vector.shape_cast %194 : vector<2x1x20x18xf32> to vector<2x20x18xf32>
    %c29 = arith.constant 29 : index
    %196 = memref.load %arg3[%c29] : memref<144xf32, #tpu.memory_space<smem>>
    %197 = vector.extract_strided_slice %195 {offsets = [0, 0, 0], sizes = [2, 18, 18], strides = [1, 1, 1]} : vector<2x20x18xf32> to vector<2x18x18xf32>
    %198 = vector.broadcast %196 : f32 to vector<2x18x18xf32>
    %199 = arith.mulf %198, %197 : vector<2x18x18xf32>
    %200 = arith.addf %193, %199 : vector<2x18x18xf32>
    %c32 = arith.constant 32 : index
    %201 = memref.load %arg3[%c32] : memref<144xf32, #tpu.memory_space<smem>>
    %202 = vector.extract_strided_slice %195 {offsets = [0, 1, 0], sizes = [2, 18, 18], strides = [1, 1, 1]} : vector<2x20x18xf32> to vector<2x18x18xf32>
    %203 = vector.broadcast %201 : f32 to vector<2x18x18xf32>
    %204 = arith.mulf %203, %202 : vector<2x18x18xf32>
    %205 = arith.addf %200, %204 : vector<2x18x18xf32>
    %c35 = arith.constant 35 : index
    %206 = memref.load %arg3[%c35] : memref<144xf32, #tpu.memory_space<smem>>
    %207 = vector.extract_strided_slice %195 {offsets = [0, 2, 0], sizes = [2, 18, 18], strides = [1, 1, 1]} : vector<2x20x18xf32> to vector<2x18x18xf32>
    %208 = vector.broadcast %206 : f32 to vector<2x18x18xf32>
    %209 = arith.mulf %208, %207 : vector<2x18x18xf32>
    %210 = arith.addf %205, %209 : vector<2x18x18xf32>
    %211 = vector.shape_cast %210 : vector<2x18x18xf32> to vector<1x2x18x18xf32>
    %cst_69 = arith.constant dense<0.000000e+00> : vector<1xf32>
    %212 = vector.multi_reduction <add>, %211, %cst_69 [1, 2, 3] : vector<1x2x18x18xf32> to vector<1xf32>
    %213 = vector.shape_cast %212 : vector<1xf32> to vector<1x1x1x1xf32>
    %214 = vector.extract %213[0, 0, 0, 0] : f32 from vector<1x1x1x1xf32>
    %cst_70 = arith.constant 0.00154320989 : f32
    %215 = arith.mulf %214, %cst_70 : f32
    %216 = vector.broadcast %215 : f32 to vector<2x18x18xf32>
    %217 = arith.subf %210, %216 : vector<2x18x18xf32>
    %218 = arith.mulf %217, %217 : vector<2x18x18xf32>
    %219 = vector.shape_cast %218 : vector<2x18x18xf32> to vector<1x2x18x18xf32>
    %cst_71 = arith.constant dense<0.000000e+00> : vector<1xf32>
    %220 = vector.multi_reduction <add>, %219, %cst_71 [1, 2, 3] : vector<1x2x18x18xf32> to vector<1xf32>
    %221 = vector.shape_cast %220 : vector<1xf32> to vector<1x1x1x1xf32>
    %222 = vector.extract %221[0, 0, 0, 0] : f32 from vector<1x1x1x1xf32>
    %cst_72 = arith.constant 0.00154320989 : f32
    %223 = arith.mulf %222, %cst_72 : f32
    %cst_73 = arith.constant 9.99999974E-6 : f32
    %224 = arith.addf %223, %cst_73 : f32
    %225 = math.rsqrt %224 : f32
    %c0_74 = arith.constant 0 : index
    %226 = memref.load %arg4[%c0_74] : memref<4xf32, #tpu.memory_space<smem>>
    %227 = arith.mulf %225, %226 : f32
    %228 = vector.broadcast %227 : f32 to vector<2x18x18xf32>
    %229 = arith.mulf %217, %228 : vector<2x18x18xf32>
    %c0_75 = arith.constant 0 : index
    %230 = memref.load %arg5[%c0_75] : memref<4xf32, #tpu.memory_space<smem>>
    %231 = vector.broadcast %230 : f32 to vector<2x18x18xf32>
    %232 = arith.addf %229, %231 : vector<2x18x18xf32>
    %cst_76 = arith.constant 0.000000e+00 : f32
    %233 = vector.broadcast %cst_76 : f32 to vector<2x18x18xf32>
    %234 = arith.cmpf oge, %232, %233 : vector<2x18x18xf32>
    %cst_77 = arith.constant 0.00999999977 : f32
    %235 = vector.broadcast %cst_77 : f32 to vector<2x18x18xf32>
    %236 = arith.mulf %235, %232 : vector<2x18x18xf32>
    %237 = arith.select %234, %232, %236 : vector<2x18x18xi1>, vector<2x18x18xf32>
    %c0_78 = arith.constant 0 : index
    %c0_79 = arith.constant 0 : index
    %c0_80 = arith.constant 0 : index
    %c0_81 = arith.constant 0 : index
    %238 = vector.load %arg6[%c0_78, %c0_79, %c0_80, %c0_81] : memref<2x4x18x18xf32, #tpu.memory_space<vmem>>, vector<2x1x18x18xf32>
    %239 = vector.shape_cast %238 : vector<2x1x18x18xf32> to vector<2x18x18xf32>
    %240 = vector.shape_cast %237 : vector<2x18x18xf32> to vector<2x1x18x18xf32>
    tpu.vector_store %arg6[%c0_78, %c0_79, %c0_80, %c0_81], %240 {strides = array<i32>} : memref<2x4x18x18xf32, #tpu.memory_space<vmem>>, vector<2x1x18x18xf32>,
    %cst_82 = arith.constant 0.000000e+00 : f32
    %241 = vector.broadcast %cst_82 : f32 to vector<2x18x18xf32>
    %c0_83 = arith.constant 0 : index
    %c0_84 = arith.constant 0 : index
    %c0_85 = arith.constant 0 : index
    %c0_86 = arith.constant 0 : index
    %242 = vector.load %arg7[%c0_83, %c0_84, %c0_85, %c0_86] : memref<2x4x20x20xf32, #tpu.memory_space<vmem>>, vector<2x1x20x18xf32>
    %243 = vector.shape_cast %242 : vector<2x1x20x18xf32> to vector<2x20x18xf32>
    %c36 = arith.constant 36 : index
    %244 = memref.load %arg3[%c36] : memref<144xf32, #tpu.memory_space<smem>>
    %245 = vector.extract_strided_slice %243 {offsets = [0, 0, 0], sizes = [2, 18, 18], strides = [1, 1, 1]} : vector<2x20x18xf32> to vector<2x18x18xf32>
    %246 = vector.broadcast %244 : f32 to vector<2x18x18xf32>
    %247 = arith.mulf %246, %245 : vector<2x18x18xf32>
    %248 = arith.addf %241, %247 : vector<2x18x18xf32>
    %c39 = arith.constant 39 : index
    %249 = memref.load %arg3[%c39] : memref<144xf32, #tpu.memory_space<smem>>
    %250 = vector.extract_strided_slice %243 {offsets = [0, 1, 0], sizes = [2, 18, 18], strides = [1, 1, 1]} : vector<2x20x18xf32> to vector<2x18x18xf32>
    %251 = vector.broadcast %249 : f32 to vector<2x18x18xf32>
    %252 = arith.mulf %251, %250 : vector<2x18x18xf32>
    %253 = arith.addf %248, %252 : vector<2x18x18xf32>
    %c42 = arith.constant 42 : index
    %254 = memref.load %arg3[%c42] : memref<144xf32, #tpu.memory_space<smem>>
    %255 = vector.extract_strided_slice %243 {offsets = [0, 2, 0], sizes = [2, 18, 18], strides = [1, 1, 1]} : vector<2x20x18xf32> to vector<2x18x18xf32>
    %256 = vector.broadcast %254 : f32 to vector<2x18x18xf32>
    %257 = arith.mulf %256, %255 : vector<2x18x18xf32>
    %258 = arith.addf %253, %257 : vector<2x18x18xf32>
    %c0_87 = arith.constant 0 : index
    %c0_88 = arith.constant 0 : index
    %c0_89 = arith.constant 0 : index
    %c1_90 = arith.constant 1 : index
    %259 = vector.load %arg7[%c0_87, %c0_88, %c0_89, %c1_90] : memref<2x4x20x20xf32, #tpu.memory_space<vmem>>, vector<2x1x20x18xf32>
    %260 = vector.shape_cast %259 : vector<2x1x20x18xf32> to vector<2x20x18xf32>
    %c37 = arith.constant 37 : index
    %261 = memref.load %arg3[%c37] : memref<144xf32, #tpu.memory_space<smem>>
    %262 = vector.extract_strided_slice %260 {offsets = [0, 0, 0], sizes = [2, 18, 18], strides = [1, 1, 1]} : vector<2x20x18xf32> to vector<2x18x18xf32>
    %263 = vector.broadcast %261 : f32 to vector<2x18x18xf32>
    %264 = arith.mulf %263, %262 : vector<2x18x18xf32>
    %265 = arith.addf %258, %264 : vector<2x18x18xf32>
    %c40 = arith.constant 40 : index
    %266 = memref.load %arg3[%c40] : memref<144xf32, #tpu.memory_space<smem>>
    %267 = vector.extract_strided_slice %260 {offsets = [0, 1, 0], sizes = [2, 18, 18], strides = [1, 1, 1]} : vector<2x20x18xf32> to vector<2x18x18xf32>
    %268 = vector.broadcast %266 : f32 to vector<2x18x18xf32>
    %269 = arith.mulf %268, %267 : vector<2x18x18xf32>
    %270 = arith.addf %265, %269 : vector<2x18x18xf32>
    %c43 = arith.constant 43 : index
    %271 = memref.load %arg3[%c43] : memref<144xf32, #tpu.memory_space<smem>>
    %272 = vector.extract_strided_slice %260 {offsets = [0, 2, 0], sizes = [2, 18, 18], strides = [1, 1, 1]} : vector<2x20x18xf32> to vector<2x18x18xf32>
    %273 = vector.broadcast %271 : f32 to vector<2x18x18xf32>
    %274 = arith.mulf %273, %272 : vector<2x18x18xf32>
    %275 = arith.addf %270, %274 : vector<2x18x18xf32>
    %c0_91 = arith.constant 0 : index
    %c0_92 = arith.constant 0 : index
    %c0_93 = arith.constant 0 : index
    %c2_94 = arith.constant 2 : index
    %276 = vector.load %arg7[%c0_91, %c0_92, %c0_93, %c2_94] : memref<2x4x20x20xf32, #tpu.memory_space<vmem>>, vector<2x1x20x18xf32>
    %277 = vector.shape_cast %276 : vector<2x1x20x18xf32> to vector<2x20x18xf32>
    %c38 = arith.constant 38 : index
    %278 = memref.load %arg3[%c38] : memref<144xf32, #tpu.memory_space<smem>>
    %279 = vector.extract_strided_slice %277 {offsets = [0, 0, 0], sizes = [2, 18, 18], strides = [1, 1, 1]} : vector<2x20x18xf32> to vector<2x18x18xf32>
    %280 = vector.broadcast %278 : f32 to vector<2x18x18xf32>
    %281 = arith.mulf %280, %279 : vector<2x18x18xf32>
    %282 = arith.addf %275, %281 : vector<2x18x18xf32>
    %c41 = arith.constant 41 : index
    %283 = memref.load %arg3[%c41] : memref<144xf32, #tpu.memory_space<smem>>
    %284 = vector.extract_strided_slice %277 {offsets = [0, 1, 0], sizes = [2, 18, 18], strides = [1, 1, 1]} : vector<2x20x18xf32> to vector<2x18x18xf32>
    %285 = vector.broadcast %283 : f32 to vector<2x18x18xf32>
    %286 = arith.mulf %285, %284 : vector<2x18x18xf32>
    %287 = arith.addf %282, %286 : vector<2x18x18xf32>
    %c44 = arith.constant 44 : index
    %288 = memref.load %arg3[%c44] : memref<144xf32, #tpu.memory_space<smem>>
    %289 = vector.extract_strided_slice %277 {offsets = [0, 2, 0], sizes = [2, 18, 18], strides = [1, 1, 1]} : vector<2x20x18xf32> to vector<2x18x18xf32>
    %290 = vector.broadcast %288 : f32 to vector<2x18x18xf32>
    %291 = arith.mulf %290, %289 : vector<2x18x18xf32>
    %292 = arith.addf %287, %291 : vector<2x18x18xf32>
    %c0_95 = arith.constant 0 : index
    %c1_96 = arith.constant 1 : index
    %c0_97 = arith.constant 0 : index
    %c0_98 = arith.constant 0 : index
    %293 = vector.load %arg7[%c0_95, %c1_96, %c0_97, %c0_98] : memref<2x4x20x20xf32, #tpu.memory_space<vmem>>, vector<2x1x20x18xf32>
    %294 = vector.shape_cast %293 : vector<2x1x20x18xf32> to vector<2x20x18xf32>
    %c45 = arith.constant 45 : index
    %295 = memref.load %arg3[%c45] : memref<144xf32, #tpu.memory_space<smem>>
    %296 = vector.extract_strided_slice %294 {offsets = [0, 0, 0], sizes = [2, 18, 18], strides = [1, 1, 1]} : vector<2x20x18xf32> to vector<2x18x18xf32>
    %297 = vector.broadcast %295 : f32 to vector<2x18x18xf32>
    %298 = arith.mulf %297, %296 : vector<2x18x18xf32>
    %299 = arith.addf %292, %298 : vector<2x18x18xf32>
    %c48 = arith.constant 48 : index
    %300 = memref.load %arg3[%c48] : memref<144xf32, #tpu.memory_space<smem>>
    %301 = vector.extract_strided_slice %294 {offsets = [0, 1, 0], sizes = [2, 18, 18], strides = [1, 1, 1]} : vector<2x20x18xf32> to vector<2x18x18xf32>
    %302 = vector.broadcast %300 : f32 to vector<2x18x18xf32>
    %303 = arith.mulf %302, %301 : vector<2x18x18xf32>
    %304 = arith.addf %299, %303 : vector<2x18x18xf32>
    %c51 = arith.constant 51 : index
    %305 = memref.load %arg3[%c51] : memref<144xf32, #tpu.memory_space<smem>>
    %306 = vector.extract_strided_slice %294 {offsets = [0, 2, 0], sizes = [2, 18, 18], strides = [1, 1, 1]} : vector<2x20x18xf32> to vector<2x18x18xf32>
    %307 = vector.broadcast %305 : f32 to vector<2x18x18xf32>
    %308 = arith.mulf %307, %306 : vector<2x18x18xf32>
    %309 = arith.addf %304, %308 : vector<2x18x18xf32>
    %c0_99 = arith.constant 0 : index
    %c1_100 = arith.constant 1 : index
    %c0_101 = arith.constant 0 : index
    %c1_102 = arith.constant 1 : index
    %310 = vector.load %arg7[%c0_99, %c1_100, %c0_101, %c1_102] : memref<2x4x20x20xf32, #tpu.memory_space<vmem>>, vector<2x1x20x18xf32>
    %311 = vector.shape_cast %310 : vector<2x1x20x18xf32> to vector<2x20x18xf32>
    %c46 = arith.constant 46 : index
    %312 = memref.load %arg3[%c46] : memref<144xf32, #tpu.memory_space<smem>>
    %313 = vector.extract_strided_slice %311 {offsets = [0, 0, 0], sizes = [2, 18, 18], strides = [1, 1, 1]} : vector<2x20x18xf32> to vector<2x18x18xf32>
    %314 = vector.broadcast %312 : f32 to vector<2x18x18xf32>
    %315 = arith.mulf %314, %313 : vector<2x18x18xf32>
    %316 = arith.addf %309, %315 : vector<2x18x18xf32>
    %c49 = arith.constant 49 : index
    %317 = memref.load %arg3[%c49] : memref<144xf32, #tpu.memory_space<smem>>
    %318 = vector.extract_strided_slice %311 {offsets = [0, 1, 0], sizes = [2, 18, 18], strides = [1, 1, 1]} : vector<2x20x18xf32> to vector<2x18x18xf32>
    %319 = vector.broadcast %317 : f32 to vector<2x18x18xf32>
    %320 = arith.mulf %319, %318 : vector<2x18x18xf32>
    %321 = arith.addf %316, %320 : vector<2x18x18xf32>
    %c52 = arith.constant 52 : index
    %322 = memref.load %arg3[%c52] : memref<144xf32, #tpu.memory_space<smem>>
    %323 = vector.extract_strided_slice %311 {offsets = [0, 2, 0], sizes = [2, 18, 18], strides = [1, 1, 1]} : vector<2x20x18xf32> to vector<2x18x18xf32>
    %324 = vector.broadcast %322 : f32 to vector<2x18x18xf32>
    %325 = arith.mulf %324, %323 : vector<2x18x18xf32>
    %326 = arith.addf %321, %325 : vector<2x18x18xf32>
    %c0_103 = arith.constant 0 : index
    %c1_104 = arith.constant 1 : index
    %c0_105 = arith.constant 0 : index
    %c2_106 = arith.constant 2 : index
    %327 = vector.load %arg7[%c0_103, %c1_104, %c0_105, %c2_106] : memref<2x4x20x20xf32, #tpu.memory_space<vmem>>, vector<2x1x20x18xf32>
    %328 = vector.shape_cast %327 : vector<2x1x20x18xf32> to vector<2x20x18xf32>
    %c47 = arith.constant 47 : index
    %329 = memref.load %arg3[%c47] : memref<144xf32, #tpu.memory_space<smem>>
    %330 = vector.extract_strided_slice %328 {offsets = [0, 0, 0], sizes = [2, 18, 18], strides = [1, 1, 1]} : vector<2x20x18xf32> to vector<2x18x18xf32>
    %331 = vector.broadcast %329 : f32 to vector<2x18x18xf32>
    %332 = arith.mulf %331, %330 : vector<2x18x18xf32>
    %333 = arith.addf %326, %332 : vector<2x18x18xf32>
    %c50 = arith.constant 50 : index
    %334 = memref.load %arg3[%c50] : memref<144xf32, #tpu.memory_space<smem>>
    %335 = vector.extract_strided_slice %328 {offsets = [0, 1, 0], sizes = [2, 18, 18], strides = [1, 1, 1]} : vector<2x20x18xf32> to vector<2x18x18xf32>
    %336 = vector.broadcast %334 : f32 to vector<2x18x18xf32>
    %337 = arith.mulf %336, %335 : vector<2x18x18xf32>
    %338 = arith.addf %333, %337 : vector<2x18x18xf32>
    %c53 = arith.constant 53 : index
    %339 = memref.load %arg3[%c53] : memref<144xf32, #tpu.memory_space<smem>>
    %340 = vector.extract_strided_slice %328 {offsets = [0, 2, 0], sizes = [2, 18, 18], strides = [1, 1, 1]} : vector<2x20x18xf32> to vector<2x18x18xf32>
    %341 = vector.broadcast %339 : f32 to vector<2x18x18xf32>
    %342 = arith.mulf %341, %340 : vector<2x18x18xf32>
    %343 = arith.addf %338, %342 : vector<2x18x18xf32>
    %c0_107 = arith.constant 0 : index
    %c2_108 = arith.constant 2 : index
    %c0_109 = arith.constant 0 : index
    %c0_110 = arith.constant 0 : index
    %344 = vector.load %arg7[%c0_107, %c2_108, %c0_109, %c0_110] : memref<2x4x20x20xf32, #tpu.memory_space<vmem>>, vector<2x1x20x18xf32>
    %345 = vector.shape_cast %344 : vector<2x1x20x18xf32> to vector<2x20x18xf32>
    %c54 = arith.constant 54 : index
    %346 = memref.load %arg3[%c54] : memref<144xf32, #tpu.memory_space<smem>>
    %347 = vector.extract_strided_slice %345 {offsets = [0, 0, 0], sizes = [2, 18, 18], strides = [1, 1, 1]} : vector<2x20x18xf32> to vector<2x18x18xf32>
    %348 = vector.broadcast %346 : f32 to vector<2x18x18xf32>
    %349 = arith.mulf %348, %347 : vector<2x18x18xf32>
    %350 = arith.addf %343, %349 : vector<2x18x18xf32>
    %c57 = arith.constant 57 : index
    %351 = memref.load %arg3[%c57] : memref<144xf32, #tpu.memory_space<smem>>
    %352 = vector.extract_strided_slice %345 {offsets = [0, 1, 0], sizes = [2, 18, 18], strides = [1, 1, 1]} : vector<2x20x18xf32> to vector<2x18x18xf32>
    %353 = vector.broadcast %351 : f32 to vector<2x18x18xf32>
    %354 = arith.mulf %353, %352 : vector<2x18x18xf32>
    %355 = arith.addf %350, %354 : vector<2x18x18xf32>
    %c60 = arith.constant 60 : index
    %356 = memref.load %arg3[%c60] : memref<144xf32, #tpu.memory_space<smem>>
    %357 = vector.extract_strided_slice %345 {offsets = [0, 2, 0], sizes = [2, 18, 18], strides = [1, 1, 1]} : vector<2x20x18xf32> to vector<2x18x18xf32>
    %358 = vector.broadcast %356 : f32 to vector<2x18x18xf32>
    %359 = arith.mulf %358, %357 : vector<2x18x18xf32>
    %360 = arith.addf %355, %359 : vector<2x18x18xf32>
    %c0_111 = arith.constant 0 : index
    %c2_112 = arith.constant 2 : index
    %c0_113 = arith.constant 0 : index
    %c1_114 = arith.constant 1 : index
    %361 = vector.load %arg7[%c0_111, %c2_112, %c0_113, %c1_114] : memref<2x4x20x20xf32, #tpu.memory_space<vmem>>, vector<2x1x20x18xf32>
    %362 = vector.shape_cast %361 : vector<2x1x20x18xf32> to vector<2x20x18xf32>
    %c55 = arith.constant 55 : index
    %363 = memref.load %arg3[%c55] : memref<144xf32, #tpu.memory_space<smem>>
    %364 = vector.extract_strided_slice %362 {offsets = [0, 0, 0], sizes = [2, 18, 18], strides = [1, 1, 1]} : vector<2x20x18xf32> to vector<2x18x18xf32>
    %365 = vector.broadcast %363 : f32 to vector<2x18x18xf32>
    %366 = arith.mulf %365, %364 : vector<2x18x18xf32>
    %367 = arith.addf %360, %366 : vector<2x18x18xf32>
    %c58 = arith.constant 58 : index
    %368 = memref.load %arg3[%c58] : memref<144xf32, #tpu.memory_space<smem>>
    %369 = vector.extract_strided_slice %362 {offsets = [0, 1, 0], sizes = [2, 18, 18], strides = [1, 1, 1]} : vector<2x20x18xf32> to vector<2x18x18xf32>
    %370 = vector.broadcast %368 : f32 to vector<2x18x18xf32>
    %371 = arith.mulf %370, %369 : vector<2x18x18xf32>
    %372 = arith.addf %367, %371 : vector<2x18x18xf32>
    %c61 = arith.constant 61 : index
    %373 = memref.load %arg3[%c61] : memref<144xf32, #tpu.memory_space<smem>>
    %374 = vector.extract_strided_slice %362 {offsets = [0, 2, 0], sizes = [2, 18, 18], strides = [1, 1, 1]} : vector<2x20x18xf32> to vector<2x18x18xf32>
    %375 = vector.broadcast %373 : f32 to vector<2x18x18xf32>
    %376 = arith.mulf %375, %374 : vector<2x18x18xf32>
    %377 = arith.addf %372, %376 : vector<2x18x18xf32>
    %c0_115 = arith.constant 0 : index
    %c2_116 = arith.constant 2 : index
    %c0_117 = arith.constant 0 : index
    %c2_118 = arith.constant 2 : index
    %378 = vector.load %arg7[%c0_115, %c2_116, %c0_117, %c2_118] : memref<2x4x20x20xf32, #tpu.memory_space<vmem>>, vector<2x1x20x18xf32>
    %379 = vector.shape_cast %378 : vector<2x1x20x18xf32> to vector<2x20x18xf32>
    %c56 = arith.constant 56 : index
    %380 = memref.load %arg3[%c56] : memref<144xf32, #tpu.memory_space<smem>>
    %381 = vector.extract_strided_slice %379 {offsets = [0, 0, 0], sizes = [2, 18, 18], strides = [1, 1, 1]} : vector<2x20x18xf32> to vector<2x18x18xf32>
    %382 = vector.broadcast %380 : f32 to vector<2x18x18xf32>
    %383 = arith.mulf %382, %381 : vector<2x18x18xf32>
    %384 = arith.addf %377, %383 : vector<2x18x18xf32>
    %c59 = arith.constant 59 : index
    %385 = memref.load %arg3[%c59] : memref<144xf32, #tpu.memory_space<smem>>
    %386 = vector.extract_strided_slice %379 {offsets = [0, 1, 0], sizes = [2, 18, 18], strides = [1, 1, 1]} : vector<2x20x18xf32> to vector<2x18x18xf32>
    %387 = vector.broadcast %385 : f32 to vector<2x18x18xf32>
    %388 = arith.mulf %387, %386 : vector<2x18x18xf32>
    %389 = arith.addf %384, %388 : vector<2x18x18xf32>
    %c62 = arith.constant 62 : index
    %390 = memref.load %arg3[%c62] : memref<144xf32, #tpu.memory_space<smem>>
    %391 = vector.extract_strided_slice %379 {offsets = [0, 2, 0], sizes = [2, 18, 18], strides = [1, 1, 1]} : vector<2x20x18xf32> to vector<2x18x18xf32>
    %392 = vector.broadcast %390 : f32 to vector<2x18x18xf32>
    %393 = arith.mulf %392, %391 : vector<2x18x18xf32>
    %394 = arith.addf %389, %393 : vector<2x18x18xf32>
    %c0_119 = arith.constant 0 : index
    %c3_120 = arith.constant 3 : index
    %c0_121 = arith.constant 0 : index
    %c0_122 = arith.constant 0 : index
    %395 = vector.load %arg7[%c0_119, %c3_120, %c0_121, %c0_122] : memref<2x4x20x20xf32, #tpu.memory_space<vmem>>, vector<2x1x20x18xf32>
    %396 = vector.shape_cast %395 : vector<2x1x20x18xf32> to vector<2x20x18xf32>
    %c63 = arith.constant 63 : index
    %397 = memref.load %arg3[%c63] : memref<144xf32, #tpu.memory_space<smem>>
    %398 = vector.extract_strided_slice %396 {offsets = [0, 0, 0], sizes = [2, 18, 18], strides = [1, 1, 1]} : vector<2x20x18xf32> to vector<2x18x18xf32>
    %399 = vector.broadcast %397 : f32 to vector<2x18x18xf32>
    %400 = arith.mulf %399, %398 : vector<2x18x18xf32>
    %401 = arith.addf %394, %400 : vector<2x18x18xf32>
    %c66 = arith.constant 66 : index
    %402 = memref.load %arg3[%c66] : memref<144xf32, #tpu.memory_space<smem>>
    %403 = vector.extract_strided_slice %396 {offsets = [0, 1, 0], sizes = [2, 18, 18], strides = [1, 1, 1]} : vector<2x20x18xf32> to vector<2x18x18xf32>
    %404 = vector.broadcast %402 : f32 to vector<2x18x18xf32>
    %405 = arith.mulf %404, %403 : vector<2x18x18xf32>
    %406 = arith.addf %401, %405 : vector<2x18x18xf32>
    %c69 = arith.constant 69 : index
    %407 = memref.load %arg3[%c69] : memref<144xf32, #tpu.memory_space<smem>>
    %408 = vector.extract_strided_slice %396 {offsets = [0, 2, 0], sizes = [2, 18, 18], strides = [1, 1, 1]} : vector<2x20x18xf32> to vector<2x18x18xf32>
    %409 = vector.broadcast %407 : f32 to vector<2x18x18xf32>
    %410 = arith.mulf %409, %408 : vector<2x18x18xf32>
    %411 = arith.addf %406, %410 : vector<2x18x18xf32>
    %c0_123 = arith.constant 0 : index
    %c3_124 = arith.constant 3 : index
    %c0_125 = arith.constant 0 : index
    %c1_126 = arith.constant 1 : index
    %412 = vector.load %arg7[%c0_123, %c3_124, %c0_125, %c1_126] : memref<2x4x20x20xf32, #tpu.memory_space<vmem>>, vector<2x1x20x18xf32>
    %413 = vector.shape_cast %412 : vector<2x1x20x18xf32> to vector<2x20x18xf32>
    %c64 = arith.constant 64 : index
    %414 = memref.load %arg3[%c64] : memref<144xf32, #tpu.memory_space<smem>>
    %415 = vector.extract_strided_slice %413 {offsets = [0, 0, 0], sizes = [2, 18, 18], strides = [1, 1, 1]} : vector<2x20x18xf32> to vector<2x18x18xf32>
    %416 = vector.broadcast %414 : f32 to vector<2x18x18xf32>
    %417 = arith.mulf %416, %415 : vector<2x18x18xf32>
    %418 = arith.addf %411, %417 : vector<2x18x18xf32>
    %c67 = arith.constant 67 : index
    %419 = memref.load %arg3[%c67] : memref<144xf32, #tpu.memory_space<smem>>
    %420 = vector.extract_strided_slice %413 {offsets = [0, 1, 0], sizes = [2, 18, 18], strides = [1, 1, 1]} : vector<2x20x18xf32> to vector<2x18x18xf32>
    %421 = vector.broadcast %419 : f32 to vector<2x18x18xf32>
    %422 = arith.mulf %421, %420 : vector<2x18x18xf32>
    %423 = arith.addf %418, %422 : vector<2x18x18xf32>
    %c70 = arith.constant 70 : index
    %424 = memref.load %arg3[%c70] : memref<144xf32, #tpu.memory_space<smem>>
    %425 = vector.extract_strided_slice %413 {offsets = [0, 2, 0], sizes = [2, 18, 18], strides = [1, 1, 1]} : vector<2x20x18xf32> to vector<2x18x18xf32>
    %426 = vector.broadcast %424 : f32 to vector<2x18x18xf32>
    %427 = arith.mulf %426, %425 : vector<2x18x18xf32>
    %428 = arith.addf %423, %427 : vector<2x18x18xf32>
    %c0_127 = arith.constant 0 : index
    %c3_128 = arith.constant 3 : index
    %c0_129 = arith.constant 0 : index
    %c2_130 = arith.constant 2 : index
    %429 = vector.load %arg7[%c0_127, %c3_128, %c0_129, %c2_130] : memref<2x4x20x20xf32, #tpu.memory_space<vmem>>, vector<2x1x20x18xf32>
    %430 = vector.shape_cast %429 : vector<2x1x20x18xf32> to vector<2x20x18xf32>
    %c65 = arith.constant 65 : index
    %431 = memref.load %arg3[%c65] : memref<144xf32, #tpu.memory_space<smem>>
    %432 = vector.extract_strided_slice %430 {offsets = [0, 0, 0], sizes = [2, 18, 18], strides = [1, 1, 1]} : vector<2x20x18xf32> to vector<2x18x18xf32>
    %433 = vector.broadcast %431 : f32 to vector<2x18x18xf32>
    %434 = arith.mulf %433, %432 : vector<2x18x18xf32>
    %435 = arith.addf %428, %434 : vector<2x18x18xf32>
    %c68 = arith.constant 68 : index
    %436 = memref.load %arg3[%c68] : memref<144xf32, #tpu.memory_space<smem>>
    %437 = vector.extract_strided_slice %430 {offsets = [0, 1, 0], sizes = [2, 18, 18], strides = [1, 1, 1]} : vector<2x20x18xf32> to vector<2x18x18xf32>
    %438 = vector.broadcast %436 : f32 to vector<2x18x18xf32>
    %439 = arith.mulf %438, %437 : vector<2x18x18xf32>
    %440 = arith.addf %435, %439 : vector<2x18x18xf32>
    %c71 = arith.constant 71 : index
    %441 = memref.load %arg3[%c71] : memref<144xf32, #tpu.memory_space<smem>>
    %442 = vector.extract_strided_slice %430 {offsets = [0, 2, 0], sizes = [2, 18, 18], strides = [1, 1, 1]} : vector<2x20x18xf32> to vector<2x18x18xf32>
    %443 = vector.broadcast %441 : f32 to vector<2x18x18xf32>
    %444 = arith.mulf %443, %442 : vector<2x18x18xf32>
    %445 = arith.addf %440, %444 : vector<2x18x18xf32>
    %446 = vector.shape_cast %445 : vector<2x18x18xf32> to vector<1x2x18x18xf32>
    %cst_131 = arith.constant dense<0.000000e+00> : vector<1xf32>
    %447 = vector.multi_reduction <add>, %446, %cst_131 [1, 2, 3] : vector<1x2x18x18xf32> to vector<1xf32>
    %448 = vector.shape_cast %447 : vector<1xf32> to vector<1x1x1x1xf32>
    %449 = vector.extract %448[0, 0, 0, 0] : f32 from vector<1x1x1x1xf32>
    %cst_132 = arith.constant 0.00154320989 : f32
    %450 = arith.mulf %449, %cst_132 : f32
    %451 = vector.broadcast %450 : f32 to vector<2x18x18xf32>
    %452 = arith.subf %445, %451 : vector<2x18x18xf32>
    %453 = arith.mulf %452, %452 : vector<2x18x18xf32>
    %454 = vector.shape_cast %453 : vector<2x18x18xf32> to vector<1x2x18x18xf32>
    %cst_133 = arith.constant dense<0.000000e+00> : vector<1xf32>
    %455 = vector.multi_reduction <add>, %454, %cst_133 [1, 2, 3] : vector<1x2x18x18xf32> to vector<1xf32>
    %456 = vector.shape_cast %455 : vector<1xf32> to vector<1x1x1x1xf32>
    %457 = vector.extract %456[0, 0, 0, 0] : f32 from vector<1x1x1x1xf32>
    %cst_134 = arith.constant 0.00154320989 : f32
    %458 = arith.mulf %457, %cst_134 : f32
    %cst_135 = arith.constant 9.99999974E-6 : f32
    %459 = arith.addf %458, %cst_135 : f32
    %460 = math.rsqrt %459 : f32
    %c1_136 = arith.constant 1 : index
    %461 = memref.load %arg4[%c1_136] : memref<4xf32, #tpu.memory_space<smem>>
    %462 = arith.mulf %460, %461 : f32
    %463 = vector.broadcast %462 : f32 to vector<2x18x18xf32>
    %464 = arith.mulf %452, %463 : vector<2x18x18xf32>
    %c1_137 = arith.constant 1 : index
    %465 = memref.load %arg5[%c1_137] : memref<4xf32, #tpu.memory_space<smem>>
    %466 = vector.broadcast %465 : f32 to vector<2x18x18xf32>
    %467 = arith.addf %464, %466 : vector<2x18x18xf32>
    %cst_138 = arith.constant 0.000000e+00 : f32
    %468 = vector.broadcast %cst_138 : f32 to vector<2x18x18xf32>
    %469 = arith.cmpf oge, %467, %468 : vector<2x18x18xf32>
    %cst_139 = arith.constant 0.00999999977 : f32
    %470 = vector.broadcast %cst_139 : f32 to vector<2x18x18xf32>
    %471 = arith.mulf %470, %467 : vector<2x18x18xf32>
    %472 = arith.select %469, %467, %471 : vector<2x18x18xi1>, vector<2x18x18xf32>
    %c0_140 = arith.constant 0 : index
    %c1_141 = arith.constant 1 : index
    %c0_142 = arith.constant 0 : index
    %c0_143 = arith.constant 0 : index
    %473 = vector.load %arg6[%c0_140, %c1_141, %c0_142, %c0_143] : memref<2x4x18x18xf32, #tpu.memory_space<vmem>>, vector<2x1x18x18xf32>
    %474 = vector.shape_cast %473 : vector<2x1x18x18xf32> to vector<2x18x18xf32>
    %475 = vector.shape_cast %472 : vector<2x18x18xf32> to vector<2x1x18x18xf32>
    tpu.vector_store %arg6[%c0_140, %c1_141, %c0_142, %c0_143], %475 {strides = array<i32>} : memref<2x4x18x18xf32, #tpu.memory_space<vmem>>, vector<2x1x18x18xf32>,
    %cst_144 = arith.constant 0.000000e+00 : f32
    %476 = vector.broadcast %cst_144 : f32 to vector<2x18x18xf32>
    %c0_145 = arith.constant 0 : index
    %c0_146 = arith.constant 0 : index
    %c0_147 = arith.constant 0 : index
    %c0_148 = arith.constant 0 : index
    %477 = vector.load %arg7[%c0_145, %c0_146, %c0_147, %c0_148] : memref<2x4x20x20xf32, #tpu.memory_space<vmem>>, vector<2x1x20x18xf32>
    %478 = vector.shape_cast %477 : vector<2x1x20x18xf32> to vector<2x20x18xf32>
    %c72 = arith.constant 72 : index
    %479 = memref.load %arg3[%c72] : memref<144xf32, #tpu.memory_space<smem>>
    %480 = vector.extract_strided_slice %478 {offsets = [0, 0, 0], sizes = [2, 18, 18], strides = [1, 1, 1]} : vector<2x20x18xf32> to vector<2x18x18xf32>
    %481 = vector.broadcast %479 : f32 to vector<2x18x18xf32>
    %482 = arith.mulf %481, %480 : vector<2x18x18xf32>
    %483 = arith.addf %476, %482 : vector<2x18x18xf32>
    %c75 = arith.constant 75 : index
    %484 = memref.load %arg3[%c75] : memref<144xf32, #tpu.memory_space<smem>>
    %485 = vector.extract_strided_slice %478 {offsets = [0, 1, 0], sizes = [2, 18, 18], strides = [1, 1, 1]} : vector<2x20x18xf32> to vector<2x18x18xf32>
    %486 = vector.broadcast %484 : f32 to vector<2x18x18xf32>
    %487 = arith.mulf %486, %485 : vector<2x18x18xf32>
    %488 = arith.addf %483, %487 : vector<2x18x18xf32>
    %c78 = arith.constant 78 : index
    %489 = memref.load %arg3[%c78] : memref<144xf32, #tpu.memory_space<smem>>
    %490 = vector.extract_strided_slice %478 {offsets = [0, 2, 0], sizes = [2, 18, 18], strides = [1, 1, 1]} : vector<2x20x18xf32> to vector<2x18x18xf32>
    %491 = vector.broadcast %489 : f32 to vector<2x18x18xf32>
    %492 = arith.mulf %491, %490 : vector<2x18x18xf32>
    %493 = arith.addf %488, %492 : vector<2x18x18xf32>
    %c0_149 = arith.constant 0 : index
    %c0_150 = arith.constant 0 : index
    %c0_151 = arith.constant 0 : index
    %c1_152 = arith.constant 1 : index
    %494 = vector.load %arg7[%c0_149, %c0_150, %c0_151, %c1_152] : memref<2x4x20x20xf32, #tpu.memory_space<vmem>>, vector<2x1x20x18xf32>
    %495 = vector.shape_cast %494 : vector<2x1x20x18xf32> to vector<2x20x18xf32>
    %c73 = arith.constant 73 : index
    %496 = memref.load %arg3[%c73] : memref<144xf32, #tpu.memory_space<smem>>
    %497 = vector.extract_strided_slice %495 {offsets = [0, 0, 0], sizes = [2, 18, 18], strides = [1, 1, 1]} : vector<2x20x18xf32> to vector<2x18x18xf32>
    %498 = vector.broadcast %496 : f32 to vector<2x18x18xf32>
    %499 = arith.mulf %498, %497 : vector<2x18x18xf32>
    %500 = arith.addf %493, %499 : vector<2x18x18xf32>
    %c76 = arith.constant 76 : index
    %501 = memref.load %arg3[%c76] : memref<144xf32, #tpu.memory_space<smem>>
    %502 = vector.extract_strided_slice %495 {offsets = [0, 1, 0], sizes = [2, 18, 18], strides = [1, 1, 1]} : vector<2x20x18xf32> to vector<2x18x18xf32>
    %503 = vector.broadcast %501 : f32 to vector<2x18x18xf32>
    %504 = arith.mulf %503, %502 : vector<2x18x18xf32>
    %505 = arith.addf %500, %504 : vector<2x18x18xf32>
    %c79 = arith.constant 79 : index
    %506 = memref.load %arg3[%c79] : memref<144xf32, #tpu.memory_space<smem>>
    %507 = vector.extract_strided_slice %495 {offsets = [0, 2, 0], sizes = [2, 18, 18], strides = [1, 1, 1]} : vector<2x20x18xf32> to vector<2x18x18xf32>
    %508 = vector.broadcast %506 : f32 to vector<2x18x18xf32>
    %509 = arith.mulf %508, %507 : vector<2x18x18xf32>
    %510 = arith.addf %505, %509 : vector<2x18x18xf32>
    %c0_153 = arith.constant 0 : index
    %c0_154 = arith.constant 0 : index
    %c0_155 = arith.constant 0 : index
    %c2_156 = arith.constant 2 : index
    %511 = vector.load %arg7[%c0_153, %c0_154, %c0_155, %c2_156] : memref<2x4x20x20xf32, #tpu.memory_space<vmem>>, vector<2x1x20x18xf32>
    %512 = vector.shape_cast %511 : vector<2x1x20x18xf32> to vector<2x20x18xf32>
    %c74 = arith.constant 74 : index
    %513 = memref.load %arg3[%c74] : memref<144xf32, #tpu.memory_space<smem>>
    %514 = vector.extract_strided_slice %512 {offsets = [0, 0, 0], sizes = [2, 18, 18], strides = [1, 1, 1]} : vector<2x20x18xf32> to vector<2x18x18xf32>
    %515 = vector.broadcast %513 : f32 to vector<2x18x18xf32>
    %516 = arith.mulf %515, %514 : vector<2x18x18xf32>
    %517 = arith.addf %510, %516 : vector<2x18x18xf32>
    %c77 = arith.constant 77 : index
    %518 = memref.load %arg3[%c77] : memref<144xf32, #tpu.memory_space<smem>>
    %519 = vector.extract_strided_slice %512 {offsets = [0, 1, 0], sizes = [2, 18, 18], strides = [1, 1, 1]} : vector<2x20x18xf32> to vector<2x18x18xf32>
    %520 = vector.broadcast %518 : f32 to vector<2x18x18xf32>
    %521 = arith.mulf %520, %519 : vector<2x18x18xf32>
    %522 = arith.addf %517, %521 : vector<2x18x18xf32>
    %c80 = arith.constant 80 : index
    %523 = memref.load %arg3[%c80] : memref<144xf32, #tpu.memory_space<smem>>
    %524 = vector.extract_strided_slice %512 {offsets = [0, 2, 0], sizes = [2, 18, 18], strides = [1, 1, 1]} : vector<2x20x18xf32> to vector<2x18x18xf32>
    %525 = vector.broadcast %523 : f32 to vector<2x18x18xf32>
    %526 = arith.mulf %525, %524 : vector<2x18x18xf32>
    %527 = arith.addf %522, %526 : vector<2x18x18xf32>
    %c0_157 = arith.constant 0 : index
    %c1_158 = arith.constant 1 : index
    %c0_159 = arith.constant 0 : index
    %c0_160 = arith.constant 0 : index
    %528 = vector.load %arg7[%c0_157, %c1_158, %c0_159, %c0_160] : memref<2x4x20x20xf32, #tpu.memory_space<vmem>>, vector<2x1x20x18xf32>
    %529 = vector.shape_cast %528 : vector<2x1x20x18xf32> to vector<2x20x18xf32>
    %c81 = arith.constant 81 : index
    %530 = memref.load %arg3[%c81] : memref<144xf32, #tpu.memory_space<smem>>
    %531 = vector.extract_strided_slice %529 {offsets = [0, 0, 0], sizes = [2, 18, 18], strides = [1, 1, 1]} : vector<2x20x18xf32> to vector<2x18x18xf32>
    %532 = vector.broadcast %530 : f32 to vector<2x18x18xf32>
    %533 = arith.mulf %532, %531 : vector<2x18x18xf32>
    %534 = arith.addf %527, %533 : vector<2x18x18xf32>
    %c84 = arith.constant 84 : index
    %535 = memref.load %arg3[%c84] : memref<144xf32, #tpu.memory_space<smem>>
    %536 = vector.extract_strided_slice %529 {offsets = [0, 1, 0], sizes = [2, 18, 18], strides = [1, 1, 1]} : vector<2x20x18xf32> to vector<2x18x18xf32>
    %537 = vector.broadcast %535 : f32 to vector<2x18x18xf32>
    %538 = arith.mulf %537, %536 : vector<2x18x18xf32>
    %539 = arith.addf %534, %538 : vector<2x18x18xf32>
    %c87 = arith.constant 87 : index
    %540 = memref.load %arg3[%c87] : memref<144xf32, #tpu.memory_space<smem>>
    %541 = vector.extract_strided_slice %529 {offsets = [0, 2, 0], sizes = [2, 18, 18], strides = [1, 1, 1]} : vector<2x20x18xf32> to vector<2x18x18xf32>
    %542 = vector.broadcast %540 : f32 to vector<2x18x18xf32>
    %543 = arith.mulf %542, %541 : vector<2x18x18xf32>
    %544 = arith.addf %539, %543 : vector<2x18x18xf32>
    %c0_161 = arith.constant 0 : index
    %c1_162 = arith.constant 1 : index
    %c0_163 = arith.constant 0 : index
    %c1_164 = arith.constant 1 : index
    %545 = vector.load %arg7[%c0_161, %c1_162, %c0_163, %c1_164] : memref<2x4x20x20xf32, #tpu.memory_space<vmem>>, vector<2x1x20x18xf32>
    %546 = vector.shape_cast %545 : vector<2x1x20x18xf32> to vector<2x20x18xf32>
    %c82 = arith.constant 82 : index
    %547 = memref.load %arg3[%c82] : memref<144xf32, #tpu.memory_space<smem>>
    %548 = vector.extract_strided_slice %546 {offsets = [0, 0, 0], sizes = [2, 18, 18], strides = [1, 1, 1]} : vector<2x20x18xf32> to vector<2x18x18xf32>
    %549 = vector.broadcast %547 : f32 to vector<2x18x18xf32>
    %550 = arith.mulf %549, %548 : vector<2x18x18xf32>
    %551 = arith.addf %544, %550 : vector<2x18x18xf32>
    %c85 = arith.constant 85 : index
    %552 = memref.load %arg3[%c85] : memref<144xf32, #tpu.memory_space<smem>>
    %553 = vector.extract_strided_slice %546 {offsets = [0, 1, 0], sizes = [2, 18, 18], strides = [1, 1, 1]} : vector<2x20x18xf32> to vector<2x18x18xf32>
    %554 = vector.broadcast %552 : f32 to vector<2x18x18xf32>
    %555 = arith.mulf %554, %553 : vector<2x18x18xf32>
    %556 = arith.addf %551, %555 : vector<2x18x18xf32>
    %c88 = arith.constant 88 : index
    %557 = memref.load %arg3[%c88] : memref<144xf32, #tpu.memory_space<smem>>
    %558 = vector.extract_strided_slice %546 {offsets = [0, 2, 0], sizes = [2, 18, 18], strides = [1, 1, 1]} : vector<2x20x18xf32> to vector<2x18x18xf32>
    %559 = vector.broadcast %557 : f32 to vector<2x18x18xf32>
    %560 = arith.mulf %559, %558 : vector<2x18x18xf32>
    %561 = arith.addf %556, %560 : vector<2x18x18xf32>
    %c0_165 = arith.constant 0 : index
    %c1_166 = arith.constant 1 : index
    %c0_167 = arith.constant 0 : index
    %c2_168 = arith.constant 2 : index
    %562 = vector.load %arg7[%c0_165, %c1_166, %c0_167, %c2_168] : memref<2x4x20x20xf32, #tpu.memory_space<vmem>>, vector<2x1x20x18xf32>
    %563 = vector.shape_cast %562 : vector<2x1x20x18xf32> to vector<2x20x18xf32>
    %c83 = arith.constant 83 : index
    %564 = memref.load %arg3[%c83] : memref<144xf32, #tpu.memory_space<smem>>
    %565 = vector.extract_strided_slice %563 {offsets = [0, 0, 0], sizes = [2, 18, 18], strides = [1, 1, 1]} : vector<2x20x18xf32> to vector<2x18x18xf32>
    %566 = vector.broadcast %564 : f32 to vector<2x18x18xf32>
    %567 = arith.mulf %566, %565 : vector<2x18x18xf32>
    %568 = arith.addf %561, %567 : vector<2x18x18xf32>
    %c86 = arith.constant 86 : index
    %569 = memref.load %arg3[%c86] : memref<144xf32, #tpu.memory_space<smem>>
    %570 = vector.extract_strided_slice %563 {offsets = [0, 1, 0], sizes = [2, 18, 18], strides = [1, 1, 1]} : vector<2x20x18xf32> to vector<2x18x18xf32>
    %571 = vector.broadcast %569 : f32 to vector<2x18x18xf32>
    %572 = arith.mulf %571, %570 : vector<2x18x18xf32>
    %573 = arith.addf %568, %572 : vector<2x18x18xf32>
    %c89 = arith.constant 89 : index
    %574 = memref.load %arg3[%c89] : memref<144xf32, #tpu.memory_space<smem>>
    %575 = vector.extract_strided_slice %563 {offsets = [0, 2, 0], sizes = [2, 18, 18], strides = [1, 1, 1]} : vector<2x20x18xf32> to vector<2x18x18xf32>
    %576 = vector.broadcast %574 : f32 to vector<2x18x18xf32>
    %577 = arith.mulf %576, %575 : vector<2x18x18xf32>
    %578 = arith.addf %573, %577 : vector<2x18x18xf32>
    %c0_169 = arith.constant 0 : index
    %c2_170 = arith.constant 2 : index
    %c0_171 = arith.constant 0 : index
    %c0_172 = arith.constant 0 : index
    %579 = vector.load %arg7[%c0_169, %c2_170, %c0_171, %c0_172] : memref<2x4x20x20xf32, #tpu.memory_space<vmem>>, vector<2x1x20x18xf32>
    %580 = vector.shape_cast %579 : vector<2x1x20x18xf32> to vector<2x20x18xf32>
    %c90 = arith.constant 90 : index
    %581 = memref.load %arg3[%c90] : memref<144xf32, #tpu.memory_space<smem>>
    %582 = vector.extract_strided_slice %580 {offsets = [0, 0, 0], sizes = [2, 18, 18], strides = [1, 1, 1]} : vector<2x20x18xf32> to vector<2x18x18xf32>
    %583 = vector.broadcast %581 : f32 to vector<2x18x18xf32>
    %584 = arith.mulf %583, %582 : vector<2x18x18xf32>
    %585 = arith.addf %578, %584 : vector<2x18x18xf32>
    %c93 = arith.constant 93 : index
    %586 = memref.load %arg3[%c93] : memref<144xf32, #tpu.memory_space<smem>>
    %587 = vector.extract_strided_slice %580 {offsets = [0, 1, 0], sizes = [2, 18, 18], strides = [1, 1, 1]} : vector<2x20x18xf32> to vector<2x18x18xf32>
    %588 = vector.broadcast %586 : f32 to vector<2x18x18xf32>
    %589 = arith.mulf %588, %587 : vector<2x18x18xf32>
    %590 = arith.addf %585, %589 : vector<2x18x18xf32>
    %c96 = arith.constant 96 : index
    %591 = memref.load %arg3[%c96] : memref<144xf32, #tpu.memory_space<smem>>
    %592 = vector.extract_strided_slice %580 {offsets = [0, 2, 0], sizes = [2, 18, 18], strides = [1, 1, 1]} : vector<2x20x18xf32> to vector<2x18x18xf32>
    %593 = vector.broadcast %591 : f32 to vector<2x18x18xf32>
    %594 = arith.mulf %593, %592 : vector<2x18x18xf32>
    %595 = arith.addf %590, %594 : vector<2x18x18xf32>
    %c0_173 = arith.constant 0 : index
    %c2_174 = arith.constant 2 : index
    %c0_175 = arith.constant 0 : index
    %c1_176 = arith.constant 1 : index
    %596 = vector.load %arg7[%c0_173, %c2_174, %c0_175, %c1_176] : memref<2x4x20x20xf32, #tpu.memory_space<vmem>>, vector<2x1x20x18xf32>
    %597 = vector.shape_cast %596 : vector<2x1x20x18xf32> to vector<2x20x18xf32>
    %c91 = arith.constant 91 : index
    %598 = memref.load %arg3[%c91] : memref<144xf32, #tpu.memory_space<smem>>
    %599 = vector.extract_strided_slice %597 {offsets = [0, 0, 0], sizes = [2, 18, 18], strides = [1, 1, 1]} : vector<2x20x18xf32> to vector<2x18x18xf32>
    %600 = vector.broadcast %598 : f32 to vector<2x18x18xf32>
    %601 = arith.mulf %600, %599 : vector<2x18x18xf32>
    %602 = arith.addf %595, %601 : vector<2x18x18xf32>
    %c94 = arith.constant 94 : index
    %603 = memref.load %arg3[%c94] : memref<144xf32, #tpu.memory_space<smem>>
    %604 = vector.extract_strided_slice %597 {offsets = [0, 1, 0], sizes = [2, 18, 18], strides = [1, 1, 1]} : vector<2x20x18xf32> to vector<2x18x18xf32>
    %605 = vector.broadcast %603 : f32 to vector<2x18x18xf32>
    %606 = arith.mulf %605, %604 : vector<2x18x18xf32>
    %607 = arith.addf %602, %606 : vector<2x18x18xf32>
    %c97 = arith.constant 97 : index
    %608 = memref.load %arg3[%c97] : memref<144xf32, #tpu.memory_space<smem>>
    %609 = vector.extract_strided_slice %597 {offsets = [0, 2, 0], sizes = [2, 18, 18], strides = [1, 1, 1]} : vector<2x20x18xf32> to vector<2x18x18xf32>
    %610 = vector.broadcast %608 : f32 to vector<2x18x18xf32>
    %611 = arith.mulf %610, %609 : vector<2x18x18xf32>
    %612 = arith.addf %607, %611 : vector<2x18x18xf32>
    %c0_177 = arith.constant 0 : index
    %c2_178 = arith.constant 2 : index
    %c0_179 = arith.constant 0 : index
    %c2_180 = arith.constant 2 : index
    %613 = vector.load %arg7[%c0_177, %c2_178, %c0_179, %c2_180] : memref<2x4x20x20xf32, #tpu.memory_space<vmem>>, vector<2x1x20x18xf32>
    %614 = vector.shape_cast %613 : vector<2x1x20x18xf32> to vector<2x20x18xf32>
    %c92 = arith.constant 92 : index
    %615 = memref.load %arg3[%c92] : memref<144xf32, #tpu.memory_space<smem>>
    %616 = vector.extract_strided_slice %614 {offsets = [0, 0, 0], sizes = [2, 18, 18], strides = [1, 1, 1]} : vector<2x20x18xf32> to vector<2x18x18xf32>
    %617 = vector.broadcast %615 : f32 to vector<2x18x18xf32>
    %618 = arith.mulf %617, %616 : vector<2x18x18xf32>
    %619 = arith.addf %612, %618 : vector<2x18x18xf32>
    %c95 = arith.constant 95 : index
    %620 = memref.load %arg3[%c95] : memref<144xf32, #tpu.memory_space<smem>>
    %621 = vector.extract_strided_slice %614 {offsets = [0, 1, 0], sizes = [2, 18, 18], strides = [1, 1, 1]} : vector<2x20x18xf32> to vector<2x18x18xf32>
    %622 = vector.broadcast %620 : f32 to vector<2x18x18xf32>
    %623 = arith.mulf %622, %621 : vector<2x18x18xf32>
    %624 = arith.addf %619, %623 : vector<2x18x18xf32>
    %c98 = arith.constant 98 : index
    %625 = memref.load %arg3[%c98] : memref<144xf32, #tpu.memory_space<smem>>
    %626 = vector.extract_strided_slice %614 {offsets = [0, 2, 0], sizes = [2, 18, 18], strides = [1, 1, 1]} : vector<2x20x18xf32> to vector<2x18x18xf32>
    %627 = vector.broadcast %625 : f32 to vector<2x18x18xf32>
    %628 = arith.mulf %627, %626 : vector<2x18x18xf32>
    %629 = arith.addf %624, %628 : vector<2x18x18xf32>
    %c0_181 = arith.constant 0 : index
    %c3_182 = arith.constant 3 : index
    %c0_183 = arith.constant 0 : index
    %c0_184 = arith.constant 0 : index
    %630 = vector.load %arg7[%c0_181, %c3_182, %c0_183, %c0_184] : memref<2x4x20x20xf32, #tpu.memory_space<vmem>>, vector<2x1x20x18xf32>
    %631 = vector.shape_cast %630 : vector<2x1x20x18xf32> to vector<2x20x18xf32>
    %c99 = arith.constant 99 : index
    %632 = memref.load %arg3[%c99] : memref<144xf32, #tpu.memory_space<smem>>
    %633 = vector.extract_strided_slice %631 {offsets = [0, 0, 0], sizes = [2, 18, 18], strides = [1, 1, 1]} : vector<2x20x18xf32> to vector<2x18x18xf32>
    %634 = vector.broadcast %632 : f32 to vector<2x18x18xf32>
    %635 = arith.mulf %634, %633 : vector<2x18x18xf32>
    %636 = arith.addf %629, %635 : vector<2x18x18xf32>
    %c102 = arith.constant 102 : index
    %637 = memref.load %arg3[%c102] : memref<144xf32, #tpu.memory_space<smem>>
    %638 = vector.extract_strided_slice %631 {offsets = [0, 1, 0], sizes = [2, 18, 18], strides = [1, 1, 1]} : vector<2x20x18xf32> to vector<2x18x18xf32>
    %639 = vector.broadcast %637 : f32 to vector<2x18x18xf32>
    %640 = arith.mulf %639, %638 : vector<2x18x18xf32>
    %641 = arith.addf %636, %640 : vector<2x18x18xf32>
    %c105 = arith.constant 105 : index
    %642 = memref.load %arg3[%c105] : memref<144xf32, #tpu.memory_space<smem>>
    %643 = vector.extract_strided_slice %631 {offsets = [0, 2, 0], sizes = [2, 18, 18], strides = [1, 1, 1]} : vector<2x20x18xf32> to vector<2x18x18xf32>
    %644 = vector.broadcast %642 : f32 to vector<2x18x18xf32>
    %645 = arith.mulf %644, %643 : vector<2x18x18xf32>
    %646 = arith.addf %641, %645 : vector<2x18x18xf32>
    %c0_185 = arith.constant 0 : index
    %c3_186 = arith.constant 3 : index
    %c0_187 = arith.constant 0 : index
    %c1_188 = arith.constant 1 : index
    %647 = vector.load %arg7[%c0_185, %c3_186, %c0_187, %c1_188] : memref<2x4x20x20xf32, #tpu.memory_space<vmem>>, vector<2x1x20x18xf32>
    %648 = vector.shape_cast %647 : vector<2x1x20x18xf32> to vector<2x20x18xf32>
    %c100 = arith.constant 100 : index
    %649 = memref.load %arg3[%c100] : memref<144xf32, #tpu.memory_space<smem>>
    %650 = vector.extract_strided_slice %648 {offsets = [0, 0, 0], sizes = [2, 18, 18], strides = [1, 1, 1]} : vector<2x20x18xf32> to vector<2x18x18xf32>
    %651 = vector.broadcast %649 : f32 to vector<2x18x18xf32>
    %652 = arith.mulf %651, %650 : vector<2x18x18xf32>
    %653 = arith.addf %646, %652 : vector<2x18x18xf32>
    %c103 = arith.constant 103 : index
    %654 = memref.load %arg3[%c103] : memref<144xf32, #tpu.memory_space<smem>>
    %655 = vector.extract_strided_slice %648 {offsets = [0, 1, 0], sizes = [2, 18, 18], strides = [1, 1, 1]} : vector<2x20x18xf32> to vector<2x18x18xf32>
    %656 = vector.broadcast %654 : f32 to vector<2x18x18xf32>
    %657 = arith.mulf %656, %655 : vector<2x18x18xf32>
    %658 = arith.addf %653, %657 : vector<2x18x18xf32>
    %c106 = arith.constant 106 : index
    %659 = memref.load %arg3[%c106] : memref<144xf32, #tpu.memory_space<smem>>
    %660 = vector.extract_strided_slice %648 {offsets = [0, 2, 0], sizes = [2, 18, 18], strides = [1, 1, 1]} : vector<2x20x18xf32> to vector<2x18x18xf32>
    %661 = vector.broadcast %659 : f32 to vector<2x18x18xf32>
    %662 = arith.mulf %661, %660 : vector<2x18x18xf32>
    %663 = arith.addf %658, %662 : vector<2x18x18xf32>
    %c0_189 = arith.constant 0 : index
    %c3_190 = arith.constant 3 : index
    %c0_191 = arith.constant 0 : index
    %c2_192 = arith.constant 2 : index
    %664 = vector.load %arg7[%c0_189, %c3_190, %c0_191, %c2_192] : memref<2x4x20x20xf32, #tpu.memory_space<vmem>>, vector<2x1x20x18xf32>
    %665 = vector.shape_cast %664 : vector<2x1x20x18xf32> to vector<2x20x18xf32>
    %c101 = arith.constant 101 : index
    %666 = memref.load %arg3[%c101] : memref<144xf32, #tpu.memory_space<smem>>
    %667 = vector.extract_strided_slice %665 {offsets = [0, 0, 0], sizes = [2, 18, 18], strides = [1, 1, 1]} : vector<2x20x18xf32> to vector<2x18x18xf32>
    %668 = vector.broadcast %666 : f32 to vector<2x18x18xf32>
    %669 = arith.mulf %668, %667 : vector<2x18x18xf32>
    %670 = arith.addf %663, %669 : vector<2x18x18xf32>
    %c104 = arith.constant 104 : index
    %671 = memref.load %arg3[%c104] : memref<144xf32, #tpu.memory_space<smem>>
    %672 = vector.extract_strided_slice %665 {offsets = [0, 1, 0], sizes = [2, 18, 18], strides = [1, 1, 1]} : vector<2x20x18xf32> to vector<2x18x18xf32>
    %673 = vector.broadcast %671 : f32 to vector<2x18x18xf32>
    %674 = arith.mulf %673, %672 : vector<2x18x18xf32>
    %675 = arith.addf %670, %674 : vector<2x18x18xf32>
    %c107 = arith.constant 107 : index
    %676 = memref.load %arg3[%c107] : memref<144xf32, #tpu.memory_space<smem>>
    %677 = vector.extract_strided_slice %665 {offsets = [0, 2, 0], sizes = [2, 18, 18], strides = [1, 1, 1]} : vector<2x20x18xf32> to vector<2x18x18xf32>
    %678 = vector.broadcast %676 : f32 to vector<2x18x18xf32>
    %679 = arith.mulf %678, %677 : vector<2x18x18xf32>
    %680 = arith.addf %675, %679 : vector<2x18x18xf32>
    %681 = vector.shape_cast %680 : vector<2x18x18xf32> to vector<1x2x18x18xf32>
    %cst_193 = arith.constant dense<0.000000e+00> : vector<1xf32>
    %682 = vector.multi_reduction <add>, %681, %cst_193 [1, 2, 3] : vector<1x2x18x18xf32> to vector<1xf32>
    %683 = vector.shape_cast %682 : vector<1xf32> to vector<1x1x1x1xf32>
    %684 = vector.extract %683[0, 0, 0, 0] : f32 from vector<1x1x1x1xf32>
    %cst_194 = arith.constant 0.00154320989 : f32
    %685 = arith.mulf %684, %cst_194 : f32
    %686 = vector.broadcast %685 : f32 to vector<2x18x18xf32>
    %687 = arith.subf %680, %686 : vector<2x18x18xf32>
    %688 = arith.mulf %687, %687 : vector<2x18x18xf32>
    %689 = vector.shape_cast %688 : vector<2x18x18xf32> to vector<1x2x18x18xf32>
    %cst_195 = arith.constant dense<0.000000e+00> : vector<1xf32>
    %690 = vector.multi_reduction <add>, %689, %cst_195 [1, 2, 3] : vector<1x2x18x18xf32> to vector<1xf32>
    %691 = vector.shape_cast %690 : vector<1xf32> to vector<1x1x1x1xf32>
    %692 = vector.extract %691[0, 0, 0, 0] : f32 from vector<1x1x1x1xf32>
    %cst_196 = arith.constant 0.00154320989 : f32
    %693 = arith.mulf %692, %cst_196 : f32
    %cst_197 = arith.constant 9.99999974E-6 : f32
    %694 = arith.addf %693, %cst_197 : f32
    %695 = math.rsqrt %694 : f32
    %c2_198 = arith.constant 2 : index
    %696 = memref.load %arg4[%c2_198] : memref<4xf32, #tpu.memory_space<smem>>
    %697 = arith.mulf %695, %696 : f32
    %698 = vector.broadcast %697 : f32 to vector<2x18x18xf32>
    %699 = arith.mulf %687, %698 : vector<2x18x18xf32>
    %c2_199 = arith.constant 2 : index
    %700 = memref.load %arg5[%c2_199] : memref<4xf32, #tpu.memory_space<smem>>
    %701 = vector.broadcast %700 : f32 to vector<2x18x18xf32>
    %702 = arith.addf %699, %701 : vector<2x18x18xf32>
    %cst_200 = arith.constant 0.000000e+00 : f32
    %703 = vector.broadcast %cst_200 : f32 to vector<2x18x18xf32>
    %704 = arith.cmpf oge, %702, %703 : vector<2x18x18xf32>
    %cst_201 = arith.constant 0.00999999977 : f32
    %705 = vector.broadcast %cst_201 : f32 to vector<2x18x18xf32>
    %706 = arith.mulf %705, %702 : vector<2x18x18xf32>
    %707 = arith.select %704, %702, %706 : vector<2x18x18xi1>, vector<2x18x18xf32>
    %c0_202 = arith.constant 0 : index
    %c2_203 = arith.constant 2 : index
    %c0_204 = arith.constant 0 : index
    %c0_205 = arith.constant 0 : index
    %708 = vector.load %arg6[%c0_202, %c2_203, %c0_204, %c0_205] : memref<2x4x18x18xf32, #tpu.memory_space<vmem>>, vector<2x1x18x18xf32>
    %709 = vector.shape_cast %708 : vector<2x1x18x18xf32> to vector<2x18x18xf32>
    %710 = vector.shape_cast %707 : vector<2x18x18xf32> to vector<2x1x18x18xf32>
    tpu.vector_store %arg6[%c0_202, %c2_203, %c0_204, %c0_205], %710 {strides = array<i32>} : memref<2x4x18x18xf32, #tpu.memory_space<vmem>>, vector<2x1x18x18xf32>,
    %cst_206 = arith.constant 0.000000e+00 : f32
    %711 = vector.broadcast %cst_206 : f32 to vector<2x18x18xf32>
    %c0_207 = arith.constant 0 : index
    %c0_208 = arith.constant 0 : index
    %c0_209 = arith.constant 0 : index
    %c0_210 = arith.constant 0 : index
    %712 = vector.load %arg7[%c0_207, %c0_208, %c0_209, %c0_210] : memref<2x4x20x20xf32, #tpu.memory_space<vmem>>, vector<2x1x20x18xf32>
    %713 = vector.shape_cast %712 : vector<2x1x20x18xf32> to vector<2x20x18xf32>
    %c108 = arith.constant 108 : index
    %714 = memref.load %arg3[%c108] : memref<144xf32, #tpu.memory_space<smem>>
    %715 = vector.extract_strided_slice %713 {offsets = [0, 0, 0], sizes = [2, 18, 18], strides = [1, 1, 1]} : vector<2x20x18xf32> to vector<2x18x18xf32>
    %716 = vector.broadcast %714 : f32 to vector<2x18x18xf32>
    %717 = arith.mulf %716, %715 : vector<2x18x18xf32>
    %718 = arith.addf %711, %717 : vector<2x18x18xf32>
    %c111 = arith.constant 111 : index
    %719 = memref.load %arg3[%c111] : memref<144xf32, #tpu.memory_space<smem>>
    %720 = vector.extract_strided_slice %713 {offsets = [0, 1, 0], sizes = [2, 18, 18], strides = [1, 1, 1]} : vector<2x20x18xf32> to vector<2x18x18xf32>
    %721 = vector.broadcast %719 : f32 to vector<2x18x18xf32>
    %722 = arith.mulf %721, %720 : vector<2x18x18xf32>
    %723 = arith.addf %718, %722 : vector<2x18x18xf32>
    %c114 = arith.constant 114 : index
    %724 = memref.load %arg3[%c114] : memref<144xf32, #tpu.memory_space<smem>>
    %725 = vector.extract_strided_slice %713 {offsets = [0, 2, 0], sizes = [2, 18, 18], strides = [1, 1, 1]} : vector<2x20x18xf32> to vector<2x18x18xf32>
    %726 = vector.broadcast %724 : f32 to vector<2x18x18xf32>
    %727 = arith.mulf %726, %725 : vector<2x18x18xf32>
    %728 = arith.addf %723, %727 : vector<2x18x18xf32>
    %c0_211 = arith.constant 0 : index
    %c0_212 = arith.constant 0 : index
    %c0_213 = arith.constant 0 : index
    %c1_214 = arith.constant 1 : index
    %729 = vector.load %arg7[%c0_211, %c0_212, %c0_213, %c1_214] : memref<2x4x20x20xf32, #tpu.memory_space<vmem>>, vector<2x1x20x18xf32>
    %730 = vector.shape_cast %729 : vector<2x1x20x18xf32> to vector<2x20x18xf32>
    %c109 = arith.constant 109 : index
    %731 = memref.load %arg3[%c109] : memref<144xf32, #tpu.memory_space<smem>>
    %732 = vector.extract_strided_slice %730 {offsets = [0, 0, 0], sizes = [2, 18, 18], strides = [1, 1, 1]} : vector<2x20x18xf32> to vector<2x18x18xf32>
    %733 = vector.broadcast %731 : f32 to vector<2x18x18xf32>
    %734 = arith.mulf %733, %732 : vector<2x18x18xf32>
    %735 = arith.addf %728, %734 : vector<2x18x18xf32>
    %c112 = arith.constant 112 : index
    %736 = memref.load %arg3[%c112] : memref<144xf32, #tpu.memory_space<smem>>
    %737 = vector.extract_strided_slice %730 {offsets = [0, 1, 0], sizes = [2, 18, 18], strides = [1, 1, 1]} : vector<2x20x18xf32> to vector<2x18x18xf32>
    %738 = vector.broadcast %736 : f32 to vector<2x18x18xf32>
    %739 = arith.mulf %738, %737 : vector<2x18x18xf32>
    %740 = arith.addf %735, %739 : vector<2x18x18xf32>
    %c115 = arith.constant 115 : index
    %741 = memref.load %arg3[%c115] : memref<144xf32, #tpu.memory_space<smem>>
    %742 = vector.extract_strided_slice %730 {offsets = [0, 2, 0], sizes = [2, 18, 18], strides = [1, 1, 1]} : vector<2x20x18xf32> to vector<2x18x18xf32>
    %743 = vector.broadcast %741 : f32 to vector<2x18x18xf32>
    %744 = arith.mulf %743, %742 : vector<2x18x18xf32>
    %745 = arith.addf %740, %744 : vector<2x18x18xf32>
    %c0_215 = arith.constant 0 : index
    %c0_216 = arith.constant 0 : index
    %c0_217 = arith.constant 0 : index
    %c2_218 = arith.constant 2 : index
    %746 = vector.load %arg7[%c0_215, %c0_216, %c0_217, %c2_218] : memref<2x4x20x20xf32, #tpu.memory_space<vmem>>, vector<2x1x20x18xf32>
    %747 = vector.shape_cast %746 : vector<2x1x20x18xf32> to vector<2x20x18xf32>
    %c110 = arith.constant 110 : index
    %748 = memref.load %arg3[%c110] : memref<144xf32, #tpu.memory_space<smem>>
    %749 = vector.extract_strided_slice %747 {offsets = [0, 0, 0], sizes = [2, 18, 18], strides = [1, 1, 1]} : vector<2x20x18xf32> to vector<2x18x18xf32>
    %750 = vector.broadcast %748 : f32 to vector<2x18x18xf32>
    %751 = arith.mulf %750, %749 : vector<2x18x18xf32>
    %752 = arith.addf %745, %751 : vector<2x18x18xf32>
    %c113 = arith.constant 113 : index
    %753 = memref.load %arg3[%c113] : memref<144xf32, #tpu.memory_space<smem>>
    %754 = vector.extract_strided_slice %747 {offsets = [0, 1, 0], sizes = [2, 18, 18], strides = [1, 1, 1]} : vector<2x20x18xf32> to vector<2x18x18xf32>
    %755 = vector.broadcast %753 : f32 to vector<2x18x18xf32>
    %756 = arith.mulf %755, %754 : vector<2x18x18xf32>
    %757 = arith.addf %752, %756 : vector<2x18x18xf32>
    %c116 = arith.constant 116 : index
    %758 = memref.load %arg3[%c116] : memref<144xf32, #tpu.memory_space<smem>>
    %759 = vector.extract_strided_slice %747 {offsets = [0, 2, 0], sizes = [2, 18, 18], strides = [1, 1, 1]} : vector<2x20x18xf32> to vector<2x18x18xf32>
    %760 = vector.broadcast %758 : f32 to vector<2x18x18xf32>
    %761 = arith.mulf %760, %759 : vector<2x18x18xf32>
    %762 = arith.addf %757, %761 : vector<2x18x18xf32>
    %c0_219 = arith.constant 0 : index
    %c1_220 = arith.constant 1 : index
    %c0_221 = arith.constant 0 : index
    %c0_222 = arith.constant 0 : index
    %763 = vector.load %arg7[%c0_219, %c1_220, %c0_221, %c0_222] : memref<2x4x20x20xf32, #tpu.memory_space<vmem>>, vector<2x1x20x18xf32>
    %764 = vector.shape_cast %763 : vector<2x1x20x18xf32> to vector<2x20x18xf32>
    %c117 = arith.constant 117 : index
    %765 = memref.load %arg3[%c117] : memref<144xf32, #tpu.memory_space<smem>>
    %766 = vector.extract_strided_slice %764 {offsets = [0, 0, 0], sizes = [2, 18, 18], strides = [1, 1, 1]} : vector<2x20x18xf32> to vector<2x18x18xf32>
    %767 = vector.broadcast %765 : f32 to vector<2x18x18xf32>
    %768 = arith.mulf %767, %766 : vector<2x18x18xf32>
    %769 = arith.addf %762, %768 : vector<2x18x18xf32>
    %c120 = arith.constant 120 : index
    %770 = memref.load %arg3[%c120] : memref<144xf32, #tpu.memory_space<smem>>
    %771 = vector.extract_strided_slice %764 {offsets = [0, 1, 0], sizes = [2, 18, 18], strides = [1, 1, 1]} : vector<2x20x18xf32> to vector<2x18x18xf32>
    %772 = vector.broadcast %770 : f32 to vector<2x18x18xf32>
    %773 = arith.mulf %772, %771 : vector<2x18x18xf32>
    %774 = arith.addf %769, %773 : vector<2x18x18xf32>
    %c123 = arith.constant 123 : index
    %775 = memref.load %arg3[%c123] : memref<144xf32, #tpu.memory_space<smem>>
    %776 = vector.extract_strided_slice %764 {offsets = [0, 2, 0], sizes = [2, 18, 18], strides = [1, 1, 1]} : vector<2x20x18xf32> to vector<2x18x18xf32>
    %777 = vector.broadcast %775 : f32 to vector<2x18x18xf32>
    %778 = arith.mulf %777, %776 : vector<2x18x18xf32>
    %779 = arith.addf %774, %778 : vector<2x18x18xf32>
    %c0_223 = arith.constant 0 : index
    %c1_224 = arith.constant 1 : index
    %c0_225 = arith.constant 0 : index
    %c1_226 = arith.constant 1 : index
    %780 = vector.load %arg7[%c0_223, %c1_224, %c0_225, %c1_226] : memref<2x4x20x20xf32, #tpu.memory_space<vmem>>, vector<2x1x20x18xf32>
    %781 = vector.shape_cast %780 : vector<2x1x20x18xf32> to vector<2x20x18xf32>
    %c118 = arith.constant 118 : index
    %782 = memref.load %arg3[%c118] : memref<144xf32, #tpu.memory_space<smem>>
    %783 = vector.extract_strided_slice %781 {offsets = [0, 0, 0], sizes = [2, 18, 18], strides = [1, 1, 1]} : vector<2x20x18xf32> to vector<2x18x18xf32>
    %784 = vector.broadcast %782 : f32 to vector<2x18x18xf32>
    %785 = arith.mulf %784, %783 : vector<2x18x18xf32>
    %786 = arith.addf %779, %785 : vector<2x18x18xf32>
    %c121 = arith.constant 121 : index
    %787 = memref.load %arg3[%c121] : memref<144xf32, #tpu.memory_space<smem>>
    %788 = vector.extract_strided_slice %781 {offsets = [0, 1, 0], sizes = [2, 18, 18], strides = [1, 1, 1]} : vector<2x20x18xf32> to vector<2x18x18xf32>
    %789 = vector.broadcast %787 : f32 to vector<2x18x18xf32>
    %790 = arith.mulf %789, %788 : vector<2x18x18xf32>
    %791 = arith.addf %786, %790 : vector<2x18x18xf32>
    %c124 = arith.constant 124 : index
    %792 = memref.load %arg3[%c124] : memref<144xf32, #tpu.memory_space<smem>>
    %793 = vector.extract_strided_slice %781 {offsets = [0, 2, 0], sizes = [2, 18, 18], strides = [1, 1, 1]} : vector<2x20x18xf32> to vector<2x18x18xf32>
    %794 = vector.broadcast %792 : f32 to vector<2x18x18xf32>
    %795 = arith.mulf %794, %793 : vector<2x18x18xf32>
    %796 = arith.addf %791, %795 : vector<2x18x18xf32>
    %c0_227 = arith.constant 0 : index
    %c1_228 = arith.constant 1 : index
    %c0_229 = arith.constant 0 : index
    %c2_230 = arith.constant 2 : index
    %797 = vector.load %arg7[%c0_227, %c1_228, %c0_229, %c2_230] : memref<2x4x20x20xf32, #tpu.memory_space<vmem>>, vector<2x1x20x18xf32>
    %798 = vector.shape_cast %797 : vector<2x1x20x18xf32> to vector<2x20x18xf32>
    %c119 = arith.constant 119 : index
    %799 = memref.load %arg3[%c119] : memref<144xf32, #tpu.memory_space<smem>>
    %800 = vector.extract_strided_slice %798 {offsets = [0, 0, 0], sizes = [2, 18, 18], strides = [1, 1, 1]} : vector<2x20x18xf32> to vector<2x18x18xf32>
    %801 = vector.broadcast %799 : f32 to vector<2x18x18xf32>
    %802 = arith.mulf %801, %800 : vector<2x18x18xf32>
    %803 = arith.addf %796, %802 : vector<2x18x18xf32>
    %c122 = arith.constant 122 : index
    %804 = memref.load %arg3[%c122] : memref<144xf32, #tpu.memory_space<smem>>
    %805 = vector.extract_strided_slice %798 {offsets = [0, 1, 0], sizes = [2, 18, 18], strides = [1, 1, 1]} : vector<2x20x18xf32> to vector<2x18x18xf32>
    %806 = vector.broadcast %804 : f32 to vector<2x18x18xf32>
    %807 = arith.mulf %806, %805 : vector<2x18x18xf32>
    %808 = arith.addf %803, %807 : vector<2x18x18xf32>
    %c125 = arith.constant 125 : index
    %809 = memref.load %arg3[%c125] : memref<144xf32, #tpu.memory_space<smem>>
    %810 = vector.extract_strided_slice %798 {offsets = [0, 2, 0], sizes = [2, 18, 18], strides = [1, 1, 1]} : vector<2x20x18xf32> to vector<2x18x18xf32>
    %811 = vector.broadcast %809 : f32 to vector<2x18x18xf32>
    %812 = arith.mulf %811, %810 : vector<2x18x18xf32>
    %813 = arith.addf %808, %812 : vector<2x18x18xf32>
    %c0_231 = arith.constant 0 : index
    %c2_232 = arith.constant 2 : index
    %c0_233 = arith.constant 0 : index
    %c0_234 = arith.constant 0 : index
    %814 = vector.load %arg7[%c0_231, %c2_232, %c0_233, %c0_234] : memref<2x4x20x20xf32, #tpu.memory_space<vmem>>, vector<2x1x20x18xf32>
    %815 = vector.shape_cast %814 : vector<2x1x20x18xf32> to vector<2x20x18xf32>
    %c126 = arith.constant 126 : index
    %816 = memref.load %arg3[%c126] : memref<144xf32, #tpu.memory_space<smem>>
    %817 = vector.extract_strided_slice %815 {offsets = [0, 0, 0], sizes = [2, 18, 18], strides = [1, 1, 1]} : vector<2x20x18xf32> to vector<2x18x18xf32>
    %818 = vector.broadcast %816 : f32 to vector<2x18x18xf32>
    %819 = arith.mulf %818, %817 : vector<2x18x18xf32>
    %820 = arith.addf %813, %819 : vector<2x18x18xf32>
    %c129 = arith.constant 129 : index
    %821 = memref.load %arg3[%c129] : memref<144xf32, #tpu.memory_space<smem>>
    %822 = vector.extract_strided_slice %815 {offsets = [0, 1, 0], sizes = [2, 18, 18], strides = [1, 1, 1]} : vector<2x20x18xf32> to vector<2x18x18xf32>
    %823 = vector.broadcast %821 : f32 to vector<2x18x18xf32>
    %824 = arith.mulf %823, %822 : vector<2x18x18xf32>
    %825 = arith.addf %820, %824 : vector<2x18x18xf32>
    %c132 = arith.constant 132 : index
    %826 = memref.load %arg3[%c132] : memref<144xf32, #tpu.memory_space<smem>>
    %827 = vector.extract_strided_slice %815 {offsets = [0, 2, 0], sizes = [2, 18, 18], strides = [1, 1, 1]} : vector<2x20x18xf32> to vector<2x18x18xf32>
    %828 = vector.broadcast %826 : f32 to vector<2x18x18xf32>
    %829 = arith.mulf %828, %827 : vector<2x18x18xf32>
    %830 = arith.addf %825, %829 : vector<2x18x18xf32>
    %c0_235 = arith.constant 0 : index
    %c2_236 = arith.constant 2 : index
    %c0_237 = arith.constant 0 : index
    %c1_238 = arith.constant 1 : index
    %831 = vector.load %arg7[%c0_235, %c2_236, %c0_237, %c1_238] : memref<2x4x20x20xf32, #tpu.memory_space<vmem>>, vector<2x1x20x18xf32>
    %832 = vector.shape_cast %831 : vector<2x1x20x18xf32> to vector<2x20x18xf32>
    %c127 = arith.constant 127 : index
    %833 = memref.load %arg3[%c127] : memref<144xf32, #tpu.memory_space<smem>>
    %834 = vector.extract_strided_slice %832 {offsets = [0, 0, 0], sizes = [2, 18, 18], strides = [1, 1, 1]} : vector<2x20x18xf32> to vector<2x18x18xf32>
    %835 = vector.broadcast %833 : f32 to vector<2x18x18xf32>
    %836 = arith.mulf %835, %834 : vector<2x18x18xf32>
    %837 = arith.addf %830, %836 : vector<2x18x18xf32>
    %c130 = arith.constant 130 : index
    %838 = memref.load %arg3[%c130] : memref<144xf32, #tpu.memory_space<smem>>
    %839 = vector.extract_strided_slice %832 {offsets = [0, 1, 0], sizes = [2, 18, 18], strides = [1, 1, 1]} : vector<2x20x18xf32> to vector<2x18x18xf32>
    %840 = vector.broadcast %838 : f32 to vector<2x18x18xf32>
    %841 = arith.mulf %840, %839 : vector<2x18x18xf32>
    %842 = arith.addf %837, %841 : vector<2x18x18xf32>
    %c133 = arith.constant 133 : index
    %843 = memref.load %arg3[%c133] : memref<144xf32, #tpu.memory_space<smem>>
    %844 = vector.extract_strided_slice %832 {offsets = [0, 2, 0], sizes = [2, 18, 18], strides = [1, 1, 1]} : vector<2x20x18xf32> to vector<2x18x18xf32>
    %845 = vector.broadcast %843 : f32 to vector<2x18x18xf32>
    %846 = arith.mulf %845, %844 : vector<2x18x18xf32>
    %847 = arith.addf %842, %846 : vector<2x18x18xf32>
    %c0_239 = arith.constant 0 : index
    %c2_240 = arith.constant 2 : index
    %c0_241 = arith.constant 0 : index
    %c2_242 = arith.constant 2 : index
    %848 = vector.load %arg7[%c0_239, %c2_240, %c0_241, %c2_242] : memref<2x4x20x20xf32, #tpu.memory_space<vmem>>, vector<2x1x20x18xf32>
    %849 = vector.shape_cast %848 : vector<2x1x20x18xf32> to vector<2x20x18xf32>
    %c128 = arith.constant 128 : index
    %850 = memref.load %arg3[%c128] : memref<144xf32, #tpu.memory_space<smem>>
    %851 = vector.extract_strided_slice %849 {offsets = [0, 0, 0], sizes = [2, 18, 18], strides = [1, 1, 1]} : vector<2x20x18xf32> to vector<2x18x18xf32>
    %852 = vector.broadcast %850 : f32 to vector<2x18x18xf32>
    %853 = arith.mulf %852, %851 : vector<2x18x18xf32>
    %854 = arith.addf %847, %853 : vector<2x18x18xf32>
    %c131 = arith.constant 131 : index
    %855 = memref.load %arg3[%c131] : memref<144xf32, #tpu.memory_space<smem>>
    %856 = vector.extract_strided_slice %849 {offsets = [0, 1, 0], sizes = [2, 18, 18], strides = [1, 1, 1]} : vector<2x20x18xf32> to vector<2x18x18xf32>
    %857 = vector.broadcast %855 : f32 to vector<2x18x18xf32>
    %858 = arith.mulf %857, %856 : vector<2x18x18xf32>
    %859 = arith.addf %854, %858 : vector<2x18x18xf32>
    %c134 = arith.constant 134 : index
    %860 = memref.load %arg3[%c134] : memref<144xf32, #tpu.memory_space<smem>>
    %861 = vector.extract_strided_slice %849 {offsets = [0, 2, 0], sizes = [2, 18, 18], strides = [1, 1, 1]} : vector<2x20x18xf32> to vector<2x18x18xf32>
    %862 = vector.broadcast %860 : f32 to vector<2x18x18xf32>
    %863 = arith.mulf %862, %861 : vector<2x18x18xf32>
    %864 = arith.addf %859, %863 : vector<2x18x18xf32>
    %c0_243 = arith.constant 0 : index
    %c3_244 = arith.constant 3 : index
    %c0_245 = arith.constant 0 : index
    %c0_246 = arith.constant 0 : index
    %865 = vector.load %arg7[%c0_243, %c3_244, %c0_245, %c0_246] : memref<2x4x20x20xf32, #tpu.memory_space<vmem>>, vector<2x1x20x18xf32>
    %866 = vector.shape_cast %865 : vector<2x1x20x18xf32> to vector<2x20x18xf32>
    %c135 = arith.constant 135 : index
    %867 = memref.load %arg3[%c135] : memref<144xf32, #tpu.memory_space<smem>>
    %868 = vector.extract_strided_slice %866 {offsets = [0, 0, 0], sizes = [2, 18, 18], strides = [1, 1, 1]} : vector<2x20x18xf32> to vector<2x18x18xf32>
    %869 = vector.broadcast %867 : f32 to vector<2x18x18xf32>
    %870 = arith.mulf %869, %868 : vector<2x18x18xf32>
    %871 = arith.addf %864, %870 : vector<2x18x18xf32>
    %c138 = arith.constant 138 : index
    %872 = memref.load %arg3[%c138] : memref<144xf32, #tpu.memory_space<smem>>
    %873 = vector.extract_strided_slice %866 {offsets = [0, 1, 0], sizes = [2, 18, 18], strides = [1, 1, 1]} : vector<2x20x18xf32> to vector<2x18x18xf32>
    %874 = vector.broadcast %872 : f32 to vector<2x18x18xf32>
    %875 = arith.mulf %874, %873 : vector<2x18x18xf32>
    %876 = arith.addf %871, %875 : vector<2x18x18xf32>
    %c141 = arith.constant 141 : index
    %877 = memref.load %arg3[%c141] : memref<144xf32, #tpu.memory_space<smem>>
    %878 = vector.extract_strided_slice %866 {offsets = [0, 2, 0], sizes = [2, 18, 18], strides = [1, 1, 1]} : vector<2x20x18xf32> to vector<2x18x18xf32>
    %879 = vector.broadcast %877 : f32 to vector<2x18x18xf32>
    %880 = arith.mulf %879, %878 : vector<2x18x18xf32>
    %881 = arith.addf %876, %880 : vector<2x18x18xf32>
    %c0_247 = arith.constant 0 : index
    %c3_248 = arith.constant 3 : index
    %c0_249 = arith.constant 0 : index
    %c1_250 = arith.constant 1 : index
    %882 = vector.load %arg7[%c0_247, %c3_248, %c0_249, %c1_250] : memref<2x4x20x20xf32, #tpu.memory_space<vmem>>, vector<2x1x20x18xf32>
    %883 = vector.shape_cast %882 : vector<2x1x20x18xf32> to vector<2x20x18xf32>
    %c136 = arith.constant 136 : index
    %884 = memref.load %arg3[%c136] : memref<144xf32, #tpu.memory_space<smem>>
    %885 = vector.extract_strided_slice %883 {offsets = [0, 0, 0], sizes = [2, 18, 18], strides = [1, 1, 1]} : vector<2x20x18xf32> to vector<2x18x18xf32>
    %886 = vector.broadcast %884 : f32 to vector<2x18x18xf32>
    %887 = arith.mulf %886, %885 : vector<2x18x18xf32>
    %888 = arith.addf %881, %887 : vector<2x18x18xf32>
    %c139 = arith.constant 139 : index
    %889 = memref.load %arg3[%c139] : memref<144xf32, #tpu.memory_space<smem>>
    %890 = vector.extract_strided_slice %883 {offsets = [0, 1, 0], sizes = [2, 18, 18], strides = [1, 1, 1]} : vector<2x20x18xf32> to vector<2x18x18xf32>
    %891 = vector.broadcast %889 : f32 to vector<2x18x18xf32>
    %892 = arith.mulf %891, %890 : vector<2x18x18xf32>
    %893 = arith.addf %888, %892 : vector<2x18x18xf32>
    %c142 = arith.constant 142 : index
    %894 = memref.load %arg3[%c142] : memref<144xf32, #tpu.memory_space<smem>>
    %895 = vector.extract_strided_slice %883 {offsets = [0, 2, 0], sizes = [2, 18, 18], strides = [1, 1, 1]} : vector<2x20x18xf32> to vector<2x18x18xf32>
    %896 = vector.broadcast %894 : f32 to vector<2x18x18xf32>
    %897 = arith.mulf %896, %895 : vector<2x18x18xf32>
    %898 = arith.addf %893, %897 : vector<2x18x18xf32>
    %c0_251 = arith.constant 0 : index
    %c3_252 = arith.constant 3 : index
    %c0_253 = arith.constant 0 : index
    %c2_254 = arith.constant 2 : index
    %899 = vector.load %arg7[%c0_251, %c3_252, %c0_253, %c2_254] : memref<2x4x20x20xf32, #tpu.memory_space<vmem>>, vector<2x1x20x18xf32>
    %900 = vector.shape_cast %899 : vector<2x1x20x18xf32> to vector<2x20x18xf32>
    %c137 = arith.constant 137 : index
    %901 = memref.load %arg3[%c137] : memref<144xf32, #tpu.memory_space<smem>>
    %902 = vector.extract_strided_slice %900 {offsets = [0, 0, 0], sizes = [2, 18, 18], strides = [1, 1, 1]} : vector<2x20x18xf32> to vector<2x18x18xf32>
    %903 = vector.broadcast %901 : f32 to vector<2x18x18xf32>
    %904 = arith.mulf %903, %902 : vector<2x18x18xf32>
    %905 = arith.addf %898, %904 : vector<2x18x18xf32>
    %c140 = arith.constant 140 : index
    %906 = memref.load %arg3[%c140] : memref<144xf32, #tpu.memory_space<smem>>
    %907 = vector.extract_strided_slice %900 {offsets = [0, 1, 0], sizes = [2, 18, 18], strides = [1, 1, 1]} : vector<2x20x18xf32> to vector<2x18x18xf32>
    %908 = vector.broadcast %906 : f32 to vector<2x18x18xf32>
    %909 = arith.mulf %908, %907 : vector<2x18x18xf32>
    %910 = arith.addf %905, %909 : vector<2x18x18xf32>
    %c143 = arith.constant 143 : index
    %911 = memref.load %arg3[%c143] : memref<144xf32, #tpu.memory_space<smem>>
    %912 = vector.extract_strided_slice %900 {offsets = [0, 2, 0], sizes = [2, 18, 18], strides = [1, 1, 1]} : vector<2x20x18xf32> to vector<2x18x18xf32>
    %913 = vector.broadcast %911 : f32 to vector<2x18x18xf32>
    %914 = arith.mulf %913, %912 : vector<2x18x18xf32>
    %915 = arith.addf %910, %914 : vector<2x18x18xf32>
    %916 = vector.shape_cast %915 : vector<2x18x18xf32> to vector<1x2x18x18xf32>
    %cst_255 = arith.constant dense<0.000000e+00> : vector<1xf32>
    %917 = vector.multi_reduction <add>, %916, %cst_255 [1, 2, 3] : vector<1x2x18x18xf32> to vector<1xf32>
    %918 = vector.shape_cast %917 : vector<1xf32> to vector<1x1x1x1xf32>
    %919 = vector.extract %918[0, 0, 0, 0] : f32 from vector<1x1x1x1xf32>
    %cst_256 = arith.constant 0.00154320989 : f32
    %920 = arith.mulf %919, %cst_256 : f32
    %921 = vector.broadcast %920 : f32 to vector<2x18x18xf32>
    %922 = arith.subf %915, %921 : vector<2x18x18xf32>
    %923 = arith.mulf %922, %922 : vector<2x18x18xf32>
    %924 = vector.shape_cast %923 : vector<2x18x18xf32> to vector<1x2x18x18xf32>
    %cst_257 = arith.constant dense<0.000000e+00> : vector<1xf32>
    %925 = vector.multi_reduction <add>, %924, %cst_257 [1, 2, 3] : vector<1x2x18x18xf32> to vector<1xf32>
    %926 = vector.shape_cast %925 : vector<1xf32> to vector<1x1x1x1xf32>
    %927 = vector.extract %926[0, 0, 0, 0] : f32 from vector<1x1x1x1xf32>
    %cst_258 = arith.constant 0.00154320989 : f32
    %928 = arith.mulf %927, %cst_258 : f32
    %cst_259 = arith.constant 9.99999974E-6 : f32
    %929 = arith.addf %928, %cst_259 : f32
    %930 = math.rsqrt %929 : f32
    %c3_260 = arith.constant 3 : index
    %931 = memref.load %arg4[%c3_260] : memref<4xf32, #tpu.memory_space<smem>>
    %932 = arith.mulf %930, %931 : f32
    %933 = vector.broadcast %932 : f32 to vector<2x18x18xf32>
    %934 = arith.mulf %922, %933 : vector<2x18x18xf32>
    %c3_261 = arith.constant 3 : index
    %935 = memref.load %arg5[%c3_261] : memref<4xf32, #tpu.memory_space<smem>>
    %936 = vector.broadcast %935 : f32 to vector<2x18x18xf32>
    %937 = arith.addf %934, %936 : vector<2x18x18xf32>
    %cst_262 = arith.constant 0.000000e+00 : f32
    %938 = vector.broadcast %cst_262 : f32 to vector<2x18x18xf32>
    %939 = arith.cmpf oge, %937, %938 : vector<2x18x18xf32>
    %cst_263 = arith.constant 0.00999999977 : f32
    %940 = vector.broadcast %cst_263 : f32 to vector<2x18x18xf32>
    %941 = arith.mulf %940, %937 : vector<2x18x18xf32>
    %942 = arith.select %939, %937, %941 : vector<2x18x18xi1>, vector<2x18x18xf32>
    %c0_264 = arith.constant 0 : index
    %c3_265 = arith.constant 3 : index
    %c0_266 = arith.constant 0 : index
    %c0_267 = arith.constant 0 : index
    %943 = vector.load %arg6[%c0_264, %c3_265, %c0_266, %c0_267] : memref<2x4x18x18xf32, #tpu.memory_space<vmem>>, vector<2x1x18x18xf32>
    %944 = vector.shape_cast %943 : vector<2x1x18x18xf32> to vector<2x18x18xf32>
    %945 = vector.shape_cast %942 : vector<2x18x18xf32> to vector<2x1x18x18xf32>
    tpu.vector_store %arg6[%c0_264, %c3_265, %c0_266, %c0_267], %945 {strides = array<i32>} : memref<2x4x18x18xf32, #tpu.memory_space<vmem>>, vector<2x1x18x18xf32>,
    return
  }
  func.func @transform_0(%arg0: i32) -> (i32, i32, i32, i32) {
    %c0_i32 = arith.constant 0 : i32
    %c0_i32_0 = arith.constant 0 : i32
    %c0_i32_1 = arith.constant 0 : i32
    %c0_i32_2 = arith.constant 0 : i32
    %c0_i32_3 = arith.constant 0 : i32
    return %c0_i32, %c0_i32_0, %c0_i32_1, %c0_i32_2 : i32, i32, i32, i32
  }
  func.func @transform_1(%arg0: i32) -> (i32, i32, i32, i32) {
    %c0_i32 = arith.constant 0 : i32
    %c0_i32_0 = arith.constant 0 : i32
    %c0_i32_1 = arith.constant 0 : i32
    %c0_i32_2 = arith.constant 0 : i32
    %c0_i32_3 = arith.constant 0 : i32
    return %c0_i32, %c0_i32_0, %c0_i32_1, %c0_i32_2 : i32, i32, i32, i32
  }
  func.func @transform_2(%arg0: i32) -> i32 {
    %c0_i32 = arith.constant 0 : i32
    %c0_i32_0 = arith.constant 0 : i32
    return %c0_i32 : i32
  }
  func.func @transform_3(%arg0: i32) -> i32 {
    %c0_i32 = arith.constant 0 : i32
    %c0_i32_0 = arith.constant 0 : i32
    return %c0_i32 : i32
  }
  func.func @transform_4(%arg0: i32) -> i32 {
    %c0_i32 = arith.constant 0 : i32
    %c0_i32_0 = arith.constant 0 : i32
    return %c0_i32 : i32
  }
  func.func @transform_5(%arg0: i32) -> (i32, i32, i32, i32) {
    %c0_i32 = arith.constant 0 : i32
    %c0_i32_0 = arith.constant 0 : i32
    %c0_i32_1 = arith.constant 0 : i32
    %c0_i32_2 = arith.constant 0 : i32
    %c0_i32_3 = arith.constant 0 : i32
    return %c0_i32, %c0_i32_0, %c0_i32_1, %c0_i32_2 : i32, i32, i32, i32
  }
}

</mosaic_0001>

<llo_original>
// kernel: tpu_custom_call.1
$region0: #{tpu_custom_call.1}
  #allocation0 [shape = 'u32[]', space=smem, size = 0x4, offset = 0x4, fixed_abs, tag = 'smem constant byte address 0x4 - core index']
  #allocation1 [shape = 'u32[144,128]{1,0:T(1,128)}', space=vmem, size = 0x12000, scoped, tag = 'internal scratch']
  #allocation2 [shape = 'f32[2,4,20,20]{3,2,1,0:T(8,128)}', space=vmem, size = 0x18000, scoped, tag = 'scratch operand']
  %s0 = inlined_call_operand.hbm [shape: f32[2,2,16,16], index: 0, kind: input, shape index: {}]
  %s1 = inlined_call_operand.hbm [shape: f32[2,2,16,16], index: 1, kind: input, shape index: {}]
  %s2 = inlined_call_operand.vmem [shape: f32[144], index: 2, kind: input, shape index: {}]
  %s3 = inlined_call_operand.vmem [shape: f32[4], index: 3, kind: input, shape index: {}]
  %s4 = inlined_call_operand.vmem [shape: f32[4], index: 4, kind: input, shape index: {}]
  %s5 = inlined_call_operand.vmem [shape: f32[2,4,18,18], index: 5, kind: output, shape index: {}]
  %s6 = sld [smem:[#allocation0]]
  $region50: #{tpu_custom_call.1} parent=0
    _
  %s8 = ssub.s32 1, %s6
  %s9 = scalar_select 0, %s8, %s6
  $region1: #{tpu_custom_call.1} parent=0
    #allocation3 [shape = 'u8[32768]{0}', space=vmem, size = 0x8000, scoped, tag = 'input window, operand 0, single buffered']
    #allocation4 [shape = 's32[1]{0}', space=sflag, size = 0x4, scoped, tag = 'scoped memory for tpu_custom_call.1']
    #allocation5 [shape = 's32[1]{0}', space=sflag, size = 0x4, scoped, tag = 'scoped memory for tpu_custom_call.1']
    #allocation6 [shape = 'u8[32768]{0}', space=vmem, size = 0x8000, scoped, tag = 'input window, operand 1, single buffered']
    #allocation7 [shape = 's32[1]{0}', space=sflag, size = 0x4, scoped, tag = 'scoped memory for tpu_custom_call.1']
    #allocation8 [shape = 'u8[1024]{0}', space=smem, size = 0x400, scoped, tag = 'input window, operand 2, single buffered']
    #allocation9 [shape = 'u8[512]{0}', space=smem, size = 0x200, scoped, tag = 'input window, operand 3, single buffered']
    #allocation10 [shape = 's32[1]{0}', space=sflag, size = 0x4, scoped, tag = 'scoped memory for tpu_custom_call.1']
    #allocation11 [shape = 'u8[512]{0}', space=smem, size = 0x200, scoped, tag = 'input window, operand 4, single buffered']
    %10 = vsyncpa [#allocation4], 0
    %11 = vsyncpa [#allocation7], 0
    %12 = vsyncpa [#allocation5], 0
    %13 = vsyncpa [#allocation10], 0
    // Predicated region
    $region2: #{tpu_custom_call.1} parent=1 // pred_check
      _
    $region3: #{tpu_custom_call.1} parent=1 // pred_check_branch
      %15 = sbr.rel (0) target = $region5
    $region4: #{tpu_custom_call.1} parent=1 // pred_region
      %s17 = ssub.s32 1024, 1024
      %18 = vsyncadd [#allocation4], %s17
      %s19 = sshll.u32 [#allocation3], 4
      %s20 = int_to_ptr.vmem [resolvable:$true] %s19
      %25 = dma.hbm_to_vmem [thread:$0]  %s0, 1024, %s20, [#allocation4], 128, 128, 8
    $region5: #{tpu_custom_call.1} parent=1 // pred_fallthru
      _
    // Predicated region
    $region6: #{tpu_custom_call.1} parent=1 // pred_check
      _
    $region7: #{tpu_custom_call.1} parent=1 // pred_check_branch
      %27 = sbr.rel (0) target = $region9
    $region8: #{tpu_custom_call.1} parent=1 // pred_region
      %s29 = ssub.s32 1024, 1024
      %30 = vsyncadd [#allocation7], %s29
      %s31 = sshll.u32 [#allocation6], 4
      %s32 = int_to_ptr.vmem [resolvable:$true] %s31
      %37 = dma.hbm_to_vmem [thread:$0]  %s1, 1024, %s32, [#allocation7], 128, 128, 8
    $region9: #{tpu_custom_call.1} parent=1 // pred_fallthru
      _
    // Predicated region
    $region10: #{tpu_custom_call.1} parent=1 // pred_check
      _
    $region11: #{tpu_custom_call.1} parent=1 // pred_check_branch
      %39 = sbr.rel (0) target = $region13
    $region12: #{tpu_custom_call.1} parent=1 // pred_region
      %s41 = ssub.s32 32, 32
      %42 = vsyncadd [#allocation5], %s41
      %s44 = sshll.u32 %s2, 4
      %s45 = int_to_ptr.vmem [resolvable:$true] %s44
      %47 = dma.vmem_to_smem %s45, 32, [#allocation8], [#allocation5]
    $region13: #{tpu_custom_call.1} parent=1 // pred_fallthru
      _
    // Predicated region
    $region14: #{tpu_custom_call.1} parent=1 // pred_check
      _
    $region15: #{tpu_custom_call.1} parent=1 // pred_check_branch
      %49 = sbr.rel (0) target = $region17
    $region16: #{tpu_custom_call.1} parent=1 // pred_region
      %s51 = ssub.s32 16, 16
      %52 = vsyncadd [#allocation10], %s51
      %s54 = sshll.u32 %s3, 4
      %s55 = int_to_ptr.vmem [resolvable:$true] %s54
      %57 = dma.vmem_to_smem %s55, 16, [#allocation9], [#allocation10]
    $region17: #{tpu_custom_call.1} parent=1 // pred_fallthru
      _
    // Predicated region
    $region18: #{tpu_custom_call.1} parent=1 // pred_check
      _
    $region19: #{tpu_custom_call.1} parent=1 // pred_check_branch
      %59 = sbr.rel (0) target = $region21
    $region20: #{tpu_custom_call.1} parent=1 // pred_region
      %s61 = ssub.s32 16, 16
      %62 = vsyncadd [#allocation10], %s61
      %s64 = sshll.u32 %s4, 4
      %s65 = int_to_ptr.vmem [resolvable:$true] %s64
      %67 = dma.vmem_to_smem %s65, 16, [#allocation11], [#allocation10]
    $region21: #{tpu_custom_call.1} parent=1 // pred_fallthru
      _
    // Predicated region
    $region22: #{tpu_custom_call.1} parent=1 // pred_check
      _
    $region23: #{tpu_custom_call.1} parent=1 // pred_check_branch
      %69 = sbr.rel (0) target = $region25
    $region24: #{tpu_custom_call.1} parent=1 // pred_region
      %70 = dma.done [#allocation4], 1024
    $region25: #{tpu_custom_call.1} parent=1 // pred_fallthru
      _
    // Predicated region
    $region26: #{tpu_custom_call.1} parent=1 // pred_check
      _
    $region27: #{tpu_custom_call.1} parent=1 // pred_check_branch
      %72 = sbr.rel (0) target = $region29
    $region28: #{tpu_custom_call.1} parent=1 // pred_region
      %73 = dma.done [#allocation7], 1024
    $region29: #{tpu_custom_call.1} parent=1 // pred_fallthru
      _
    // Predicated region
    $region30: #{tpu_custom_call.1} parent=1 // pred_check
      _
    $region31: #{tpu_custom_call.1} parent=1 // pred_check_branch
      %75 = sbr.rel (0) target = $region33
    $region32: #{tpu_custom_call.1} parent=1 // pred_region
      %76 = dma.done [#allocation5], 32
    $region33: #{tpu_custom_call.1} parent=1 // pred_fallthru
      _
    // Predicated region
    $region34: #{tpu_custom_call.1} parent=1 // pred_check
      _
    $region35: #{tpu_custom_call.1} parent=1 // pred_check_branch
      %78 = sbr.rel (0) target = $region37
    $region36: #{tpu_custom_call.1} parent=1 // pred_region
      %79 = dma.done [#allocation10], 16
    $region37: #{tpu_custom_call.1} parent=1 // pred_fallthru
      _
    // Predicated region
    $region38: #{tpu_custom_call.1} parent=1 // pred_check
      _
    $region39: #{tpu_custom_call.1} parent=1 // pred_check_branch
      %81 = sbr.rel (0) target = $region41
    $region40: #{tpu_custom_call.1} parent=1 // pred_region
      %82 = dma.done [#allocation10], 16
    $region41: #{tpu_custom_call.1} parent=1 // pred_fallthru
      _
    %83 = sfence
    %vm84 = vcmask 162816
    %85 = vst.msk [vmem:[#allocation2] sm:$0xff] %vm84, 0.0
    %86 = vst.msk [vmem:[#allocation2 + $0x8] sm:$0xff] %vm84, 0.0
    %vm87 = vcmask 158720
    %88 = vst.msk [vmem:[#allocation2 + $0x10] sm:$0xf] %vm87, 0.0
    %89 = vst.msk [vmem:[#allocation2 + $0x18] sm:$0xff] %vm84, 0.0
    %90 = vst.msk [vmem:[#allocation2 + $0x20] sm:$0xff] %vm84, 0.0
    %91 = vst.msk [vmem:[#allocation2 + $0x28] sm:$0xf] %vm87, 0.0
    %92 = vst.msk [vmem:[#allocation2 + $0x30] sm:$0xff] %vm84, 0.0
    %93 = vst.msk [vmem:[#allocation2 + $0x38] sm:$0xff] %vm84, 0.0
    %94 = vst.msk [vmem:[#allocation2 + $0x40] sm:$0xf] %vm87, 0.0
    %95 = vst.msk [vmem:[#allocation2 + $0x48] sm:$0xff] %vm84, 0.0
    %96 = vst.msk [vmem:[#allocation2 + $0x50] sm:$0xff] %vm84, 0.0
    %97 = vst.msk [vmem:[#allocation2 + $0x58] sm:$0xf] %vm87, 0.0
    %98 = vst.msk [vmem:[#allocation2 + $0x60] sm:$0xff] %vm84, 0.0
    %99 = vst.msk [vmem:[#allocation2 + $0x68] sm:$0xff] %vm84, 0.0
    %100 = vst.msk [vmem:[#allocation2 + $0x70] sm:$0xf] %vm87, 0.0
    %101 = vst.msk [vmem:[#allocation2 + $0x78] sm:$0xff] %vm84, 0.0
    %102 = vst.msk [vmem:[#allocation2 + $0x80] sm:$0xff] %vm84, 0.0
    %103 = vst.msk [vmem:[#allocation2 + $0x88] sm:$0xf] %vm87, 0.0
    %104 = vst.msk [vmem:[#allocation2 + $0x90] sm:$0xff] %vm84, 0.0
    %105 = vst.msk [vmem:[#allocation2 + $0x98] sm:$0xff] %vm84, 0.0
    %106 = vst.msk [vmem:[#allocation2 + $0xa0] sm:$0xf] %vm87, 0.0
    %107 = vst.msk [vmem:[#allocation2 + $0xa8] sm:$0xff] %vm84, 0.0
    %108 = vst.msk [vmem:[#allocation2 + $0xb0] sm:$0xff] %vm84, 0.0
    %109 = vst.msk [vmem:[#allocation2 + $0xb8] sm:$0xf] %vm87, 0.0
    %v110 = vld [vmem:[#allocation3] sm:$0xff]
    %v111 = vld [vmem:[#allocation3 + $0x8] sm:$0xff]
    %v112 = vld [vmem:[#allocation3 + $0x10] sm:$0xff]
    %v113 = vld [vmem:[#allocation3 + $0x18] sm:$0xff]
    %v114 = vld [vmem:[#allocation3 + $0x20] sm:$0xff]
    %v115 = vld [vmem:[#allocation3 + $0x28] sm:$0xff]
    %v116 = vld [vmem:[#allocation3 + $0x30] sm:$0xff]
    %v117 = vld [vmem:[#allocation3 + $0x38] sm:$0xff]
    %126 = vrot.lane.b32.xlu0 %v110, 2
    %v127 = vpop.permute.xlu0 %126
    %128 = vrot.lane.b32.xlu0 %v111, 2
    %v129 = vpop.permute.xlu0 %128
    %130 = vrot.lane.b32.xlu0 %v112, 2
    %v131 = vpop.permute.xlu0 %130
    %132 = vrot.lane.b32.xlu0 %v113, 2
    %v133 = vpop.permute.xlu0 %132
    %134 = vrot.lane.b32.xlu0 %v114, 2
    %v135 = vpop.permute.xlu0 %134
    %136 = vrot.lane.b32.xlu0 %v115, 2
    %v137 = vpop.permute.xlu0 %136
    %138 = vrot.lane.b32.xlu0 %v116, 2
    %v139 = vpop.permute.xlu0 %138
    %140 = vrot.lane.b32.xlu0 %v117, 2
    %v141 = vpop.permute.xlu0 %140
    %vm150 = vcmask 146448
    %151 = vst.msk [vmem:[#allocation2 + $0x2] sm:$0xff] %vm150, %v127
    %152 = vst.msk [vmem:[#allocation2 + $0xa] sm:$0xff] %vm150, %v129
    %153 = vst.msk [vmem:[#allocation2 + $0x1a] sm:$0xff] %vm150, %v131
    %154 = vst.msk [vmem:[#allocation2 + $0x22] sm:$0xff] %vm150, %v133
    %155 = vst.msk [vmem:[#allocation2 + $0x62] sm:$0xff] %vm150, %v135
    %156 = vst.msk [vmem:[#allocation2 + $0x6a] sm:$0xff] %vm150, %v137
    %157 = vst.msk [vmem:[#allocation2 + $0x7a] sm:$0xff] %vm150, %v139
    %158 = vst.msk [vmem:[#allocation2 + $0x82] sm:$0xff] %vm150, %v141
    %v159 = vld [vmem:[#allocation6] sm:$0xff]
    %v160 = vld [vmem:[#allocation6 + $0x8] sm:$0xff]
    %v161 = vld [vmem:[#allocation6 + $0x10] sm:$0xff]
    %v162 = vld [vmem:[#allocation6 + $0x18] sm:$0xff]
    %v163 = vld [vmem:[#allocation6 + $0x20] sm:$0xff]
    %v164 = vld [vmem:[#allocation6 + $0x28] sm:$0xff]
    %v165 = vld [vmem:[#allocation6 + $0x30] sm:$0xff]
    %v166 = vld [vmem:[#allocation6 + $0x38] sm:$0xff]
    %175 = vrot.lane.b32.xlu0 %v159, 2
    %v176 = vpop.permute.xlu0 %175
    %177 = vrot.lane.b32.xlu0 %v160, 2
    %v178 = vpop.permute.xlu0 %177
    %179 = vrot.lane.b32.xlu0 %v161, 2
    %v180 = vpop.permute.xlu0 %179
    %181 = vrot.lane.b32.xlu0 %v162, 2
    %v182 = vpop.permute.xlu0 %181
    %183 = vrot.lane.b32.xlu0 %v163, 2
    %v184 = vpop.permute.xlu0 %183
    %185 = vrot.lane.b32.xlu0 %v164, 2
    %v186 = vpop.permute.xlu0 %185
    %187 = vrot.lane.b32.xlu0 %v165, 2
    %v188 = vpop.permute.xlu0 %187
    %189 = vrot.lane.b32.xlu0 %v166, 2
    %v190 = vpop.permute.xlu0 %189
    %s199 = scalar_lea.vmem [#allocation2], 48
    %200 = vst.msk [vmem:[%s199 + $0x2] sm:$0xff] %vm150, %v176
    %201 = vst.msk [vmem:[%s199 + $0xa] sm:$0xff] %vm150, %v178
    %202 = vst.msk [vmem:[%s199 + $0x1a] sm:$0xff] %vm150, %v180
    %203 = vst.msk [vmem:[%s199 + $0x22] sm:$0xff] %vm150, %v182
    %204 = vst.msk [vmem:[%s199 + $0x62] sm:$0xff] %vm150, %v184
    %205 = vst.msk [vmem:[%s199 + $0x6a] sm:$0xff] %vm150, %v186
    %206 = vst.msk [vmem:[%s199 + $0x7a] sm:$0xff] %vm150, %v188
    %207 = vst.msk [vmem:[%s199 + $0x82] sm:$0xff] %vm150, %v190
    %v208 = vld [vmem:[#allocation2] sm:$0xff]
    %v209 = vld [vmem:[#allocation2 + $0x8] sm:$0xff]
    %v210 = vld [vmem:[#allocation2 + $0x10] sm:$0xf]
    %v211 = vld [vmem:[#allocation2 + $0x60] sm:$0xff]
    %v212 = vld [vmem:[#allocation2 + $0x68] sm:$0xff]
    %v213 = vld [vmem:[#allocation2 + $0x70] sm:$0xf]
    %s214 = sld [smem:[#allocation8]]
    %v215 = vstv %s214
    %v216 = vmul.f32 %v215, %v208
    %v217 = vmul.f32 %v215, %v209
    %v218 = vmul.f32 %v215, %v210
    %v219 = vmul.f32 %v215, %v211
    %v220 = vmul.f32 %v215, %v212
    %v221 = vmul.f32 %v215, %v213
    %v222 = vadd.f32 %v216, 0.0
    %v223 = vadd.f32 %v217, 0.0
    %v224 = vadd.f32 %v218, 0.0
    %v225 = vadd.f32 %v219, 0.0
    %v226 = vadd.f32 %v220, 0.0
    %v227 = vadd.f32 %v221, 0.0
    %s228 = sld [smem:[#allocation8 + $0x3]]
    %v229 = vstv %s228
    %v230 = vmul.f32 %v229, %v208
    %v231 = vmul.f32 %v229, %v209
    %v232 = vmul.f32 %v229, %v210
    %v233 = vmul.f32 %v229, %v211
    %v234 = vmul.f32 %v229, %v212
    %v235 = vmul.f32 %v229, %v213
    %vm242 = vcmask 1046528
    %v243 = vrot.slane %v230, 1
    %v244 = vrot.slane %v231, 1
    %v245 = vsel %vm242, %v243, %v244
    %v246 = vrot.slane %v232, 1
    %v247 = vsel %vm242, %v244, %v246
    %v248 = vrot.slane %v233, 1
    %v249 = vrot.slane %v234, 1
    %v250 = vsel %vm242, %v248, %v249
    %v251 = vrot.slane %v235, 1
    %v252 = vsel %vm242, %v249, %v251
    %v259 = vadd.f32 %v222, %v245
    %v260 = vadd.f32 %v223, %v247
    %v261 = vadd.f32 %v224, %v246
    %v262 = vadd.f32 %v225, %v250
    %v263 = vadd.f32 %v226, %v252
    %v264 = vadd.f32 %v227, %v251
    %s265 = sld [smem:[#allocation8 + $0x6]]
    %v266 = vstv %s265
    %v267 = vmul.f32 %v266, %v208
    %v268 = vmul.f32 %v266, %v209
    %v269 = vmul.f32 %v266, %v210
    %v270 = vmul.f32 %v266, %v211
    %v271 = vmul.f32 %v266, %v212
    %v272 = vmul.f32 %v266, %v213
    %vm279 = vcmask 1045504
    %v280 = vrot.slane %v267, 2
    %v281 = vrot.slane %v268, 2
    %v282 = vsel %vm279, %v280, %v281
    %v283 = vrot.slane %v269, 2
    %v284 = vsel %vm279, %v281, %v283
    %v285 = vrot.slane %v270, 2
    %v286 = vrot.slane %v271, 2
    %v287 = vsel %vm279, %v285, %v286
    %v288 = vrot.slane %v272, 2
    %v289 = vsel %vm279, %v286, %v288
    %v296 = vadd.f32 %v259, %v282
    %v297 = vadd.f32 %v260, %v284
    %v298 = vadd.f32 %v261, %v283
    %v299 = vadd.f32 %v262, %v287
    %v300 = vadd.f32 %v263, %v289
    %v301 = vadd.f32 %v264, %v288
    %s302 = sld [smem:[#allocation8 + $0x1]]
    %v303 = vstv %s302
    %v304 = vmul.f32 %v303, %v208
    %v305 = vmul.f32 %v303, %v209
    %v306 = vmul.f32 %v303, %v210
    %v307 = vmul.f32 %v303, %v211
    %v308 = vmul.f32 %v303, %v212
    %v309 = vmul.f32 %v303, %v213
    %316 = vrot.lane.b32.xlu0 %v304, 127
    %v317 = vpop.permute.xlu0 %316
    %318 = vrot.lane.b32.xlu0 %v305, 127
    %v319 = vpop.permute.xlu0 %318
    %320 = vrot.lane.b32.xlu0 %v306, 127
    %v321 = vpop.permute.xlu0 %320
    %322 = vrot.lane.b32.xlu0 %v307, 127
    %v323 = vpop.permute.xlu0 %322
    %324 = vrot.lane.b32.xlu0 %v308, 127
    %v325 = vpop.permute.xlu0 %324
    %326 = vrot.lane.b32.xlu0 %v309, 127
    %v327 = vpop.permute.xlu0 %326
    %v334 = vadd.f32 %v296, %v317
    %v335 = vadd.f32 %v297, %v319
    %v336 = vadd.f32 %v298, %v321
    %v337 = vadd.f32 %v299, %v323
    %v338 = vadd.f32 %v300, %v325
    %v339 = vadd.f32 %v301, %v327
    %s340 = sld [smem:[#allocation8 + $0x4]]
    %v341 = vstv %s340
    %v342 = vmul.f32 %v341, %v208
    %v343 = vmul.f32 %v341, %v209
    %v344 = vmul.f32 %v341, %v210
    %v345 = vmul.f32 %v341, %v211
    %v346 = vmul.f32 %v341, %v212
    %v347 = vmul.f32 %v341, %v213
    %v354 = vrot.slane %v342, 1
    %v355 = vrot.slane %v343, 1
    %v356 = vsel %vm242, %v354, %v355
    %v357 = vrot.slane %v344, 1
    %v358 = vsel %vm242, %v355, %v357
    %v359 = vrot.slane %v345, 1
    %v360 = vrot.slane %v346, 1
    %v361 = vsel %vm242, %v359, %v360
    %v362 = vrot.slane %v347, 1
    %v363 = vsel %vm242, %v360, %v362
    %364 = vrot.lane.b32.xlu0 %v356, 127
    %v365 = vpop.permute.xlu0 %364
    %366 = vrot.lane.b32.xlu0 %v358, 127
    %v367 = vpop.permute.xlu0 %366
    %368 = vrot.lane.b32.xlu0 %v357, 127
    %v369 = vpop.permute.xlu0 %368
    %370 = vrot.lane.b32.xlu0 %v361, 127
    %v371 = vpop.permute.xlu0 %370
    %372 = vrot.lane.b32.xlu0 %v363, 127
    %v373 = vpop.permute.xlu0 %372
    %374 = vrot.lane.b32.xlu0 %v362, 127
    %v375 = vpop.permute.xlu0 %374
    %v382 = vadd.f32 %v334, %v365
    %v383 = vadd.f32 %v335, %v367
    %v384 = vadd.f32 %v336, %v369
    %v385 = vadd.f32 %v337, %v371
    %v386 = vadd.f32 %v338, %v373
    %v387 = vadd.f32 %v339, %v375
    %s388 = sld [smem:[#allocation8 + $0x7]]
    %v389 = vstv %s388
    %v390 = vmul.f32 %v389, %v208
    %v391 = vmul.f32 %v389, %v209
    %v392 = vmul.f32 %v389, %v210
    %v393 = vmul.f32 %v389, %v211
    %v394 = vmul.f32 %v389, %v212
    %v395 = vmul.f32 %v389, %v213
    %v402 = vrot.slane %v390, 2
    %v403 = vrot.slane %v391, 2
    %v404 = vsel %vm279, %v402, %v403
    %v405 = vrot.slane %v392, 2
    %v406 = vsel %vm279, %v403, %v405
    %v407 = vrot.slane %v393, 2
    %v408 = vrot.slane %v394, 2
    %v409 = vsel %vm279, %v407, %v408
    %v410 = vrot.slane %v395, 2
    %v411 = vsel %vm279, %v408, %v410
    %412 = vrot.lane.b32.xlu0 %v404, 127
    %v413 = vpop.permute.xlu0 %412
    %414 = vrot.lane.b32.xlu0 %v406, 127
    %v415 = vpop.permute.xlu0 %414
    %416 = vrot.lane.b32.xlu0 %v405, 127
    %v417 = vpop.permute.xlu0 %416
    %418 = vrot.lane.b32.xlu0 %v409, 127
    %v419 = vpop.permute.xlu0 %418
    %420 = vrot.lane.b32.xlu0 %v411, 127
    %v421 = vpop.permute.xlu0 %420
    %422 = vrot.lane.b32.xlu0 %v410, 127
    %v423 = vpop.permute.xlu0 %422
    %v430 = vadd.f32 %v382, %v413
    %v431 = vadd.f32 %v383, %v415
    %v432 = vadd.f32 %v384, %v417
    %v433 = vadd.f32 %v385, %v419
    %v434 = vadd.f32 %v386, %v421
    %v435 = vadd.f32 %v387, %v423
    %s436 = sld [smem:[#allocation8 + $0x2]]
    %v437 = vstv %s436
    %v438 = vmul.f32 %v437, %v208
    %v439 = vmul.f32 %v437, %v209
    %v440 = vmul.f32 %v437, %v210
    %v441 = vmul.f32 %v437, %v211
    %v442 = vmul.f32 %v437, %v212
    %v443 = vmul.f32 %v437, %v213
    %450 = vrot.lane.b32.xlu0 %v438, 126
    %v451 = vpop.permute.xlu0 %450
    %452 = vrot.lane.b32.xlu0 %v439, 126
    %v453 = vpop.permute.xlu0 %452
    %454 = vrot.lane.b32.xlu0 %v440, 126
    %v455 = vpop.permute.xlu0 %454
    %456 = vrot.lane.b32.xlu0 %v441, 126
    %v457 = vpop.permute.xlu0 %456
    %458 = vrot.lane.b32.xlu0 %v442, 126
    %v459 = vpop.permute.xlu0 %458
    %460 = vrot.lane.b32.xlu0 %v443, 126
    %v461 = vpop.permute.xlu0 %460
    %v468 = vadd.f32 %v430, %v451
    %v469 = vadd.f32 %v431, %v453
    %v470 = vadd.f32 %v432, %v455
    %v471 = vadd.f32 %v433, %v457
    %v472 = vadd.f32 %v434, %v459
    %v473 = vadd.f32 %v435, %v461
    %s474 = sld [smem:[#allocation8 + $0x5]]
    %v475 = vstv %s474
    %v476 = vmul.f32 %v475, %v208
    %v477 = vmul.f32 %v475, %v209
    %v478 = vmul.f32 %v475, %v210
    %v479 = vmul.f32 %v475, %v211
    %v480 = vmul.f32 %v475, %v212
    %v481 = vmul.f32 %v475, %v213
    %v488 = vrot.slane %v476, 1
    %v489 = vrot.slane %v477, 1
    %v490 = vsel %vm242, %v488, %v489
    %v491 = vrot.slane %v478, 1
    %v492 = vsel %vm242, %v489, %v491
    %v493 = vrot.slane %v479, 1
    %v494 = vrot.slane %v480, 1
    %v495 = vsel %vm242, %v493, %v494
    %v496 = vrot.slane %v481, 1
    %v497 = vsel %vm242, %v494, %v496
    %498 = vrot.lane.b32.xlu0 %v490, 126
    %v499 = vpop.permute.xlu0 %498
    %500 = vrot.lane.b32.xlu0 %v492, 126
    %v501 = vpop.permute.xlu0 %500
    %502 = vrot.lane.b32.xlu0 %v491, 126
    %v503 = vpop.permute.xlu0 %502
    %504 = vrot.lane.b32.xlu0 %v495, 126
    %v505 = vpop.permute.xlu0 %504
    %506 = vrot.lane.b32.xlu0 %v497, 126
    %v507 = vpop.permute.xlu0 %506
    %508 = vrot.lane.b32.xlu0 %v496, 126
    %v509 = vpop.permute.xlu0 %508
    %v516 = vadd.f32 %v468, %v499
    %v517 = vadd.f32 %v469, %v501
    %v518 = vadd.f32 %v470, %v503
    %v519 = vadd.f32 %v471, %v505
    %v520 = vadd.f32 %v472, %v507
    %v521 = vadd.f32 %v473, %v509
    %s522 = sld [smem:[#allocation8 + $0x8]]
    %v523 = vstv %s522
    %v524 = vmul.f32 %v523, %v208
    %v525 = vmul.f32 %v523, %v209
    %v526 = vmul.f32 %v523, %v210
    %v527 = vmul.f32 %v523, %v211
    %v528 = vmul.f32 %v523, %v212
    %v529 = vmul.f32 %v523, %v213
    %v536 = vrot.slane %v524, 2
    %v537 = vrot.slane %v525, 2
    %v538 = vsel %vm279, %v536, %v537
    %v539 = vrot.slane %v526, 2
    %v540 = vsel %vm279, %v537, %v539
    %v541 = vrot.slane %v527, 2
    %v542 = vrot.slane %v528, 2
    %v543 = vsel %vm279, %v541, %v542
    %v544 = vrot.slane %v529, 2
    %v545 = vsel %vm279, %v542, %v544
    %546 = vrot.lane.b32.xlu0 %v538, 126
    %v547 = vpop.permute.xlu0 %546
    %548 = vrot.lane.b32.xlu0 %v540, 126
    %v549 = vpop.permute.xlu0 %548
    %550 = vrot.lane.b32.xlu0 %v539, 126
    %v551 = vpop.permute.xlu0 %550
    %552 = vrot.lane.b32.xlu0 %v543, 126
    %v553 = vpop.permute.xlu0 %552
    %554 = vrot.lane.b32.xlu0 %v545, 126
    %v555 = vpop.permute.xlu0 %554
    %556 = vrot.lane.b32.xlu0 %v544, 126
    %v557 = vpop.permute.xlu0 %556
    %v564 = vadd.f32 %v516, %v547
    %v565 = vadd.f32 %v517, %v549
    %v566 = vadd.f32 %v518, %v551
    %v567 = vadd.f32 %v519, %v553
    %v568 = vadd.f32 %v520, %v555
    %v569 = vadd.f32 %v521, %v557
    %s570 = scalar_lea.vmem [#allocation2], 24
    %v571 = vld [vmem:[%s570] sm:$0xff]
    %v572 = vld [vmem:[%s570 + $0x8] sm:$0xff]
    %v573 = vld [vmem:[%s570 + $0x10] sm:$0xf]
    %v574 = vld [vmem:[%s570 + $0x60] sm:$0xff]
    %v575 = vld [vmem:[%s570 + $0x68] sm:$0xff]
    %v576 = vld [vmem:[%s570 + $0x70] sm:$0xf]
    %s577 = sld [smem:[#allocation8 + $0x9]]
    %v578 = vstv %s577
    %v579 = vmul.f32 %v578, %v571
    %v580 = vmul.f32 %v578, %v572
    %v581 = vmul.f32 %v578, %v573
    %v582 = vmul.f32 %v578, %v574
    %v583 = vmul.f32 %v578, %v575
    %v584 = vmul.f32 %v578, %v576
    %v585 = vadd.f32 %v564, %v579
    %v586 = vadd.f32 %v565, %v580
    %v587 = vadd.f32 %v566, %v581
    %v588 = vadd.f32 %v567, %v582
    %v589 = vadd.f32 %v568, %v583
    %v590 = vadd.f32 %v569, %v584
    %s591 = sld [smem:[#allocation8 + $0xc]]
    %v592 = vstv %s591
    %v593 = vmul.f32 %v592, %v571
    %v594 = vmul.f32 %v592, %v572
    %v595 = vmul.f32 %v592, %v573
    %v596 = vmul.f32 %v592, %v574
    %v597 = vmul.f32 %v592, %v575
    %v598 = vmul.f32 %v592, %v576
    %v605 = vrot.slane %v593, 1
    %v606 = vrot.slane %v594, 1
    %v607 = vsel %vm242, %v605, %v606
    %v608 = vrot.slane %v595, 1
    %v609 = vsel %vm242, %v606, %v608
    %v610 = vrot.slane %v596, 1
    %v611 = vrot.slane %v597, 1
    %v612 = vsel %vm242, %v610, %v611
    %v613 = vrot.slane %v598, 1
    %v614 = vsel %vm242, %v611, %v613
    %v621 = vadd.f32 %v585, %v607
    %v622 = vadd.f32 %v586, %v609
    %v623 = vadd.f32 %v587, %v608
    %v624 = vadd.f32 %v588, %v612
    %v625 = vadd.f32 %v589, %v614
    %v626 = vadd.f32 %v590, %v613
    %s627 = sld [smem:[#allocation8 + $0xf]]
    %v628 = vstv %s627
    %v629 = vmul.f32 %v628, %v571
    %v630 = vmul.f32 %v628, %v572
    %v631 = vmul.f32 %v628, %v573
    %v632 = vmul.f32 %v628, %v574
    %v633 = vmul.f32 %v628, %v575
    %v634 = vmul.f32 %v628, %v576
    %v641 = vrot.slane %v629, 2
    %v642 = vrot.slane %v630, 2
    %v643 = vsel %vm279, %v641, %v642
    %v644 = vrot.slane %v631, 2
    %v645 = vsel %vm279, %v642, %v644
    %v646 = vrot.slane %v632, 2
    %v647 = vrot.slane %v633, 2
    %v648 = vsel %vm279, %v646, %v647
    %v649 = vrot.slane %v634, 2
    %v650 = vsel %vm279, %v647, %v649
    %v657 = vadd.f32 %v621, %v643
    %v658 = vadd.f32 %v622, %v645
    %v659 = vadd.f32 %v623, %v644
    %v660 = vadd.f32 %v624, %v648
    %v661 = vadd.f32 %v625, %v650
    %v662 = vadd.f32 %v626, %v649
    %s663 = sld [smem:[#allocation8 + $0xa]]
    %v664 = vstv %s663
    %v665 = vmul.f32 %v664, %v571
    %v666 = vmul.f32 %v664, %v572
    %v667 = vmul.f32 %v664, %v573
    %v668 = vmul.f32 %v664, %v574
    %v669 = vmul.f32 %v664, %v575
    %v670 = vmul.f32 %v664, %v576
    %677 = vrot.lane.b32.xlu0 %v665, 127
    %v678 = vpop.permute.xlu0 %677
    %679 = vrot.lane.b32.xlu0 %v666, 127
    %v680 = vpop.permute.xlu0 %679
    %681 = vrot.lane.b32.xlu0 %v667, 127
    %v682 = vpop.permute.xlu0 %681
    %683 = vrot.lane.b32.xlu0 %v668, 127
    %v684 = vpop.permute.xlu0 %683
    %685 = vrot.lane.b32.xlu0 %v669, 127
    %v686 = vpop.permute.xlu0 %685
    %687 = vrot.lane.b32.xlu0 %v670, 127
    %v688 = vpop.permute.xlu0 %687
    %v695 = vadd.f32 %v657, %v678
    %v696 = vadd.f32 %v658, %v680
    %v697 = vadd.f32 %v659, %v682
    %v698 = vadd.f32 %v660, %v684
    %v699 = vadd.f32 %v661, %v686
    %v700 = vadd.f32 %v662, %v688
    %s701 = sld [smem:[#allocation8 + $0xd]]
    %v702 = vstv %s701
    %v703 = vmul.f32 %v702, %v571
    %v704 = vmul.f32 %v702, %v572
    %v705 = vmul.f32 %v702, %v573
    %v706 = vmul.f32 %v702, %v574
    %v707 = vmul.f32 %v702, %v575
    %v708 = vmul.f32 %v702, %v576
    %v715 = vrot.slane %v703, 1
    %v716 = vrot.slane %v704, 1
    %v717 = vsel %vm242, %v715, %v716
    %v718 = vrot.slane %v705, 1
    %v719 = vsel %vm242, %v716, %v718
    %v720 = vrot.slane %v706, 1
    %v721 = vrot.slane %v707, 1
    %v722 = vsel %vm242, %v720, %v721
    %v723 = vrot.slane %v708, 1
    %v724 = vsel %vm242, %v721, %v723
    %725 = vrot.lane.b32.xlu0 %v717, 127
    %v726 = vpop.permute.xlu0 %725
    %727 = vrot.lane.b32.xlu0 %v719, 127
    %v728 = vpop.permute.xlu0 %727
    %729 = vrot.lane.b32.xlu0 %v718, 127
    %v730 = vpop.permute.xlu0 %729
    %731 = vrot.lane.b32.xlu0 %v722, 127
    %v732 = vpop.permute.xlu0 %731
    %733 = vrot.lane.b32.xlu0 %v724, 127
    %v734 = vpop.permute.xlu0 %733
    %735 = vrot.lane.b32.xlu0 %v723, 127
    %v736 = vpop.permute.xlu0 %735
    %v743 = vadd.f32 %v695, %v726
    %v744 = vadd.f32 %v696, %v728
    %v745 = vadd.f32 %v697, %v730
    %v746 = vadd.f32 %v698, %v732
    %v747 = vadd.f32 %v699, %v734
    %v748 = vadd.f32 %v700, %v736
    %s749 = sld [smem:[#allocation8 + $0x10]]
    %v750 = vstv %s749
    %v751 = vmul.f32 %v750, %v571
    %v752 = vmul.f32 %v750, %v572
    %v753 = vmul.f32 %v750, %v573
    %v754 = vmul.f32 %v750, %v574
    %v755 = vmul.f32 %v750, %v575
    %v756 = vmul.f32 %v750, %v576
    %v763 = vrot.slane %v751, 2
    %v764 = vrot.slane %v752, 2
    %v765 = vsel %vm279, %v763, %v764
    %v766 = vrot.slane %v753, 2
    %v767 = vsel %vm279, %v764, %v766
    %v768 = vrot.slane %v754, 2
    %v769 = vrot.slane %v755, 2
    %v770 = vsel %vm279, %v768, %v769
    %v771 = vrot.slane %v756, 2
    %v772 = vsel %vm279, %v769, %v771
    %773 = vrot.lane.b32.xlu0 %v765, 127
    %v774 = vpop.permute.xlu0 %773
    %775 = vrot.lane.b32.xlu0 %v767, 127
    %v776 = vpop.permute.xlu0 %775
    %777 = vrot.lane.b32.xlu0 %v766, 127
    %v778 = vpop.permute.xlu0 %777
    %779 = vrot.lane.b32.xlu0 %v770, 127
    %v780 = vpop.permute.xlu0 %779
    %781 = vrot.lane.b32.xlu0 %v772, 127
    %v782 = vpop.permute.xlu0 %781
    %783 = vrot.lane.b32.xlu0 %v771, 127
    %v784 = vpop.permute.xlu0 %783
    %v791 = vadd.f32 %v743, %v774
    %v792 = vadd.f32 %v744, %v776
    %v793 = vadd.f32 %v745, %v778
    %v794 = vadd.f32 %v746, %v780
    %v795 = vadd.f32 %v747, %v782
    %v796 = vadd.f32 %v748, %v784
    %s797 = sld [smem:[#allocation8 + $0xb]]
    %v798 = vstv %s797
    %v799 = vmul.f32 %v798, %v571
    %v800 = vmul.f32 %v798, %v572
    %v801 = vmul.f32 %v798, %v573
    %v802 = vmul.f32 %v798, %v574
    %v803 = vmul.f32 %v798, %v575
    %v804 = vmul.f32 %v798, %v576
    %811 = vrot.lane.b32.xlu0 %v799, 126
    %v812 = vpop.permute.xlu0 %811
    %813 = vrot.lane.b32.xlu0 %v800, 126
    %v814 = vpop.permute.xlu0 %813
    %815 = vrot.lane.b32.xlu0 %v801, 126
    %v816 = vpop.permute.xlu0 %815
    %817 = vrot.lane.b32.xlu0 %v802, 126
    %v818 = vpop.permute.xlu0 %817
    %819 = vrot.lane.b32.xlu0 %v803, 126
    %v820 = vpop.permute.xlu0 %819
    %821 = vrot.lane.b32.xlu0 %v804, 126
    %v822 = vpop.permute.xlu0 %821
    %v829 = vadd.f32 %v791, %v812
    %v830 = vadd.f32 %v792, %v814
    %v831 = vadd.f32 %v793, %v816
    %v832 = vadd.f32 %v794, %v818
    %v833 = vadd.f32 %v795, %v820
    %v834 = vadd.f32 %v796, %v822
    %s835 = sld [smem:[#allocation8 + $0xe]]
    %v836 = vstv %s835
    %v837 = vmul.f32 %v836, %v571
    %v838 = vmul.f32 %v836, %v572
    %v839 = vmul.f32 %v836, %v573
    %v840 = vmul.f32 %v836, %v574
    %v841 = vmul.f32 %v836, %v575
    %v842 = vmul.f32 %v836, %v576
    %v849 = vrot.slane %v837, 1
    %v850 = vrot.slane %v838, 1
    %v851 = vsel %vm242, %v849, %v850
    %v852 = vrot.slane %v839, 1
    %v853 = vsel %vm242, %v850, %v852
    %v854 = vrot.slane %v840, 1
    %v855 = vrot.slane %v841, 1
    %v856 = vsel %vm242, %v854, %v855
    %v857 = vrot.slane %v842, 1
    %v858 = vsel %vm242, %v855, %v857
    %859 = vrot.lane.b32.xlu0 %v851, 126
    %v860 = vpop.permute.xlu0 %859
    %861 = vrot.lane.b32.xlu0 %v853, 126
    %v862 = vpop.permute.xlu0 %861
    %863 = vrot.lane.b32.xlu0 %v852, 126
    %v864 = vpop.permute.xlu0 %863
    %865 = vrot.lane.b32.xlu0 %v856, 126
    %v866 = vpop.permute.xlu0 %865
    %867 = vrot.lane.b32.xlu0 %v858, 126
    %v868 = vpop.permute.xlu0 %867
    %869 = vrot.lane.b32.xlu0 %v857, 126
    %v870 = vpop.permute.xlu0 %869
    %v877 = vadd.f32 %v829, %v860
    %v878 = vadd.f32 %v830, %v862
    %v879 = vadd.f32 %v831, %v864
    %v880 = vadd.f32 %v832, %v866
    %v881 = vadd.f32 %v833, %v868
    %v882 = vadd.f32 %v834, %v870
    %s883 = sld [smem:[#allocation8 + $0x11]]
    %v884 = vstv %s883
    %v885 = vmul.f32 %v884, %v571
    %v886 = vmul.f32 %v884, %v572
    %v887 = vmul.f32 %v884, %v573
    %v888 = vmul.f32 %v884, %v574
    %v889 = vmul.f32 %v884, %v575
    %v890 = vmul.f32 %v884, %v576
    %v897 = vrot.slane %v885, 2
    %v898 = vrot.slane %v886, 2
    %v899 = vsel %vm279, %v897, %v898
    %v900 = vrot.slane %v887, 2
    %v901 = vsel %vm279, %v898, %v900
    %v902 = vrot.slane %v888, 2
    %v903 = vrot.slane %v889, 2
    %v904 = vsel %vm279, %v902, %v903
    %v905 = vrot.slane %v890, 2
    %v906 = vsel %vm279, %v903, %v905
    %907 = vrot.lane.b32.xlu0 %v899, 126
    %v908 = vpop.permute.xlu0 %907
    %909 = vrot.lane.b32.xlu0 %v901, 126
    %v910 = vpop.permute.xlu0 %909
    %911 = vrot.lane.b32.xlu0 %v900, 126
    %v912 = vpop.permute.xlu0 %911
    %913 = vrot.lane.b32.xlu0 %v904, 126
    %v914 = vpop.permute.xlu0 %913
    %915 = vrot.lane.b32.xlu0 %v906, 126
    %v916 = vpop.permute.xlu0 %915
    %917 = vrot.lane.b32.xlu0 %v905, 126
    %v918 = vpop.permute.xlu0 %917
    %v925 = vadd.f32 %v877, %v908
    %v926 = vadd.f32 %v878, %v910
    %v927 = vadd.f32 %v879, %v912
    %v928 = vadd.f32 %v880, %v914
    %v929 = vadd.f32 %v881, %v916
    %v930 = vadd.f32 %v882, %v918
    %v931 = vld [vmem:[%s199] sm:$0xff]
    %v932 = vld [vmem:[%s199 + $0x8] sm:$0xff]
    %v933 = vld [vmem:[%s199 + $0x10] sm:$0xf]
    %v934 = vld [vmem:[%s199 + $0x60] sm:$0xff]
    %v935 = vld [vmem:[%s199 + $0x68] sm:$0xff]
    %v936 = vld [vmem:[%s199 + $0x70] sm:$0xf]
    %s937 = sld [smem:[#allocation8 + $0x12]]
    %v938 = vstv %s937
    %v939 = vmul.f32 %v938, %v931
    %v940 = vmul.f32 %v938, %v932
    %v941 = vmul.f32 %v938, %v933
    %v942 = vmul.f32 %v938, %v934
    %v943 = vmul.f32 %v938, %v935
    %v944 = vmul.f32 %v938, %v936
    %v945 = vadd.f32 %v925, %v939
    %v946 = vadd.f32 %v926, %v940
    %v947 = vadd.f32 %v927, %v941
    %v948 = vadd.f32 %v928, %v942
    %v949 = vadd.f32 %v929, %v943
    %v950 = vadd.f32 %v930, %v944
    %s951 = sld [smem:[#allocation8 + $0x15]]
    %v952 = vstv %s951
    %v953 = vmul.f32 %v952, %v931
    %v954 = vmul.f32 %v952, %v932
    %v955 = vmul.f32 %v952, %v933
    %v956 = vmul.f32 %v952, %v934
    %v957 = vmul.f32 %v952, %v935
    %v958 = vmul.f32 %v952, %v936
    %v965 = vrot.slane %v953, 1
    %v966 = vrot.slane %v954, 1
    %v967 = vsel %vm242, %v965, %v966
    %v968 = vrot.slane %v955, 1
    %v969 = vsel %vm242, %v966, %v968
    %v970 = vrot.slane %v956, 1
    %v971 = vrot.slane %v957, 1
    %v972 = vsel %vm242, %v970, %v971
    %v973 = vrot.slane %v958, 1
    %v974 = vsel %vm242, %v971, %v973
    %v981 = vadd.f32 %v945, %v967
    %v982 = vadd.f32 %v946, %v969
    %v983 = vadd.f32 %v947, %v968
    %v984 = vadd.f32 %v948, %v972
    %v985 = vadd.f32 %v949, %v974
    %v986 = vadd.f32 %v950, %v973
    %s987 = sld [smem:[#allocation8 + $0x18]]
    %v988 = vstv %s987
    %v989 = vmul.f32 %v988, %v931
    %v990 = vmul.f32 %v988, %v932
    %v991 = vmul.f32 %v988, %v933
    %v992 = vmul.f32 %v988, %v934
    %v993 = vmul.f32 %v988, %v935
    %v994 = vmul.f32 %v988, %v936
    %v1001 = vrot.slane %v989, 2
    %v1002 = vrot.slane %v990, 2
    %v1003 = vsel %vm279, %v1001, %v1002
    %v1004 = vrot.slane %v991, 2
    %v1005 = vsel %vm279, %v1002, %v1004
    %v1006 = vrot.slane %v992, 2
    %v1007 = vrot.slane %v993, 2
    %v1008 = vsel %vm279, %v1006, %v1007
    %v1009 = vrot.slane %v994, 2
    %v1010 = vsel %vm279, %v1007, %v1009
    %v1017 = vadd.f32 %v981, %v1003
    %v1018 = vadd.f32 %v982, %v1005
    %v1019 = vadd.f32 %v983, %v1004
    %v1020 = vadd.f32 %v984, %v1008
    %v1021 = vadd.f32 %v985, %v1010
    %v1022 = vadd.f32 %v986, %v1009
    %s1023 = sld [smem:[#allocation8 + $0x13]]
    %v1024 = vstv %s1023
    %v1025 = vmul.f32 %v1024, %v931
    %v1026 = vmul.f32 %v1024, %v932
    %v1027 = vmul.f32 %v1024, %v933
    %v1028 = vmul.f32 %v1024, %v934
    %v1029 = vmul.f32 %v1024, %v935
    %v1030 = vmul.f32 %v1024, %v936
    %1037 = vrot.lane.b32.xlu0 %v1025, 127
    %v1038 = vpop.permute.xlu0 %1037
    %1039 = vrot.lane.b32.xlu0 %v1026, 127
    %v1040 = vpop.permute.xlu0 %1039
    %1041 = vrot.lane.b32.xlu0 %v1027, 127
    %v1042 = vpop.permute.xlu0 %1041
    %1043 = vrot.lane.b32.xlu0 %v1028, 127
    %v1044 = vpop.permute.xlu0 %1043
    %1045 = vrot.lane.b32.xlu0 %v1029, 127
    %v1046 = vpop.permute.xlu0 %1045
    %1047 = vrot.lane.b32.xlu0 %v1030, 127
    %v1048 = vpop.permute.xlu0 %1047
    %v1055 = vadd.f32 %v1017, %v1038
    %v1056 = vadd.f32 %v1018, %v1040
    %v1057 = vadd.f32 %v1019, %v1042
    %v1058 = vadd.f32 %v1020, %v1044
    %v1059 = vadd.f32 %v1021, %v1046
    %v1060 = vadd.f32 %v1022, %v1048
    %s1061 = sld [smem:[#allocation8 + $0x16]]
    %v1062 = vstv %s1061
    %v1063 = vmul.f32 %v1062, %v931
    %v1064 = vmul.f32 %v1062, %v932
    %v1065 = vmul.f32 %v1062, %v933
    %v1066 = vmul.f32 %v1062, %v934
    %v1067 = vmul.f32 %v1062, %v935
    %v1068 = vmul.f32 %v1062, %v936
    %v1075 = vrot.slane %v1063, 1
    %v1076 = vrot.slane %v1064, 1
    %v1077 = vsel %vm242, %v1075, %v1076
    %v1078 = vrot.slane %v1065, 1
    %v1079 = vsel %vm242, %v1076, %v1078
    %v1080 = vrot.slane %v1066, 1
    %v1081 = vrot.slane %v1067, 1
    %v1082 = vsel %vm242, %v1080, %v1081
    %v1083 = vrot.slane %v1068, 1
    %v1084 = vsel %vm242, %v1081, %v1083
    %1085 = vrot.lane.b32.xlu0 %v1077, 127
    %v1086 = vpop.permute.xlu0 %1085
    %1087 = vrot.lane.b32.xlu0 %v1079, 127
    %v1088 = vpop.permute.xlu0 %1087
    %1089 = vrot.lane.b32.xlu0 %v1078, 127
    %v1090 = vpop.permute.xlu0 %1089
    %1091 = vrot.lane.b32.xlu0 %v1082, 127
    %v1092 = vpop.permute.xlu0 %1091
    %1093 = vrot.lane.b32.xlu0 %v1084, 127
    %v1094 = vpop.permute.xlu0 %1093
    %1095 = vrot.lane.b32.xlu0 %v1083, 127
    %v1096 = vpop.permute.xlu0 %1095
    %v1103 = vadd.f32 %v1055, %v1086
    %v1104 = vadd.f32 %v1056, %v1088
    %v1105 = vadd.f32 %v1057, %v1090
    %v1106 = vadd.f32 %v1058, %v1092
    %v1107 = vadd.f32 %v1059, %v1094
    %v1108 = vadd.f32 %v1060, %v1096
    %s1109 = sld [smem:[#allocation8 + $0x19]]
    %v1110 = vstv %s1109
    %v1111 = vmul.f32 %v1110, %v931
    %v1112 = vmul.f32 %v1110, %v932
    %v1113 = vmul.f32 %v1110, %v933
    %v1114 = vmul.f32 %v1110, %v934
    %v1115 = vmul.f32 %v1110, %v935
    %v1116 = vmul.f32 %v1110, %v936
    %v1123 = vrot.slane %v1111, 2
    %v1124 = vrot.slane %v1112, 2
    %v1125 = vsel %vm279, %v1123, %v1124
    %v1126 = vrot.slane %v1113, 2
    %v1127 = vsel %vm279, %v1124, %v1126
    %v1128 = vrot.slane %v1114, 2
    %v1129 = vrot.slane %v1115, 2
    %v1130 = vsel %vm279, %v1128, %v1129
    %v1131 = vrot.slane %v1116, 2
    %v1132 = vsel %vm279, %v1129, %v1131
    %1133 = vrot.lane.b32.xlu0 %v1125, 127
    %v1134 = vpop.permute.xlu0 %1133
    %1135 = vrot.lane.b32.xlu0 %v1127, 127
    %v1136 = vpop.permute.xlu0 %1135
    %1137 = vrot.lane.b32.xlu0 %v1126, 127
    %v1138 = vpop.permute.xlu0 %1137
    %1139 = vrot.lane.b32.xlu0 %v1130, 127
    %v1140 = vpop.permute.xlu0 %1139
    %1141 = vrot.lane.b32.xlu0 %v1132, 127
    %v1142 = vpop.permute.xlu0 %1141
    %1143 = vrot.lane.b32.xlu0 %v1131, 127
    %v1144 = vpop.permute.xlu0 %1143
    %v1151 = vadd.f32 %v1103, %v1134
    %v1152 = vadd.f32 %v1104, %v1136
    %v1153 = vadd.f32 %v1105, %v1138
    %v1154 = vadd.f32 %v1106, %v1140
    %v1155 = vadd.f32 %v1107, %v1142
    %v1156 = vadd.f32 %v1108, %v1144
    %s1157 = sld [smem:[#allocation8 + $0x14]]
    %v1158 = vstv %s1157
    %v1159 = vmul.f32 %v1158, %v931
    %v1160 = vmul.f32 %v1158, %v932
    %v1161 = vmul.f32 %v1158, %v933
    %v1162 = vmul.f32 %v1158, %v934
    %v1163 = vmul.f32 %v1158, %v935
    %v1164 = vmul.f32 %v1158, %v936
    %1171 = vrot.lane.b32.xlu0 %v1159, 126
    %v1172 = vpop.permute.xlu0 %1171
    %1173 = vrot.lane.b32.xlu0 %v1160, 126
    %v1174 = vpop.permute.xlu0 %1173
    %1175 = vrot.lane.b32.xlu0 %v1161, 126
    %v1176 = vpop.permute.xlu0 %1175
    %1177 = vrot.lane.b32.xlu0 %v1162, 126
    %v1178 = vpop.permute.xlu0 %1177
    %1179 = vrot.lane.b32.xlu0 %v1163, 126
    %v1180 = vpop.permute.xlu0 %1179
    %1181 = vrot.lane.b32.xlu0 %v1164, 126
    %v1182 = vpop.permute.xlu0 %1181
    %v1189 = vadd.f32 %v1151, %v1172
    %v1190 = vadd.f32 %v1152, %v1174
    %v1191 = vadd.f32 %v1153, %v1176
    %v1192 = vadd.f32 %v1154, %v1178
    %v1193 = vadd.f32 %v1155, %v1180
    %v1194 = vadd.f32 %v1156, %v1182
    %s1195 = sld [smem:[#allocation8 + $0x17]]
    %v1196 = vstv %s1195
    %v1197 = vmul.f32 %v1196, %v931
    %v1198 = vmul.f32 %v1196, %v932
    %v1199 = vmul.f32 %v1196, %v933
    %v1200 = vmul.f32 %v1196, %v934
    %v1201 = vmul.f32 %v1196, %v935
    %v1202 = vmul.f32 %v1196, %v936
    %v1209 = vrot.slane %v1197, 1
    %v1210 = vrot.slane %v1198, 1
    %v1211 = vsel %vm242, %v1209, %v1210
    %v1212 = vrot.slane %v1199, 1
    %v1213 = vsel %vm242, %v1210, %v1212
    %v1214 = vrot.slane %v1200, 1
    %v1215 = vrot.slane %v1201, 1
    %v1216 = vsel %vm242, %v1214, %v1215
    %v1217 = vrot.slane %v1202, 1
    %v1218 = vsel %vm242, %v1215, %v1217
    %1219 = vrot.lane.b32.xlu0 %v1211, 126
    %v1220 = vpop.permute.xlu0 %1219
    %1221 = vrot.lane.b32.xlu0 %v1213, 126
    %v1222 = vpop.permute.xlu0 %1221
    %1223 = vrot.lane.b32.xlu0 %v1212, 126
    %v1224 = vpop.permute.xlu0 %1223
    %1225 = vrot.lane.b32.xlu0 %v1216, 126
    %v1226 = vpop.permute.xlu0 %1225
    %1227 = vrot.lane.b32.xlu0 %v1218, 126
    %v1228 = vpop.permute.xlu0 %1227
    %1229 = vrot.lane.b32.xlu0 %v1217, 126
    %v1230 = vpop.permute.xlu0 %1229
    %v1237 = vadd.f32 %v1189, %v1220
    %v1238 = vadd.f32 %v1190, %v1222
    %v1239 = vadd.f32 %v1191, %v1224
    %v1240 = vadd.f32 %v1192, %v1226
    %v1241 = vadd.f32 %v1193, %v1228
    %v1242 = vadd.f32 %v1194, %v1230
    %s1243 = sld [smem:[#allocation8 + $0x1a]]
    %v1244 = vstv %s1243
    %v1245 = vmul.f32 %v1244, %v931
    %v1246 = vmul.f32 %v1244, %v932
    %v1247 = vmul.f32 %v1244, %v933
    %v1248 = vmul.f32 %v1244, %v934
    %v1249 = vmul.f32 %v1244, %v935
    %v1250 = vmul.f32 %v1244, %v936
    %v1257 = vrot.slane %v1245, 2
    %v1258 = vrot.slane %v1246, 2
    %v1259 = vsel %vm279, %v1257, %v1258
    %v1260 = vrot.slane %v1247, 2
    %v1261 = vsel %vm279, %v1258, %v1260
    %v1262 = vrot.slane %v1248, 2
    %v1263 = vrot.slane %v1249, 2
    %v1264 = vsel %vm279, %v1262, %v1263
    %v1265 = vrot.slane %v1250, 2
    %v1266 = vsel %vm279, %v1263, %v1265
    %1267 = vrot.lane.b32.xlu0 %v1259, 126
    %v1268 = vpop.permute.xlu0 %1267
    %1269 = vrot.lane.b32.xlu0 %v1261, 126
    %v1270 = vpop.permute.xlu0 %1269
    %1271 = vrot.lane.b32.xlu0 %v1260, 126
    %v1272 = vpop.permute.xlu0 %1271
    %1273 = vrot.lane.b32.xlu0 %v1264, 126
    %v1274 = vpop.permute.xlu0 %1273
    %1275 = vrot.lane.b32.xlu0 %v1266, 126
    %v1276 = vpop.permute.xlu0 %1275
    %1277 = vrot.lane.b32.xlu0 %v1265, 126
    %v1278 = vpop.permute.xlu0 %1277
    %v1285 = vadd.f32 %v1237, %v1268
    %v1286 = vadd.f32 %v1238, %v1270
    %v1287 = vadd.f32 %v1239, %v1272
    %v1288 = vadd.f32 %v1240, %v1274
    %v1289 = vadd.f32 %v1241, %v1276
    %v1290 = vadd.f32 %v1242, %v1278
    %s1291 = scalar_lea.vmem [#allocation2], 72
    %v1292 = vld [vmem:[%s1291] sm:$0xff]
    %v1293 = vld [vmem:[%s1291 + $0x8] sm:$0xff]
    %v1294 = vld [vmem:[%s1291 + $0x10] sm:$0xf]
    %v1295 = vld [vmem:[%s1291 + $0x60] sm:$0xff]
    %v1296 = vld [vmem:[%s1291 + $0x68] sm:$0xff]
    %v1297 = vld [vmem:[%s1291 + $0x70] sm:$0xf]
    %s1298 = sld [smem:[#allocation8 + $0x1b]]
    %v1299 = vstv %s1298
    %v1300 = vmul.f32 %v1299, %v1292
    %v1301 = vmul.f32 %v1299, %v1293
    %v1302 = vmul.f32 %v1299, %v1294
    %v1303 = vmul.f32 %v1299, %v1295
    %v1304 = vmul.f32 %v1299, %v1296
    %v1305 = vmul.f32 %v1299, %v1297
    %v1306 = vadd.f32 %v1285, %v1300
    %v1307 = vadd.f32 %v1286, %v1301
    %v1308 = vadd.f32 %v1287, %v1302
    %v1309 = vadd.f32 %v1288, %v1303
    %v1310 = vadd.f32 %v1289, %v1304
    %v1311 = vadd.f32 %v1290, %v1305
    %s1312 = sld [smem:[#allocation8 + $0x1e]]
    %v1313 = vstv %s1312
    %v1314 = vmul.f32 %v1313, %v1292
    %v1315 = vmul.f32 %v1313, %v1293
    %v1316 = vmul.f32 %v1313, %v1294
    %v1317 = vmul.f32 %v1313, %v1295
    %v1318 = vmul.f32 %v1313, %v1296
    %v1319 = vmul.f32 %v1313, %v1297
    %v1326 = vrot.slane %v1314, 1
    %v1327 = vrot.slane %v1315, 1
    %v1328 = vsel %vm242, %v1326, %v1327
    %v1329 = vrot.slane %v1316, 1
    %v1330 = vsel %vm242, %v1327, %v1329
    %v1331 = vrot.slane %v1317, 1
    %v1332 = vrot.slane %v1318, 1
    %v1333 = vsel %vm242, %v1331, %v1332
    %v1334 = vrot.slane %v1319, 1
    %v1335 = vsel %vm242, %v1332, %v1334
    %v1342 = vadd.f32 %v1306, %v1328
    %v1343 = vadd.f32 %v1307, %v1330
    %v1344 = vadd.f32 %v1308, %v1329
    %v1345 = vadd.f32 %v1309, %v1333
    %v1346 = vadd.f32 %v1310, %v1335
    %v1347 = vadd.f32 %v1311, %v1334
    %s1348 = sld [smem:[#allocation8 + $0x21]]
    %v1349 = vstv %s1348
    %v1350 = vmul.f32 %v1349, %v1292
    %v1351 = vmul.f32 %v1349, %v1293
    %v1352 = vmul.f32 %v1349, %v1294
    %v1353 = vmul.f32 %v1349, %v1295
    %v1354 = vmul.f32 %v1349, %v1296
    %v1355 = vmul.f32 %v1349, %v1297
    %v1362 = vrot.slane %v1350, 2
    %v1363 = vrot.slane %v1351, 2
    %v1364 = vsel %vm279, %v1362, %v1363
    %v1365 = vrot.slane %v1352, 2
    %v1366 = vsel %vm279, %v1363, %v1365
    %v1367 = vrot.slane %v1353, 2
    %v1368 = vrot.slane %v1354, 2
    %v1369 = vsel %vm279, %v1367, %v1368
    %v1370 = vrot.slane %v1355, 2
    %v1371 = vsel %vm279, %v1368, %v1370
    %v1378 = vadd.f32 %v1342, %v1364
    %v1379 = vadd.f32 %v1343, %v1366
    %v1380 = vadd.f32 %v1344, %v1365
    %v1381 = vadd.f32 %v1345, %v1369
    %v1382 = vadd.f32 %v1346, %v1371
    %v1383 = vadd.f32 %v1347, %v1370
    %s1384 = sld [smem:[#allocation8 + $0x1c]]
    %v1385 = vstv %s1384
    %v1386 = vmul.f32 %v1385, %v1292
    %v1387 = vmul.f32 %v1385, %v1293
    %v1388 = vmul.f32 %v1385, %v1294
    %v1389 = vmul.f32 %v1385, %v1295
    %v1390 = vmul.f32 %v1385, %v1296
    %v1391 = vmul.f32 %v1385, %v1297
    %1398 = vrot.lane.b32.xlu0 %v1386, 127
    %v1399 = vpop.permute.xlu0 %1398
    %1400 = vrot.lane.b32.xlu0 %v1387, 127
    %v1401 = vpop.permute.xlu0 %1400
    %1402 = vrot.lane.b32.xlu0 %v1388, 127
    %v1403 = vpop.permute.xlu0 %1402
    %1404 = vrot.lane.b32.xlu0 %v1389, 127
    %v1405 = vpop.permute.xlu0 %1404
    %1406 = vrot.lane.b32.xlu0 %v1390, 127
    %v1407 = vpop.permute.xlu0 %1406
    %1408 = vrot.lane.b32.xlu0 %v1391, 127
    %v1409 = vpop.permute.xlu0 %1408
    %v1416 = vadd.f32 %v1378, %v1399
    %v1417 = vadd.f32 %v1379, %v1401
    %v1418 = vadd.f32 %v1380, %v1403
    %v1419 = vadd.f32 %v1381, %v1405
    %v1420 = vadd.f32 %v1382, %v1407
    %v1421 = vadd.f32 %v1383, %v1409
    %s1422 = sld [smem:[#allocation8 + $0x1f]]
    %v1423 = vstv %s1422
    %v1424 = vmul.f32 %v1423, %v1292
    %v1425 = vmul.f32 %v1423, %v1293
    %v1426 = vmul.f32 %v1423, %v1294
    %v1427 = vmul.f32 %v1423, %v1295
    %v1428 = vmul.f32 %v1423, %v1296
    %v1429 = vmul.f32 %v1423, %v1297
    %v1436 = vrot.slane %v1424, 1
    %v1437 = vrot.slane %v1425, 1
    %v1438 = vsel %vm242, %v1436, %v1437
    %v1439 = vrot.slane %v1426, 1
    %v1440 = vsel %vm242, %v1437, %v1439
    %v1441 = vrot.slane %v1427, 1
    %v1442 = vrot.slane %v1428, 1
    %v1443 = vsel %vm242, %v1441, %v1442
    %v1444 = vrot.slane %v1429, 1
    %v1445 = vsel %vm242, %v1442, %v1444
    %1446 = vrot.lane.b32.xlu0 %v1438, 127
    %v1447 = vpop.permute.xlu0 %1446
    %1448 = vrot.lane.b32.xlu0 %v1440, 127
    %v1449 = vpop.permute.xlu0 %1448
    %1450 = vrot.lane.b32.xlu0 %v1439, 127
    %v1451 = vpop.permute.xlu0 %1450
    %1452 = vrot.lane.b32.xlu0 %v1443, 127
    %v1453 = vpop.permute.xlu0 %1452
    %1454 = vrot.lane.b32.xlu0 %v1445, 127
    %v1455 = vpop.permute.xlu0 %1454
    %1456 = vrot.lane.b32.xlu0 %v1444, 127
    %v1457 = vpop.permute.xlu0 %1456
    %v1464 = vadd.f32 %v1416, %v1447
    %v1465 = vadd.f32 %v1417, %v1449
    %v1466 = vadd.f32 %v1418, %v1451
    %v1467 = vadd.f32 %v1419, %v1453
    %v1468 = vadd.f32 %v1420, %v1455
    %v1469 = vadd.f32 %v1421, %v1457
    %s1470 = sld [smem:[#allocation8 + $0x22]]
    %v1471 = vstv %s1470
    %v1472 = vmul.f32 %v1471, %v1292
    %v1473 = vmul.f32 %v1471, %v1293
    %v1474 = vmul.f32 %v1471, %v1294
    %v1475 = vmul.f32 %v1471, %v1295
    %v1476 = vmul.f32 %v1471, %v1296
    %v1477 = vmul.f32 %v1471, %v1297
    %v1484 = vrot.slane %v1472, 2
    %v1485 = vrot.slane %v1473, 2
    %v1486 = vsel %vm279, %v1484, %v1485
    %v1487 = vrot.slane %v1474, 2
    %v1488 = vsel %vm279, %v1485, %v1487
    %v1489 = vrot.slane %v1475, 2
    %v1490 = vrot.slane %v1476, 2
    %v1491 = vsel %vm279, %v1489, %v1490
    %v1492 = vrot.slane %v1477, 2
    %v1493 = vsel %vm279, %v1490, %v1492
    %1494 = vrot.lane.b32.xlu0 %v1486, 127
    %v1495 = vpop.permute.xlu0 %1494
    %1496 = vrot.lane.b32.xlu0 %v1488, 127
    %v1497 = vpop.permute.xlu0 %1496
    %1498 = vrot.lane.b32.xlu0 %v1487, 127
    %v1499 = vpop.permute.xlu0 %1498
    %1500 = vrot.lane.b32.xlu0 %v1491, 127
    %v1501 = vpop.permute.xlu0 %1500
    %1502 = vrot.lane.b32.xlu0 %v1493, 127
    %v1503 = vpop.permute.xlu0 %1502
    %1504 = vrot.lane.b32.xlu0 %v1492, 127
    %v1505 = vpop.permute.xlu0 %1504
    %v1512 = vadd.f32 %v1464, %v1495
    %v1513 = vadd.f32 %v1465, %v1497
    %v1514 = vadd.f32 %v1466, %v1499
    %v1515 = vadd.f32 %v1467, %v1501
    %v1516 = vadd.f32 %v1468, %v1503
    %v1517 = vadd.f32 %v1469, %v1505
    %s1518 = sld [smem:[#allocation8 + $0x1d]]
    %v1519 = vstv %s1518
    %v1520 = vmul.f32 %v1519, %v1292
    %v1521 = vmul.f32 %v1519, %v1293
    %v1522 = vmul.f32 %v1519, %v1294
    %v1523 = vmul.f32 %v1519, %v1295
    %v1524 = vmul.f32 %v1519, %v1296
    %v1525 = vmul.f32 %v1519, %v1297
    %1532 = vrot.lane.b32.xlu0 %v1520, 126
    %v1533 = vpop.permute.xlu0 %1532
    %1534 = vrot.lane.b32.xlu0 %v1521, 126
    %v1535 = vpop.permute.xlu0 %1534
    %1536 = vrot.lane.b32.xlu0 %v1522, 126
    %v1537 = vpop.permute.xlu0 %1536
    %1538 = vrot.lane.b32.xlu0 %v1523, 126
    %v1539 = vpop.permute.xlu0 %1538
    %1540 = vrot.lane.b32.xlu0 %v1524, 126
    %v1541 = vpop.permute.xlu0 %1540
    %1542 = vrot.lane.b32.xlu0 %v1525, 126
    %v1543 = vpop.permute.xlu0 %1542
    %v1550 = vadd.f32 %v1512, %v1533
    %v1551 = vadd.f32 %v1513, %v1535
    %v1552 = vadd.f32 %v1514, %v1537
    %v1553 = vadd.f32 %v1515, %v1539
    %v1554 = vadd.f32 %v1516, %v1541
    %v1555 = vadd.f32 %v1517, %v1543
    %s1556 = sld [smem:[#allocation8 + $0x20]]
    %v1557 = vstv %s1556
    %v1558 = vmul.f32 %v1557, %v1292
    %v1559 = vmul.f32 %v1557, %v1293
    %v1560 = vmul.f32 %v1557, %v1294
    %v1561 = vmul.f32 %v1557, %v1295
    %v1562 = vmul.f32 %v1557, %v1296
    %v1563 = vmul.f32 %v1557, %v1297
    %v1570 = vrot.slane %v1558, 1
    %v1571 = vrot.slane %v1559, 1
    %v1572 = vsel %vm242, %v1570, %v1571
    %v1573 = vrot.slane %v1560, 1
    %v1574 = vsel %vm242, %v1571, %v1573
    %v1575 = vrot.slane %v1561, 1
    %v1576 = vrot.slane %v1562, 1
    %v1577 = vsel %vm242, %v1575, %v1576
    %v1578 = vrot.slane %v1563, 1
    %v1579 = vsel %vm242, %v1576, %v1578
    %1580 = vrot.lane.b32.xlu0 %v1572, 126
    %v1581 = vpop.permute.xlu0 %1580
    %1582 = vrot.lane.b32.xlu0 %v1574, 126
    %v1583 = vpop.permute.xlu0 %1582
    %1584 = vrot.lane.b32.xlu0 %v1573, 126
    %v1585 = vpop.permute.xlu0 %1584
    %1586 = vrot.lane.b32.xlu0 %v1577, 126
    %v1587 = vpop.permute.xlu0 %1586
    %1588 = vrot.lane.b32.xlu0 %v1579, 126
    %v1589 = vpop.permute.xlu0 %1588
    %1590 = vrot.lane.b32.xlu0 %v1578, 126
    %v1591 = vpop.permute.xlu0 %1590
    %v1598 = vadd.f32 %v1550, %v1581
    %v1599 = vadd.f32 %v1551, %v1583
    %v1600 = vadd.f32 %v1552, %v1585
    %v1601 = vadd.f32 %v1553, %v1587
    %v1602 = vadd.f32 %v1554, %v1589
    %v1603 = vadd.f32 %v1555, %v1591
    %s1604 = sld [smem:[#allocation8 + $0x23]]
    %v1605 = vstv %s1604
    %v1606 = vmul.f32 %v1605, %v1292
    %v1607 = vmul.f32 %v1605, %v1293
    %v1608 = vmul.f32 %v1605, %v1294
    %v1609 = vmul.f32 %v1605, %v1295
    %v1610 = vmul.f32 %v1605, %v1296
    %v1611 = vmul.f32 %v1605, %v1297
    %v1618 = vrot.slane %v1606, 2
    %v1619 = vrot.slane %v1607, 2
    %v1620 = vsel %vm279, %v1618, %v1619
    %v1621 = vrot.slane %v1608, 2
    %v1622 = vsel %vm279, %v1619, %v1621
    %v1623 = vrot.slane %v1609, 2
    %v1624 = vrot.slane %v1610, 2
    %v1625 = vsel %vm279, %v1623, %v1624
    %v1626 = vrot.slane %v1611, 2
    %v1627 = vsel %vm279, %v1624, %v1626
    %1628 = vrot.lane.b32.xlu0 %v1620, 126
    %v1629 = vpop.permute.xlu0 %1628
    %1630 = vrot.lane.b32.xlu0 %v1622, 126
    %v1631 = vpop.permute.xlu0 %1630
    %1632 = vrot.lane.b32.xlu0 %v1621, 126
    %v1633 = vpop.permute.xlu0 %1632
    %1634 = vrot.lane.b32.xlu0 %v1625, 126
    %v1635 = vpop.permute.xlu0 %1634
    %1636 = vrot.lane.b32.xlu0 %v1627, 126
    %v1637 = vpop.permute.xlu0 %1636
    %1638 = vrot.lane.b32.xlu0 %v1626, 126
    %v1639 = vpop.permute.xlu0 %1638
    %v1646 = vadd.f32 %v1598, %v1629
    %v1647 = vadd.f32 %v1599, %v1631
    %v1648 = vadd.f32 %v1600, %v1633
    %v1649 = vadd.f32 %v1601, %v1635
    %v1650 = vadd.f32 %v1602, %v1637
    %v1651 = vadd.f32 %v1603, %v1639
    %vm1652 = vcmask 146432
    %v1653 = vsel %vm1652, %v1646, 0.0
    %v1654 = vsel %vm1652, %v1647, 0.0
    %v1655 = vadd.f32 %v1653, %v1654
    %vm1656 = vcmask 140288
    %v1657 = vsel %vm1656, %v1648, 0.0
    %v1658 = vadd.f32 %v1655, %v1657
    %v1659 = vsel %vm1652, %v1649, 0.0
    %v1660 = vadd.f32 %v1658, %v1659
    %v1661 = vsel %vm1652, %v1650, 0.0
    %v1662 = vadd.f32 %v1660, %v1661
    %v1663 = vsel %vm1656, %v1651, 0.0
    %v1664 = vadd.f32 %v1662, %v1663
    %1665 = vadd.xlane.f32.xlu0 %v1664
    %v1666 = vpop.xlane.xlu0 %1665
    %v1667 = vrot.slane %v1666, 4
    %v1668 = vadd.f32 %v1666, %v1667
    %v1669 = vrot.slane %v1668, 2
    %v1670 = vadd.f32 %v1668, %v1669
    %v1671 = vrot.slane %v1670, 1
    %v1672 = vadd.f32 %v1670, %v1671
    %s1673 = vtos %v1672
    %s1674 = smul.f32 %s1673, 0.0015432099
    %v1675 = vstv %s1674
    %v1676 = vsub.f32 %v1646, %v1675
    %v1677 = vsub.f32 %v1647, %v1675
    %v1678 = vsub.f32 %v1648, %v1675
    %v1679 = vsub.f32 %v1649, %v1675
    %v1680 = vsub.f32 %v1650, %v1675
    %v1681 = vsub.f32 %v1651, %v1675
    %v1682 = vmul.f32 %v1676, %v1676
    %v1683 = vmul.f32 %v1677, %v1677
    %v1684 = vmul.f32 %v1678, %v1678
    %v1685 = vmul.f32 %v1679, %v1679
    %v1686 = vmul.f32 %v1680, %v1680
    %v1687 = vmul.f32 %v1681, %v1681
    %v1688 = vsel %vm1652, %v1682, 0.0
    %v1689 = vsel %vm1652, %v1683, 0.0
    %v1690 = vadd.f32 %v1688, %v1689
    %v1691 = vsel %vm1656, %v1684, 0.0
    %v1692 = vadd.f32 %v1690, %v1691
    %v1693 = vsel %vm1652, %v1685, 0.0
    %v1694 = vadd.f32 %v1692, %v1693
    %v1695 = vsel %vm1652, %v1686, 0.0
    %v1696 = vadd.f32 %v1694, %v1695
    %v1697 = vsel %vm1656, %v1687, 0.0
    %v1698 = vadd.f32 %v1696, %v1697
    %1699 = vadd.xlane.f32.xlu0 %v1698
    %v1700 = vpop.xlane.xlu0 %1699
    %v1701 = vrot.slane %v1700, 4
    %v1702 = vadd.f32 %v1700, %v1701
    %v1703 = vrot.slane %v1702, 2
    %v1704 = vadd.f32 %v1702, %v1703
    %v1705 = vrot.slane %v1704, 1
    %v1706 = vadd.f32 %v1704, %v1705
    %s1707 = vtos %v1706
    %s1708 = smul.f32 %s1707, 0.0015432099
    %s1709 = sadd.f32 %s1708, 1e-05
    %v1710 = vstv %s1709
    %v1711 = vrsqrt.pop %v1710
    %s1712 = vtos %v1711
    %s1713 = sld [smem:[#allocation9]]
    %s1714 = smul.f32 %s1712, %s1713
    %v1715 = vstv %s1714
    %v1716 = vmul.f32 %v1676, %v1715
    %v1717 = vmul.f32 %v1677, %v1715
    %v1718 = vmul.f32 %v1678, %v1715
    %v1719 = vmul.f32 %v1679, %v1715
    %v1720 = vmul.f32 %v1680, %v1715
    %v1721 = vmul.f32 %v1681, %v1715
    %s1722 = sld [smem:[#allocation11]]
    %v1723 = vstv %s1722
    %v1724 = vadd.f32 %v1716, %v1723
    %v1725 = vadd.f32 %v1717, %v1723
    %v1726 = vadd.f32 %v1718, %v1723
    %v1727 = vadd.f32 %v1719, %v1723
    %v1728 = vadd.f32 %v1720, %v1723
    %v1729 = vadd.f32 %v1721, %v1723
    %vm1730 = vcmp.ge.f32.partialorder %v1724, 0.0
    %vm1731 = vcmp.ge.f32.partialorder %v1725, 0.0
    %vm1732 = vcmp.ge.f32.partialorder %v1726, 0.0
    %vm1733 = vcmp.ge.f32.partialorder %v1727, 0.0
    %vm1734 = vcmp.ge.f32.partialorder %v1728, 0.0
    %vm1735 = vcmp.ge.f32.partialorder %v1729, 0.0
    %v1736 = vmul.f32 %v1724, 0.01
    %v1737 = vmul.f32 %v1725, 0.01
    %v1738 = vmul.f32 %v1726, 0.01
    %v1739 = vmul.f32 %v1727, 0.01
    %v1740 = vmul.f32 %v1728, 0.01
    %v1741 = vmul.f32 %v1729, 0.01
    %v1742 = vsel %vm1730, %v1724, %v1736
    %v1743 = vsel %vm1731, %v1725, %v1737
    %v1744 = vsel %vm1732, %v1726, %v1738
    %v1745 = vsel %vm1733, %v1727, %v1739
    %v1746 = vsel %vm1734, %v1728, %v1740
    %v1747 = vsel %vm1735, %v1729, %v1741
    %1748 = vst.msk [vmem:[%s5] sm:$0xff] %vm1652, %v1742
    %1749 = vst.msk [vmem:[%s5 + $0x8] sm:$0xff] %vm1652, %v1743
    %1750 = vst.msk [vmem:[%s5 + $0x10] sm:$0x3] %vm1656, %v1744
    %1751 = vst.msk [vmem:[%s5 + $0x60] sm:$0xff] %vm1652, %v1745
    %1752 = vst.msk [vmem:[%s5 + $0x68] sm:$0xff] %vm1652, %v1746
    %1753 = vst.msk [vmem:[%s5 + $0x70] sm:$0x3] %vm1656, %v1747
    %v1754 = vld [vmem:[#allocation2] sm:$0xff]
    %v1755 = vld [vmem:[#allocation2 + $0x8] sm:$0xff]
    %v1756 = vld [vmem:[#allocation2 + $0x10] sm:$0xf]
    %v1757 = vld [vmem:[#allocation2 + $0x60] sm:$0xff]
    %v1758 = vld [vmem:[#allocation2 + $0x68] sm:$0xff]
    %v1759 = vld [vmem:[#allocation2 + $0x70] sm:$0xf]
    %s1760 = sld [smem:[#allocation8 + $0x24]]
    %v1761 = vstv %s1760
    %v1762 = vmul.f32 %v1761, %v1754
    %v1763 = vmul.f32 %v1761, %v1755
    %v1764 = vmul.f32 %v1761, %v1756
    %v1765 = vmul.f32 %v1761, %v1757
    %v1766 = vmul.f32 %v1761, %v1758
    %v1767 = vmul.f32 %v1761, %v1759
    %v1768 = vadd.f32 %v1762, 0.0
    %v1769 = vadd.f32 %v1763, 0.0
    %v1770 = vadd.f32 %v1764, 0.0
    %v1771 = vadd.f32 %v1765, 0.0
    %v1772 = vadd.f32 %v1766, 0.0
    %v1773 = vadd.f32 %v1767, 0.0
    %s1774 = sld [smem:[#allocation8 + $0x27]]
    %v1775 = vstv %s1774
    %v1776 = vmul.f32 %v1775, %v1754
    %v1777 = vmul.f32 %v1775, %v1755
    %v1778 = vmul.f32 %v1775, %v1756
    %v1779 = vmul.f32 %v1775, %v1757
    %v1780 = vmul.f32 %v1775, %v1758
    %v1781 = vmul.f32 %v1775, %v1759
    %v1788 = vrot.slane %v1776, 1
    %v1789 = vrot.slane %v1777, 1
    %v1790 = vsel %vm242, %v1788, %v1789
    %v1791 = vrot.slane %v1778, 1
    %v1792 = vsel %vm242, %v1789, %v1791
    %v1793 = vrot.slane %v1779, 1
    %v1794 = vrot.slane %v1780, 1
    %v1795 = vsel %vm242, %v1793, %v1794
    %v1796 = vrot.slane %v1781, 1
    %v1797 = vsel %vm242, %v1794, %v1796
    %v1804 = vadd.f32 %v1768, %v1790
    %v1805 = vadd.f32 %v1769, %v1792
    %v1806 = vadd.f32 %v1770, %v1791
    %v1807 = vadd.f32 %v1771, %v1795
    %v1808 = vadd.f32 %v1772, %v1797
    %v1809 = vadd.f32 %v1773, %v1796
    %s1810 = sld [smem:[#allocation8 + $0x2a]]
    %v1811 = vstv %s1810
    %v1812 = vmul.f32 %v1811, %v1754
    %v1813 = vmul.f32 %v1811, %v1755
    %v1814 = vmul.f32 %v1811, %v1756
    %v1815 = vmul.f32 %v1811, %v1757
    %v1816 = vmul.f32 %v1811, %v1758
    %v1817 = vmul.f32 %v1811, %v1759
    %v1824 = vrot.slane %v1812, 2
    %v1825 = vrot.slane %v1813, 2
    %v1826 = vsel %vm279, %v1824, %v1825
    %v1827 = vrot.slane %v1814, 2
    %v1828 = vsel %vm279, %v1825, %v1827
    %v1829 = vrot.slane %v1815, 2
    %v1830 = vrot.slane %v1816, 2
    %v1831 = vsel %vm279, %v1829, %v1830
    %v1832 = vrot.slane %v1817, 2
    %v1833 = vsel %vm279, %v1830, %v1832
    %v1840 = vadd.f32 %v1804, %v1826
    %v1841 = vadd.f32 %v1805, %v1828
    %v1842 = vadd.f32 %v1806, %v1827
    %v1843 = vadd.f32 %v1807, %v1831
    %v1844 = vadd.f32 %v1808, %v1833
    %v1845 = vadd.f32 %v1809, %v1832
    %s1846 = sld [smem:[#allocation8 + $0x25]]
    %v1847 = vstv %s1846
    %v1848 = vmul.f32 %v1847, %v1754
    %v1849 = vmul.f32 %v1847, %v1755
    %v1850 = vmul.f32 %v1847, %v1756
    %v1851 = vmul.f32 %v1847, %v1757
    %v1852 = vmul.f32 %v1847, %v1758
    %v1853 = vmul.f32 %v1847, %v1759
    %1860 = vrot.lane.b32.xlu0 %v1848, 127
    %v1861 = vpop.permute.xlu0 %1860
    %1862 = vrot.lane.b32.xlu0 %v1849, 127
    %v1863 = vpop.permute.xlu0 %1862
    %1864 = vrot.lane.b32.xlu0 %v1850, 127
    %v1865 = vpop.permute.xlu0 %1864
    %1866 = vrot.lane.b32.xlu0 %v1851, 127
    %v1867 = vpop.permute.xlu0 %1866
    %1868 = vrot.lane.b32.xlu0 %v1852, 127
    %v1869 = vpop.permute.xlu0 %1868
    %1870 = vrot.lane.b32.xlu0 %v1853, 127
    %v1871 = vpop.permute.xlu0 %1870
    %v1878 = vadd.f32 %v1840, %v1861
    %v1879 = vadd.f32 %v1841, %v1863
    %v1880 = vadd.f32 %v1842, %v1865
    %v1881 = vadd.f32 %v1843, %v1867
    %v1882 = vadd.f32 %v1844, %v1869
    %v1883 = vadd.f32 %v1845, %v1871
    %s1884 = sld [smem:[#allocation8 + $0x28]]
    %v1885 = vstv %s1884
    %v1886 = vmul.f32 %v1885, %v1754
    %v1887 = vmul.f32 %v1885, %v1755
    %v1888 = vmul.f32 %v1885, %v1756
    %v1889 = vmul.f32 %v1885, %v1757
    %v1890 = vmul.f32 %v1885, %v1758
    %v1891 = vmul.f32 %v1885, %v1759
    %v1898 = vrot.slane %v1886, 1
    %v1899 = vrot.slane %v1887, 1
    %v1900 = vsel %vm242, %v1898, %v1899
    %v1901 = vrot.slane %v1888, 1
    %v1902 = vsel %vm242, %v1899, %v1901
    %v1903 = vrot.slane %v1889, 1
    %v1904 = vrot.slane %v1890, 1
    %v1905 = vsel %vm242, %v1903, %v1904
    %v1906 = vrot.slane %v1891, 1
    %v1907 = vsel %vm242, %v1904, %v1906
    %1908 = vrot.lane.b32.xlu0 %v1900, 127
    %v1909 = vpop.permute.xlu0 %1908
    %1910 = vrot.lane.b32.xlu0 %v1902, 127
    %v1911 = vpop.permute.xlu0 %1910
    %1912 = vrot.lane.b32.xlu0 %v1901, 127
    %v1913 = vpop.permute.xlu0 %1912
    %1914 = vrot.lane.b32.xlu0 %v1905, 127
    %v1915 = vpop.permute.xlu0 %1914
    %1916 = vrot.lane.b32.xlu0 %v1907, 127
    %v1917 = vpop.permute.xlu0 %1916
    %1918 = vrot.lane.b32.xlu0 %v1906, 127
    %v1919 = vpop.permute.xlu0 %1918
    %v1926 = vadd.f32 %v1878, %v1909
    %v1927 = vadd.f32 %v1879, %v1911
    %v1928 = vadd.f32 %v1880, %v1913
    %v1929 = vadd.f32 %v1881, %v1915
    %v1930 = vadd.f32 %v1882, %v1917
    %v1931 = vadd.f32 %v1883, %v1919
    %s1932 = sld [smem:[#allocation8 + $0x2b]]
    %v1933 = vstv %s1932
    %v1934 = vmul.f32 %v1933, %v1754
    %v1935 = vmul.f32 %v1933, %v1755
    %v1936 = vmul.f32 %v1933, %v1756
    %v1937 = vmul.f32 %v1933, %v1757
    %v1938 = vmul.f32 %v1933, %v1758
    %v1939 = vmul.f32 %v1933, %v1759
    %v1946 = vrot.slane %v1934, 2
    %v1947 = vrot.slane %v1935, 2
    %v1948 = vsel %vm279, %v1946, %v1947
    %v1949 = vrot.slane %v1936, 2
    %v1950 = vsel %vm279, %v1947, %v1949
    %v1951 = vrot.slane %v1937, 2
    %v1952 = vrot.slane %v1938, 2
    %v1953 = vsel %vm279, %v1951, %v1952
    %v1954 = vrot.slane %v1939, 2
    %v1955 = vsel %vm279, %v1952, %v1954
    %1956 = vrot.lane.b32.xlu0 %v1948, 127
    %v1957 = vpop.permute.xlu0 %1956
    %1958 = vrot.lane.b32.xlu0 %v1950, 127
    %v1959 = vpop.permute.xlu0 %1958
    %1960 = vrot.lane.b32.xlu0 %v1949, 127
    %v1961 = vpop.permute.xlu0 %1960
    %1962 = vrot.lane.b32.xlu0 %v1953, 127
    %v1963 = vpop.permute.xlu0 %1962
    %1964 = vrot.lane.b32.xlu0 %v1955, 127
    %v1965 = vpop.permute.xlu0 %1964
    %1966 = vrot.lane.b32.xlu0 %v1954, 127
    %v1967 = vpop.permute.xlu0 %1966
    %v1974 = vadd.f32 %v1926, %v1957
    %v1975 = vadd.f32 %v1927, %v1959
    %v1976 = vadd.f32 %v1928, %v1961
    %v1977 = vadd.f32 %v1929, %v1963
    %v1978 = vadd.f32 %v1930, %v1965
    %v1979 = vadd.f32 %v1931, %v1967
    %s1980 = sld [smem:[#allocation8 + $0x26]]
    %v1981 = vstv %s1980
    %v1982 = vmul.f32 %v1981, %v1754
    %v1983 = vmul.f32 %v1981, %v1755
    %v1984 = vmul.f32 %v1981, %v1756
    %v1985 = vmul.f32 %v1981, %v1757
    %v1986 = vmul.f32 %v1981, %v1758
    %v1987 = vmul.f32 %v1981, %v1759
    %1994 = vrot.lane.b32.xlu0 %v1982, 126
    %v1995 = vpop.permute.xlu0 %1994
    %1996 = vrot.lane.b32.xlu0 %v1983, 126
    %v1997 = vpop.permute.xlu0 %1996
    %1998 = vrot.lane.b32.xlu0 %v1984, 126
    %v1999 = vpop.permute.xlu0 %1998
    %2000 = vrot.lane.b32.xlu0 %v1985, 126
    %v2001 = vpop.permute.xlu0 %2000
    %2002 = vrot.lane.b32.xlu0 %v1986, 126
    %v2003 = vpop.permute.xlu0 %2002
    %2004 = vrot.lane.b32.xlu0 %v1987, 126
    %v2005 = vpop.permute.xlu0 %2004
    %v2012 = vadd.f32 %v1974, %v1995
    %v2013 = vadd.f32 %v1975, %v1997
    %v2014 = vadd.f32 %v1976, %v1999
    %v2015 = vadd.f32 %v1977, %v2001
    %v2016 = vadd.f32 %v1978, %v2003
    %v2017 = vadd.f32 %v1979, %v2005
    %s2018 = sld [smem:[#allocation8 + $0x29]]
    %v2019 = vstv %s2018
    %v2020 = vmul.f32 %v2019, %v1754
    %v2021 = vmul.f32 %v2019, %v1755
    %v2022 = vmul.f32 %v2019, %v1756
    %v2023 = vmul.f32 %v2019, %v1757
    %v2024 = vmul.f32 %v2019, %v1758
    %v2025 = vmul.f32 %v2019, %v1759
    %v2032 = vrot.slane %v2020, 1
    %v2033 = vrot.slane %v2021, 1
    %v2034 = vsel %vm242, %v2032, %v2033
    %v2035 = vrot.slane %v2022, 1
    %v2036 = vsel %vm242, %v2033, %v2035
    %v2037 = vrot.slane %v2023, 1
    %v2038 = vrot.slane %v2024, 1
    %v2039 = vsel %vm242, %v2037, %v2038
    %v2040 = vrot.slane %v2025, 1
    %v2041 = vsel %vm242, %v2038, %v2040
    %2042 = vrot.lane.b32.xlu0 %v2034, 126
    %v2043 = vpop.permute.xlu0 %2042
    %2044 = vrot.lane.b32.xlu0 %v2036, 126
    %v2045 = vpop.permute.xlu0 %2044
    %2046 = vrot.lane.b32.xlu0 %v2035, 126
    %v2047 = vpop.permute.xlu0 %2046
    %2048 = vrot.lane.b32.xlu0 %v2039, 126
    %v2049 = vpop.permute.xlu0 %2048
    %2050 = vrot.lane.b32.xlu0 %v2041, 126
    %v2051 = vpop.permute.xlu0 %2050
    %2052 = vrot.lane.b32.xlu0 %v2040, 126
    %v2053 = vpop.permute.xlu0 %2052
    %v2060 = vadd.f32 %v2012, %v2043
    %v2061 = vadd.f32 %v2013, %v2045
    %v2062 = vadd.f32 %v2014, %v2047
    %v2063 = vadd.f32 %v2015, %v2049
    %v2064 = vadd.f32 %v2016, %v2051
    %v2065 = vadd.f32 %v2017, %v2053
    %s2066 = sld [smem:[#allocation8 + $0x2c]]
    %v2067 = vstv %s2066
    %v2068 = vmul.f32 %v2067, %v1754
    %v2069 = vmul.f32 %v2067, %v1755
    %v2070 = vmul.f32 %v2067, %v1756
    %v2071 = vmul.f32 %v2067, %v1757
    %v2072 = vmul.f32 %v2067, %v1758
    %v2073 = vmul.f32 %v2067, %v1759
    %v2080 = vrot.slane %v2068, 2
    %v2081 = vrot.slane %v2069, 2
    %v2082 = vsel %vm279, %v2080, %v2081
    %v2083 = vrot.slane %v2070, 2
    %v2084 = vsel %vm279, %v2081, %v2083
    %v2085 = vrot.slane %v2071, 2
    %v2086 = vrot.slane %v2072, 2
    %v2087 = vsel %vm279, %v2085, %v2086
    %v2088 = vrot.slane %v2073, 2
    %v2089 = vsel %vm279, %v2086, %v2088
    %2090 = vrot.lane.b32.xlu0 %v2082, 126
    %v2091 = vpop.permute.xlu0 %2090
    %2092 = vrot.lane.b32.xlu0 %v2084, 126
    %v2093 = vpop.permute.xlu0 %2092
    %2094 = vrot.lane.b32.xlu0 %v2083, 126
    %v2095 = vpop.permute.xlu0 %2094
    %2096 = vrot.lane.b32.xlu0 %v2087, 126
    %v2097 = vpop.permute.xlu0 %2096
    %2098 = vrot.lane.b32.xlu0 %v2089, 126
    %v2099 = vpop.permute.xlu0 %2098
    %2100 = vrot.lane.b32.xlu0 %v2088, 126
    %v2101 = vpop.permute.xlu0 %2100
    %v2108 = vadd.f32 %v2060, %v2091
    %v2109 = vadd.f32 %v2061, %v2093
    %v2110 = vadd.f32 %v2062, %v2095
    %v2111 = vadd.f32 %v2063, %v2097
    %v2112 = vadd.f32 %v2064, %v2099
    %v2113 = vadd.f32 %v2065, %v2101
    %v2114 = vld [vmem:[%s570] sm:$0xff]
    %v2115 = vld [vmem:[%s570 + $0x8] sm:$0xff]
    %v2116 = vld [vmem:[%s570 + $0x10] sm:$0xf]
    %v2117 = vld [vmem:[%s570 + $0x60] sm:$0xff]
    %v2118 = vld [vmem:[%s570 + $0x68] sm:$0xff]
    %v2119 = vld [vmem:[%s570 + $0x70] sm:$0xf]
    %s2120 = sld [smem:[#allocation8 + $0x2d]]
    %v2121 = vstv %s2120
    %v2122 = vmul.f32 %v2121, %v2114
    %v2123 = vmul.f32 %v2121, %v2115
    %v2124 = vmul.f32 %v2121, %v2116
    %v2125 = vmul.f32 %v2121, %v2117
    %v2126 = vmul.f32 %v2121, %v2118
    %v2127 = vmul.f32 %v2121, %v2119
    %v2128 = vadd.f32 %v2108, %v2122
    %v2129 = vadd.f32 %v2109, %v2123
    %v2130 = vadd.f32 %v2110, %v2124
    %v2131 = vadd.f32 %v2111, %v2125
    %v2132 = vadd.f32 %v2112, %v2126
    %v2133 = vadd.f32 %v2113, %v2127
    %s2134 = sld [smem:[#allocation8 + $0x30]]
    %v2135 = vstv %s2134
    %v2136 = vmul.f32 %v2135, %v2114
    %v2137 = vmul.f32 %v2135, %v2115
    %v2138 = vmul.f32 %v2135, %v2116
    %v2139 = vmul.f32 %v2135, %v2117
    %v2140 = vmul.f32 %v2135, %v2118
    %v2141 = vmul.f32 %v2135, %v2119
    %v2148 = vrot.slane %v2136, 1
    %v2149 = vrot.slane %v2137, 1
    %v2150 = vsel %vm242, %v2148, %v2149
    %v2151 = vrot.slane %v2138, 1
    %v2152 = vsel %vm242, %v2149, %v2151
    %v2153 = vrot.slane %v2139, 1
    %v2154 = vrot.slane %v2140, 1
    %v2155 = vsel %vm242, %v2153, %v2154
    %v2156 = vrot.slane %v2141, 1
    %v2157 = vsel %vm242, %v2154, %v2156
    %v2164 = vadd.f32 %v2128, %v2150
    %v2165 = vadd.f32 %v2129, %v2152
    %v2166 = vadd.f32 %v2130, %v2151
    %v2167 = vadd.f32 %v2131, %v2155
    %v2168 = vadd.f32 %v2132, %v2157
    %v2169 = vadd.f32 %v2133, %v2156
    %s2170 = sld [smem:[#allocation8 + $0x33]]
    %v2171 = vstv %s2170
    %v2172 = vmul.f32 %v2171, %v2114
    %v2173 = vmul.f32 %v2171, %v2115
    %v2174 = vmul.f32 %v2171, %v2116
    %v2175 = vmul.f32 %v2171, %v2117
    %v2176 = vmul.f32 %v2171, %v2118
    %v2177 = vmul.f32 %v2171, %v2119
    %v2184 = vrot.slane %v2172, 2
    %v2185 = vrot.slane %v2173, 2
    %v2186 = vsel %vm279, %v2184, %v2185
    %v2187 = vrot.slane %v2174, 2
    %v2188 = vsel %vm279, %v2185, %v2187
    %v2189 = vrot.slane %v2175, 2
    %v2190 = vrot.slane %v2176, 2
    %v2191 = vsel %vm279, %v2189, %v2190
    %v2192 = vrot.slane %v2177, 2
    %v2193 = vsel %vm279, %v2190, %v2192
    %v2200 = vadd.f32 %v2164, %v2186
    %v2201 = vadd.f32 %v2165, %v2188
    %v2202 = vadd.f32 %v2166, %v2187
    %v2203 = vadd.f32 %v2167, %v2191
    %v2204 = vadd.f32 %v2168, %v2193
    %v2205 = vadd.f32 %v2169, %v2192
    %s2206 = sld [smem:[#allocation8 + $0x2e]]
    %v2207 = vstv %s2206
    %v2208 = vmul.f32 %v2207, %v2114
    %v2209 = vmul.f32 %v2207, %v2115
    %v2210 = vmul.f32 %v2207, %v2116
    %v2211 = vmul.f32 %v2207, %v2117
    %v2212 = vmul.f32 %v2207, %v2118
    %v2213 = vmul.f32 %v2207, %v2119
    %2220 = vrot.lane.b32.xlu0 %v2208, 127
    %v2221 = vpop.permute.xlu0 %2220
    %2222 = vrot.lane.b32.xlu0 %v2209, 127
    %v2223 = vpop.permute.xlu0 %2222
    %2224 = vrot.lane.b32.xlu0 %v2210, 127
    %v2225 = vpop.permute.xlu0 %2224
    %2226 = vrot.lane.b32.xlu0 %v2211, 127
    %v2227 = vpop.permute.xlu0 %2226
    %2228 = vrot.lane.b32.xlu0 %v2212, 127
    %v2229 = vpop.permute.xlu0 %2228
    %2230 = vrot.lane.b32.xlu0 %v2213, 127
    %v2231 = vpop.permute.xlu0 %2230
    %v2238 = vadd.f32 %v2200, %v2221
    %v2239 = vadd.f32 %v2201, %v2223
    %v2240 = vadd.f32 %v2202, %v2225
    %v2241 = vadd.f32 %v2203, %v2227
    %v2242 = vadd.f32 %v2204, %v2229
    %v2243 = vadd.f32 %v2205, %v2231
    %s2244 = sld [smem:[#allocation8 + $0x31]]
    %v2245 = vstv %s2244
    %v2246 = vmul.f32 %v2245, %v2114
    %v2247 = vmul.f32 %v2245, %v2115
    %v2248 = vmul.f32 %v2245, %v2116
    %v2249 = vmul.f32 %v2245, %v2117
    %v2250 = vmul.f32 %v2245, %v2118
    %v2251 = vmul.f32 %v2245, %v2119
    %v2258 = vrot.slane %v2246, 1
    %v2259 = vrot.slane %v2247, 1
    %v2260 = vsel %vm242, %v2258, %v2259
    %v2261 = vrot.slane %v2248, 1
    %v2262 = vsel %vm242, %v2259, %v2261
    %v2263 = vrot.slane %v2249, 1
    %v2264 = vrot.slane %v2250, 1
    %v2265 = vsel %vm242, %v2263, %v2264
    %v2266 = vrot.slane %v2251, 1
    %v2267 = vsel %vm242, %v2264, %v2266
    %2268 = vrot.lane.b32.xlu0 %v2260, 127
    %v2269 = vpop.permute.xlu0 %2268
    %2270 = vrot.lane.b32.xlu0 %v2262, 127
    %v2271 = vpop.permute.xlu0 %2270
    %2272 = vrot.lane.b32.xlu0 %v2261, 127
    %v2273 = vpop.permute.xlu0 %2272
    %2274 = vrot.lane.b32.xlu0 %v2265, 127
    %v2275 = vpop.permute.xlu0 %2274
    %2276 = vrot.lane.b32.xlu0 %v2267, 127
    %v2277 = vpop.permute.xlu0 %2276
    %2278 = vrot.lane.b32.xlu0 %v2266, 127
    %v2279 = vpop.permute.xlu0 %2278
    %v2286 = vadd.f32 %v2238, %v2269
    %v2287 = vadd.f32 %v2239, %v2271
    %v2288 = vadd.f32 %v2240, %v2273
    %v2289 = vadd.f32 %v2241, %v2275
    %v2290 = vadd.f32 %v2242, %v2277
    %v2291 = vadd.f32 %v2243, %v2279
    %s2292 = sld [smem:[#allocation8 + $0x34]]
    %v2293 = vstv %s2292
    %v2294 = vmul.f32 %v2293, %v2114
    %v2295 = vmul.f32 %v2293, %v2115
    %v2296 = vmul.f32 %v2293, %v2116
    %v2297 = vmul.f32 %v2293, %v2117
    %v2298 = vmul.f32 %v2293, %v2118
    %v2299 = vmul.f32 %v2293, %v2119
    %v2306 = vrot.slane %v2294, 2
    %v2307 = vrot.slane %v2295, 2
    %v2308 = vsel %vm279, %v2306, %v2307
    %v2309 = vrot.slane %v2296, 2
    %v2310 = vsel %vm279, %v2307, %v2309
    %v2311 = vrot.slane %v2297, 2
    %v2312 = vrot.slane %v2298, 2
    %v2313 = vsel %vm279, %v2311, %v2312
    %v2314 = vrot.slane %v2299, 2
    %v2315 = vsel %vm279, %v2312, %v2314
    %2316 = vrot.lane.b32.xlu0 %v2308, 127
    %v2317 = vpop.permute.xlu0 %2316
    %2318 = vrot.lane.b32.xlu0 %v2310, 127
    %v2319 = vpop.permute.xlu0 %2318
    %2320 = vrot.lane.b32.xlu0 %v2309, 127
    %v2321 = vpop.permute.xlu0 %2320
    %2322 = vrot.lane.b32.xlu0 %v2313, 127
    %v2323 = vpop.permute.xlu0 %2322
    %2324 = vrot.lane.b32.xlu0 %v2315, 127
    %v2325 = vpop.permute.xlu0 %2324
    %2326 = vrot.lane.b32.xlu0 %v2314, 127
    %v2327 = vpop.permute.xlu0 %2326
    %v2334 = vadd.f32 %v2286, %v2317
    %v2335 = vadd.f32 %v2287, %v2319
    %v2336 = vadd.f32 %v2288, %v2321
    %v2337 = vadd.f32 %v2289, %v2323
    %v2338 = vadd.f32 %v2290, %v2325
    %v2339 = vadd.f32 %v2291, %v2327
    %s2340 = sld [smem:[#allocation8 + $0x2f]]
    %v2341 = vstv %s2340
    %v2342 = vmul.f32 %v2341, %v2114
    %v2343 = vmul.f32 %v2341, %v2115
    %v2344 = vmul.f32 %v2341, %v2116
    %v2345 = vmul.f32 %v2341, %v2117
    %v2346 = vmul.f32 %v2341, %v2118
    %v2347 = vmul.f32 %v2341, %v2119
    %2354 = vrot.lane.b32.xlu0 %v2342, 126
    %v2355 = vpop.permute.xlu0 %2354
    %2356 = vrot.lane.b32.xlu0 %v2343, 126
    %v2357 = vpop.permute.xlu0 %2356
    %2358 = vrot.lane.b32.xlu0 %v2344, 126
    %v2359 = vpop.permute.xlu0 %2358
    %2360 = vrot.lane.b32.xlu0 %v2345, 126
    %v2361 = vpop.permute.xlu0 %2360
    %2362 = vrot.lane.b32.xlu0 %v2346, 126
    %v2363 = vpop.permute.xlu0 %2362
    %2364 = vrot.lane.b32.xlu0 %v2347, 126
    %v2365 = vpop.permute.xlu0 %2364
    %v2372 = vadd.f32 %v2334, %v2355
    %v2373 = vadd.f32 %v2335, %v2357
    %v2374 = vadd.f32 %v2336, %v2359
    %v2375 = vadd.f32 %v2337, %v2361
    %v2376 = vadd.f32 %v2338, %v2363
    %v2377 = vadd.f32 %v2339, %v2365
    %s2378 = sld [smem:[#allocation8 + $0x32]]
    %v2379 = vstv %s2378
    %v2380 = vmul.f32 %v2379, %v2114
    %v2381 = vmul.f32 %v2379, %v2115
    %v2382 = vmul.f32 %v2379, %v2116
    %v2383 = vmul.f32 %v2379, %v2117
    %v2384 = vmul.f32 %v2379, %v2118
    %v2385 = vmul.f32 %v2379, %v2119
    %v2392 = vrot.slane %v2380, 1
    %v2393 = vrot.slane %v2381, 1
    %v2394 = vsel %vm242, %v2392, %v2393
    %v2395 = vrot.slane %v2382, 1
    %v2396 = vsel %vm242, %v2393, %v2395
    %v2397 = vrot.slane %v2383, 1
    %v2398 = vrot.slane %v2384, 1
    %v2399 = vsel %vm242, %v2397, %v2398
    %v2400 = vrot.slane %v2385, 1
    %v2401 = vsel %vm242, %v2398, %v2400
    %2402 = vrot.lane.b32.xlu0 %v2394, 126
    %v2403 = vpop.permute.xlu0 %2402
    %2404 = vrot.lane.b32.xlu0 %v2396, 126
    %v2405 = vpop.permute.xlu0 %2404
    %2406 = vrot.lane.b32.xlu0 %v2395, 126
    %v2407 = vpop.permute.xlu0 %2406
    %2408 = vrot.lane.b32.xlu0 %v2399, 126
    %v2409 = vpop.permute.xlu0 %2408
    %2410 = vrot.lane.b32.xlu0 %v2401, 126
    %v2411 = vpop.permute.xlu0 %2410
    %2412 = vrot.lane.b32.xlu0 %v2400, 126
    %v2413 = vpop.permute.xlu0 %2412
    %v2420 = vadd.f32 %v2372, %v2403
    %v2421 = vadd.f32 %v2373, %v2405
    %v2422 = vadd.f32 %v2374, %v2407
    %v2423 = vadd.f32 %v2375, %v2409
    %v2424 = vadd.f32 %v2376, %v2411
    %v2425 = vadd.f32 %v2377, %v2413
    %s2426 = sld [smem:[#allocation8 + $0x35]]
    %v2427 = vstv %s2426
    %v2428 = vmul.f32 %v2427, %v2114
    %v2429 = vmul.f32 %v2427, %v2115
    %v2430 = vmul.f32 %v2427, %v2116
    %v2431 = vmul.f32 %v2427, %v2117
    %v2432 = vmul.f32 %v2427, %v2118
    %v2433 = vmul.f32 %v2427, %v2119
    %v2440 = vrot.slane %v2428, 2
    %v2441 = vrot.slane %v2429, 2
    %v2442 = vsel %vm279, %v2440, %v2441
    %v2443 = vrot.slane %v2430, 2
    %v2444 = vsel %vm279, %v2441, %v2443
    %v2445 = vrot.slane %v2431, 2
    %v2446 = vrot.slane %v2432, 2
    %v2447 = vsel %vm279, %v2445, %v2446
    %v2448 = vrot.slane %v2433, 2
    %v2449 = vsel %vm279, %v2446, %v2448
    %2450 = vrot.lane.b32.xlu0 %v2442, 126
    %v2451 = vpop.permute.xlu0 %2450
    %2452 = vrot.lane.b32.xlu0 %v2444, 126
    %v2453 = vpop.permute.xlu0 %2452
    %2454 = vrot.lane.b32.xlu0 %v2443, 126
    %v2455 = vpop.permute.xlu0 %2454
    %2456 = vrot.lane.b32.xlu0 %v2447, 126
    %v2457 = vpop.permute.xlu0 %2456
    %2458 = vrot.lane.b32.xlu0 %v2449, 126
    %v2459 = vpop.permute.xlu0 %2458
    %2460 = vrot.lane.b32.xlu0 %v2448, 126
    %v2461 = vpop.permute.xlu0 %2460
    %v2468 = vadd.f32 %v2420, %v2451
    %v2469 = vadd.f32 %v2421, %v2453
    %v2470 = vadd.f32 %v2422, %v2455
    %v2471 = vadd.f32 %v2423, %v2457
    %v2472 = vadd.f32 %v2424, %v2459
    %v2473 = vadd.f32 %v2425, %v2461
    %v2474 = vld [vmem:[%s199] sm:$0xff]
    %v2475 = vld [vmem:[%s199 + $0x8] sm:$0xff]
    %v2476 = vld [vmem:[%s199 + $0x10] sm:$0xf]
    %v2477 = vld [vmem:[%s199 + $0x60] sm:$0xff]
    %v2478 = vld [vmem:[%s199 + $0x68] sm:$0xff]
    %v2479 = vld [vmem:[%s199 + $0x70] sm:$0xf]
    %s2480 = sld [smem:[#allocation8 + $0x36]]
    %v2481 = vstv %s2480
    %v2482 = vmul.f32 %v2481, %v2474
    %v2483 = vmul.f32 %v2481, %v2475
    %v2484 = vmul.f32 %v2481, %v2476
    %v2485 = vmul.f32 %v2481, %v2477
    %v2486 = vmul.f32 %v2481, %v2478
    %v2487 = vmul.f32 %v2481, %v2479
    %v2488 = vadd.f32 %v2468, %v2482
    %v2489 = vadd.f32 %v2469, %v2483
    %v2490 = vadd.f32 %v2470, %v2484
    %v2491 = vadd.f32 %v2471, %v2485
    %v2492 = vadd.f32 %v2472, %v2486
    %v2493 = vadd.f32 %v2473, %v2487
    %s2494 = sld [smem:[#allocation8 + $0x39]]
    %v2495 = vstv %s2494
    %v2496 = vmul.f32 %v2495, %v2474
    %v2497 = vmul.f32 %v2495, %v2475
    %v2498 = vmul.f32 %v2495, %v2476
    %v2499 = vmul.f32 %v2495, %v2477
    %v2500 = vmul.f32 %v2495, %v2478
    %v2501 = vmul.f32 %v2495, %v2479
    %v2508 = vrot.slane %v2496, 1
    %v2509 = vrot.slane %v2497, 1
    %v2510 = vsel %vm242, %v2508, %v2509
    %v2511 = vrot.slane %v2498, 1
    %v2512 = vsel %vm242, %v2509, %v2511
    %v2513 = vrot.slane %v2499, 1
    %v2514 = vrot.slane %v2500, 1
    %v2515 = vsel %vm242, %v2513, %v2514
    %v2516 = vrot.slane %v2501, 1
    %v2517 = vsel %vm242, %v2514, %v2516
    %v2524 = vadd.f32 %v2488, %v2510
    %v2525 = vadd.f32 %v2489, %v2512
    %v2526 = vadd.f32 %v2490, %v2511
    %v2527 = vadd.f32 %v2491, %v2515
    %v2528 = vadd.f32 %v2492, %v2517
    %v2529 = vadd.f32 %v2493, %v2516
    %s2530 = sld [smem:[#allocation8 + $0x3c]]
    %v2531 = vstv %s2530
    %v2532 = vmul.f32 %v2531, %v2474
    %v2533 = vmul.f32 %v2531, %v2475
    %v2534 = vmul.f32 %v2531, %v2476
    %v2535 = vmul.f32 %v2531, %v2477
    %v2536 = vmul.f32 %v2531, %v2478
    %v2537 = vmul.f32 %v2531, %v2479
    %v2544 = vrot.slane %v2532, 2
    %v2545 = vrot.slane %v2533, 2
    %v2546 = vsel %vm279, %v2544, %v2545
    %v2547 = vrot.slane %v2534, 2
    %v2548 = vsel %vm279, %v2545, %v2547
    %v2549 = vrot.slane %v2535, 2
    %v2550 = vrot.slane %v2536, 2
    %v2551 = vsel %vm279, %v2549, %v2550
    %v2552 = vrot.slane %v2537, 2
    %v2553 = vsel %vm279, %v2550, %v2552
    %v2560 = vadd.f32 %v2524, %v2546
    %v2561 = vadd.f32 %v2525, %v2548
    %v2562 = vadd.f32 %v2526, %v2547
    %v2563 = vadd.f32 %v2527, %v2551
    %v2564 = vadd.f32 %v2528, %v2553
    %v2565 = vadd.f32 %v2529, %v2552
    %s2566 = sld [smem:[#allocation8 + $0x37]]
    %v2567 = vstv %s2566
    %v2568 = vmul.f32 %v2567, %v2474
    %v2569 = vmul.f32 %v2567, %v2475
    %v2570 = vmul.f32 %v2567, %v2476
    %v2571 = vmul.f32 %v2567, %v2477
    %v2572 = vmul.f32 %v2567, %v2478
    %v2573 = vmul.f32 %v2567, %v2479
    %2580 = vrot.lane.b32.xlu0 %v2568, 127
    %v2581 = vpop.permute.xlu0 %2580
    %2582 = vrot.lane.b32.xlu0 %v2569, 127
    %v2583 = vpop.permute.xlu0 %2582
    %2584 = vrot.lane.b32.xlu0 %v2570, 127
    %v2585 = vpop.permute.xlu0 %2584
    %2586 = vrot.lane.b32.xlu0 %v2571, 127
    %v2587 = vpop.permute.xlu0 %2586
    %2588 = vrot.lane.b32.xlu0 %v2572, 127
    %v2589 = vpop.permute.xlu0 %2588
    %2590 = vrot.lane.b32.xlu0 %v2573, 127
    %v2591 = vpop.permute.xlu0 %2590
    %v2598 = vadd.f32 %v2560, %v2581
    %v2599 = vadd.f32 %v2561, %v2583
    %v2600 = vadd.f32 %v2562, %v2585
    %v2601 = vadd.f32 %v2563, %v2587
    %v2602 = vadd.f32 %v2564, %v2589
    %v2603 = vadd.f32 %v2565, %v2591
    %s2604 = sld [smem:[#allocation8 + $0x3a]]
    %v2605 = vstv %s2604
    %v2606 = vmul.f32 %v2605, %v2474
    %v2607 = vmul.f32 %v2605, %v2475
    %v2608 = vmul.f32 %v2605, %v2476
    %v2609 = vmul.f32 %v2605, %v2477
    %v2610 = vmul.f32 %v2605, %v2478
    %v2611 = vmul.f32 %v2605, %v2479
    %v2618 = vrot.slane %v2606, 1
    %v2619 = vrot.slane %v2607, 1
    %v2620 = vsel %vm242, %v2618, %v2619
    %v2621 = vrot.slane %v2608, 1
    %v2622 = vsel %vm242, %v2619, %v2621
    %v2623 = vrot.slane %v2609, 1
    %v2624 = vrot.slane %v2610, 1
    %v2625 = vsel %vm242, %v2623, %v2624
    %v2626 = vrot.slane %v2611, 1
    %v2627 = vsel %vm242, %v2624, %v2626
    %2628 = vrot.lane.b32.xlu0 %v2620, 127
    %v2629 = vpop.permute.xlu0 %2628
    %2630 = vrot.lane.b32.xlu0 %v2622, 127
    %v2631 = vpop.permute.xlu0 %2630
    %2632 = vrot.lane.b32.xlu0 %v2621, 127
    %v2633 = vpop.permute.xlu0 %2632
    %2634 = vrot.lane.b32.xlu0 %v2625, 127
    %v2635 = vpop.permute.xlu0 %2634
    %2636 = vrot.lane.b32.xlu0 %v2627, 127
    %v2637 = vpop.permute.xlu0 %2636
    %2638 = vrot.lane.b32.xlu0 %v2626, 127
    %v2639 = vpop.permute.xlu0 %2638
    %v2646 = vadd.f32 %v2598, %v2629
    %v2647 = vadd.f32 %v2599, %v2631
    %v2648 = vadd.f32 %v2600, %v2633
    %v2649 = vadd.f32 %v2601, %v2635
    %v2650 = vadd.f32 %v2602, %v2637
    %v2651 = vadd.f32 %v2603, %v2639
    %s2652 = sld [smem:[#allocation8 + $0x3d]]
    %v2653 = vstv %s2652
    %v2654 = vmul.f32 %v2653, %v2474
    %v2655 = vmul.f32 %v2653, %v2475
    %v2656 = vmul.f32 %v2653, %v2476
    %v2657 = vmul.f32 %v2653, %v2477
    %v2658 = vmul.f32 %v2653, %v2478
    %v2659 = vmul.f32 %v2653, %v2479
    %v2666 = vrot.slane %v2654, 2
    %v2667 = vrot.slane %v2655, 2
    %v2668 = vsel %vm279, %v2666, %v2667
    %v2669 = vrot.slane %v2656, 2
    %v2670 = vsel %vm279, %v2667, %v2669
    %v2671 = vrot.slane %v2657, 2
    %v2672 = vrot.slane %v2658, 2
    %v2673 = vsel %vm279, %v2671, %v2672
    %v2674 = vrot.slane %v2659, 2
    %v2675 = vsel %vm279, %v2672, %v2674
    %2676 = vrot.lane.b32.xlu0 %v2668, 127
    %v2677 = vpop.permute.xlu0 %2676
    %2678 = vrot.lane.b32.xlu0 %v2670, 127
    %v2679 = vpop.permute.xlu0 %2678
    %2680 = vrot.lane.b32.xlu0 %v2669, 127
    %v2681 = vpop.permute.xlu0 %2680
    %2682 = vrot.lane.b32.xlu0 %v2673, 127
    %v2683 = vpop.permute.xlu0 %2682
    %2684 = vrot.lane.b32.xlu0 %v2675, 127
    %v2685 = vpop.permute.xlu0 %2684
    %2686 = vrot.lane.b32.xlu0 %v2674, 127
    %v2687 = vpop.permute.xlu0 %2686
    %v2694 = vadd.f32 %v2646, %v2677
    %v2695 = vadd.f32 %v2647, %v2679
    %v2696 = vadd.f32 %v2648, %v2681
    %v2697 = vadd.f32 %v2649, %v2683
    %v2698 = vadd.f32 %v2650, %v2685
    %v2699 = vadd.f32 %v2651, %v2687
    %s2700 = sld [smem:[#allocation8 + $0x38]]
    %v2701 = vstv %s2700
    %v2702 = vmul.f32 %v2701, %v2474
    %v2703 = vmul.f32 %v2701, %v2475
    %v2704 = vmul.f32 %v2701, %v2476
    %v2705 = vmul.f32 %v2701, %v2477
    %v2706 = vmul.f32 %v2701, %v2478
    %v2707 = vmul.f32 %v2701, %v2479
    %2714 = vrot.lane.b32.xlu0 %v2702, 126
    %v2715 = vpop.permute.xlu0 %2714
    %2716 = vrot.lane.b32.xlu0 %v2703, 126
    %v2717 = vpop.permute.xlu0 %2716
    %2718 = vrot.lane.b32.xlu0 %v2704, 126
    %v2719 = vpop.permute.xlu0 %2718
    %2720 = vrot.lane.b32.xlu0 %v2705, 126
    %v2721 = vpop.permute.xlu0 %2720
    %2722 = vrot.lane.b32.xlu0 %v2706, 126
    %v2723 = vpop.permute.xlu0 %2722
    %2724 = vrot.lane.b32.xlu0 %v2707, 126
    %v2725 = vpop.permute.xlu0 %2724
    %v2732 = vadd.f32 %v2694, %v2715
    %v2733 = vadd.f32 %v2695, %v2717
    %v2734 = vadd.f32 %v2696, %v2719
    %v2735 = vadd.f32 %v2697, %v2721
    %v2736 = vadd.f32 %v2698, %v2723
    %v2737 = vadd.f32 %v2699, %v2725
    %s2738 = sld [smem:[#allocation8 + $0x3b]]
    %v2739 = vstv %s2738
    %v2740 = vmul.f32 %v2739, %v2474
    %v2741 = vmul.f32 %v2739, %v2475
    %v2742 = vmul.f32 %v2739, %v2476
    %v2743 = vmul.f32 %v2739, %v2477
    %v2744 = vmul.f32 %v2739, %v2478
    %v2745 = vmul.f32 %v2739, %v2479
    %v2752 = vrot.slane %v2740, 1
    %v2753 = vrot.slane %v2741, 1
    %v2754 = vsel %vm242, %v2752, %v2753
    %v2755 = vrot.slane %v2742, 1
    %v2756 = vsel %vm242, %v2753, %v2755
    %v2757 = vrot.slane %v2743, 1
    %v2758 = vrot.slane %v2744, 1
    %v2759 = vsel %vm242, %v2757, %v2758
    %v2760 = vrot.slane %v2745, 1
    %v2761 = vsel %vm242, %v2758, %v2760
    %2762 = vrot.lane.b32.xlu0 %v2754, 126
    %v2763 = vpop.permute.xlu0 %2762
    %2764 = vrot.lane.b32.xlu0 %v2756, 126
    %v2765 = vpop.permute.xlu0 %2764
    %2766 = vrot.lane.b32.xlu0 %v2755, 126
    %v2767 = vpop.permute.xlu0 %2766
    %2768 = vrot.lane.b32.xlu0 %v2759, 126
    %v2769 = vpop.permute.xlu0 %2768
    %2770 = vrot.lane.b32.xlu0 %v2761, 126
    %v2771 = vpop.permute.xlu0 %2770
    %2772 = vrot.lane.b32.xlu0 %v2760, 126
    %v2773 = vpop.permute.xlu0 %2772
    %v2780 = vadd.f32 %v2732, %v2763
    %v2781 = vadd.f32 %v2733, %v2765
    %v2782 = vadd.f32 %v2734, %v2767
    %v2783 = vadd.f32 %v2735, %v2769
    %v2784 = vadd.f32 %v2736, %v2771
    %v2785 = vadd.f32 %v2737, %v2773
    %s2786 = sld [smem:[#allocation8 + $0x3e]]
    %v2787 = vstv %s2786
    %v2788 = vmul.f32 %v2787, %v2474
    %v2789 = vmul.f32 %v2787, %v2475
    %v2790 = vmul.f32 %v2787, %v2476
    %v2791 = vmul.f32 %v2787, %v2477
    %v2792 = vmul.f32 %v2787, %v2478
    %v2793 = vmul.f32 %v2787, %v2479
    %v2800 = vrot.slane %v2788, 2
    %v2801 = vrot.slane %v2789, 2
    %v2802 = vsel %vm279, %v2800, %v2801
    %v2803 = vrot.slane %v2790, 2
    %v2804 = vsel %vm279, %v2801, %v2803
    %v2805 = vrot.slane %v2791, 2
    %v2806 = vrot.slane %v2792, 2
    %v2807 = vsel %vm279, %v2805, %v2806
    %v2808 = vrot.slane %v2793, 2
    %v2809 = vsel %vm279, %v2806, %v2808
    %2810 = vrot.lane.b32.xlu0 %v2802, 126
    %v2811 = vpop.permute.xlu0 %2810
    %2812 = vrot.lane.b32.xlu0 %v2804, 126
    %v2813 = vpop.permute.xlu0 %2812
    %2814 = vrot.lane.b32.xlu0 %v2803, 126
    %v2815 = vpop.permute.xlu0 %2814
    %2816 = vrot.lane.b32.xlu0 %v2807, 126
    %v2817 = vpop.permute.xlu0 %2816
    %2818 = vrot.lane.b32.xlu0 %v2809, 126
    %v2819 = vpop.permute.xlu0 %2818
    %2820 = vrot.lane.b32.xlu0 %v2808, 126
    %v2821 = vpop.permute.xlu0 %2820
    %v2828 = vadd.f32 %v2780, %v2811
    %v2829 = vadd.f32 %v2781, %v2813
    %v2830 = vadd.f32 %v2782, %v2815
    %v2831 = vadd.f32 %v2783, %v2817
    %v2832 = vadd.f32 %v2784, %v2819
    %v2833 = vadd.f32 %v2785, %v2821
    %v2834 = vld [vmem:[%s1291] sm:$0xff]
    %v2835 = vld [vmem:[%s1291 + $0x8] sm:$0xff]
    %v2836 = vld [vmem:[%s1291 + $0x10] sm:$0xf]
    %v2837 = vld [vmem:[%s1291 + $0x60] sm:$0xff]
    %v2838 = vld [vmem:[%s1291 + $0x68] sm:$0xff]
    %v2839 = vld [vmem:[%s1291 + $0x70] sm:$0xf]
    %s2840 = sld [smem:[#allocation8 + $0x3f]]
    %v2841 = vstv %s2840
    %v2842 = vmul.f32 %v2841, %v2834
    %v2843 = vmul.f32 %v2841, %v2835
    %v2844 = vmul.f32 %v2841, %v2836
    %v2845 = vmul.f32 %v2841, %v2837
    %v2846 = vmul.f32 %v2841, %v2838
    %v2847 = vmul.f32 %v2841, %v2839
    %v2848 = vadd.f32 %v2828, %v2842
    %v2849 = vadd.f32 %v2829, %v2843
    %v2850 = vadd.f32 %v2830, %v2844
    %v2851 = vadd.f32 %v2831, %v2845
    %v2852 = vadd.f32 %v2832, %v2846
    %v2853 = vadd.f32 %v2833, %v2847
    %s2854 = sld [smem:[#allocation8 + $0x42]]
    %v2855 = vstv %s2854
    %v2856 = vmul.f32 %v2855, %v2834
    %v2857 = vmul.f32 %v2855, %v2835
    %v2858 = vmul.f32 %v2855, %v2836
    %v2859 = vmul.f32 %v2855, %v2837
    %v2860 = vmul.f32 %v2855, %v2838
    %v2861 = vmul.f32 %v2855, %v2839
    %v2868 = vrot.slane %v2856, 1
    %v2869 = vrot.slane %v2857, 1
    %v2870 = vsel %vm242, %v2868, %v2869
    %v2871 = vrot.slane %v2858, 1
    %v2872 = vsel %vm242, %v2869, %v2871
    %v2873 = vrot.slane %v2859, 1
    %v2874 = vrot.slane %v2860, 1
    %v2875 = vsel %vm242, %v2873, %v2874
    %v2876 = vrot.slane %v2861, 1
    %v2877 = vsel %vm242, %v2874, %v2876
    %v2884 = vadd.f32 %v2848, %v2870
    %v2885 = vadd.f32 %v2849, %v2872
    %v2886 = vadd.f32 %v2850, %v2871
    %v2887 = vadd.f32 %v2851, %v2875
    %v2888 = vadd.f32 %v2852, %v2877
    %v2889 = vadd.f32 %v2853, %v2876
    %s2890 = sld [smem:[#allocation8 + $0x45]]
    %v2891 = vstv %s2890
    %v2892 = vmul.f32 %v2891, %v2834
    %v2893 = vmul.f32 %v2891, %v2835
    %v2894 = vmul.f32 %v2891, %v2836
    %v2895 = vmul.f32 %v2891, %v2837
    %v2896 = vmul.f32 %v2891, %v2838
    %v2897 = vmul.f32 %v2891, %v2839
    %v2904 = vrot.slane %v2892, 2
    %v2905 = vrot.slane %v2893, 2
    %v2906 = vsel %vm279, %v2904, %v2905
    %v2907 = vrot.slane %v2894, 2
    %v2908 = vsel %vm279, %v2905, %v2907
    %v2909 = vrot.slane %v2895, 2
    %v2910 = vrot.slane %v2896, 2
    %v2911 = vsel %vm279, %v2909, %v2910
    %v2912 = vrot.slane %v2897, 2
    %v2913 = vsel %vm279, %v2910, %v2912
    %v2920 = vadd.f32 %v2884, %v2906
    %v2921 = vadd.f32 %v2885, %v2908
    %v2922 = vadd.f32 %v2886, %v2907
    %v2923 = vadd.f32 %v2887, %v2911
    %v2924 = vadd.f32 %v2888, %v2913
    %v2925 = vadd.f32 %v2889, %v2912
    %s2926 = sld [smem:[#allocation8 + $0x40]]
    %v2927 = vstv %s2926
    %v2928 = vmul.f32 %v2927, %v2834
    %v2929 = vmul.f32 %v2927, %v2835
    %v2930 = vmul.f32 %v2927, %v2836
    %v2931 = vmul.f32 %v2927, %v2837
    %v2932 = vmul.f32 %v2927, %v2838
    %v2933 = vmul.f32 %v2927, %v2839
    %2940 = vrot.lane.b32.xlu0 %v2928, 127
    %v2941 = vpop.permute.xlu0 %2940
    %2942 = vrot.lane.b32.xlu0 %v2929, 127
    %v2943 = vpop.permute.xlu0 %2942
    %2944 = vrot.lane.b32.xlu0 %v2930, 127
    %v2945 = vpop.permute.xlu0 %2944
    %2946 = vrot.lane.b32.xlu0 %v2931, 127
    %v2947 = vpop.permute.xlu0 %2946
    %2948 = vrot.lane.b32.xlu0 %v2932, 127
    %v2949 = vpop.permute.xlu0 %2948
    %2950 = vrot.lane.b32.xlu0 %v2933, 127
    %v2951 = vpop.permute.xlu0 %2950
    %v2958 = vadd.f32 %v2920, %v2941
    %v2959 = vadd.f32 %v2921, %v2943
    %v2960 = vadd.f32 %v2922, %v2945
    %v2961 = vadd.f32 %v2923, %v2947
    %v2962 = vadd.f32 %v2924, %v2949
    %v2963 = vadd.f32 %v2925, %v2951
    %s2964 = sld [smem:[#allocation8 + $0x43]]
    %v2965 = vstv %s2964
    %v2966 = vmul.f32 %v2965, %v2834
    %v2967 = vmul.f32 %v2965, %v2835
    %v2968 = vmul.f32 %v2965, %v2836
    %v2969 = vmul.f32 %v2965, %v2837
    %v2970 = vmul.f32 %v2965, %v2838
    %v2971 = vmul.f32 %v2965, %v2839
    %v2978 = vrot.slane %v2966, 1
    %v2979 = vrot.slane %v2967, 1
    %v2980 = vsel %vm242, %v2978, %v2979
    %v2981 = vrot.slane %v2968, 1
    %v2982 = vsel %vm242, %v2979, %v2981
    %v2983 = vrot.slane %v2969, 1
    %v2984 = vrot.slane %v2970, 1
    %v2985 = vsel %vm242, %v2983, %v2984
    %v2986 = vrot.slane %v2971, 1
    %v2987 = vsel %vm242, %v2984, %v2986
    %2988 = vrot.lane.b32.xlu0 %v2980, 127
    %v2989 = vpop.permute.xlu0 %2988
    %2990 = vrot.lane.b32.xlu0 %v2982, 127
    %v2991 = vpop.permute.xlu0 %2990
    %2992 = vrot.lane.b32.xlu0 %v2981, 127
    %v2993 = vpop.permute.xlu0 %2992
    %2994 = vrot.lane.b32.xlu0 %v2985, 127
    %v2995 = vpop.permute.xlu0 %2994
    %2996 = vrot.lane.b32.xlu0 %v2987, 127
    %v2997 = vpop.permute.xlu0 %2996
    %2998 = vrot.lane.b32.xlu0 %v2986, 127
    %v2999 = vpop.permute.xlu0 %2998
    %v3006 = vadd.f32 %v2958, %v2989
    %v3007 = vadd.f32 %v2959, %v2991
    %v3008 = vadd.f32 %v2960, %v2993
    %v3009 = vadd.f32 %v2961, %v2995
    %v3010 = vadd.f32 %v2962, %v2997
    %v3011 = vadd.f32 %v2963, %v2999
    %s3012 = sld [smem:[#allocation8 + $0x46]]
    %v3013 = vstv %s3012
    %v3014 = vmul.f32 %v3013, %v2834
    %v3015 = vmul.f32 %v3013, %v2835
    %v3016 = vmul.f32 %v3013, %v2836
    %v3017 = vmul.f32 %v3013, %v2837
    %v3018 = vmul.f32 %v3013, %v2838
    %v3019 = vmul.f32 %v3013, %v2839
    %v3026 = vrot.slane %v3014, 2
    %v3027 = vrot.slane %v3015, 2
    %v3028 = vsel %vm279, %v3026, %v3027
    %v3029 = vrot.slane %v3016, 2
    %v3030 = vsel %vm279, %v3027, %v3029
    %v3031 = vrot.slane %v3017, 2
    %v3032 = vrot.slane %v3018, 2
    %v3033 = vsel %vm279, %v3031, %v3032
    %v3034 = vrot.slane %v3019, 2
    %v3035 = vsel %vm279, %v3032, %v3034
    %3036 = vrot.lane.b32.xlu0 %v3028, 127
    %v3037 = vpop.permute.xlu0 %3036
    %3038 = vrot.lane.b32.xlu0 %v3030, 127
    %v3039 = vpop.permute.xlu0 %3038
    %3040 = vrot.lane.b32.xlu0 %v3029, 127
    %v3041 = vpop.permute.xlu0 %3040
    %3042 = vrot.lane.b32.xlu0 %v3033, 127
    %v3043 = vpop.permute.xlu0 %3042
    %3044 = vrot.lane.b32.xlu0 %v3035, 127
    %v3045 = vpop.permute.xlu0 %3044
    %3046 = vrot.lane.b32.xlu0 %v3034, 127
    %v3047 = vpop.permute.xlu0 %3046
    %v3054 = vadd.f32 %v3006, %v3037
    %v3055 = vadd.f32 %v3007, %v3039
    %v3056 = vadd.f32 %v3008, %v3041
    %v3057 = vadd.f32 %v3009, %v3043
    %v3058 = vadd.f32 %v3010, %v3045
    %v3059 = vadd.f32 %v3011, %v3047
    %s3060 = sld [smem:[#allocation8 + $0x41]]
    %v3061 = vstv %s3060
    %v3062 = vmul.f32 %v3061, %v2834
    %v3063 = vmul.f32 %v3061, %v2835
    %v3064 = vmul.f32 %v3061, %v2836
    %v3065 = vmul.f32 %v3061, %v2837
    %v3066 = vmul.f32 %v3061, %v2838
    %v3067 = vmul.f32 %v3061, %v2839
    %3074 = vrot.lane.b32.xlu0 %v3062, 126
    %v3075 = vpop.permute.xlu0 %3074
    %3076 = vrot.lane.b32.xlu0 %v3063, 126
    %v3077 = vpop.permute.xlu0 %3076
    %3078 = vrot.lane.b32.xlu0 %v3064, 126
    %v3079 = vpop.permute.xlu0 %3078
    %3080 = vrot.lane.b32.xlu0 %v3065, 126
    %v3081 = vpop.permute.xlu0 %3080
    %3082 = vrot.lane.b32.xlu0 %v3066, 126
    %v3083 = vpop.permute.xlu0 %3082
    %3084 = vrot.lane.b32.xlu0 %v3067, 126
    %v3085 = vpop.permute.xlu0 %3084
    %v3092 = vadd.f32 %v3054, %v3075
    %v3093 = vadd.f32 %v3055, %v3077
    %v3094 = vadd.f32 %v3056, %v3079
    %v3095 = vadd.f32 %v3057, %v3081
    %v3096 = vadd.f32 %v3058, %v3083
    %v3097 = vadd.f32 %v3059, %v3085
    %s3098 = sld [smem:[#allocation8 + $0x44]]
    %v3099 = vstv %s3098
    %v3100 = vmul.f32 %v3099, %v2834
    %v3101 = vmul.f32 %v3099, %v2835
    %v3102 = vmul.f32 %v3099, %v2836
    %v3103 = vmul.f32 %v3099, %v2837
    %v3104 = vmul.f32 %v3099, %v2838
    %v3105 = vmul.f32 %v3099, %v2839
    %v3112 = vrot.slane %v3100, 1
    %v3113 = vrot.slane %v3101, 1
    %v3114 = vsel %vm242, %v3112, %v3113
    %v3115 = vrot.slane %v3102, 1
    %v3116 = vsel %vm242, %v3113, %v3115
    %v3117 = vrot.slane %v3103, 1
    %v3118 = vrot.slane %v3104, 1
    %v3119 = vsel %vm242, %v3117, %v3118
    %v3120 = vrot.slane %v3105, 1
    %v3121 = vsel %vm242, %v3118, %v3120
    %3122 = vrot.lane.b32.xlu0 %v3114, 126
    %v3123 = vpop.permute.xlu0 %3122
    %3124 = vrot.lane.b32.xlu0 %v3116, 126
    %v3125 = vpop.permute.xlu0 %3124
    %3126 = vrot.lane.b32.xlu0 %v3115, 126
    %v3127 = vpop.permute.xlu0 %3126
    %3128 = vrot.lane.b32.xlu0 %v3119, 126
    %v3129 = vpop.permute.xlu0 %3128
    %3130 = vrot.lane.b32.xlu0 %v3121, 126
    %v3131 = vpop.permute.xlu0 %3130
    %3132 = vrot.lane.b32.xlu0 %v3120, 126
    %v3133 = vpop.permute.xlu0 %3132
    %v3140 = vadd.f32 %v3092, %v3123
    %v3141 = vadd.f32 %v3093, %v3125
    %v3142 = vadd.f32 %v3094, %v3127
    %v3143 = vadd.f32 %v3095, %v3129
    %v3144 = vadd.f32 %v3096, %v3131
    %v3145 = vadd.f32 %v3097, %v3133
    %s3146 = sld [smem:[#allocation8 + $0x47]]
    %v3147 = vstv %s3146
    %v3148 = vmul.f32 %v3147, %v2834
    %v3149 = vmul.f32 %v3147, %v2835
    %v3150 = vmul.f32 %v3147, %v2836
    %v3151 = vmul.f32 %v3147, %v2837
    %v3152 = vmul.f32 %v3147, %v2838
    %v3153 = vmul.f32 %v3147, %v2839
    %v3160 = vrot.slane %v3148, 2
    %v3161 = vrot.slane %v3149, 2
    %v3162 = vsel %vm279, %v3160, %v3161
    %v3163 = vrot.slane %v3150, 2
    %v3164 = vsel %vm279, %v3161, %v3163
    %v3165 = vrot.slane %v3151, 2
    %v3166 = vrot.slane %v3152, 2
    %v3167 = vsel %vm279, %v3165, %v3166
    %v3168 = vrot.slane %v3153, 2
    %v3169 = vsel %vm279, %v3166, %v3168
    %3170 = vrot.lane.b32.xlu0 %v3162, 126
    %v3171 = vpop.permute.xlu0 %3170
    %3172 = vrot.lane.b32.xlu0 %v3164, 126
    %v3173 = vpop.permute.xlu0 %3172
    %3174 = vrot.lane.b32.xlu0 %v3163, 126
    %v3175 = vpop.permute.xlu0 %3174
    %3176 = vrot.lane.b32.xlu0 %v3167, 126
    %v3177 = vpop.permute.xlu0 %3176
    %3178 = vrot.lane.b32.xlu0 %v3169, 126
    %v3179 = vpop.permute.xlu0 %3178
    %3180 = vrot.lane.b32.xlu0 %v3168, 126
    %v3181 = vpop.permute.xlu0 %3180
    %v3188 = vadd.f32 %v3140, %v3171
    %v3189 = vadd.f32 %v3141, %v3173
    %v3190 = vadd.f32 %v3142, %v3175
    %v3191 = vadd.f32 %v3143, %v3177
    %v3192 = vadd.f32 %v3144, %v3179
    %v3193 = vadd.f32 %v3145, %v3181
    %v3194 = vsel %vm1652, %v3188, 0.0
    %v3195 = vsel %vm1652, %v3189, 0.0
    %v3196 = vadd.f32 %v3194, %v3195
    %v3197 = vsel %vm1656, %v3190, 0.0
    %v3198 = vadd.f32 %v3196, %v3197
    %v3199 = vsel %vm1652, %v3191, 0.0
    %v3200 = vadd.f32 %v3198, %v3199
    %v3201 = vsel %vm1652, %v3192, 0.0
    %v3202 = vadd.f32 %v3200, %v3201
    %v3203 = vsel %vm1656, %v3193, 0.0
    %v3204 = vadd.f32 %v3202, %v3203
    %3205 = vadd.xlane.f32.xlu0 %v3204
    %v3206 = vpop.xlane.xlu0 %3205
    %v3207 = vrot.slane %v3206, 4
    %v3208 = vadd.f32 %v3206, %v3207
    %v3209 = vrot.slane %v3208, 2
    %v3210 = vadd.f32 %v3208, %v3209
    %v3211 = vrot.slane %v3210, 1
    %v3212 = vadd.f32 %v3210, %v3211
    %s3213 = vtos %v3212
    %s3214 = smul.f32 %s3213, 0.0015432099
    %v3215 = vstv %s3214
    %v3216 = vsub.f32 %v3188, %v3215
    %v3217 = vsub.f32 %v3189, %v3215
    %v3218 = vsub.f32 %v3190, %v3215
    %v3219 = vsub.f32 %v3191, %v3215
    %v3220 = vsub.f32 %v3192, %v3215
    %v3221 = vsub.f32 %v3193, %v3215
    %v3222 = vmul.f32 %v3216, %v3216
    %v3223 = vmul.f32 %v3217, %v3217
    %v3224 = vmul.f32 %v3218, %v3218
    %v3225 = vmul.f32 %v3219, %v3219
    %v3226 = vmul.f32 %v3220, %v3220
    %v3227 = vmul.f32 %v3221, %v3221
    %v3228 = vsel %vm1652, %v3222, 0.0
    %v3229 = vsel %vm1652, %v3223, 0.0
    %v3230 = vadd.f32 %v3228, %v3229
    %v3231 = vsel %vm1656, %v3224, 0.0
    %v3232 = vadd.f32 %v3230, %v3231
    %v3233 = vsel %vm1652, %v3225, 0.0
    %v3234 = vadd.f32 %v3232, %v3233
    %v3235 = vsel %vm1652, %v3226, 0.0
    %v3236 = vadd.f32 %v3234, %v3235
    %v3237 = vsel %vm1656, %v3227, 0.0
    %v3238 = vadd.f32 %v3236, %v3237
    %3239 = vadd.xlane.f32.xlu0 %v3238
    %v3240 = vpop.xlane.xlu0 %3239
    %v3241 = vrot.slane %v3240, 4
    %v3242 = vadd.f32 %v3240, %v3241
    %v3243 = vrot.slane %v3242, 2
    %v3244 = vadd.f32 %v3242, %v3243
    %v3245 = vrot.slane %v3244, 1
    %v3246 = vadd.f32 %v3244, %v3245
    %s3247 = vtos %v3246
    %s3248 = smul.f32 %s3247, 0.0015432099
    %s3249 = sadd.f32 %s3248, 1e-05
    %v3250 = vstv %s3249
    %v3251 = vrsqrt.pop %v3250
    %s3252 = vtos %v3251
    %s3253 = sld [smem:[#allocation9 + $0x1]]
    %s3254 = smul.f32 %s3252, %s3253
    %v3255 = vstv %s3254
    %v3256 = vmul.f32 %v3216, %v3255
    %v3257 = vmul.f32 %v3217, %v3255
    %v3258 = vmul.f32 %v3218, %v3255
    %v3259 = vmul.f32 %v3219, %v3255
    %v3260 = vmul.f32 %v3220, %v3255
    %v3261 = vmul.f32 %v3221, %v3255
    %s3262 = sld [smem:[#allocation11 + $0x1]]
    %v3263 = vstv %s3262
    %v3264 = vadd.f32 %v3256, %v3263
    %v3265 = vadd.f32 %v3257, %v3263
    %v3266 = vadd.f32 %v3258, %v3263
    %v3267 = vadd.f32 %v3259, %v3263
    %v3268 = vadd.f32 %v3260, %v3263
    %v3269 = vadd.f32 %v3261, %v3263
    %vm3270 = vcmp.ge.f32.partialorder %v3264, 0.0
    %vm3271 = vcmp.ge.f32.partialorder %v3265, 0.0
    %vm3272 = vcmp.ge.f32.partialorder %v3266, 0.0
    %vm3273 = vcmp.ge.f32.partialorder %v3267, 0.0
    %vm3274 = vcmp.ge.f32.partialorder %v3268, 0.0
    %vm3275 = vcmp.ge.f32.partialorder %v3269, 0.0
    %v3276 = vmul.f32 %v3264, 0.01
    %v3277 = vmul.f32 %v3265, 0.01
    %v3278 = vmul.f32 %v3266, 0.01
    %v3279 = vmul.f32 %v3267, 0.01
    %v3280 = vmul.f32 %v3268, 0.01
    %v3281 = vmul.f32 %v3269, 0.01
    %v3282 = vsel %vm3270, %v3264, %v3276
    %v3283 = vsel %vm3271, %v3265, %v3277
    %v3284 = vsel %vm3272, %v3266, %v3278
    %v3285 = vsel %vm3273, %v3267, %v3279
    %v3286 = vsel %vm3274, %v3268, %v3280
    %v3287 = vsel %vm3275, %v3269, %v3281
    %s3288 = scalar_lea.vmem %s5, 24
    %3289 = vst.msk [vmem:[%s3288] sm:$0xff] %vm1652, %v3282
    %3290 = vst.msk [vmem:[%s3288 + $0x8] sm:$0xff] %vm1652, %v3283
    %3291 = vst.msk [vmem:[%s3288 + $0x10] sm:$0x3] %vm1656, %v3284
    %3292 = vst.msk [vmem:[%s3288 + $0x60] sm:$0xff] %vm1652, %v3285
    %3293 = vst.msk [vmem:[%s3288 + $0x68] sm:$0xff] %vm1652, %v3286
    %3294 = vst.msk [vmem:[%s3288 + $0x70] sm:$0x3] %vm1656, %v3287
    %v3295 = vld [vmem:[#allocation2] sm:$0xff]
    %v3296 = vld [vmem:[#allocation2 + $0x8] sm:$0xff]
    %v3297 = vld [vmem:[#allocation2 + $0x10] sm:$0xf]
    %v3298 = vld [vmem:[#allocation2 + $0x60] sm:$0xff]
    %v3299 = vld [vmem:[#allocation2 + $0x68] sm:$0xff]
    %v3300 = vld [vmem:[#allocation2 + $0x70] sm:$0xf]
    %s3301 = sld [smem:[#allocation8 + $0x48]]
    %v3302 = vstv %s3301
    %v3303 = vmul.f32 %v3302, %v3295
    %v3304 = vmul.f32 %v3302, %v3296
    %v3305 = vmul.f32 %v3302, %v3297
    %v3306 = vmul.f32 %v3302, %v3298
    %v3307 = vmul.f32 %v3302, %v3299
    %v3308 = vmul.f32 %v3302, %v3300
    %v3309 = vadd.f32 %v3303, 0.0
    %v3310 = vadd.f32 %v3304, 0.0
    %v3311 = vadd.f32 %v3305, 0.0
    %v3312 = vadd.f32 %v3306, 0.0
    %v3313 = vadd.f32 %v3307, 0.0
    %v3314 = vadd.f32 %v3308, 0.0
    %s3315 = sld [smem:[#allocation8 + $0x4b]]
    %v3316 = vstv %s3315
    %v3317 = vmul.f32 %v3316, %v3295
    %v3318 = vmul.f32 %v3316, %v3296
    %v3319 = vmul.f32 %v3316, %v3297
    %v3320 = vmul.f32 %v3316, %v3298
    %v3321 = vmul.f32 %v3316, %v3299
    %v3322 = vmul.f32 %v3316, %v3300
    %v3329 = vrot.slane %v3317, 1
    %v3330 = vrot.slane %v3318, 1
    %v3331 = vsel %vm242, %v3329, %v3330
    %v3332 = vrot.slane %v3319, 1
    %v3333 = vsel %vm242, %v3330, %v3332
    %v3334 = vrot.slane %v3320, 1
    %v3335 = vrot.slane %v3321, 1
    %v3336 = vsel %vm242, %v3334, %v3335
    %v3337 = vrot.slane %v3322, 1
    %v3338 = vsel %vm242, %v3335, %v3337
    %v3345 = vadd.f32 %v3309, %v3331
    %v3346 = vadd.f32 %v3310, %v3333
    %v3347 = vadd.f32 %v3311, %v3332
    %v3348 = vadd.f32 %v3312, %v3336
    %v3349 = vadd.f32 %v3313, %v3338
    %v3350 = vadd.f32 %v3314, %v3337
    %s3351 = sld [smem:[#allocation8 + $0x4e]]
    %v3352 = vstv %s3351
    %v3353 = vmul.f32 %v3352, %v3295
    %v3354 = vmul.f32 %v3352, %v3296
    %v3355 = vmul.f32 %v3352, %v3297
    %v3356 = vmul.f32 %v3352, %v3298
    %v3357 = vmul.f32 %v3352, %v3299
    %v3358 = vmul.f32 %v3352, %v3300
    %v3365 = vrot.slane %v3353, 2
    %v3366 = vrot.slane %v3354, 2
    %v3367 = vsel %vm279, %v3365, %v3366
    %v3368 = vrot.slane %v3355, 2
    %v3369 = vsel %vm279, %v3366, %v3368
    %v3370 = vrot.slane %v3356, 2
    %v3371 = vrot.slane %v3357, 2
    %v3372 = vsel %vm279, %v3370, %v3371
    %v3373 = vrot.slane %v3358, 2
    %v3374 = vsel %vm279, %v3371, %v3373
    %v3381 = vadd.f32 %v3345, %v3367
    %v3382 = vadd.f32 %v3346, %v3369
    %v3383 = vadd.f32 %v3347, %v3368
    %v3384 = vadd.f32 %v3348, %v3372
    %v3385 = vadd.f32 %v3349, %v3374
    %v3386 = vadd.f32 %v3350, %v3373
    %s3387 = sld [smem:[#allocation8 + $0x49]]
    %v3388 = vstv %s3387
    %v3389 = vmul.f32 %v3388, %v3295
    %v3390 = vmul.f32 %v3388, %v3296
    %v3391 = vmul.f32 %v3388, %v3297
    %v3392 = vmul.f32 %v3388, %v3298
    %v3393 = vmul.f32 %v3388, %v3299
    %v3394 = vmul.f32 %v3388, %v3300
    %3401 = vrot.lane.b32.xlu0 %v3389, 127
    %v3402 = vpop.permute.xlu0 %3401
    %3403 = vrot.lane.b32.xlu0 %v3390, 127
    %v3404 = vpop.permute.xlu0 %3403
    %3405 = vrot.lane.b32.xlu0 %v3391, 127
    %v3406 = vpop.permute.xlu0 %3405
    %3407 = vrot.lane.b32.xlu0 %v3392, 127
    %v3408 = vpop.permute.xlu0 %3407
    %3409 = vrot.lane.b32.xlu0 %v3393, 127
    %v3410 = vpop.permute.xlu0 %3409
    %3411 = vrot.lane.b32.xlu0 %v3394, 127
    %v3412 = vpop.permute.xlu0 %3411
    %v3419 = vadd.f32 %v3381, %v3402
    %v3420 = vadd.f32 %v3382, %v3404
    %v3421 = vadd.f32 %v3383, %v3406
    %v3422 = vadd.f32 %v3384, %v3408
    %v3423 = vadd.f32 %v3385, %v3410
    %v3424 = vadd.f32 %v3386, %v3412
    %s3425 = sld [smem:[#allocation8 + $0x4c]]
    %v3426 = vstv %s3425
    %v3427 = vmul.f32 %v3426, %v3295
    %v3428 = vmul.f32 %v3426, %v3296
    %v3429 = vmul.f32 %v3426, %v3297
    %v3430 = vmul.f32 %v3426, %v3298
    %v3431 = vmul.f32 %v3426, %v3299
    %v3432 = vmul.f32 %v3426, %v3300
    %v3439 = vrot.slane %v3427, 1
    %v3440 = vrot.slane %v3428, 1
    %v3441 = vsel %vm242, %v3439, %v3440
    %v3442 = vrot.slane %v3429, 1
    %v3443 = vsel %vm242, %v3440, %v3442
    %v3444 = vrot.slane %v3430, 1
    %v3445 = vrot.slane %v3431, 1
    %v3446 = vsel %vm242, %v3444, %v3445
    %v3447 = vrot.slane %v3432, 1
    %v3448 = vsel %vm242, %v3445, %v3447
    %3449 = vrot.lane.b32.xlu0 %v3441, 127
    %v3450 = vpop.permute.xlu0 %3449
    %3451 = vrot.lane.b32.xlu0 %v3443, 127
    %v3452 = vpop.permute.xlu0 %3451
    %3453 = vrot.lane.b32.xlu0 %v3442, 127
    %v3454 = vpop.permute.xlu0 %3453
    %3455 = vrot.lane.b32.xlu0 %v3446, 127
    %v3456 = vpop.permute.xlu0 %3455
    %3457 = vrot.lane.b32.xlu0 %v3448, 127
    %v3458 = vpop.permute.xlu0 %3457
    %3459 = vrot.lane.b32.xlu0 %v3447, 127
    %v3460 = vpop.permute.xlu0 %3459
    %v3467 = vadd.f32 %v3419, %v3450
    %v3468 = vadd.f32 %v3420, %v3452
    %v3469 = vadd.f32 %v3421, %v3454
    %v3470 = vadd.f32 %v3422, %v3456
    %v3471 = vadd.f32 %v3423, %v3458
    %v3472 = vadd.f32 %v3424, %v3460
    %s3473 = sld [smem:[#allocation8 + $0x4f]]
    %v3474 = vstv %s3473
    %v3475 = vmul.f32 %v3474, %v3295
    %v3476 = vmul.f32 %v3474, %v3296
    %v3477 = vmul.f32 %v3474, %v3297
    %v3478 = vmul.f32 %v3474, %v3298
    %v3479 = vmul.f32 %v3474, %v3299
    %v3480 = vmul.f32 %v3474, %v3300
    %v3487 = vrot.slane %v3475, 2
    %v3488 = vrot.slane %v3476, 2
    %v3489 = vsel %vm279, %v3487, %v3488
    %v3490 = vrot.slane %v3477, 2
    %v3491 = vsel %vm279, %v3488, %v3490
    %v3492 = vrot.slane %v3478, 2
    %v3493 = vrot.slane %v3479, 2
    %v3494 = vsel %vm279, %v3492, %v3493
    %v3495 = vrot.slane %v3480, 2
    %v3496 = vsel %vm279, %v3493, %v3495
    %3497 = vrot.lane.b32.xlu0 %v3489, 127
    %v3498 = vpop.permute.xlu0 %3497
    %3499 = vrot.lane.b32.xlu0 %v3491, 127
    %v3500 = vpop.permute.xlu0 %3499
    %3501 = vrot.lane.b32.xlu0 %v3490, 127
    %v3502 = vpop.permute.xlu0 %3501
    %3503 = vrot.lane.b32.xlu0 %v3494, 127
    %v3504 = vpop.permute.xlu0 %3503
    %3505 = vrot.lane.b32.xlu0 %v3496, 127
    %v3506 = vpop.permute.xlu0 %3505
    %3507 = vrot.lane.b32.xlu0 %v3495, 127
    %v3508 = vpop.permute.xlu0 %3507
    %v3515 = vadd.f32 %v3467, %v3498
    %v3516 = vadd.f32 %v3468, %v3500
    %v3517 = vadd.f32 %v3469, %v3502
    %v3518 = vadd.f32 %v3470, %v3504
    %v3519 = vadd.f32 %v3471, %v3506
    %v3520 = vadd.f32 %v3472, %v3508
    %s3521 = sld [smem:[#allocation8 + $0x4a]]
    %v3522 = vstv %s3521
    %v3523 = vmul.f32 %v3522, %v3295
    %v3524 = vmul.f32 %v3522, %v3296
    %v3525 = vmul.f32 %v3522, %v3297
    %v3526 = vmul.f32 %v3522, %v3298
    %v3527 = vmul.f32 %v3522, %v3299
    %v3528 = vmul.f32 %v3522, %v3300
    %3535 = vrot.lane.b32.xlu0 %v3523, 126
    %v3536 = vpop.permute.xlu0 %3535
    %3537 = vrot.lane.b32.xlu0 %v3524, 126
    %v3538 = vpop.permute.xlu0 %3537
    %3539 = vrot.lane.b32.xlu0 %v3525, 126
    %v3540 = vpop.permute.xlu0 %3539
    %3541 = vrot.lane.b32.xlu0 %v3526, 126
    %v3542 = vpop.permute.xlu0 %3541
    %3543 = vrot.lane.b32.xlu0 %v3527, 126
    %v3544 = vpop.permute.xlu0 %3543
    %3545 = vrot.lane.b32.xlu0 %v3528, 126
    %v3546 = vpop.permute.xlu0 %3545
    %v3553 = vadd.f32 %v3515, %v3536
    %v3554 = vadd.f32 %v3516, %v3538
    %v3555 = vadd.f32 %v3517, %v3540
    %v3556 = vadd.f32 %v3518, %v3542
    %v3557 = vadd.f32 %v3519, %v3544
    %v3558 = vadd.f32 %v3520, %v3546
    %s3559 = sld [smem:[#allocation8 + $0x4d]]
    %v3560 = vstv %s3559
    %v3561 = vmul.f32 %v3560, %v3295
    %v3562 = vmul.f32 %v3560, %v3296
    %v3563 = vmul.f32 %v3560, %v3297
    %v3564 = vmul.f32 %v3560, %v3298
    %v3565 = vmul.f32 %v3560, %v3299
    %v3566 = vmul.f32 %v3560, %v3300
    %v3573 = vrot.slane %v3561, 1
    %v3574 = vrot.slane %v3562, 1
    %v3575 = vsel %vm242, %v3573, %v3574
    %v3576 = vrot.slane %v3563, 1
    %v3577 = vsel %vm242, %v3574, %v3576
    %v3578 = vrot.slane %v3564, 1
    %v3579 = vrot.slane %v3565, 1
    %v3580 = vsel %vm242, %v3578, %v3579
    %v3581 = vrot.slane %v3566, 1
    %v3582 = vsel %vm242, %v3579, %v3581
    %3583 = vrot.lane.b32.xlu0 %v3575, 126
    %v3584 = vpop.permute.xlu0 %3583
    %3585 = vrot.lane.b32.xlu0 %v3577, 126
    %v3586 = vpop.permute.xlu0 %3585
    %3587 = vrot.lane.b32.xlu0 %v3576, 126
    %v3588 = vpop.permute.xlu0 %3587
    %3589 = vrot.lane.b32.xlu0 %v3580, 126
    %v3590 = vpop.permute.xlu0 %3589
    %3591 = vrot.lane.b32.xlu0 %v3582, 126
    %v3592 = vpop.permute.xlu0 %3591
    %3593 = vrot.lane.b32.xlu0 %v3581, 126
    %v3594 = vpop.permute.xlu0 %3593
    %v3601 = vadd.f32 %v3553, %v3584
    %v3602 = vadd.f32 %v3554, %v3586
    %v3603 = vadd.f32 %v3555, %v3588
    %v3604 = vadd.f32 %v3556, %v3590
    %v3605 = vadd.f32 %v3557, %v3592
    %v3606 = vadd.f32 %v3558, %v3594
    %s3607 = sld [smem:[#allocation8 + $0x50]]
    %v3608 = vstv %s3607
    %v3609 = vmul.f32 %v3608, %v3295
    %v3610 = vmul.f32 %v3608, %v3296
    %v3611 = vmul.f32 %v3608, %v3297
    %v3612 = vmul.f32 %v3608, %v3298
    %v3613 = vmul.f32 %v3608, %v3299
    %v3614 = vmul.f32 %v3608, %v3300
    %v3621 = vrot.slane %v3609, 2
    %v3622 = vrot.slane %v3610, 2
    %v3623 = vsel %vm279, %v3621, %v3622
    %v3624 = vrot.slane %v3611, 2
    %v3625 = vsel %vm279, %v3622, %v3624
    %v3626 = vrot.slane %v3612, 2
    %v3627 = vrot.slane %v3613, 2
    %v3628 = vsel %vm279, %v3626, %v3627
    %v3629 = vrot.slane %v3614, 2
    %v3630 = vsel %vm279, %v3627, %v3629
    %3631 = vrot.lane.b32.xlu0 %v3623, 126
    %v3632 = vpop.permute.xlu0 %3631
    %3633 = vrot.lane.b32.xlu0 %v3625, 126
    %v3634 = vpop.permute.xlu0 %3633
    %3635 = vrot.lane.b32.xlu0 %v3624, 126
    %v3636 = vpop.permute.xlu0 %3635
    %3637 = vrot.lane.b32.xlu0 %v3628, 126
    %v3638 = vpop.permute.xlu0 %3637
    %3639 = vrot.lane.b32.xlu0 %v3630, 126
    %v3640 = vpop.permute.xlu0 %3639
    %3641 = vrot.lane.b32.xlu0 %v3629, 126
    %v3642 = vpop.permute.xlu0 %3641
    %v3649 = vadd.f32 %v3601, %v3632
    %v3650 = vadd.f32 %v3602, %v3634
    %v3651 = vadd.f32 %v3603, %v3636
    %v3652 = vadd.f32 %v3604, %v3638
    %v3653 = vadd.f32 %v3605, %v3640
    %v3654 = vadd.f32 %v3606, %v3642
    %v3655 = vld [vmem:[%s570] sm:$0xff]
    %v3656 = vld [vmem:[%s570 + $0x8] sm:$0xff]
    %v3657 = vld [vmem:[%s570 + $0x10] sm:$0xf]
    %v3658 = vld [vmem:[%s570 + $0x60] sm:$0xff]
    %v3659 = vld [vmem:[%s570 + $0x68] sm:$0xff]
    %v3660 = vld [vmem:[%s570 + $0x70] sm:$0xf]
    %s3661 = sld [smem:[#allocation8 + $0x51]]
    %v3662 = vstv %s3661
    %v3663 = vmul.f32 %v3662, %v3655
    %v3664 = vmul.f32 %v3662, %v3656
    %v3665 = vmul.f32 %v3662, %v3657
    %v3666 = vmul.f32 %v3662, %v3658
    %v3667 = vmul.f32 %v3662, %v3659
    %v3668 = vmul.f32 %v3662, %v3660
    %v3669 = vadd.f32 %v3649, %v3663
    %v3670 = vadd.f32 %v3650, %v3664
    %v3671 = vadd.f32 %v3651, %v3665
    %v3672 = vadd.f32 %v3652, %v3666
    %v3673 = vadd.f32 %v3653, %v3667
    %v3674 = vadd.f32 %v3654, %v3668
    %s3675 = sld [smem:[#allocation8 + $0x54]]
    %v3676 = vstv %s3675
    %v3677 = vmul.f32 %v3676, %v3655
    %v3678 = vmul.f32 %v3676, %v3656
    %v3679 = vmul.f32 %v3676, %v3657
    %v3680 = vmul.f32 %v3676, %v3658
    %v3681 = vmul.f32 %v3676, %v3659
    %v3682 = vmul.f32 %v3676, %v3660
    %v3689 = vrot.slane %v3677, 1
    %v3690 = vrot.slane %v3678, 1
    %v3691 = vsel %vm242, %v3689, %v3690
    %v3692 = vrot.slane %v3679, 1
    %v3693 = vsel %vm242, %v3690, %v3692
    %v3694 = vrot.slane %v3680, 1
    %v3695 = vrot.slane %v3681, 1
    %v3696 = vsel %vm242, %v3694, %v3695
    %v3697 = vrot.slane %v3682, 1
    %v3698 = vsel %vm242, %v3695, %v3697
    %v3705 = vadd.f32 %v3669, %v3691
    %v3706 = vadd.f32 %v3670, %v3693
    %v3707 = vadd.f32 %v3671, %v3692
    %v3708 = vadd.f32 %v3672, %v3696
    %v3709 = vadd.f32 %v3673, %v3698
    %v3710 = vadd.f32 %v3674, %v3697
    %s3711 = sld [smem:[#allocation8 + $0x57]]
    %v3712 = vstv %s3711
    %v3713 = vmul.f32 %v3712, %v3655
    %v3714 = vmul.f32 %v3712, %v3656
    %v3715 = vmul.f32 %v3712, %v3657
    %v3716 = vmul.f32 %v3712, %v3658
    %v3717 = vmul.f32 %v3712, %v3659
    %v3718 = vmul.f32 %v3712, %v3660
    %v3725 = vrot.slane %v3713, 2
    %v3726 = vrot.slane %v3714, 2
    %v3727 = vsel %vm279, %v3725, %v3726
    %v3728 = vrot.slane %v3715, 2
    %v3729 = vsel %vm279, %v3726, %v3728
    %v3730 = vrot.slane %v3716, 2
    %v3731 = vrot.slane %v3717, 2
    %v3732 = vsel %vm279, %v3730, %v3731
    %v3733 = vrot.slane %v3718, 2
    %v3734 = vsel %vm279, %v3731, %v3733
    %v3741 = vadd.f32 %v3705, %v3727
    %v3742 = vadd.f32 %v3706, %v3729
    %v3743 = vadd.f32 %v3707, %v3728
    %v3744 = vadd.f32 %v3708, %v3732
    %v3745 = vadd.f32 %v3709, %v3734
    %v3746 = vadd.f32 %v3710, %v3733
    %s3747 = sld [smem:[#allocation8 + $0x52]]
    %v3748 = vstv %s3747
    %v3749 = vmul.f32 %v3748, %v3655
    %v3750 = vmul.f32 %v3748, %v3656
    %v3751 = vmul.f32 %v3748, %v3657
    %v3752 = vmul.f32 %v3748, %v3658
    %v3753 = vmul.f32 %v3748, %v3659
    %v3754 = vmul.f32 %v3748, %v3660
    %3761 = vrot.lane.b32.xlu0 %v3749, 127
    %v3762 = vpop.permute.xlu0 %3761
    %3763 = vrot.lane.b32.xlu0 %v3750, 127
    %v3764 = vpop.permute.xlu0 %3763
    %3765 = vrot.lane.b32.xlu0 %v3751, 127
    %v3766 = vpop.permute.xlu0 %3765
    %3767 = vrot.lane.b32.xlu0 %v3752, 127
    %v3768 = vpop.permute.xlu0 %3767
    %3769 = vrot.lane.b32.xlu0 %v3753, 127
    %v3770 = vpop.permute.xlu0 %3769
    %3771 = vrot.lane.b32.xlu0 %v3754, 127
    %v3772 = vpop.permute.xlu0 %3771
    %v3779 = vadd.f32 %v3741, %v3762
    %v3780 = vadd.f32 %v3742, %v3764
    %v3781 = vadd.f32 %v3743, %v3766
    %v3782 = vadd.f32 %v3744, %v3768
    %v3783 = vadd.f32 %v3745, %v3770
    %v3784 = vadd.f32 %v3746, %v3772
    %s3785 = sld [smem:[#allocation8 + $0x55]]
    %v3786 = vstv %s3785
    %v3787 = vmul.f32 %v3786, %v3655
    %v3788 = vmul.f32 %v3786, %v3656
    %v3789 = vmul.f32 %v3786, %v3657
    %v3790 = vmul.f32 %v3786, %v3658
    %v3791 = vmul.f32 %v3786, %v3659
    %v3792 = vmul.f32 %v3786, %v3660
    %v3799 = vrot.slane %v3787, 1
    %v3800 = vrot.slane %v3788, 1
    %v3801 = vsel %vm242, %v3799, %v3800
    %v3802 = vrot.slane %v3789, 1
    %v3803 = vsel %vm242, %v3800, %v3802
    %v3804 = vrot.slane %v3790, 1
    %v3805 = vrot.slane %v3791, 1
    %v3806 = vsel %vm242, %v3804, %v3805
    %v3807 = vrot.slane %v3792, 1
    %v3808 = vsel %vm242, %v3805, %v3807
    %3809 = vrot.lane.b32.xlu0 %v3801, 127
    %v3810 = vpop.permute.xlu0 %3809
    %3811 = vrot.lane.b32.xlu0 %v3803, 127
    %v3812 = vpop.permute.xlu0 %3811
    %3813 = vrot.lane.b32.xlu0 %v3802, 127
    %v3814 = vpop.permute.xlu0 %3813
    %3815 = vrot.lane.b32.xlu0 %v3806, 127
    %v3816 = vpop.permute.xlu0 %3815
    %3817 = vrot.lane.b32.xlu0 %v3808, 127
    %v3818 = vpop.permute.xlu0 %3817
    %3819 = vrot.lane.b32.xlu0 %v3807, 127
    %v3820 = vpop.permute.xlu0 %3819
    %v3827 = vadd.f32 %v3779, %v3810
    %v3828 = vadd.f32 %v3780, %v3812
    %v3829 = vadd.f32 %v3781, %v3814
    %v3830 = vadd.f32 %v3782, %v3816
    %v3831 = vadd.f32 %v3783, %v3818
    %v3832 = vadd.f32 %v3784, %v3820
    %s3833 = sld [smem:[#allocation8 + $0x58]]
    %v3834 = vstv %s3833
    %v3835 = vmul.f32 %v3834, %v3655
    %v3836 = vmul.f32 %v3834, %v3656
    %v3837 = vmul.f32 %v3834, %v3657
    %v3838 = vmul.f32 %v3834, %v3658
    %v3839 = vmul.f32 %v3834, %v3659
    %v3840 = vmul.f32 %v3834, %v3660
    %v3847 = vrot.slane %v3835, 2
    %v3848 = vrot.slane %v3836, 2
    %v3849 = vsel %vm279, %v3847, %v3848
    %v3850 = vrot.slane %v3837, 2
    %v3851 = vsel %vm279, %v3848, %v3850
    %v3852 = vrot.slane %v3838, 2
    %v3853 = vrot.slane %v3839, 2
    %v3854 = vsel %vm279, %v3852, %v3853
    %v3855 = vrot.slane %v3840, 2
    %v3856 = vsel %vm279, %v3853, %v3855
    %3857 = vrot.lane.b32.xlu0 %v3849, 127
    %v3858 = vpop.permute.xlu0 %3857
    %3859 = vrot.lane.b32.xlu0 %v3851, 127
    %v3860 = vpop.permute.xlu0 %3859
    %3861 = vrot.lane.b32.xlu0 %v3850, 127
    %v3862 = vpop.permute.xlu0 %3861
    %3863 = vrot.lane.b32.xlu0 %v3854, 127
    %v3864 = vpop.permute.xlu0 %3863
    %3865 = vrot.lane.b32.xlu0 %v3856, 127
    %v3866 = vpop.permute.xlu0 %3865
    %3867 = vrot.lane.b32.xlu0 %v3855, 127
    %v3868 = vpop.permute.xlu0 %3867
    %v3875 = vadd.f32 %v3827, %v3858
    %v3876 = vadd.f32 %v3828, %v3860
    %v3877 = vadd.f32 %v3829, %v3862
    %v3878 = vadd.f32 %v3830, %v3864
    %v3879 = vadd.f32 %v3831, %v3866
    %v3880 = vadd.f32 %v3832, %v3868
    %s3881 = sld [smem:[#allocation8 + $0x53]]
    %v3882 = vstv %s3881
    %v3883 = vmul.f32 %v3882, %v3655
    %v3884 = vmul.f32 %v3882, %v3656
    %v3885 = vmul.f32 %v3882, %v3657
    %v3886 = vmul.f32 %v3882, %v3658
    %v3887 = vmul.f32 %v3882, %v3659
    %v3888 = vmul.f32 %v3882, %v3660
    %3895 = vrot.lane.b32.xlu0 %v3883, 126
    %v3896 = vpop.permute.xlu0 %3895
    %3897 = vrot.lane.b32.xlu0 %v3884, 126
    %v3898 = vpop.permute.xlu0 %3897
    %3899 = vrot.lane.b32.xlu0 %v3885, 126
    %v3900 = vpop.permute.xlu0 %3899
    %3901 = vrot.lane.b32.xlu0 %v3886, 126
    %v3902 = vpop.permute.xlu0 %3901
    %3903 = vrot.lane.b32.xlu0 %v3887, 126
    %v3904 = vpop.permute.xlu0 %3903
    %3905 = vrot.lane.b32.xlu0 %v3888, 126
    %v3906 = vpop.permute.xlu0 %3905
    %v3913 = vadd.f32 %v3875, %v3896
    %v3914 = vadd.f32 %v3876, %v3898
    %v3915 = vadd.f32 %v3877, %v3900
    %v3916 = vadd.f32 %v3878, %v3902
    %v3917 = vadd.f32 %v3879, %v3904
    %v3918 = vadd.f32 %v3880, %v3906
    %s3919 = sld [smem:[#allocation8 + $0x56]]
    %v3920 = vstv %s3919
    %v3921 = vmul.f32 %v3920, %v3655
    %v3922 = vmul.f32 %v3920, %v3656
    %v3923 = vmul.f32 %v3920, %v3657
    %v3924 = vmul.f32 %v3920, %v3658
    %v3925 = vmul.f32 %v3920, %v3659
    %v3926 = vmul.f32 %v3920, %v3660
    %v3933 = vrot.slane %v3921, 1
    %v3934 = vrot.slane %v3922, 1
    %v3935 = vsel %vm242, %v3933, %v3934
    %v3936 = vrot.slane %v3923, 1
    %v3937 = vsel %vm242, %v3934, %v3936
    %v3938 = vrot.slane %v3924, 1
    %v3939 = vrot.slane %v3925, 1
    %v3940 = vsel %vm242, %v3938, %v3939
    %v3941 = vrot.slane %v3926, 1
    %v3942 = vsel %vm242, %v3939, %v3941
    %3943 = vrot.lane.b32.xlu0 %v3935, 126
    %v3944 = vpop.permute.xlu0 %3943
    %3945 = vrot.lane.b32.xlu0 %v3937, 126
    %v3946 = vpop.permute.xlu0 %3945
    %3947 = vrot.lane.b32.xlu0 %v3936, 126
    %v3948 = vpop.permute.xlu0 %3947
    %3949 = vrot.lane.b32.xlu0 %v3940, 126
    %v3950 = vpop.permute.xlu0 %3949
    %3951 = vrot.lane.b32.xlu0 %v3942, 126
    %v3952 = vpop.permute.xlu0 %3951
    %3953 = vrot.lane.b32.xlu0 %v3941, 126
    %v3954 = vpop.permute.xlu0 %3953
    %v3961 = vadd.f32 %v3913, %v3944
    %v3962 = vadd.f32 %v3914, %v3946
    %v3963 = vadd.f32 %v3915, %v3948
    %v3964 = vadd.f32 %v3916, %v3950
    %v3965 = vadd.f32 %v3917, %v3952
    %v3966 = vadd.f32 %v3918, %v3954
    %s3967 = sld [smem:[#allocation8 + $0x59]]
    %v3968 = vstv %s3967
    %v3969 = vmul.f32 %v3968, %v3655
    %v3970 = vmul.f32 %v3968, %v3656
    %v3971 = vmul.f32 %v3968, %v3657
    %v3972 = vmul.f32 %v3968, %v3658
    %v3973 = vmul.f32 %v3968, %v3659
    %v3974 = vmul.f32 %v3968, %v3660
    %v3981 = vrot.slane %v3969, 2
    %v3982 = vrot.slane %v3970, 2
    %v3983 = vsel %vm279, %v3981, %v3982
    %v3984 = vrot.slane %v3971, 2
    %v3985 = vsel %vm279, %v3982, %v3984
    %v3986 = vrot.slane %v3972, 2
    %v3987 = vrot.slane %v3973, 2
    %v3988 = vsel %vm279, %v3986, %v3987
    %v3989 = vrot.slane %v3974, 2
    %v3990 = vsel %vm279, %v3987, %v3989
    %3991 = vrot.lane.b32.xlu0 %v3983, 126
    %v3992 = vpop.permute.xlu0 %3991
    %3993 = vrot.lane.b32.xlu0 %v3985, 126
    %v3994 = vpop.permute.xlu0 %3993
    %3995 = vrot.lane.b32.xlu0 %v3984, 126
    %v3996 = vpop.permute.xlu0 %3995
    %3997 = vrot.lane.b32.xlu0 %v3988, 126
    %v3998 = vpop.permute.xlu0 %3997
    %3999 = vrot.lane.b32.xlu0 %v3990, 126
    %v4000 = vpop.permute.xlu0 %3999
    %4001 = vrot.lane.b32.xlu0 %v3989, 126
    %v4002 = vpop.permute.xlu0 %4001
    %v4009 = vadd.f32 %v3961, %v3992
    %v4010 = vadd.f32 %v3962, %v3994
    %v4011 = vadd.f32 %v3963, %v3996
    %v4012 = vadd.f32 %v3964, %v3998
    %v4013 = vadd.f32 %v3965, %v4000
    %v4014 = vadd.f32 %v3966, %v4002
    %v4015 = vld [vmem:[%s199] sm:$0xff]
    %v4016 = vld [vmem:[%s199 + $0x8] sm:$0xff]
    %v4017 = vld [vmem:[%s199 + $0x10] sm:$0xf]
    %v4018 = vld [vmem:[%s199 + $0x60] sm:$0xff]
    %v4019 = vld [vmem:[%s199 + $0x68] sm:$0xff]
    %v4020 = vld [vmem:[%s199 + $0x70] sm:$0xf]
    %s4021 = sld [smem:[#allocation8 + $0x5a]]
    %v4022 = vstv %s4021
    %v4023 = vmul.f32 %v4022, %v4015
    %v4024 = vmul.f32 %v4022, %v4016
    %v4025 = vmul.f32 %v4022, %v4017
    %v4026 = vmul.f32 %v4022, %v4018
    %v4027 = vmul.f32 %v4022, %v4019
    %v4028 = vmul.f32 %v4022, %v4020
    %v4029 = vadd.f32 %v4009, %v4023
    %v4030 = vadd.f32 %v4010, %v4024
    %v4031 = vadd.f32 %v4011, %v4025
    %v4032 = vadd.f32 %v4012, %v4026
    %v4033 = vadd.f32 %v4013, %v4027
    %v4034 = vadd.f32 %v4014, %v4028
    %s4035 = sld [smem:[#allocation8 + $0x5d]]
    %v4036 = vstv %s4035
    %v4037 = vmul.f32 %v4036, %v4015
    %v4038 = vmul.f32 %v4036, %v4016
    %v4039 = vmul.f32 %v4036, %v4017
    %v4040 = vmul.f32 %v4036, %v4018
    %v4041 = vmul.f32 %v4036, %v4019
    %v4042 = vmul.f32 %v4036, %v4020
    %v4049 = vrot.slane %v4037, 1
    %v4050 = vrot.slane %v4038, 1
    %v4051 = vsel %vm242, %v4049, %v4050
    %v4052 = vrot.slane %v4039, 1
    %v4053 = vsel %vm242, %v4050, %v4052
    %v4054 = vrot.slane %v4040, 1
    %v4055 = vrot.slane %v4041, 1
    %v4056 = vsel %vm242, %v4054, %v4055
    %v4057 = vrot.slane %v4042, 1
    %v4058 = vsel %vm242, %v4055, %v4057
    %v4065 = vadd.f32 %v4029, %v4051
    %v4066 = vadd.f32 %v4030, %v4053
    %v4067 = vadd.f32 %v4031, %v4052
    %v4068 = vadd.f32 %v4032, %v4056
    %v4069 = vadd.f32 %v4033, %v4058
    %v4070 = vadd.f32 %v4034, %v4057
    %s4071 = sld [smem:[#allocation8 + $0x60]]
    %v4072 = vstv %s4071
    %v4073 = vmul.f32 %v4072, %v4015
    %v4074 = vmul.f32 %v4072, %v4016
    %v4075 = vmul.f32 %v4072, %v4017
    %v4076 = vmul.f32 %v4072, %v4018
    %v4077 = vmul.f32 %v4072, %v4019
    %v4078 = vmul.f32 %v4072, %v4020
    %v4085 = vrot.slane %v4073, 2
    %v4086 = vrot.slane %v4074, 2
    %v4087 = vsel %vm279, %v4085, %v4086
    %v4088 = vrot.slane %v4075, 2
    %v4089 = vsel %vm279, %v4086, %v4088
    %v4090 = vrot.slane %v4076, 2
    %v4091 = vrot.slane %v4077, 2
    %v4092 = vsel %vm279, %v4090, %v4091
    %v4093 = vrot.slane %v4078, 2
    %v4094 = vsel %vm279, %v4091, %v4093
    %v4101 = vadd.f32 %v4065, %v4087
    %v4102 = vadd.f32 %v4066, %v4089
    %v4103 = vadd.f32 %v4067, %v4088
    %v4104 = vadd.f32 %v4068, %v4092
    %v4105 = vadd.f32 %v4069, %v4094
    %v4106 = vadd.f32 %v4070, %v4093
    %s4107 = sld [smem:[#allocation8 + $0x5b]]
    %v4108 = vstv %s4107
    %v4109 = vmul.f32 %v4108, %v4015
    %v4110 = vmul.f32 %v4108, %v4016
    %v4111 = vmul.f32 %v4108, %v4017
    %v4112 = vmul.f32 %v4108, %v4018
    %v4113 = vmul.f32 %v4108, %v4019
    %v4114 = vmul.f32 %v4108, %v4020
    %4121 = vrot.lane.b32.xlu0 %v4109, 127
    %v4122 = vpop.permute.xlu0 %4121
    %4123 = vrot.lane.b32.xlu0 %v4110, 127
    %v4124 = vpop.permute.xlu0 %4123
    %4125 = vrot.lane.b32.xlu0 %v4111, 127
    %v4126 = vpop.permute.xlu0 %4125
    %4127 = vrot.lane.b32.xlu0 %v4112, 127
    %v4128 = vpop.permute.xlu0 %4127
    %4129 = vrot.lane.b32.xlu0 %v4113, 127
    %v4130 = vpop.permute.xlu0 %4129
    %4131 = vrot.lane.b32.xlu0 %v4114, 127
    %v4132 = vpop.permute.xlu0 %4131
    %v4139 = vadd.f32 %v4101, %v4122
    %v4140 = vadd.f32 %v4102, %v4124
    %v4141 = vadd.f32 %v4103, %v4126
    %v4142 = vadd.f32 %v4104, %v4128
    %v4143 = vadd.f32 %v4105, %v4130
    %v4144 = vadd.f32 %v4106, %v4132
    %s4145 = sld [smem:[#allocation8 + $0x5e]]
    %v4146 = vstv %s4145
    %v4147 = vmul.f32 %v4146, %v4015
    %v4148 = vmul.f32 %v4146, %v4016
    %v4149 = vmul.f32 %v4146, %v4017
    %v4150 = vmul.f32 %v4146, %v4018
    %v4151 = vmul.f32 %v4146, %v4019
    %v4152 = vmul.f32 %v4146, %v4020
    %v4159 = vrot.slane %v4147, 1
    %v4160 = vrot.slane %v4148, 1
    %v4161 = vsel %vm242, %v4159, %v4160
    %v4162 = vrot.slane %v4149, 1
    %v4163 = vsel %vm242, %v4160, %v4162
    %v4164 = vrot.slane %v4150, 1
    %v4165 = vrot.slane %v4151, 1
    %v4166 = vsel %vm242, %v4164, %v4165
    %v4167 = vrot.slane %v4152, 1
    %v4168 = vsel %vm242, %v4165, %v4167
    %4169 = vrot.lane.b32.xlu0 %v4161, 127
    %v4170 = vpop.permute.xlu0 %4169
    %4171 = vrot.lane.b32.xlu0 %v4163, 127
    %v4172 = vpop.permute.xlu0 %4171
    %4173 = vrot.lane.b32.xlu0 %v4162, 127
    %v4174 = vpop.permute.xlu0 %4173
    %4175 = vrot.lane.b32.xlu0 %v4166, 127
    %v4176 = vpop.permute.xlu0 %4175
    %4177 = vrot.lane.b32.xlu0 %v4168, 127
    %v4178 = vpop.permute.xlu0 %4177
    %4179 = vrot.lane.b32.xlu0 %v4167, 127
    %v4180 = vpop.permute.xlu0 %4179
    %v4187 = vadd.f32 %v4139, %v4170
    %v4188 = vadd.f32 %v4140, %v4172
    %v4189 = vadd.f32 %v4141, %v4174
    %v4190 = vadd.f32 %v4142, %v4176
    %v4191 = vadd.f32 %v4143, %v4178
    %v4192 = vadd.f32 %v4144, %v4180
    %s4193 = sld [smem:[#allocation8 + $0x61]]
    %v4194 = vstv %s4193
    %v4195 = vmul.f32 %v4194, %v4015
    %v4196 = vmul.f32 %v4194, %v4016
    %v4197 = vmul.f32 %v4194, %v4017
    %v4198 = vmul.f32 %v4194, %v4018
    %v4199 = vmul.f32 %v4194, %v4019
    %v4200 = vmul.f32 %v4194, %v4020
    %v4207 = vrot.slane %v4195, 2
    %v4208 = vrot.slane %v4196, 2
    %v4209 = vsel %vm279, %v4207, %v4208
    %v4210 = vrot.slane %v4197, 2
    %v4211 = vsel %vm279, %v4208, %v4210
    %v4212 = vrot.slane %v4198, 2
    %v4213 = vrot.slane %v4199, 2
    %v4214 = vsel %vm279, %v4212, %v4213
    %v4215 = vrot.slane %v4200, 2
    %v4216 = vsel %vm279, %v4213, %v4215
    %4217 = vrot.lane.b32.xlu0 %v4209, 127
    %v4218 = vpop.permute.xlu0 %4217
    %4219 = vrot.lane.b32.xlu0 %v4211, 127
    %v4220 = vpop.permute.xlu0 %4219
    %4221 = vrot.lane.b32.xlu0 %v4210, 127
    %v4222 = vpop.permute.xlu0 %4221
    %4223 = vrot.lane.b32.xlu0 %v4214, 127
    %v4224 = vpop.permute.xlu0 %4223
    %4225 = vrot.lane.b32.xlu0 %v4216, 127
    %v4226 = vpop.permute.xlu0 %4225
    %4227 = vrot.lane.b32.xlu0 %v4215, 127
    %v4228 = vpop.permute.xlu0 %4227
    %v4235 = vadd.f32 %v4187, %v4218
    %v4236 = vadd.f32 %v4188, %v4220
    %v4237 = vadd.f32 %v4189, %v4222
    %v4238 = vadd.f32 %v4190, %v4224
    %v4239 = vadd.f32 %v4191, %v4226
    %v4240 = vadd.f32 %v4192, %v4228
    %s4241 = sld [smem:[#allocation8 + $0x5c]]
    %v4242 = vstv %s4241
    %v4243 = vmul.f32 %v4242, %v4015
    %v4244 = vmul.f32 %v4242, %v4016
    %v4245 = vmul.f32 %v4242, %v4017
    %v4246 = vmul.f32 %v4242, %v4018
    %v4247 = vmul.f32 %v4242, %v4019
    %v4248 = vmul.f32 %v4242, %v4020
    %4255 = vrot.lane.b32.xlu0 %v4243, 126
    %v4256 = vpop.permute.xlu0 %4255
    %4257 = vrot.lane.b32.xlu0 %v4244, 126
    %v4258 = vpop.permute.xlu0 %4257
    %4259 = vrot.lane.b32.xlu0 %v4245, 126
    %v4260 = vpop.permute.xlu0 %4259
    %4261 = vrot.lane.b32.xlu0 %v4246, 126
    %v4262 = vpop.permute.xlu0 %4261
    %4263 = vrot.lane.b32.xlu0 %v4247, 126
    %v4264 = vpop.permute.xlu0 %4263
    %4265 = vrot.lane.b32.xlu0 %v4248, 126
    %v4266 = vpop.permute.xlu0 %4265
    %v4273 = vadd.f32 %v4235, %v4256
    %v4274 = vadd.f32 %v4236, %v4258
    %v4275 = vadd.f32 %v4237, %v4260
    %v4276 = vadd.f32 %v4238, %v4262
    %v4277 = vadd.f32 %v4239, %v4264
    %v4278 = vadd.f32 %v4240, %v4266
    %s4279 = sld [smem:[#allocation8 + $0x5f]]
    %v4280 = vstv %s4279
    %v4281 = vmul.f32 %v4280, %v4015
    %v4282 = vmul.f32 %v4280, %v4016
    %v4283 = vmul.f32 %v4280, %v4017
    %v4284 = vmul.f32 %v4280, %v4018
    %v4285 = vmul.f32 %v4280, %v4019
    %v4286 = vmul.f32 %v4280, %v4020
    %v4293 = vrot.slane %v4281, 1
    %v4294 = vrot.slane %v4282, 1
    %v4295 = vsel %vm242, %v4293, %v4294
    %v4296 = vrot.slane %v4283, 1
    %v4297 = vsel %vm242, %v4294, %v4296
    %v4298 = vrot.slane %v4284, 1
    %v4299 = vrot.slane %v4285, 1
    %v4300 = vsel %vm242, %v4298, %v4299
    %v4301 = vrot.slane %v4286, 1
    %v4302 = vsel %vm242, %v4299, %v4301
    %4303 = vrot.lane.b32.xlu0 %v4295, 126
    %v4304 = vpop.permute.xlu0 %4303
    %4305 = vrot.lane.b32.xlu0 %v4297, 126
    %v4306 = vpop.permute.xlu0 %4305
    %4307 = vrot.lane.b32.xlu0 %v4296, 126
    %v4308 = vpop.permute.xlu0 %4307
    %4309 = vrot.lane.b32.xlu0 %v4300, 126
    %v4310 = vpop.permute.xlu0 %4309
    %4311 = vrot.lane.b32.xlu0 %v4302, 126
    %v4312 = vpop.permute.xlu0 %4311
    %4313 = vrot.lane.b32.xlu0 %v4301, 126
    %v4314 = vpop.permute.xlu0 %4313
    %v4321 = vadd.f32 %v4273, %v4304
    %v4322 = vadd.f32 %v4274, %v4306
    %v4323 = vadd.f32 %v4275, %v4308
    %v4324 = vadd.f32 %v4276, %v4310
    %v4325 = vadd.f32 %v4277, %v4312
    %v4326 = vadd.f32 %v4278, %v4314
    %s4327 = sld [smem:[#allocation8 + $0x62]]
    %v4328 = vstv %s4327
    %v4329 = vmul.f32 %v4328, %v4015
    %v4330 = vmul.f32 %v4328, %v4016
    %v4331 = vmul.f32 %v4328, %v4017
    %v4332 = vmul.f32 %v4328, %v4018
    %v4333 = vmul.f32 %v4328, %v4019
    %v4334 = vmul.f32 %v4328, %v4020
    %v4341 = vrot.slane %v4329, 2
    %v4342 = vrot.slane %v4330, 2
    %v4343 = vsel %vm279, %v4341, %v4342
    %v4344 = vrot.slane %v4331, 2
    %v4345 = vsel %vm279, %v4342, %v4344
    %v4346 = vrot.slane %v4332, 2
    %v4347 = vrot.slane %v4333, 2
    %v4348 = vsel %vm279, %v4346, %v4347
    %v4349 = vrot.slane %v4334, 2
    %v4350 = vsel %vm279, %v4347, %v4349
    %4351 = vrot.lane.b32.xlu0 %v4343, 126
    %v4352 = vpop.permute.xlu0 %4351
    %4353 = vrot.lane.b32.xlu0 %v4345, 126
    %v4354 = vpop.permute.xlu0 %4353
    %4355 = vrot.lane.b32.xlu0 %v4344, 126
    %v4356 = vpop.permute.xlu0 %4355
    %4357 = vrot.lane.b32.xlu0 %v4348, 126
    %v4358 = vpop.permute.xlu0 %4357
    %4359 = vrot.lane.b32.xlu0 %v4350, 126
    %v4360 = vpop.permute.xlu0 %4359
    %4361 = vrot.lane.b32.xlu0 %v4349, 126
    %v4362 = vpop.permute.xlu0 %4361
    %v4369 = vadd.f32 %v4321, %v4352
    %v4370 = vadd.f32 %v4322, %v4354
    %v4371 = vadd.f32 %v4323, %v4356
    %v4372 = vadd.f32 %v4324, %v4358
    %v4373 = vadd.f32 %v4325, %v4360
    %v4374 = vadd.f32 %v4326, %v4362
    %v4375 = vld [vmem:[%s1291] sm:$0xff]
    %v4376 = vld [vmem:[%s1291 + $0x8] sm:$0xff]
    %v4377 = vld [vmem:[%s1291 + $0x10] sm:$0xf]
    %v4378 = vld [vmem:[%s1291 + $0x60] sm:$0xff]
    %v4379 = vld [vmem:[%s1291 + $0x68] sm:$0xff]
    %v4380 = vld [vmem:[%s1291 + $0x70] sm:$0xf]
    %s4381 = sld [smem:[#allocation8 + $0x63]]
    %v4382 = vstv %s4381
    %v4383 = vmul.f32 %v4382, %v4375
    %v4384 = vmul.f32 %v4382, %v4376
    %v4385 = vmul.f32 %v4382, %v4377
    %v4386 = vmul.f32 %v4382, %v4378
    %v4387 = vmul.f32 %v4382, %v4379
    %v4388 = vmul.f32 %v4382, %v4380
    %v4389 = vadd.f32 %v4369, %v4383
    %v4390 = vadd.f32 %v4370, %v4384
    %v4391 = vadd.f32 %v4371, %v4385
    %v4392 = vadd.f32 %v4372, %v4386
    %v4393 = vadd.f32 %v4373, %v4387
    %v4394 = vadd.f32 %v4374, %v4388
    %s4395 = sld [smem:[#allocation8 + $0x66]]
    %v4396 = vstv %s4395
    %v4397 = vmul.f32 %v4396, %v4375
    %v4398 = vmul.f32 %v4396, %v4376
    %v4399 = vmul.f32 %v4396, %v4377
    %v4400 = vmul.f32 %v4396, %v4378
    %v4401 = vmul.f32 %v4396, %v4379
    %v4402 = vmul.f32 %v4396, %v4380
    %v4409 = vrot.slane %v4397, 1
    %v4410 = vrot.slane %v4398, 1
    %v4411 = vsel %vm242, %v4409, %v4410
    %v4412 = vrot.slane %v4399, 1
    %v4413 = vsel %vm242, %v4410, %v4412
    %v4414 = vrot.slane %v4400, 1
    %v4415 = vrot.slane %v4401, 1
    %v4416 = vsel %vm242, %v4414, %v4415
    %v4417 = vrot.slane %v4402, 1
    %v4418 = vsel %vm242, %v4415, %v4417
    %v4425 = vadd.f32 %v4389, %v4411
    %v4426 = vadd.f32 %v4390, %v4413
    %v4427 = vadd.f32 %v4391, %v4412
    %v4428 = vadd.f32 %v4392, %v4416
    %v4429 = vadd.f32 %v4393, %v4418
    %v4430 = vadd.f32 %v4394, %v4417
    %s4431 = sld [smem:[#allocation8 + $0x69]]
    %v4432 = vstv %s4431
    %v4433 = vmul.f32 %v4432, %v4375
    %v4434 = vmul.f32 %v4432, %v4376
    %v4435 = vmul.f32 %v4432, %v4377
    %v4436 = vmul.f32 %v4432, %v4378
    %v4437 = vmul.f32 %v4432, %v4379
    %v4438 = vmul.f32 %v4432, %v4380
    %v4445 = vrot.slane %v4433, 2
    %v4446 = vrot.slane %v4434, 2
    %v4447 = vsel %vm279, %v4445, %v4446
    %v4448 = vrot.slane %v4435, 2
    %v4449 = vsel %vm279, %v4446, %v4448
    %v4450 = vrot.slane %v4436, 2
    %v4451 = vrot.slane %v4437, 2
    %v4452 = vsel %vm279, %v4450, %v4451
    %v4453 = vrot.slane %v4438, 2
    %v4454 = vsel %vm279, %v4451, %v4453
    %v4461 = vadd.f32 %v4425, %v4447
    %v4462 = vadd.f32 %v4426, %v4449
    %v4463 = vadd.f32 %v4427, %v4448
    %v4464 = vadd.f32 %v4428, %v4452
    %v4465 = vadd.f32 %v4429, %v4454
    %v4466 = vadd.f32 %v4430, %v4453
    %s4467 = sld [smem:[#allocation8 + $0x64]]
    %v4468 = vstv %s4467
    %v4469 = vmul.f32 %v4468, %v4375
    %v4470 = vmul.f32 %v4468, %v4376
    %v4471 = vmul.f32 %v4468, %v4377
    %v4472 = vmul.f32 %v4468, %v4378
    %v4473 = vmul.f32 %v4468, %v4379
    %v4474 = vmul.f32 %v4468, %v4380
    %4481 = vrot.lane.b32.xlu0 %v4469, 127
    %v4482 = vpop.permute.xlu0 %4481
    %4483 = vrot.lane.b32.xlu0 %v4470, 127
    %v4484 = vpop.permute.xlu0 %4483
    %4485 = vrot.lane.b32.xlu0 %v4471, 127
    %v4486 = vpop.permute.xlu0 %4485
    %4487 = vrot.lane.b32.xlu0 %v4472, 127
    %v4488 = vpop.permute.xlu0 %4487
    %4489 = vrot.lane.b32.xlu0 %v4473, 127
    %v4490 = vpop.permute.xlu0 %4489
    %4491 = vrot.lane.b32.xlu0 %v4474, 127
    %v4492 = vpop.permute.xlu0 %4491
    %v4499 = vadd.f32 %v4461, %v4482
    %v4500 = vadd.f32 %v4462, %v4484
    %v4501 = vadd.f32 %v4463, %v4486
    %v4502 = vadd.f32 %v4464, %v4488
    %v4503 = vadd.f32 %v4465, %v4490
    %v4504 = vadd.f32 %v4466, %v4492
    %s4505 = sld [smem:[#allocation8 + $0x67]]
    %v4506 = vstv %s4505
    %v4507 = vmul.f32 %v4506, %v4375
    %v4508 = vmul.f32 %v4506, %v4376
    %v4509 = vmul.f32 %v4506, %v4377
    %v4510 = vmul.f32 %v4506, %v4378
    %v4511 = vmul.f32 %v4506, %v4379
    %v4512 = vmul.f32 %v4506, %v4380
    %v4519 = vrot.slane %v4507, 1
    %v4520 = vrot.slane %v4508, 1
    %v4521 = vsel %vm242, %v4519, %v4520
    %v4522 = vrot.slane %v4509, 1
    %v4523 = vsel %vm242, %v4520, %v4522
    %v4524 = vrot.slane %v4510, 1
    %v4525 = vrot.slane %v4511, 1
    %v4526 = vsel %vm242, %v4524, %v4525
    %v4527 = vrot.slane %v4512, 1
    %v4528 = vsel %vm242, %v4525, %v4527
    %4529 = vrot.lane.b32.xlu0 %v4521, 127
    %v4530 = vpop.permute.xlu0 %4529
    %4531 = vrot.lane.b32.xlu0 %v4523, 127
    %v4532 = vpop.permute.xlu0 %4531
    %4533 = vrot.lane.b32.xlu0 %v4522, 127
    %v4534 = vpop.permute.xlu0 %4533
    %4535 = vrot.lane.b32.xlu0 %v4526, 127
    %v4536 = vpop.permute.xlu0 %4535
    %4537 = vrot.lane.b32.xlu0 %v4528, 127
    %v4538 = vpop.permute.xlu0 %4537
    %4539 = vrot.lane.b32.xlu0 %v4527, 127
    %v4540 = vpop.permute.xlu0 %4539
    %v4547 = vadd.f32 %v4499, %v4530
    %v4548 = vadd.f32 %v4500, %v4532
    %v4549 = vadd.f32 %v4501, %v4534
    %v4550 = vadd.f32 %v4502, %v4536
    %v4551 = vadd.f32 %v4503, %v4538
    %v4552 = vadd.f32 %v4504, %v4540
    %s4553 = sld [smem:[#allocation8 + $0x6a]]
    %v4554 = vstv %s4553
    %v4555 = vmul.f32 %v4554, %v4375
    %v4556 = vmul.f32 %v4554, %v4376
    %v4557 = vmul.f32 %v4554, %v4377
    %v4558 = vmul.f32 %v4554, %v4378
    %v4559 = vmul.f32 %v4554, %v4379
    %v4560 = vmul.f32 %v4554, %v4380
    %v4567 = vrot.slane %v4555, 2
    %v4568 = vrot.slane %v4556, 2
    %v4569 = vsel %vm279, %v4567, %v4568
    %v4570 = vrot.slane %v4557, 2
    %v4571 = vsel %vm279, %v4568, %v4570
    %v4572 = vrot.slane %v4558, 2
    %v4573 = vrot.slane %v4559, 2
    %v4574 = vsel %vm279, %v4572, %v4573
    %v4575 = vrot.slane %v4560, 2
    %v4576 = vsel %vm279, %v4573, %v4575
    %4577 = vrot.lane.b32.xlu0 %v4569, 127
    %v4578 = vpop.permute.xlu0 %4577
    %4579 = vrot.lane.b32.xlu0 %v4571, 127
    %v4580 = vpop.permute.xlu0 %4579
    %4581 = vrot.lane.b32.xlu0 %v4570, 127
    %v4582 = vpop.permute.xlu0 %4581
    %4583 = vrot.lane.b32.xlu0 %v4574, 127
    %v4584 = vpop.permute.xlu0 %4583
    %4585 = vrot.lane.b32.xlu0 %v4576, 127
    %v4586 = vpop.permute.xlu0 %4585
    %4587 = vrot.lane.b32.xlu0 %v4575, 127
    %v4588 = vpop.permute.xlu0 %4587
    %v4595 = vadd.f32 %v4547, %v4578
    %v4596 = vadd.f32 %v4548, %v4580
    %v4597 = vadd.f32 %v4549, %v4582
    %v4598 = vadd.f32 %v4550, %v4584
    %v4599 = vadd.f32 %v4551, %v4586
    %v4600 = vadd.f32 %v4552, %v4588
    %s4601 = sld [smem:[#allocation8 + $0x65]]
    %v4602 = vstv %s4601
    %v4603 = vmul.f32 %v4602, %v4375
    %v4604 = vmul.f32 %v4602, %v4376
    %v4605 = vmul.f32 %v4602, %v4377
    %v4606 = vmul.f32 %v4602, %v4378
    %v4607 = vmul.f32 %v4602, %v4379
    %v4608 = vmul.f32 %v4602, %v4380
    %4615 = vrot.lane.b32.xlu0 %v4603, 126
    %v4616 = vpop.permute.xlu0 %4615
    %4617 = vrot.lane.b32.xlu0 %v4604, 126
    %v4618 = vpop.permute.xlu0 %4617
    %4619 = vrot.lane.b32.xlu0 %v4605, 126
    %v4620 = vpop.permute.xlu0 %4619
    %4621 = vrot.lane.b32.xlu0 %v4606, 126
    %v4622 = vpop.permute.xlu0 %4621
    %4623 = vrot.lane.b32.xlu0 %v4607, 126
    %v4624 = vpop.permute.xlu0 %4623
    %4625 = vrot.lane.b32.xlu0 %v4608, 126
    %v4626 = vpop.permute.xlu0 %4625
    %v4633 = vadd.f32 %v4595, %v4616
    %v4634 = vadd.f32 %v4596, %v4618
    %v4635 = vadd.f32 %v4597, %v4620
    %v4636 = vadd.f32 %v4598, %v4622
    %v4637 = vadd.f32 %v4599, %v4624
    %v4638 = vadd.f32 %v4600, %v4626
    %s4639 = sld [smem:[#allocation8 + $0x68]]
    %v4640 = vstv %s4639
    %v4641 = vmul.f32 %v4640, %v4375
    %v4642 = vmul.f32 %v4640, %v4376
    %v4643 = vmul.f32 %v4640, %v4377
    %v4644 = vmul.f32 %v4640, %v4378
    %v4645 = vmul.f32 %v4640, %v4379
    %v4646 = vmul.f32 %v4640, %v4380
    %v4653 = vrot.slane %v4641, 1
    %v4654 = vrot.slane %v4642, 1
    %v4655 = vsel %vm242, %v4653, %v4654
    %v4656 = vrot.slane %v4643, 1
    %v4657 = vsel %vm242, %v4654, %v4656
    %v4658 = vrot.slane %v4644, 1
    %v4659 = vrot.slane %v4645, 1
    %v4660 = vsel %vm242, %v4658, %v4659
    %v4661 = vrot.slane %v4646, 1
    %v4662 = vsel %vm242, %v4659, %v4661
    %4663 = vrot.lane.b32.xlu0 %v4655, 126
    %v4664 = vpop.permute.xlu0 %4663
    %4665 = vrot.lane.b32.xlu0 %v4657, 126
    %v4666 = vpop.permute.xlu0 %4665
    %4667 = vrot.lane.b32.xlu0 %v4656, 126
    %v4668 = vpop.permute.xlu0 %4667
    %4669 = vrot.lane.b32.xlu0 %v4660, 126
    %v4670 = vpop.permute.xlu0 %4669
    %4671 = vrot.lane.b32.xlu0 %v4662, 126
    %v4672 = vpop.permute.xlu0 %4671
    %4673 = vrot.lane.b32.xlu0 %v4661, 126
    %v4674 = vpop.permute.xlu0 %4673
    %v4681 = vadd.f32 %v4633, %v4664
    %v4682 = vadd.f32 %v4634, %v4666
    %v4683 = vadd.f32 %v4635, %v4668
    %v4684 = vadd.f32 %v4636, %v4670
    %v4685 = vadd.f32 %v4637, %v4672
    %v4686 = vadd.f32 %v4638, %v4674
    %s4687 = sld [smem:[#allocation8 + $0x6b]]
    %v4688 = vstv %s4687
    %v4689 = vmul.f32 %v4688, %v4375
    %v4690 = vmul.f32 %v4688, %v4376
    %v4691 = vmul.f32 %v4688, %v4377
    %v4692 = vmul.f32 %v4688, %v4378
    %v4693 = vmul.f32 %v4688, %v4379
    %v4694 = vmul.f32 %v4688, %v4380
    %v4701 = vrot.slane %v4689, 2
    %v4702 = vrot.slane %v4690, 2
    %v4703 = vsel %vm279, %v4701, %v4702
    %v4704 = vrot.slane %v4691, 2
    %v4705 = vsel %vm279, %v4702, %v4704
    %v4706 = vrot.slane %v4692, 2
    %v4707 = vrot.slane %v4693, 2
    %v4708 = vsel %vm279, %v4706, %v4707
    %v4709 = vrot.slane %v4694, 2
    %v4710 = vsel %vm279, %v4707, %v4709
    %4711 = vrot.lane.b32.xlu0 %v4703, 126
    %v4712 = vpop.permute.xlu0 %4711
    %4713 = vrot.lane.b32.xlu0 %v4705, 126
    %v4714 = vpop.permute.xlu0 %4713
    %4715 = vrot.lane.b32.xlu0 %v4704, 126
    %v4716 = vpop.permute.xlu0 %4715
    %4717 = vrot.lane.b32.xlu0 %v4708, 126
    %v4718 = vpop.permute.xlu0 %4717
    %4719 = vrot.lane.b32.xlu0 %v4710, 126
    %v4720 = vpop.permute.xlu0 %4719
    %4721 = vrot.lane.b32.xlu0 %v4709, 126
    %v4722 = vpop.permute.xlu0 %4721
    %v4729 = vadd.f32 %v4681, %v4712
    %v4730 = vadd.f32 %v4682, %v4714
    %v4731 = vadd.f32 %v4683, %v4716
    %v4732 = vadd.f32 %v4684, %v4718
    %v4733 = vadd.f32 %v4685, %v4720
    %v4734 = vadd.f32 %v4686, %v4722
    %v4735 = vsel %vm1652, %v4729, 0.0
    %v4736 = vsel %vm1652, %v4730, 0.0
    %v4737 = vadd.f32 %v4735, %v4736
    %v4738 = vsel %vm1656, %v4731, 0.0
    %v4739 = vadd.f32 %v4737, %v4738
    %v4740 = vsel %vm1652, %v4732, 0.0
    %v4741 = vadd.f32 %v4739, %v4740
    %v4742 = vsel %vm1652, %v4733, 0.0
    %v4743 = vadd.f32 %v4741, %v4742
    %v4744 = vsel %vm1656, %v4734, 0.0
    %v4745 = vadd.f32 %v4743, %v4744
    %4746 = vadd.xlane.f32.xlu0 %v4745
    %v4747 = vpop.xlane.xlu0 %4746
    %v4748 = vrot.slane %v4747, 4
    %v4749 = vadd.f32 %v4747, %v4748
    %v4750 = vrot.slane %v4749, 2
    %v4751 = vadd.f32 %v4749, %v4750
    %v4752 = vrot.slane %v4751, 1
    %v4753 = vadd.f32 %v4751, %v4752
    %s4754 = vtos %v4753
    %s4755 = smul.f32 %s4754, 0.0015432099
    %v4756 = vstv %s4755
    %v4757 = vsub.f32 %v4729, %v4756
    %v4758 = vsub.f32 %v4730, %v4756
    %v4759 = vsub.f32 %v4731, %v4756
    %v4760 = vsub.f32 %v4732, %v4756
    %v4761 = vsub.f32 %v4733, %v4756
    %v4762 = vsub.f32 %v4734, %v4756
    %v4763 = vmul.f32 %v4757, %v4757
    %v4764 = vmul.f32 %v4758, %v4758
    %v4765 = vmul.f32 %v4759, %v4759
    %v4766 = vmul.f32 %v4760, %v4760
    %v4767 = vmul.f32 %v4761, %v4761
    %v4768 = vmul.f32 %v4762, %v4762
    %v4769 = vsel %vm1652, %v4763, 0.0
    %v4770 = vsel %vm1652, %v4764, 0.0
    %v4771 = vadd.f32 %v4769, %v4770
    %v4772 = vsel %vm1656, %v4765, 0.0
    %v4773 = vadd.f32 %v4771, %v4772
    %v4774 = vsel %vm1652, %v4766, 0.0
    %v4775 = vadd.f32 %v4773, %v4774
    %v4776 = vsel %vm1652, %v4767, 0.0
    %v4777 = vadd.f32 %v4775, %v4776
    %v4778 = vsel %vm1656, %v4768, 0.0
    %v4779 = vadd.f32 %v4777, %v4778
    %4780 = vadd.xlane.f32.xlu0 %v4779
    %v4781 = vpop.xlane.xlu0 %4780
    %v4782 = vrot.slane %v4781, 4
    %v4783 = vadd.f32 %v4781, %v4782
    %v4784 = vrot.slane %v4783, 2
    %v4785 = vadd.f32 %v4783, %v4784
    %v4786 = vrot.slane %v4785, 1
    %v4787 = vadd.f32 %v4785, %v4786
    %s4788 = vtos %v4787
    %s4789 = smul.f32 %s4788, 0.0015432099
    %s4790 = sadd.f32 %s4789, 1e-05
    %v4791 = vstv %s4790
    %v4792 = vrsqrt.pop %v4791
    %s4793 = vtos %v4792
    %s4794 = sld [smem:[#allocation9 + $0x2]]
    %s4795 = smul.f32 %s4793, %s4794
    %v4796 = vstv %s4795
    %v4797 = vmul.f32 %v4757, %v4796
    %v4798 = vmul.f32 %v4758, %v4796
    %v4799 = vmul.f32 %v4759, %v4796
    %v4800 = vmul.f32 %v4760, %v4796
    %v4801 = vmul.f32 %v4761, %v4796
    %v4802 = vmul.f32 %v4762, %v4796
    %s4803 = sld [smem:[#allocation11 + $0x2]]
    %v4804 = vstv %s4803
    %v4805 = vadd.f32 %v4797, %v4804
    %v4806 = vadd.f32 %v4798, %v4804
    %v4807 = vadd.f32 %v4799, %v4804
    %v4808 = vadd.f32 %v4800, %v4804
    %v4809 = vadd.f32 %v4801, %v4804
    %v4810 = vadd.f32 %v4802, %v4804
    %vm4811 = vcmp.ge.f32.partialorder %v4805, 0.0
    %vm4812 = vcmp.ge.f32.partialorder %v4806, 0.0
    %vm4813 = vcmp.ge.f32.partialorder %v4807, 0.0
    %vm4814 = vcmp.ge.f32.partialorder %v4808, 0.0
    %vm4815 = vcmp.ge.f32.partialorder %v4809, 0.0
    %vm4816 = vcmp.ge.f32.partialorder %v4810, 0.0
    %v4817 = vmul.f32 %v4805, 0.01
    %v4818 = vmul.f32 %v4806, 0.01
    %v4819 = vmul.f32 %v4807, 0.01
    %v4820 = vmul.f32 %v4808, 0.01
    %v4821 = vmul.f32 %v4809, 0.01
    %v4822 = vmul.f32 %v4810, 0.01
    %v4823 = vsel %vm4811, %v4805, %v4817
    %v4824 = vsel %vm4812, %v4806, %v4818
    %v4825 = vsel %vm4813, %v4807, %v4819
    %v4826 = vsel %vm4814, %v4808, %v4820
    %v4827 = vsel %vm4815, %v4809, %v4821
    %v4828 = vsel %vm4816, %v4810, %v4822
    %s4829 = scalar_lea.vmem %s5, 48
    %4830 = vst.msk [vmem:[%s4829] sm:$0xff] %vm1652, %v4823
    %4831 = vst.msk [vmem:[%s4829 + $0x8] sm:$0xff] %vm1652, %v4824
    %4832 = vst.msk [vmem:[%s4829 + $0x10] sm:$0x3] %vm1656, %v4825
    %4833 = vst.msk [vmem:[%s4829 + $0x60] sm:$0xff] %vm1652, %v4826
    %4834 = vst.msk [vmem:[%s4829 + $0x68] sm:$0xff] %vm1652, %v4827
    %4835 = vst.msk [vmem:[%s4829 + $0x70] sm:$0x3] %vm1656, %v4828
    %v4836 = vld [vmem:[#allocation2] sm:$0xff]
    %v4837 = vld [vmem:[#allocation2 + $0x8] sm:$0xff]
    %v4838 = vld [vmem:[#allocation2 + $0x10] sm:$0xf]
    %v4839 = vld [vmem:[#allocation2 + $0x60] sm:$0xff]
    %v4840 = vld [vmem:[#allocation2 + $0x68] sm:$0xff]
    %v4841 = vld [vmem:[#allocation2 + $0x70] sm:$0xf]
    %s4842 = sld [smem:[#allocation8 + $0x6c]]
    %v4843 = vstv %s4842
    %v4844 = vmul.f32 %v4843, %v4836
    %v4845 = vmul.f32 %v4843, %v4837
    %v4846 = vmul.f32 %v4843, %v4838
    %v4847 = vmul.f32 %v4843, %v4839
    %v4848 = vmul.f32 %v4843, %v4840
    %v4849 = vmul.f32 %v4843, %v4841
    %v4850 = vadd.f32 %v4844, 0.0
    %v4851 = vadd.f32 %v4845, 0.0
    %v4852 = vadd.f32 %v4846, 0.0
    %v4853 = vadd.f32 %v4847, 0.0
    %v4854 = vadd.f32 %v4848, 0.0
    %v4855 = vadd.f32 %v4849, 0.0
    %s4856 = sld [smem:[#allocation8 + $0x6f]]
    %v4857 = vstv %s4856
    %v4858 = vmul.f32 %v4857, %v4836
    %v4859 = vmul.f32 %v4857, %v4837
    %v4860 = vmul.f32 %v4857, %v4838
    %v4861 = vmul.f32 %v4857, %v4839
    %v4862 = vmul.f32 %v4857, %v4840
    %v4863 = vmul.f32 %v4857, %v4841
    %v4870 = vrot.slane %v4858, 1
    %v4871 = vrot.slane %v4859, 1
    %v4872 = vsel %vm242, %v4870, %v4871
    %v4873 = vrot.slane %v4860, 1
    %v4874 = vsel %vm242, %v4871, %v4873
    %v4875 = vrot.slane %v4861, 1
    %v4876 = vrot.slane %v4862, 1
    %v4877 = vsel %vm242, %v4875, %v4876
    %v4878 = vrot.slane %v4863, 1
    %v4879 = vsel %vm242, %v4876, %v4878
    %v4886 = vadd.f32 %v4850, %v4872
    %v4887 = vadd.f32 %v4851, %v4874
    %v4888 = vadd.f32 %v4852, %v4873
    %v4889 = vadd.f32 %v4853, %v4877
    %v4890 = vadd.f32 %v4854, %v4879
    %v4891 = vadd.f32 %v4855, %v4878
    %s4892 = sld [smem:[#allocation8 + $0x72]]
    %v4893 = vstv %s4892
    %v4894 = vmul.f32 %v4893, %v4836
    %v4895 = vmul.f32 %v4893, %v4837
    %v4896 = vmul.f32 %v4893, %v4838
    %v4897 = vmul.f32 %v4893, %v4839
    %v4898 = vmul.f32 %v4893, %v4840
    %v4899 = vmul.f32 %v4893, %v4841
    %v4906 = vrot.slane %v4894, 2
    %v4907 = vrot.slane %v4895, 2
    %v4908 = vsel %vm279, %v4906, %v4907
    %v4909 = vrot.slane %v4896, 2
    %v4910 = vsel %vm279, %v4907, %v4909
    %v4911 = vrot.slane %v4897, 2
    %v4912 = vrot.slane %v4898, 2
    %v4913 = vsel %vm279, %v4911, %v4912
    %v4914 = vrot.slane %v4899, 2
    %v4915 = vsel %vm279, %v4912, %v4914
    %v4922 = vadd.f32 %v4886, %v4908
    %v4923 = vadd.f32 %v4887, %v4910
    %v4924 = vadd.f32 %v4888, %v4909
    %v4925 = vadd.f32 %v4889, %v4913
    %v4926 = vadd.f32 %v4890, %v4915
    %v4927 = vadd.f32 %v4891, %v4914
    %s4928 = sld [smem:[#allocation8 + $0x6d]]
    %v4929 = vstv %s4928
    %v4930 = vmul.f32 %v4929, %v4836
    %v4931 = vmul.f32 %v4929, %v4837
    %v4932 = vmul.f32 %v4929, %v4838
    %v4933 = vmul.f32 %v4929, %v4839
    %v4934 = vmul.f32 %v4929, %v4840
    %v4935 = vmul.f32 %v4929, %v4841
    %4942 = vrot.lane.b32.xlu0 %v4930, 127
    %v4943 = vpop.permute.xlu0 %4942
    %4944 = vrot.lane.b32.xlu0 %v4931, 127
    %v4945 = vpop.permute.xlu0 %4944
    %4946 = vrot.lane.b32.xlu0 %v4932, 127
    %v4947 = vpop.permute.xlu0 %4946
    %4948 = vrot.lane.b32.xlu0 %v4933, 127
    %v4949 = vpop.permute.xlu0 %4948
    %4950 = vrot.lane.b32.xlu0 %v4934, 127
    %v4951 = vpop.permute.xlu0 %4950
    %4952 = vrot.lane.b32.xlu0 %v4935, 127
    %v4953 = vpop.permute.xlu0 %4952
    %v4960 = vadd.f32 %v4922, %v4943
    %v4961 = vadd.f32 %v4923, %v4945
    %v4962 = vadd.f32 %v4924, %v4947
    %v4963 = vadd.f32 %v4925, %v4949
    %v4964 = vadd.f32 %v4926, %v4951
    %v4965 = vadd.f32 %v4927, %v4953
    %s4966 = sld [smem:[#allocation8 + $0x70]]
    %v4967 = vstv %s4966
    %v4968 = vmul.f32 %v4967, %v4836
    %v4969 = vmul.f32 %v4967, %v4837
    %v4970 = vmul.f32 %v4967, %v4838
    %v4971 = vmul.f32 %v4967, %v4839
    %v4972 = vmul.f32 %v4967, %v4840
    %v4973 = vmul.f32 %v4967, %v4841
    %v4980 = vrot.slane %v4968, 1
    %v4981 = vrot.slane %v4969, 1
    %v4982 = vsel %vm242, %v4980, %v4981
    %v4983 = vrot.slane %v4970, 1
    %v4984 = vsel %vm242, %v4981, %v4983
    %v4985 = vrot.slane %v4971, 1
    %v4986 = vrot.slane %v4972, 1
    %v4987 = vsel %vm242, %v4985, %v4986
    %v4988 = vrot.slane %v4973, 1
    %v4989 = vsel %vm242, %v4986, %v4988
    %4990 = vrot.lane.b32.xlu0 %v4982, 127
    %v4991 = vpop.permute.xlu0 %4990
    %4992 = vrot.lane.b32.xlu0 %v4984, 127
    %v4993 = vpop.permute.xlu0 %4992
    %4994 = vrot.lane.b32.xlu0 %v4983, 127
    %v4995 = vpop.permute.xlu0 %4994
    %4996 = vrot.lane.b32.xlu0 %v4987, 127
    %v4997 = vpop.permute.xlu0 %4996
    %4998 = vrot.lane.b32.xlu0 %v4989, 127
    %v4999 = vpop.permute.xlu0 %4998
    %5000 = vrot.lane.b32.xlu0 %v4988, 127
    %v5001 = vpop.permute.xlu0 %5000
    %v5008 = vadd.f32 %v4960, %v4991
    %v5009 = vadd.f32 %v4961, %v4993
    %v5010 = vadd.f32 %v4962, %v4995
    %v5011 = vadd.f32 %v4963, %v4997
    %v5012 = vadd.f32 %v4964, %v4999
    %v5013 = vadd.f32 %v4965, %v5001
    %s5014 = sld [smem:[#allocation8 + $0x73]]
    %v5015 = vstv %s5014
    %v5016 = vmul.f32 %v5015, %v4836
    %v5017 = vmul.f32 %v5015, %v4837
    %v5018 = vmul.f32 %v5015, %v4838
    %v5019 = vmul.f32 %v5015, %v4839
    %v5020 = vmul.f32 %v5015, %v4840
    %v5021 = vmul.f32 %v5015, %v4841
    %v5028 = vrot.slane %v5016, 2
    %v5029 = vrot.slane %v5017, 2
    %v5030 = vsel %vm279, %v5028, %v5029
    %v5031 = vrot.slane %v5018, 2
    %v5032 = vsel %vm279, %v5029, %v5031
    %v5033 = vrot.slane %v5019, 2
    %v5034 = vrot.slane %v5020, 2
    %v5035 = vsel %vm279, %v5033, %v5034
    %v5036 = vrot.slane %v5021, 2
    %v5037 = vsel %vm279, %v5034, %v5036
    %5038 = vrot.lane.b32.xlu0 %v5030, 127
    %v5039 = vpop.permute.xlu0 %5038
    %5040 = vrot.lane.b32.xlu0 %v5032, 127
    %v5041 = vpop.permute.xlu0 %5040
    %5042 = vrot.lane.b32.xlu0 %v5031, 127
    %v5043 = vpop.permute.xlu0 %5042
    %5044 = vrot.lane.b32.xlu0 %v5035, 127
    %v5045 = vpop.permute.xlu0 %5044
    %5046 = vrot.lane.b32.xlu0 %v5037, 127
    %v5047 = vpop.permute.xlu0 %5046
    %5048 = vrot.lane.b32.xlu0 %v5036, 127
    %v5049 = vpop.permute.xlu0 %5048
    %v5056 = vadd.f32 %v5008, %v5039
    %v5057 = vadd.f32 %v5009, %v5041
    %v5058 = vadd.f32 %v5010, %v5043
    %v5059 = vadd.f32 %v5011, %v5045
    %v5060 = vadd.f32 %v5012, %v5047
    %v5061 = vadd.f32 %v5013, %v5049
    %s5062 = sld [smem:[#allocation8 + $0x6e]]
    %v5063 = vstv %s5062
    %v5064 = vmul.f32 %v5063, %v4836
    %v5065 = vmul.f32 %v5063, %v4837
    %v5066 = vmul.f32 %v5063, %v4838
    %v5067 = vmul.f32 %v5063, %v4839
    %v5068 = vmul.f32 %v5063, %v4840
    %v5069 = vmul.f32 %v5063, %v4841
    %5076 = vrot.lane.b32.xlu0 %v5064, 126
    %v5077 = vpop.permute.xlu0 %5076
    %5078 = vrot.lane.b32.xlu0 %v5065, 126
    %v5079 = vpop.permute.xlu0 %5078
    %5080 = vrot.lane.b32.xlu0 %v5066, 126
    %v5081 = vpop.permute.xlu0 %5080
    %5082 = vrot.lane.b32.xlu0 %v5067, 126
    %v5083 = vpop.permute.xlu0 %5082
    %5084 = vrot.lane.b32.xlu0 %v5068, 126
    %v5085 = vpop.permute.xlu0 %5084
    %5086 = vrot.lane.b32.xlu0 %v5069, 126
    %v5087 = vpop.permute.xlu0 %5086
    %v5094 = vadd.f32 %v5056, %v5077
    %v5095 = vadd.f32 %v5057, %v5079
    %v5096 = vadd.f32 %v5058, %v5081
    %v5097 = vadd.f32 %v5059, %v5083
    %v5098 = vadd.f32 %v5060, %v5085
    %v5099 = vadd.f32 %v5061, %v5087
    %s5100 = sld [smem:[#allocation8 + $0x71]]
    %v5101 = vstv %s5100
    %v5102 = vmul.f32 %v5101, %v4836
    %v5103 = vmul.f32 %v5101, %v4837
    %v5104 = vmul.f32 %v5101, %v4838
    %v5105 = vmul.f32 %v5101, %v4839
    %v5106 = vmul.f32 %v5101, %v4840
    %v5107 = vmul.f32 %v5101, %v4841
    %v5114 = vrot.slane %v5102, 1
    %v5115 = vrot.slane %v5103, 1
    %v5116 = vsel %vm242, %v5114, %v5115
    %v5117 = vrot.slane %v5104, 1
    %v5118 = vsel %vm242, %v5115, %v5117
    %v5119 = vrot.slane %v5105, 1
    %v5120 = vrot.slane %v5106, 1
    %v5121 = vsel %vm242, %v5119, %v5120
    %v5122 = vrot.slane %v5107, 1
    %v5123 = vsel %vm242, %v5120, %v5122
    %5124 = vrot.lane.b32.xlu0 %v5116, 126
    %v5125 = vpop.permute.xlu0 %5124
    %5126 = vrot.lane.b32.xlu0 %v5118, 126
    %v5127 = vpop.permute.xlu0 %5126
    %5128 = vrot.lane.b32.xlu0 %v5117, 126
    %v5129 = vpop.permute.xlu0 %5128
    %5130 = vrot.lane.b32.xlu0 %v5121, 126
    %v5131 = vpop.permute.xlu0 %5130
    %5132 = vrot.lane.b32.xlu0 %v5123, 126
    %v5133 = vpop.permute.xlu0 %5132
    %5134 = vrot.lane.b32.xlu0 %v5122, 126
    %v5135 = vpop.permute.xlu0 %5134
    %v5142 = vadd.f32 %v5094, %v5125
    %v5143 = vadd.f32 %v5095, %v5127
    %v5144 = vadd.f32 %v5096, %v5129
    %v5145 = vadd.f32 %v5097, %v5131
    %v5146 = vadd.f32 %v5098, %v5133
    %v5147 = vadd.f32 %v5099, %v5135
    %s5148 = sld [smem:[#allocation8 + $0x74]]
    %v5149 = vstv %s5148
    %v5150 = vmul.f32 %v5149, %v4836
    %v5151 = vmul.f32 %v5149, %v4837
    %v5152 = vmul.f32 %v5149, %v4838
    %v5153 = vmul.f32 %v5149, %v4839
    %v5154 = vmul.f32 %v5149, %v4840
    %v5155 = vmul.f32 %v5149, %v4841
    %v5162 = vrot.slane %v5150, 2
    %v5163 = vrot.slane %v5151, 2
    %v5164 = vsel %vm279, %v5162, %v5163
    %v5165 = vrot.slane %v5152, 2
    %v5166 = vsel %vm279, %v5163, %v5165
    %v5167 = vrot.slane %v5153, 2
    %v5168 = vrot.slane %v5154, 2
    %v5169 = vsel %vm279, %v5167, %v5168
    %v5170 = vrot.slane %v5155, 2
    %v5171 = vsel %vm279, %v5168, %v5170
    %5172 = vrot.lane.b32.xlu0 %v5164, 126
    %v5173 = vpop.permute.xlu0 %5172
    %5174 = vrot.lane.b32.xlu0 %v5166, 126
    %v5175 = vpop.permute.xlu0 %5174
    %5176 = vrot.lane.b32.xlu0 %v5165, 126
    %v5177 = vpop.permute.xlu0 %5176
    %5178 = vrot.lane.b32.xlu0 %v5169, 126
    %v5179 = vpop.permute.xlu0 %5178
    %5180 = vrot.lane.b32.xlu0 %v5171, 126
    %v5181 = vpop.permute.xlu0 %5180
    %5182 = vrot.lane.b32.xlu0 %v5170, 126
    %v5183 = vpop.permute.xlu0 %5182
    %v5190 = vadd.f32 %v5142, %v5173
    %v5191 = vadd.f32 %v5143, %v5175
    %v5192 = vadd.f32 %v5144, %v5177
    %v5193 = vadd.f32 %v5145, %v5179
    %v5194 = vadd.f32 %v5146, %v5181
    %v5195 = vadd.f32 %v5147, %v5183
    %v5196 = vld [vmem:[%s570] sm:$0xff]
    %v5197 = vld [vmem:[%s570 + $0x8] sm:$0xff]
    %v5198 = vld [vmem:[%s570 + $0x10] sm:$0xf]
    %v5199 = vld [vmem:[%s570 + $0x60] sm:$0xff]
    %v5200 = vld [vmem:[%s570 + $0x68] sm:$0xff]
    %v5201 = vld [vmem:[%s570 + $0x70] sm:$0xf]
    %s5202 = sld [smem:[#allocation8 + $0x75]]
    %v5203 = vstv %s5202
    %v5204 = vmul.f32 %v5203, %v5196
    %v5205 = vmul.f32 %v5203, %v5197
    %v5206 = vmul.f32 %v5203, %v5198
    %v5207 = vmul.f32 %v5203, %v5199
    %v5208 = vmul.f32 %v5203, %v5200
    %v5209 = vmul.f32 %v5203, %v5201
    %v5210 = vadd.f32 %v5190, %v5204
    %v5211 = vadd.f32 %v5191, %v5205
    %v5212 = vadd.f32 %v5192, %v5206
    %v5213 = vadd.f32 %v5193, %v5207
    %v5214 = vadd.f32 %v5194, %v5208
    %v5215 = vadd.f32 %v5195, %v5209
    %s5216 = sld [smem:[#allocation8 + $0x78]]
    %v5217 = vstv %s5216
    %v5218 = vmul.f32 %v5217, %v5196
    %v5219 = vmul.f32 %v5217, %v5197
    %v5220 = vmul.f32 %v5217, %v5198
    %v5221 = vmul.f32 %v5217, %v5199
    %v5222 = vmul.f32 %v5217, %v5200
    %v5223 = vmul.f32 %v5217, %v5201
    %v5230 = vrot.slane %v5218, 1
    %v5231 = vrot.slane %v5219, 1
    %v5232 = vsel %vm242, %v5230, %v5231
    %v5233 = vrot.slane %v5220, 1
    %v5234 = vsel %vm242, %v5231, %v5233
    %v5235 = vrot.slane %v5221, 1
    %v5236 = vrot.slane %v5222, 1
    %v5237 = vsel %vm242, %v5235, %v5236
    %v5238 = vrot.slane %v5223, 1
    %v5239 = vsel %vm242, %v5236, %v5238
    %v5246 = vadd.f32 %v5210, %v5232
    %v5247 = vadd.f32 %v5211, %v5234
    %v5248 = vadd.f32 %v5212, %v5233
    %v5249 = vadd.f32 %v5213, %v5237
    %v5250 = vadd.f32 %v5214, %v5239
    %v5251 = vadd.f32 %v5215, %v5238
    %s5252 = sld [smem:[#allocation8 + $0x7b]]
    %v5253 = vstv %s5252
    %v5254 = vmul.f32 %v5253, %v5196
    %v5255 = vmul.f32 %v5253, %v5197
    %v5256 = vmul.f32 %v5253, %v5198
    %v5257 = vmul.f32 %v5253, %v5199
    %v5258 = vmul.f32 %v5253, %v5200
    %v5259 = vmul.f32 %v5253, %v5201
    %v5266 = vrot.slane %v5254, 2
    %v5267 = vrot.slane %v5255, 2
    %v5268 = vsel %vm279, %v5266, %v5267
    %v5269 = vrot.slane %v5256, 2
    %v5270 = vsel %vm279, %v5267, %v5269
    %v5271 = vrot.slane %v5257, 2
    %v5272 = vrot.slane %v5258, 2
    %v5273 = vsel %vm279, %v5271, %v5272
    %v5274 = vrot.slane %v5259, 2
    %v5275 = vsel %vm279, %v5272, %v5274
    %v5282 = vadd.f32 %v5246, %v5268
    %v5283 = vadd.f32 %v5247, %v5270
    %v5284 = vadd.f32 %v5248, %v5269
    %v5285 = vadd.f32 %v5249, %v5273
    %v5286 = vadd.f32 %v5250, %v5275
    %v5287 = vadd.f32 %v5251, %v5274
    %s5288 = sld [smem:[#allocation8 + $0x76]]
    %v5289 = vstv %s5288
    %v5290 = vmul.f32 %v5289, %v5196
    %v5291 = vmul.f32 %v5289, %v5197
    %v5292 = vmul.f32 %v5289, %v5198
    %v5293 = vmul.f32 %v5289, %v5199
    %v5294 = vmul.f32 %v5289, %v5200
    %v5295 = vmul.f32 %v5289, %v5201
    %5302 = vrot.lane.b32.xlu0 %v5290, 127
    %v5303 = vpop.permute.xlu0 %5302
    %5304 = vrot.lane.b32.xlu0 %v5291, 127
    %v5305 = vpop.permute.xlu0 %5304
    %5306 = vrot.lane.b32.xlu0 %v5292, 127
    %v5307 = vpop.permute.xlu0 %5306
    %5308 = vrot.lane.b32.xlu0 %v5293, 127
    %v5309 = vpop.permute.xlu0 %5308
    %5310 = vrot.lane.b32.xlu0 %v5294, 127
    %v5311 = vpop.permute.xlu0 %5310
    %5312 = vrot.lane.b32.xlu0 %v5295, 127
    %v5313 = vpop.permute.xlu0 %5312
    %v5320 = vadd.f32 %v5282, %v5303
    %v5321 = vadd.f32 %v5283, %v5305
    %v5322 = vadd.f32 %v5284, %v5307
    %v5323 = vadd.f32 %v5285, %v5309
    %v5324 = vadd.f32 %v5286, %v5311
    %v5325 = vadd.f32 %v5287, %v5313
    %s5326 = sld [smem:[#allocation8 + $0x79]]
    %v5327 = vstv %s5326
    %v5328 = vmul.f32 %v5327, %v5196
    %v5329 = vmul.f32 %v5327, %v5197
    %v5330 = vmul.f32 %v5327, %v5198
    %v5331 = vmul.f32 %v5327, %v5199
    %v5332 = vmul.f32 %v5327, %v5200
    %v5333 = vmul.f32 %v5327, %v5201
    %v5340 = vrot.slane %v5328, 1
    %v5341 = vrot.slane %v5329, 1
    %v5342 = vsel %vm242, %v5340, %v5341
    %v5343 = vrot.slane %v5330, 1
    %v5344 = vsel %vm242, %v5341, %v5343
    %v5345 = vrot.slane %v5331, 1
    %v5346 = vrot.slane %v5332, 1
    %v5347 = vsel %vm242, %v5345, %v5346
    %v5348 = vrot.slane %v5333, 1
    %v5349 = vsel %vm242, %v5346, %v5348
    %5350 = vrot.lane.b32.xlu0 %v5342, 127
    %v5351 = vpop.permute.xlu0 %5350
    %5352 = vrot.lane.b32.xlu0 %v5344, 127
    %v5353 = vpop.permute.xlu0 %5352
    %5354 = vrot.lane.b32.xlu0 %v5343, 127
    %v5355 = vpop.permute.xlu0 %5354
    %5356 = vrot.lane.b32.xlu0 %v5347, 127
    %v5357 = vpop.permute.xlu0 %5356
    %5358 = vrot.lane.b32.xlu0 %v5349, 127
    %v5359 = vpop.permute.xlu0 %5358
    %5360 = vrot.lane.b32.xlu0 %v5348, 127
    %v5361 = vpop.permute.xlu0 %5360
    %v5368 = vadd.f32 %v5320, %v5351
    %v5369 = vadd.f32 %v5321, %v5353
    %v5370 = vadd.f32 %v5322, %v5355
    %v5371 = vadd.f32 %v5323, %v5357
    %v5372 = vadd.f32 %v5324, %v5359
    %v5373 = vadd.f32 %v5325, %v5361
    %s5374 = sld [smem:[#allocation8 + $0x7c]]
    %v5375 = vstv %s5374
    %v5376 = vmul.f32 %v5375, %v5196
    %v5377 = vmul.f32 %v5375, %v5197
    %v5378 = vmul.f32 %v5375, %v5198
    %v5379 = vmul.f32 %v5375, %v5199
    %v5380 = vmul.f32 %v5375, %v5200
    %v5381 = vmul.f32 %v5375, %v5201
    %v5388 = vrot.slane %v5376, 2
    %v5389 = vrot.slane %v5377, 2
    %v5390 = vsel %vm279, %v5388, %v5389
    %v5391 = vrot.slane %v5378, 2
    %v5392 = vsel %vm279, %v5389, %v5391
    %v5393 = vrot.slane %v5379, 2
    %v5394 = vrot.slane %v5380, 2
    %v5395 = vsel %vm279, %v5393, %v5394
    %v5396 = vrot.slane %v5381, 2
    %v5397 = vsel %vm279, %v5394, %v5396
    %5398 = vrot.lane.b32.xlu0 %v5390, 127
    %v5399 = vpop.permute.xlu0 %5398
    %5400 = vrot.lane.b32.xlu0 %v5392, 127
    %v5401 = vpop.permute.xlu0 %5400
    %5402 = vrot.lane.b32.xlu0 %v5391, 127
    %v5403 = vpop.permute.xlu0 %5402
    %5404 = vrot.lane.b32.xlu0 %v5395, 127
    %v5405 = vpop.permute.xlu0 %5404
    %5406 = vrot.lane.b32.xlu0 %v5397, 127
    %v5407 = vpop.permute.xlu0 %5406
    %5408 = vrot.lane.b32.xlu0 %v5396, 127
    %v5409 = vpop.permute.xlu0 %5408
    %v5416 = vadd.f32 %v5368, %v5399
    %v5417 = vadd.f32 %v5369, %v5401
    %v5418 = vadd.f32 %v5370, %v5403
    %v5419 = vadd.f32 %v5371, %v5405
    %v5420 = vadd.f32 %v5372, %v5407
    %v5421 = vadd.f32 %v5373, %v5409
    %s5422 = sld [smem:[#allocation8 + $0x77]]
    %v5423 = vstv %s5422
    %v5424 = vmul.f32 %v5423, %v5196
    %v5425 = vmul.f32 %v5423, %v5197
    %v5426 = vmul.f32 %v5423, %v5198
    %v5427 = vmul.f32 %v5423, %v5199
    %v5428 = vmul.f32 %v5423, %v5200
    %v5429 = vmul.f32 %v5423, %v5201
    %5436 = vrot.lane.b32.xlu0 %v5424, 126
    %v5437 = vpop.permute.xlu0 %5436
    %5438 = vrot.lane.b32.xlu0 %v5425, 126
    %v5439 = vpop.permute.xlu0 %5438
    %5440 = vrot.lane.b32.xlu0 %v5426, 126
    %v5441 = vpop.permute.xlu0 %5440
    %5442 = vrot.lane.b32.xlu0 %v5427, 126
    %v5443 = vpop.permute.xlu0 %5442
    %5444 = vrot.lane.b32.xlu0 %v5428, 126
    %v5445 = vpop.permute.xlu0 %5444
    %5446 = vrot.lane.b32.xlu0 %v5429, 126
    %v5447 = vpop.permute.xlu0 %5446
    %v5454 = vadd.f32 %v5416, %v5437
    %v5455 = vadd.f32 %v5417, %v5439
    %v5456 = vadd.f32 %v5418, %v5441
    %v5457 = vadd.f32 %v5419, %v5443
    %v5458 = vadd.f32 %v5420, %v5445
    %v5459 = vadd.f32 %v5421, %v5447
    %s5460 = sld [smem:[#allocation8 + $0x7a]]
    %v5461 = vstv %s5460
    %v5462 = vmul.f32 %v5461, %v5196
    %v5463 = vmul.f32 %v5461, %v5197
    %v5464 = vmul.f32 %v5461, %v5198
    %v5465 = vmul.f32 %v5461, %v5199
    %v5466 = vmul.f32 %v5461, %v5200
    %v5467 = vmul.f32 %v5461, %v5201
    %v5474 = vrot.slane %v5462, 1
    %v5475 = vrot.slane %v5463, 1
    %v5476 = vsel %vm242, %v5474, %v5475
    %v5477 = vrot.slane %v5464, 1
    %v5478 = vsel %vm242, %v5475, %v5477
    %v5479 = vrot.slane %v5465, 1
    %v5480 = vrot.slane %v5466, 1
    %v5481 = vsel %vm242, %v5479, %v5480
    %v5482 = vrot.slane %v5467, 1
    %v5483 = vsel %vm242, %v5480, %v5482
    %5484 = vrot.lane.b32.xlu0 %v5476, 126
    %v5485 = vpop.permute.xlu0 %5484
    %5486 = vrot.lane.b32.xlu0 %v5478, 126
    %v5487 = vpop.permute.xlu0 %5486
    %5488 = vrot.lane.b32.xlu0 %v5477, 126
    %v5489 = vpop.permute.xlu0 %5488
    %5490 = vrot.lane.b32.xlu0 %v5481, 126
    %v5491 = vpop.permute.xlu0 %5490
    %5492 = vrot.lane.b32.xlu0 %v5483, 126
    %v5493 = vpop.permute.xlu0 %5492
    %5494 = vrot.lane.b32.xlu0 %v5482, 126
    %v5495 = vpop.permute.xlu0 %5494
    %v5502 = vadd.f32 %v5454, %v5485
    %v5503 = vadd.f32 %v5455, %v5487
    %v5504 = vadd.f32 %v5456, %v5489
    %v5505 = vadd.f32 %v5457, %v5491
    %v5506 = vadd.f32 %v5458, %v5493
    %v5507 = vadd.f32 %v5459, %v5495
    %s5508 = sld [smem:[#allocation8 + $0x7d]]
    %v5509 = vstv %s5508
    %v5510 = vmul.f32 %v5509, %v5196
    %v5511 = vmul.f32 %v5509, %v5197
    %v5512 = vmul.f32 %v5509, %v5198
    %v5513 = vmul.f32 %v5509, %v5199
    %v5514 = vmul.f32 %v5509, %v5200
    %v5515 = vmul.f32 %v5509, %v5201
    %v5522 = vrot.slane %v5510, 2
    %v5523 = vrot.slane %v5511, 2
    %v5524 = vsel %vm279, %v5522, %v5523
    %v5525 = vrot.slane %v5512, 2
    %v5526 = vsel %vm279, %v5523, %v5525
    %v5527 = vrot.slane %v5513, 2
    %v5528 = vrot.slane %v5514, 2
    %v5529 = vsel %vm279, %v5527, %v5528
    %v5530 = vrot.slane %v5515, 2
    %v5531 = vsel %vm279, %v5528, %v5530
    %5532 = vrot.lane.b32.xlu0 %v5524, 126
    %v5533 = vpop.permute.xlu0 %5532
    %5534 = vrot.lane.b32.xlu0 %v5526, 126
    %v5535 = vpop.permute.xlu0 %5534
    %5536 = vrot.lane.b32.xlu0 %v5525, 126
    %v5537 = vpop.permute.xlu0 %5536
    %5538 = vrot.lane.b32.xlu0 %v5529, 126
    %v5539 = vpop.permute.xlu0 %5538
    %5540 = vrot.lane.b32.xlu0 %v5531, 126
    %v5541 = vpop.permute.xlu0 %5540
    %5542 = vrot.lane.b32.xlu0 %v5530, 126
    %v5543 = vpop.permute.xlu0 %5542
    %v5550 = vadd.f32 %v5502, %v5533
    %v5551 = vadd.f32 %v5503, %v5535
    %v5552 = vadd.f32 %v5504, %v5537
    %v5553 = vadd.f32 %v5505, %v5539
    %v5554 = vadd.f32 %v5506, %v5541
    %v5555 = vadd.f32 %v5507, %v5543
    %v5556 = vld [vmem:[%s199] sm:$0xff]
    %v5557 = vld [vmem:[%s199 + $0x8] sm:$0xff]
    %v5558 = vld [vmem:[%s199 + $0x10] sm:$0xf]
    %v5559 = vld [vmem:[%s199 + $0x60] sm:$0xff]
    %v5560 = vld [vmem:[%s199 + $0x68] sm:$0xff]
    %v5561 = vld [vmem:[%s199 + $0x70] sm:$0xf]
    %s5562 = sld [smem:[#allocation8 + $0x7e]]
    %v5563 = vstv %s5562
    %v5564 = vmul.f32 %v5563, %v5556
    %v5565 = vmul.f32 %v5563, %v5557
    %v5566 = vmul.f32 %v5563, %v5558
    %v5567 = vmul.f32 %v5563, %v5559
    %v5568 = vmul.f32 %v5563, %v5560
    %v5569 = vmul.f32 %v5563, %v5561
    %v5570 = vadd.f32 %v5550, %v5564
    %v5571 = vadd.f32 %v5551, %v5565
    %v5572 = vadd.f32 %v5552, %v5566
    %v5573 = vadd.f32 %v5553, %v5567
    %v5574 = vadd.f32 %v5554, %v5568
    %v5575 = vadd.f32 %v5555, %v5569
    %s5576 = sld [smem:[#allocation8 + $0x81]]
    %v5577 = vstv %s5576
    %v5578 = vmul.f32 %v5577, %v5556
    %v5579 = vmul.f32 %v5577, %v5557
    %v5580 = vmul.f32 %v5577, %v5558
    %v5581 = vmul.f32 %v5577, %v5559
    %v5582 = vmul.f32 %v5577, %v5560
    %v5583 = vmul.f32 %v5577, %v5561
    %v5590 = vrot.slane %v5578, 1
    %v5591 = vrot.slane %v5579, 1
    %v5592 = vsel %vm242, %v5590, %v5591
    %v5593 = vrot.slane %v5580, 1
    %v5594 = vsel %vm242, %v5591, %v5593
    %v5595 = vrot.slane %v5581, 1
    %v5596 = vrot.slane %v5582, 1
    %v5597 = vsel %vm242, %v5595, %v5596
    %v5598 = vrot.slane %v5583, 1
    %v5599 = vsel %vm242, %v5596, %v5598
    %v5606 = vadd.f32 %v5570, %v5592
    %v5607 = vadd.f32 %v5571, %v5594
    %v5608 = vadd.f32 %v5572, %v5593
    %v5609 = vadd.f32 %v5573, %v5597
    %v5610 = vadd.f32 %v5574, %v5599
    %v5611 = vadd.f32 %v5575, %v5598
    %s5612 = sld [smem:[#allocation8 + $0x84]]
    %v5613 = vstv %s5612
    %v5614 = vmul.f32 %v5613, %v5556
    %v5615 = vmul.f32 %v5613, %v5557
    %v5616 = vmul.f32 %v5613, %v5558
    %v5617 = vmul.f32 %v5613, %v5559
    %v5618 = vmul.f32 %v5613, %v5560
    %v5619 = vmul.f32 %v5613, %v5561
    %v5626 = vrot.slane %v5614, 2
    %v5627 = vrot.slane %v5615, 2
    %v5628 = vsel %vm279, %v5626, %v5627
    %v5629 = vrot.slane %v5616, 2
    %v5630 = vsel %vm279, %v5627, %v5629
    %v5631 = vrot.slane %v5617, 2
    %v5632 = vrot.slane %v5618, 2
    %v5633 = vsel %vm279, %v5631, %v5632
    %v5634 = vrot.slane %v5619, 2
    %v5635 = vsel %vm279, %v5632, %v5634
    %v5642 = vadd.f32 %v5606, %v5628
    %v5643 = vadd.f32 %v5607, %v5630
    %v5644 = vadd.f32 %v5608, %v5629
    %v5645 = vadd.f32 %v5609, %v5633
    %v5646 = vadd.f32 %v5610, %v5635
    %v5647 = vadd.f32 %v5611, %v5634
    %s5648 = sld [smem:[#allocation8 + $0x7f]]
    %v5649 = vstv %s5648
    %v5650 = vmul.f32 %v5649, %v5556
    %v5651 = vmul.f32 %v5649, %v5557
    %v5652 = vmul.f32 %v5649, %v5558
    %v5653 = vmul.f32 %v5649, %v5559
    %v5654 = vmul.f32 %v5649, %v5560
    %v5655 = vmul.f32 %v5649, %v5561
    %5662 = vrot.lane.b32.xlu0 %v5650, 127
    %v5663 = vpop.permute.xlu0 %5662
    %5664 = vrot.lane.b32.xlu0 %v5651, 127
    %v5665 = vpop.permute.xlu0 %5664
    %5666 = vrot.lane.b32.xlu0 %v5652, 127
    %v5667 = vpop.permute.xlu0 %5666
    %5668 = vrot.lane.b32.xlu0 %v5653, 127
    %v5669 = vpop.permute.xlu0 %5668
    %5670 = vrot.lane.b32.xlu0 %v5654, 127
    %v5671 = vpop.permute.xlu0 %5670
    %5672 = vrot.lane.b32.xlu0 %v5655, 127
    %v5673 = vpop.permute.xlu0 %5672
    %v5680 = vadd.f32 %v5642, %v5663
    %v5681 = vadd.f32 %v5643, %v5665
    %v5682 = vadd.f32 %v5644, %v5667
    %v5683 = vadd.f32 %v5645, %v5669
    %v5684 = vadd.f32 %v5646, %v5671
    %v5685 = vadd.f32 %v5647, %v5673
    %s5686 = sld [smem:[#allocation8 + $0x82]]
    %v5687 = vstv %s5686
    %v5688 = vmul.f32 %v5687, %v5556
    %v5689 = vmul.f32 %v5687, %v5557
    %v5690 = vmul.f32 %v5687, %v5558
    %v5691 = vmul.f32 %v5687, %v5559
    %v5692 = vmul.f32 %v5687, %v5560
    %v5693 = vmul.f32 %v5687, %v5561
    %v5700 = vrot.slane %v5688, 1
    %v5701 = vrot.slane %v5689, 1
    %v5702 = vsel %vm242, %v5700, %v5701
    %v5703 = vrot.slane %v5690, 1
    %v5704 = vsel %vm242, %v5701, %v5703
    %v5705 = vrot.slane %v5691, 1
    %v5706 = vrot.slane %v5692, 1
    %v5707 = vsel %vm242, %v5705, %v5706
    %v5708 = vrot.slane %v5693, 1
    %v5709 = vsel %vm242, %v5706, %v5708
    %5710 = vrot.lane.b32.xlu0 %v5702, 127
    %v5711 = vpop.permute.xlu0 %5710
    %5712 = vrot.lane.b32.xlu0 %v5704, 127
    %v5713 = vpop.permute.xlu0 %5712
    %5714 = vrot.lane.b32.xlu0 %v5703, 127
    %v5715 = vpop.permute.xlu0 %5714
    %5716 = vrot.lane.b32.xlu0 %v5707, 127
    %v5717 = vpop.permute.xlu0 %5716
    %5718 = vrot.lane.b32.xlu0 %v5709, 127
    %v5719 = vpop.permute.xlu0 %5718
    %5720 = vrot.lane.b32.xlu0 %v5708, 127
    %v5721 = vpop.permute.xlu0 %5720
    %v5728 = vadd.f32 %v5680, %v5711
    %v5729 = vadd.f32 %v5681, %v5713
    %v5730 = vadd.f32 %v5682, %v5715
    %v5731 = vadd.f32 %v5683, %v5717
    %v5732 = vadd.f32 %v5684, %v5719
    %v5733 = vadd.f32 %v5685, %v5721
    %s5734 = sld [smem:[#allocation8 + $0x85]]
    %v5735 = vstv %s5734
    %v5736 = vmul.f32 %v5735, %v5556
    %v5737 = vmul.f32 %v5735, %v5557
    %v5738 = vmul.f32 %v5735, %v5558
    %v5739 = vmul.f32 %v5735, %v5559
    %v5740 = vmul.f32 %v5735, %v5560
    %v5741 = vmul.f32 %v5735, %v5561
    %v5748 = vrot.slane %v5736, 2
    %v5749 = vrot.slane %v5737, 2
    %v5750 = vsel %vm279, %v5748, %v5749
    %v5751 = vrot.slane %v5738, 2
    %v5752 = vsel %vm279, %v5749, %v5751
    %v5753 = vrot.slane %v5739, 2
    %v5754 = vrot.slane %v5740, 2
    %v5755 = vsel %vm279, %v5753, %v5754
    %v5756 = vrot.slane %v5741, 2
    %v5757 = vsel %vm279, %v5754, %v5756
    %5758 = vrot.lane.b32.xlu0 %v5750, 127
    %v5759 = vpop.permute.xlu0 %5758
    %5760 = vrot.lane.b32.xlu0 %v5752, 127
    %v5761 = vpop.permute.xlu0 %5760
    %5762 = vrot.lane.b32.xlu0 %v5751, 127
    %v5763 = vpop.permute.xlu0 %5762
    %5764 = vrot.lane.b32.xlu0 %v5755, 127
    %v5765 = vpop.permute.xlu0 %5764
    %5766 = vrot.lane.b32.xlu0 %v5757, 127
    %v5767 = vpop.permute.xlu0 %5766
    %5768 = vrot.lane.b32.xlu0 %v5756, 127
    %v5769 = vpop.permute.xlu0 %5768
    %v5776 = vadd.f32 %v5728, %v5759
    %v5777 = vadd.f32 %v5729, %v5761
    %v5778 = vadd.f32 %v5730, %v5763
    %v5779 = vadd.f32 %v5731, %v5765
    %v5780 = vadd.f32 %v5732, %v5767
    %v5781 = vadd.f32 %v5733, %v5769
    %s5782 = sld [smem:[#allocation8 + $0x80]]
    %v5783 = vstv %s5782
    %v5784 = vmul.f32 %v5783, %v5556
    %v5785 = vmul.f32 %v5783, %v5557
    %v5786 = vmul.f32 %v5783, %v5558
    %v5787 = vmul.f32 %v5783, %v5559
    %v5788 = vmul.f32 %v5783, %v5560
    %v5789 = vmul.f32 %v5783, %v5561
    %5796 = vrot.lane.b32.xlu0 %v5784, 126
    %v5797 = vpop.permute.xlu0 %5796
    %5798 = vrot.lane.b32.xlu0 %v5785, 126
    %v5799 = vpop.permute.xlu0 %5798
    %5800 = vrot.lane.b32.xlu0 %v5786, 126
    %v5801 = vpop.permute.xlu0 %5800
    %5802 = vrot.lane.b32.xlu0 %v5787, 126
    %v5803 = vpop.permute.xlu0 %5802
    %5804 = vrot.lane.b32.xlu0 %v5788, 126
    %v5805 = vpop.permute.xlu0 %5804
    %5806 = vrot.lane.b32.xlu0 %v5789, 126
    %v5807 = vpop.permute.xlu0 %5806
    %v5814 = vadd.f32 %v5776, %v5797
    %v5815 = vadd.f32 %v5777, %v5799
    %v5816 = vadd.f32 %v5778, %v5801
    %v5817 = vadd.f32 %v5779, %v5803
    %v5818 = vadd.f32 %v5780, %v5805
    %v5819 = vadd.f32 %v5781, %v5807
    %s5820 = sld [smem:[#allocation8 + $0x83]]
    %v5821 = vstv %s5820
    %v5822 = vmul.f32 %v5821, %v5556
    %v5823 = vmul.f32 %v5821, %v5557
    %v5824 = vmul.f32 %v5821, %v5558
    %v5825 = vmul.f32 %v5821, %v5559
    %v5826 = vmul.f32 %v5821, %v5560
    %v5827 = vmul.f32 %v5821, %v5561
    %v5834 = vrot.slane %v5822, 1
    %v5835 = vrot.slane %v5823, 1
    %v5836 = vsel %vm242, %v5834, %v5835
    %v5837 = vrot.slane %v5824, 1
    %v5838 = vsel %vm242, %v5835, %v5837
    %v5839 = vrot.slane %v5825, 1
    %v5840 = vrot.slane %v5826, 1
    %v5841 = vsel %vm242, %v5839, %v5840
    %v5842 = vrot.slane %v5827, 1
    %v5843 = vsel %vm242, %v5840, %v5842
    %5844 = vrot.lane.b32.xlu0 %v5836, 126
    %v5845 = vpop.permute.xlu0 %5844
    %5846 = vrot.lane.b32.xlu0 %v5838, 126
    %v5847 = vpop.permute.xlu0 %5846
    %5848 = vrot.lane.b32.xlu0 %v5837, 126
    %v5849 = vpop.permute.xlu0 %5848
    %5850 = vrot.lane.b32.xlu0 %v5841, 126
    %v5851 = vpop.permute.xlu0 %5850
    %5852 = vrot.lane.b32.xlu0 %v5843, 126
    %v5853 = vpop.permute.xlu0 %5852
    %5854 = vrot.lane.b32.xlu0 %v5842, 126
    %v5855 = vpop.permute.xlu0 %5854
    %v5862 = vadd.f32 %v5814, %v5845
    %v5863 = vadd.f32 %v5815, %v5847
    %v5864 = vadd.f32 %v5816, %v5849
    %v5865 = vadd.f32 %v5817, %v5851
    %v5866 = vadd.f32 %v5818, %v5853
    %v5867 = vadd.f32 %v5819, %v5855
    %s5868 = sld [smem:[#allocation8 + $0x86]]
    %v5869 = vstv %s5868
    %v5870 = vmul.f32 %v5869, %v5556
    %v5871 = vmul.f32 %v5869, %v5557
    %v5872 = vmul.f32 %v5869, %v5558
    %v5873 = vmul.f32 %v5869, %v5559
    %v5874 = vmul.f32 %v5869, %v5560
    %v5875 = vmul.f32 %v5869, %v5561
    %v5882 = vrot.slane %v5870, 2
    %v5883 = vrot.slane %v5871, 2
    %v5884 = vsel %vm279, %v5882, %v5883
    %v5885 = vrot.slane %v5872, 2
    %v5886 = vsel %vm279, %v5883, %v5885
    %v5887 = vrot.slane %v5873, 2
    %v5888 = vrot.slane %v5874, 2
    %v5889 = vsel %vm279, %v5887, %v5888
    %v5890 = vrot.slane %v5875, 2
    %v5891 = vsel %vm279, %v5888, %v5890
    %5892 = vrot.lane.b32.xlu0 %v5884, 126
    %v5893 = vpop.permute.xlu0 %5892
    %5894 = vrot.lane.b32.xlu0 %v5886, 126
    %v5895 = vpop.permute.xlu0 %5894
    %5896 = vrot.lane.b32.xlu0 %v5885, 126
    %v5897 = vpop.permute.xlu0 %5896
    %5898 = vrot.lane.b32.xlu0 %v5889, 126
    %v5899 = vpop.permute.xlu0 %5898
    %5900 = vrot.lane.b32.xlu0 %v5891, 126
    %v5901 = vpop.permute.xlu0 %5900
    %5902 = vrot.lane.b32.xlu0 %v5890, 126
    %v5903 = vpop.permute.xlu0 %5902
    %v5910 = vadd.f32 %v5862, %v5893
    %v5911 = vadd.f32 %v5863, %v5895
    %v5912 = vadd.f32 %v5864, %v5897
    %v5913 = vadd.f32 %v5865, %v5899
    %v5914 = vadd.f32 %v5866, %v5901
    %v5915 = vadd.f32 %v5867, %v5903
    %v5916 = vld [vmem:[%s1291] sm:$0xff]
    %v5917 = vld [vmem:[%s1291 + $0x8] sm:$0xff]
    %v5918 = vld [vmem:[%s1291 + $0x10] sm:$0xf]
    %v5919 = vld [vmem:[%s1291 + $0x60] sm:$0xff]
    %v5920 = vld [vmem:[%s1291 + $0x68] sm:$0xff]
    %v5921 = vld [vmem:[%s1291 + $0x70] sm:$0xf]
    %s5922 = sld [smem:[#allocation8 + $0x87]]
    %v5923 = vstv %s5922
    %v5924 = vmul.f32 %v5923, %v5916
    %v5925 = vmul.f32 %v5923, %v5917
    %v5926 = vmul.f32 %v5923, %v5918
    %v5927 = vmul.f32 %v5923, %v5919
    %v5928 = vmul.f32 %v5923, %v5920
    %v5929 = vmul.f32 %v5923, %v5921
    %v5930 = vadd.f32 %v5910, %v5924
    %v5931 = vadd.f32 %v5911, %v5925
    %v5932 = vadd.f32 %v5912, %v5926
    %v5933 = vadd.f32 %v5913, %v5927
    %v5934 = vadd.f32 %v5914, %v5928
    %v5935 = vadd.f32 %v5915, %v5929
    %s5936 = sld [smem:[#allocation8 + $0x8a]]
    %v5937 = vstv %s5936
    %v5938 = vmul.f32 %v5937, %v5916
    %v5939 = vmul.f32 %v5937, %v5917
    %v5940 = vmul.f32 %v5937, %v5918
    %v5941 = vmul.f32 %v5937, %v5919
    %v5942 = vmul.f32 %v5937, %v5920
    %v5943 = vmul.f32 %v5937, %v5921
    %v5950 = vrot.slane %v5938, 1
    %v5951 = vrot.slane %v5939, 1
    %v5952 = vsel %vm242, %v5950, %v5951
    %v5953 = vrot.slane %v5940, 1
    %v5954 = vsel %vm242, %v5951, %v5953
    %v5955 = vrot.slane %v5941, 1
    %v5956 = vrot.slane %v5942, 1
    %v5957 = vsel %vm242, %v5955, %v5956
    %v5958 = vrot.slane %v5943, 1
    %v5959 = vsel %vm242, %v5956, %v5958
    %v5966 = vadd.f32 %v5930, %v5952
    %v5967 = vadd.f32 %v5931, %v5954
    %v5968 = vadd.f32 %v5932, %v5953
    %v5969 = vadd.f32 %v5933, %v5957
    %v5970 = vadd.f32 %v5934, %v5959
    %v5971 = vadd.f32 %v5935, %v5958
    %s5972 = sld [smem:[#allocation8 + $0x8d]]
    %v5973 = vstv %s5972
    %v5974 = vmul.f32 %v5973, %v5916
    %v5975 = vmul.f32 %v5973, %v5917
    %v5976 = vmul.f32 %v5973, %v5918
    %v5977 = vmul.f32 %v5973, %v5919
    %v5978 = vmul.f32 %v5973, %v5920
    %v5979 = vmul.f32 %v5973, %v5921
    %v5986 = vrot.slane %v5974, 2
    %v5987 = vrot.slane %v5975, 2
    %v5988 = vsel %vm279, %v5986, %v5987
    %v5989 = vrot.slane %v5976, 2
    %v5990 = vsel %vm279, %v5987, %v5989
    %v5991 = vrot.slane %v5977, 2
    %v5992 = vrot.slane %v5978, 2
    %v5993 = vsel %vm279, %v5991, %v5992
    %v5994 = vrot.slane %v5979, 2
    %v5995 = vsel %vm279, %v5992, %v5994
    %v6002 = vadd.f32 %v5966, %v5988
    %v6003 = vadd.f32 %v5967, %v5990
    %v6004 = vadd.f32 %v5968, %v5989
    %v6005 = vadd.f32 %v5969, %v5993
    %v6006 = vadd.f32 %v5970, %v5995
    %v6007 = vadd.f32 %v5971, %v5994
    %s6008 = sld [smem:[#allocation8 + $0x88]]
    %v6009 = vstv %s6008
    %v6010 = vmul.f32 %v6009, %v5916
    %v6011 = vmul.f32 %v6009, %v5917
    %v6012 = vmul.f32 %v6009, %v5918
    %v6013 = vmul.f32 %v6009, %v5919
    %v6014 = vmul.f32 %v6009, %v5920
    %v6015 = vmul.f32 %v6009, %v5921
    %6022 = vrot.lane.b32.xlu0 %v6010, 127
    %v6023 = vpop.permute.xlu0 %6022
    %6024 = vrot.lane.b32.xlu0 %v6011, 127
    %v6025 = vpop.permute.xlu0 %6024
    %6026 = vrot.lane.b32.xlu0 %v6012, 127
    %v6027 = vpop.permute.xlu0 %6026
    %6028 = vrot.lane.b32.xlu0 %v6013, 127
    %v6029 = vpop.permute.xlu0 %6028
    %6030 = vrot.lane.b32.xlu0 %v6014, 127
    %v6031 = vpop.permute.xlu0 %6030
    %6032 = vrot.lane.b32.xlu0 %v6015, 127
    %v6033 = vpop.permute.xlu0 %6032
    %v6040 = vadd.f32 %v6002, %v6023
    %v6041 = vadd.f32 %v6003, %v6025
    %v6042 = vadd.f32 %v6004, %v6027
    %v6043 = vadd.f32 %v6005, %v6029
    %v6044 = vadd.f32 %v6006, %v6031
    %v6045 = vadd.f32 %v6007, %v6033
    %s6046 = sld [smem:[#allocation8 + $0x8b]]
    %v6047 = vstv %s6046
    %v6048 = vmul.f32 %v6047, %v5916
    %v6049 = vmul.f32 %v6047, %v5917
    %v6050 = vmul.f32 %v6047, %v5918
    %v6051 = vmul.f32 %v6047, %v5919
    %v6052 = vmul.f32 %v6047, %v5920
    %v6053 = vmul.f32 %v6047, %v5921
    %v6060 = vrot.slane %v6048, 1
    %v6061 = vrot.slane %v6049, 1
    %v6062 = vsel %vm242, %v6060, %v6061
    %v6063 = vrot.slane %v6050, 1
    %v6064 = vsel %vm242, %v6061, %v6063
    %v6065 = vrot.slane %v6051, 1
    %v6066 = vrot.slane %v6052, 1
    %v6067 = vsel %vm242, %v6065, %v6066
    %v6068 = vrot.slane %v6053, 1
    %v6069 = vsel %vm242, %v6066, %v6068
    %6070 = vrot.lane.b32.xlu0 %v6062, 127
    %v6071 = vpop.permute.xlu0 %6070
    %6072 = vrot.lane.b32.xlu0 %v6064, 127
    %v6073 = vpop.permute.xlu0 %6072
    %6074 = vrot.lane.b32.xlu0 %v6063, 127
    %v6075 = vpop.permute.xlu0 %6074
    %6076 = vrot.lane.b32.xlu0 %v6067, 127
    %v6077 = vpop.permute.xlu0 %6076
    %6078 = vrot.lane.b32.xlu0 %v6069, 127
    %v6079 = vpop.permute.xlu0 %6078
    %6080 = vrot.lane.b32.xlu0 %v6068, 127
    %v6081 = vpop.permute.xlu0 %6080
    %v6088 = vadd.f32 %v6040, %v6071
    %v6089 = vadd.f32 %v6041, %v6073
    %v6090 = vadd.f32 %v6042, %v6075
    %v6091 = vadd.f32 %v6043, %v6077
    %v6092 = vadd.f32 %v6044, %v6079
    %v6093 = vadd.f32 %v6045, %v6081
    %s6094 = sld [smem:[#allocation8 + $0x8e]]
    %v6095 = vstv %s6094
    %v6096 = vmul.f32 %v6095, %v5916
    %v6097 = vmul.f32 %v6095, %v5917
    %v6098 = vmul.f32 %v6095, %v5918
    %v6099 = vmul.f32 %v6095, %v5919
    %v6100 = vmul.f32 %v6095, %v5920
    %v6101 = vmul.f32 %v6095, %v5921
    %v6108 = vrot.slane %v6096, 2
    %v6109 = vrot.slane %v6097, 2
    %v6110 = vsel %vm279, %v6108, %v6109
    %v6111 = vrot.slane %v6098, 2
    %v6112 = vsel %vm279, %v6109, %v6111
    %v6113 = vrot.slane %v6099, 2
    %v6114 = vrot.slane %v6100, 2
    %v6115 = vsel %vm279, %v6113, %v6114
    %v6116 = vrot.slane %v6101, 2
    %v6117 = vsel %vm279, %v6114, %v6116
    %6118 = vrot.lane.b32.xlu0 %v6110, 127
    %v6119 = vpop.permute.xlu0 %6118
    %6120 = vrot.lane.b32.xlu0 %v6112, 127
    %v6121 = vpop.permute.xlu0 %6120
    %6122 = vrot.lane.b32.xlu0 %v6111, 127
    %v6123 = vpop.permute.xlu0 %6122
    %6124 = vrot.lane.b32.xlu0 %v6115, 127
    %v6125 = vpop.permute.xlu0 %6124
    %6126 = vrot.lane.b32.xlu0 %v6117, 127
    %v6127 = vpop.permute.xlu0 %6126
    %6128 = vrot.lane.b32.xlu0 %v6116, 127
    %v6129 = vpop.permute.xlu0 %6128
    %v6136 = vadd.f32 %v6088, %v6119
    %v6137 = vadd.f32 %v6089, %v6121
    %v6138 = vadd.f32 %v6090, %v6123
    %v6139 = vadd.f32 %v6091, %v6125
    %v6140 = vadd.f32 %v6092, %v6127
    %v6141 = vadd.f32 %v6093, %v6129
    %s6142 = sld [smem:[#allocation8 + $0x89]]
    %v6143 = vstv %s6142
    %v6144 = vmul.f32 %v6143, %v5916
    %v6145 = vmul.f32 %v6143, %v5917
    %v6146 = vmul.f32 %v6143, %v5918
    %v6147 = vmul.f32 %v6143, %v5919
    %v6148 = vmul.f32 %v6143, %v5920
    %v6149 = vmul.f32 %v6143, %v5921
    %6156 = vrot.lane.b32.xlu0 %v6144, 126
    %v6157 = vpop.permute.xlu0 %6156
    %6158 = vrot.lane.b32.xlu0 %v6145, 126
    %v6159 = vpop.permute.xlu0 %6158
    %6160 = vrot.lane.b32.xlu0 %v6146, 126
    %v6161 = vpop.permute.xlu0 %6160
    %6162 = vrot.lane.b32.xlu0 %v6147, 126
    %v6163 = vpop.permute.xlu0 %6162
    %6164 = vrot.lane.b32.xlu0 %v6148, 126
    %v6165 = vpop.permute.xlu0 %6164
    %6166 = vrot.lane.b32.xlu0 %v6149, 126
    %v6167 = vpop.permute.xlu0 %6166
    %v6174 = vadd.f32 %v6136, %v6157
    %v6175 = vadd.f32 %v6137, %v6159
    %v6176 = vadd.f32 %v6138, %v6161
    %v6177 = vadd.f32 %v6139, %v6163
    %v6178 = vadd.f32 %v6140, %v6165
    %v6179 = vadd.f32 %v6141, %v6167
    %s6180 = sld [smem:[#allocation8 + $0x8c]]
    %v6181 = vstv %s6180
    %v6182 = vmul.f32 %v6181, %v5916
    %v6183 = vmul.f32 %v6181, %v5917
    %v6184 = vmul.f32 %v6181, %v5918
    %v6185 = vmul.f32 %v6181, %v5919
    %v6186 = vmul.f32 %v6181, %v5920
    %v6187 = vmul.f32 %v6181, %v5921
    %v6194 = vrot.slane %v6182, 1
    %v6195 = vrot.slane %v6183, 1
    %v6196 = vsel %vm242, %v6194, %v6195
    %v6197 = vrot.slane %v6184, 1
    %v6198 = vsel %vm242, %v6195, %v6197
    %v6199 = vrot.slane %v6185, 1
    %v6200 = vrot.slane %v6186, 1
    %v6201 = vsel %vm242, %v6199, %v6200
    %v6202 = vrot.slane %v6187, 1
    %v6203 = vsel %vm242, %v6200, %v6202
    %6204 = vrot.lane.b32.xlu0 %v6196, 126
    %v6205 = vpop.permute.xlu0 %6204
    %6206 = vrot.lane.b32.xlu0 %v6198, 126
    %v6207 = vpop.permute.xlu0 %6206
    %6208 = vrot.lane.b32.xlu0 %v6197, 126
    %v6209 = vpop.permute.xlu0 %6208
    %6210 = vrot.lane.b32.xlu0 %v6201, 126
    %v6211 = vpop.permute.xlu0 %6210
    %6212 = vrot.lane.b32.xlu0 %v6203, 126
    %v6213 = vpop.permute.xlu0 %6212
    %6214 = vrot.lane.b32.xlu0 %v6202, 126
    %v6215 = vpop.permute.xlu0 %6214
    %v6222 = vadd.f32 %v6174, %v6205
    %v6223 = vadd.f32 %v6175, %v6207
    %v6224 = vadd.f32 %v6176, %v6209
    %v6225 = vadd.f32 %v6177, %v6211
    %v6226 = vadd.f32 %v6178, %v6213
    %v6227 = vadd.f32 %v6179, %v6215
    %s6228 = sld [smem:[#allocation8 + $0x8f]]
    %v6229 = vstv %s6228
    %v6230 = vmul.f32 %v6229, %v5916
    %v6231 = vmul.f32 %v6229, %v5917
    %v6232 = vmul.f32 %v6229, %v5918
    %v6233 = vmul.f32 %v6229, %v5919
    %v6234 = vmul.f32 %v6229, %v5920
    %v6235 = vmul.f32 %v6229, %v5921
    %v6242 = vrot.slane %v6230, 2
    %v6243 = vrot.slane %v6231, 2
    %v6244 = vsel %vm279, %v6242, %v6243
    %v6245 = vrot.slane %v6232, 2
    %v6246 = vsel %vm279, %v6243, %v6245
    %v6247 = vrot.slane %v6233, 2
    %v6248 = vrot.slane %v6234, 2
    %v6249 = vsel %vm279, %v6247, %v6248
    %v6250 = vrot.slane %v6235, 2
    %v6251 = vsel %vm279, %v6248, %v6250
    %6252 = vrot.lane.b32.xlu0 %v6244, 126
    %v6253 = vpop.permute.xlu0 %6252
    %6254 = vrot.lane.b32.xlu0 %v6246, 126
    %v6255 = vpop.permute.xlu0 %6254
    %6256 = vrot.lane.b32.xlu0 %v6245, 126
    %v6257 = vpop.permute.xlu0 %6256
    %6258 = vrot.lane.b32.xlu0 %v6249, 126
    %v6259 = vpop.permute.xlu0 %6258
    %6260 = vrot.lane.b32.xlu0 %v6251, 126
    %v6261 = vpop.permute.xlu0 %6260
    %6262 = vrot.lane.b32.xlu0 %v6250, 126
    %v6263 = vpop.permute.xlu0 %6262
    %v6270 = vadd.f32 %v6222, %v6253
    %v6271 = vadd.f32 %v6223, %v6255
    %v6272 = vadd.f32 %v6224, %v6257
    %v6273 = vadd.f32 %v6225, %v6259
    %v6274 = vadd.f32 %v6226, %v6261
    %v6275 = vadd.f32 %v6227, %v6263
    %v6276 = vsel %vm1652, %v6270, 0.0
    %v6277 = vsel %vm1652, %v6271, 0.0
    %v6278 = vadd.f32 %v6276, %v6277
    %v6279 = vsel %vm1656, %v6272, 0.0
    %v6280 = vadd.f32 %v6278, %v6279
    %v6281 = vsel %vm1652, %v6273, 0.0
    %v6282 = vadd.f32 %v6280, %v6281
    %v6283 = vsel %vm1652, %v6274, 0.0
    %v6284 = vadd.f32 %v6282, %v6283
    %v6285 = vsel %vm1656, %v6275, 0.0
    %v6286 = vadd.f32 %v6284, %v6285
    %6287 = vadd.xlane.f32.xlu0 %v6286
    %v6288 = vpop.xlane.xlu0 %6287
    %v6289 = vrot.slane %v6288, 4
    %v6290 = vadd.f32 %v6288, %v6289
    %v6291 = vrot.slane %v6290, 2
    %v6292 = vadd.f32 %v6290, %v6291
    %v6293 = vrot.slane %v6292, 1
    %v6294 = vadd.f32 %v6292, %v6293
    %s6295 = vtos %v6294
    %s6296 = smul.f32 %s6295, 0.0015432099
    %v6297 = vstv %s6296
    %v6298 = vsub.f32 %v6270, %v6297
    %v6299 = vsub.f32 %v6271, %v6297
    %v6300 = vsub.f32 %v6272, %v6297
    %v6301 = vsub.f32 %v6273, %v6297
    %v6302 = vsub.f32 %v6274, %v6297
    %v6303 = vsub.f32 %v6275, %v6297
    %v6304 = vmul.f32 %v6298, %v6298
    %v6305 = vmul.f32 %v6299, %v6299
    %v6306 = vmul.f32 %v6300, %v6300
    %v6307 = vmul.f32 %v6301, %v6301
    %v6308 = vmul.f32 %v6302, %v6302
    %v6309 = vmul.f32 %v6303, %v6303
    %v6310 = vsel %vm1652, %v6304, 0.0
    %v6311 = vsel %vm1652, %v6305, 0.0
    %v6312 = vadd.f32 %v6310, %v6311
    %v6313 = vsel %vm1656, %v6306, 0.0
    %v6314 = vadd.f32 %v6312, %v6313
    %v6315 = vsel %vm1652, %v6307, 0.0
    %v6316 = vadd.f32 %v6314, %v6315
    %v6317 = vsel %vm1652, %v6308, 0.0
    %v6318 = vadd.f32 %v6316, %v6317
    %v6319 = vsel %vm1656, %v6309, 0.0
    %v6320 = vadd.f32 %v6318, %v6319
    %6321 = vadd.xlane.f32.xlu0 %v6320
    %v6322 = vpop.xlane.xlu0 %6321
    %v6323 = vrot.slane %v6322, 4
    %v6324 = vadd.f32 %v6322, %v6323
    %v6325 = vrot.slane %v6324, 2
    %v6326 = vadd.f32 %v6324, %v6325
    %v6327 = vrot.slane %v6326, 1
    %v6328 = vadd.f32 %v6326, %v6327
    %s6329 = vtos %v6328
    %s6330 = smul.f32 %s6329, 0.0015432099
    %s6331 = sadd.f32 %s6330, 1e-05
    %v6332 = vstv %s6331
    %v6333 = vrsqrt.pop %v6332
    %s6334 = vtos %v6333
    %s6335 = sld [smem:[#allocation9 + $0x3]]
    %s6336 = smul.f32 %s6334, %s6335
    %v6337 = vstv %s6336
    %v6338 = vmul.f32 %v6298, %v6337
    %v6339 = vmul.f32 %v6299, %v6337
    %v6340 = vmul.f32 %v6300, %v6337
    %v6341 = vmul.f32 %v6301, %v6337
    %v6342 = vmul.f32 %v6302, %v6337
    %v6343 = vmul.f32 %v6303, %v6337
    %s6344 = sld [smem:[#allocation11 + $0x3]]
    %v6345 = vstv %s6344
    %v6346 = vadd.f32 %v6338, %v6345
    %v6347 = vadd.f32 %v6339, %v6345
    %v6348 = vadd.f32 %v6340, %v6345
    %v6349 = vadd.f32 %v6341, %v6345
    %v6350 = vadd.f32 %v6342, %v6345
    %v6351 = vadd.f32 %v6343, %v6345
    %vm6352 = vcmp.ge.f32.partialorder %v6346, 0.0
    %vm6353 = vcmp.ge.f32.partialorder %v6347, 0.0
    %vm6354 = vcmp.ge.f32.partialorder %v6348, 0.0
    %vm6355 = vcmp.ge.f32.partialorder %v6349, 0.0
    %vm6356 = vcmp.ge.f32.partialorder %v6350, 0.0
    %vm6357 = vcmp.ge.f32.partialorder %v6351, 0.0
    %v6358 = vmul.f32 %v6346, 0.01
    %v6359 = vmul.f32 %v6347, 0.01
    %v6360 = vmul.f32 %v6348, 0.01
    %v6361 = vmul.f32 %v6349, 0.01
    %v6362 = vmul.f32 %v6350, 0.01
    %v6363 = vmul.f32 %v6351, 0.01
    %v6364 = vsel %vm6352, %v6346, %v6358
    %v6365 = vsel %vm6353, %v6347, %v6359
    %v6366 = vsel %vm6354, %v6348, %v6360
    %v6367 = vsel %vm6355, %v6349, %v6361
    %v6368 = vsel %vm6356, %v6350, %v6362
    %v6369 = vsel %vm6357, %v6351, %v6363
    %s6370 = scalar_lea.vmem %s5, 72
    %6371 = vst.msk [vmem:[%s6370] sm:$0xff] %vm1652, %v6364
    %6372 = vst.msk [vmem:[%s6370 + $0x8] sm:$0xff] %vm1652, %v6365
    %6373 = vst.msk [vmem:[%s6370 + $0x10] sm:$0x3] %vm1656, %v6366
    %6374 = vst.msk [vmem:[%s6370 + $0x60] sm:$0xff] %vm1652, %v6367
    %6375 = vst.msk [vmem:[%s6370 + $0x68] sm:$0xff] %vm1652, %v6368
    %6376 = vst.msk [vmem:[%s6370 + $0x70] sm:$0x3] %vm1656, %v6369
    // Predicated region
    $region42: #{tpu_custom_call.1} parent=1 // pred_check
      _
    $region43: #{tpu_custom_call.1} parent=1 // pred_check_branch
      %6378 = sbr.rel (0) target = $region45
    $region44: #{tpu_custom_call.1} parent=1 // pred_region
      _
    $region45: #{tpu_custom_call.1} parent=1 // pred_fallthru
      _
    // Predicated region
    $region46: #{tpu_custom_call.1} parent=1 // pred_check
      _
    $region47: #{tpu_custom_call.1} parent=1 // pred_check_branch
      %6380 = sbr.rel (0) target = $region49
    $region48: #{tpu_custom_call.1} parent=1 // pred_region
      _
    $region49: #{tpu_custom_call.1} parent=1 // pred_fallthru
      _
    %6381 = vsyncpa [#allocation4], 1
    %6382 = vsyncpa [#allocation7], 1
    %6383 = vsyncpa [#allocation5], 1
    %6384 = vsyncpa [#allocation10], 1

</llo_original>
